<compile_context>
chip_gen: v6e
topology: v6e:2x2x1
jax: 0.10.0
libtpu: 0.0.40
codegen_flags: <defaults>
</compile_context>

<pallas_src>
import jax
import jax.numpy as jnp
import numpy as np
from jax import lax
from jax.experimental import pallas as pl
from jax.experimental.pallas import tpu as pltpu


# (dy, kh) taps per output-row parity, in zero-padded input coordinates:
# out[2*qy + py, ...] reads padded input row qy + dy with kernel row kh.
_ROW_TAPS = (((1, 1), (0, 3)),   # py == 0 -> kh in {1, 3}
             ((1, 2), (2, 0)))   # py == 1 -> kh in {2, 0}
_COL_TAPS = _ROW_TAPS            # identical structure along width
_PHASES = ((0, 0), (0, 1), (1, 0), (1, 1))


def _make_kernel(H, W, C_out, eps=1e-5):
    Wp = W + 2                        # padded row length (1 zero column each side)
    HW2 = H * Wp                      # rows per phase tile (incl. 2 junk cols/row)
    inv_count = 1.0 / float(4 * H * W)  # real spatial size OH*OW of the output

    def kernel(x_ref, w_ref, g_ref, b_ref, mask_ref, o_ref):
        # x_ref   : (1, P2, C_in)       bf16  flattened zero-padded image
        # w_ref   : (4, 4, C_in, C_out) bf16  ConvTranspose weight, (kh, kw) leading
        # g_ref   : (1, C_out)          f32   instance-norm gamma
        # b_ref   : (1, C_out)          f32   instance-norm beta
        # mask_ref: (HW2, 1)            f32   1.0 real columns, 0.0 junk columns
        # o_ref   : (1, 4, HW2, C_out)  f32   per-phase normalized + ReLU output
        valid = mask_ref[...]                                     # (HW2, 1)

        # --- ConvTranspose: 4 phases x 4 shifted bf16 matmuls, f32 accumulation.
        for ph, (py, px) in enumerate(_PHASES):
            acc = jnp.zeros((HW2, C_out), jnp.float32)
            for dy, kh in _ROW_TAPS[py]:
                for dx, kw in _COL_TAPS[px]:
                    xs = x_ref[0, pl.ds(dy * Wp + dx, HW2), :]    # (HW2, C_in) bf16
                    acc = acc + jnp.dot(xs, w_ref[kh, kw],
                                        preferred_element_type=jnp.float32)
            # Zero the junk columns and stash the raw activations in the output
            # block (reused as the accumulator -- no extra VMEM scratch).
            o_ref[0, ph] = acc * valid

        # --- One-pass InstanceNorm statistics (biased variance) over all phases.
        s = jnp.zeros((1, C_out), jnp.float32)
        ss = jnp.zeros((1, C_out), jnp.float32)
        for ph in range(4):
            a = o_ref[0, ph]
            s = s + jnp.sum(a, axis=0, keepdims=True)
            ss = ss + jnp.sum(a * a, axis=0, keepdims=True)
        mean = s * inv_count
        var = ss * inv_count - mean * mean
        scale = g_ref[...] * lax.rsqrt(var + eps)                 # (1, C_out)
        shift = b_ref[...] - mean * scale

        # --- Affine + ReLU, written back in place over the raw activations.
        for ph in range(4):
            o_ref[0, ph] = jnp.maximum(o_ref[0, ph] * scale + shift, 0.0)

    return kernel


# ------------------------------ JAX wrapper -------------------------------- #
def unet_up_forward(x, skip_input, weight, gamma, beta):
    """x: (N, C_in, H, W), skip_input: (N, C_skip, 2H, 2W),
       weight: (C_in, C_out, 4, 4) [PyTorch ConvTranspose2d layout],
       gamma/beta: (C_out,).  Returns (N, C_out + C_skip, 2H, 2W) float32."""
    N, C_in, H, W = x.shape
    C_out = weight.shape[1]
    Wp = W + 2
    HW2 = H * Wp
    P2 = (H + 3) * Wp   # 1 top + 2 bottom pad rows keep every shifted slice in-bounds

    # Channel-last, zero-padded, flattened input in bf16 (MXU operand).
    x_nhwc = jnp.transpose(x, (0, 2, 3, 1))                        # (N, H, W, C_in)
    x_pad = jnp.pad(x_nhwc, ((0, 0), (1, 2), (1, 1), (0, 0)))      # (N, H+3, W+2, C_in)
    x_flat = x_pad.reshape(N, P2, C_in).astype(jnp.bfloat16)

    # Weight with kernel taps leading: w_k[kh, kw] = weight[:, :, kh, kw].
    w_k = jnp.transpose(weight, (2, 3, 0, 1)).astype(jnp.bfloat16)  # (4,4,C_in,C_out)

    g2 = gamma.reshape(1, C_out).astype(jnp.float32)
    b2 = beta.reshape(1, C_out).astype(jnp.float32)

    # 1.0 for real output columns, 0.0 for the 2 junk columns per flattened row.
    mask = ((jnp.arange(HW2) % Wp) < W).astype(jnp.float32).reshape(HW2, 1)

    # VMEM budget: double-buffered input/weight/output blocks + headroom,
    # clamped to [32 MiB, 48 MiB] so it stays under v7x's 64 MiB physical VMEM.
    need = 2 * (P2 * C_in * 2 + 16 * C_in * C_out * 2 + 4 * HW2 * C_out * 4) + (8 << 20)
    vmem_limit = int(min(max(need, 32 << 20), 48 << 20))

    out_phases = pl.pallas_call(
        _make_kernel(H, W, C_out),
        out_shape=jax.ShapeDtypeStruct((N, 4, HW2, C_out), jnp.float32),
        grid=(N,),
        in_specs=[
            pl.BlockSpec((1, P2, C_in), lambda n: (n, 0, 0)),
            pl.BlockSpec((4, 4, C_in, C_out), lambda n: (0, 0, 0, 0)),
            pl.BlockSpec((1, C_out), lambda n: (0, 0)),
            pl.BlockSpec((1, C_out), lambda n: (0, 0)),
            pl.BlockSpec((HW2, 1), lambda n: (0, 0)),
        ],
        out_specs=pl.BlockSpec((1, 4, HW2, C_out), lambda n: (n, 0, 0, 0)),
        compiler_params=pltpu.CompilerParams(
            dimension_semantics=("parallel",),
            vmem_limit_bytes=vmem_limit),
    )(x_flat, w_k, g2, b2, mask)

    # Interleave the 4 parity phases into NCHW and concat with skip (layout glue).
    y = out_phases.reshape(N, 2, 2, H, Wp, C_out)[:, :, :, :, :W, :]
    y = jnp.transpose(y, (0, 5, 3, 1, 4, 2)).reshape(N, C_out, 2 * H, 2 * W)
    return jnp.concatenate([y, skip_input.astype(y.dtype)], axis=1)


# ------------------------------- reference --------------------------------- #
def _reference(x, skip_input, weight, gamma, beta):
    # Same bf16 matmul operands as the kernel, f32 accumulation & norm math.
    xb = x.astype(jnp.bfloat16)
    wb = weight.astype(jnp.bfloat16)
    w_flip = jnp.transpose(wb[:, :, ::-1, ::-1], (1, 0, 2, 3))      # (O, I, 4, 4)
    y = lax.conv_general_dilated(
        xb, w_flip, window_strides=(1, 1), padding=((2, 2), (2, 2)),
        lhs_dilation=(2, 2), dimension_numbers=("NCHW", "OIHW", "NCHW"),
        preferred_element_type=jnp.float32)
    mean = jnp.mean(y, axis=(2, 3), keepdims=True)
    var = jnp.mean((y - mean) ** 2, axis=(2, 3), keepdims=True)
    y = (y - mean) * lax.rsqrt(var + 1e-5)
    y = y * gamma.reshape(1, -1, 1, 1) + beta.reshape(1, -1, 1, 1)
    y = jnp.maximum(y, 0.0)
    return jnp.concatenate([y, skip_input.astype(y.dtype)], axis=1)


# --------------------------------- main ------------------------------------ #
if __name__ == "__main__":
    key = jax.random.PRNGKey(0)
    k1, k2, k3 = jax.random.split(key, 3)

    N, C_in, H, W = 2, 4, 16, 16
    C_out, C_skip = 4, 4

    x = jax.random.normal(k1, (N, C_in, H, W), jnp.float32)
    skip = jax.random.normal(k2, (N, C_skip, 2 * H, 2 * W), jnp.float32)

    # PyTorch ConvTranspose2d weight layout (in, out, kH, kW); IN affine params.
    weight = 0.1 * jax.random.normal(k3, (C_in, C_out, 4, 4), jnp.float32)
    gamma = jnp.ones((C_out,), jnp.float32) * 1.1
    beta = jnp.full((C_out,), 0.05, jnp.float32)

    out = jax.block_until_ready(unet_up_forward(x, skip, weight, gamma, beta))
    ref = jax.block_until_ready(_reference(x, skip, weight, gamma, beta))

    assert out.shape == (N, C_out + C_skip, 2 * H, 2 * W), out.shape
    np.testing.assert_allclose(np.asarray(out), np.asarray(ref), rtol=2e-3, atol=2e-3)

    print("KERNEL_OK")
</pallas_src>

<mosaic_0001>
module attributes {stable_mosaic.version = 11 : i64} {
  func.func @kernel(%arg0: i32, %arg1: memref<1x342x4xbf16, #tpu.memory_space<vmem>>, %arg2: memref<4x4x4x4xbf16, #tpu.memory_space<vmem>>, %arg3: memref<1x4xf32, #tpu.memory_space<vmem>>, %arg4: memref<1x4xf32, #tpu.memory_space<vmem>>, %arg5: memref<288x1xf32, #tpu.memory_space<vmem>>, %arg6: memref<1x4x288x4xf32, #tpu.memory_space<vmem>>) attributes {dimension_semantics = [#tpu.dimension_semantics<parallel>], iteration_bounds = array<i64: 2>, scalar_prefetch = 0 : i64, scratch_operands = 0 : i64, tpu.core_type = #tpu.core_type<tc>, window_params = [{transform_indices = @transform_0, window_bounds = array<i64: 1, 342, 4>}, {pipeline_mode = #tpu.pipeline_mode<synchronous>, transform_indices = @transform_1, window_bounds = array<i64: 4, 4, 4, 4>}, {pipeline_mode = #tpu.pipeline_mode<synchronous>, transform_indices = @transform_2, window_bounds = array<i64: 1, 4>}, {pipeline_mode = #tpu.pipeline_mode<synchronous>, transform_indices = @transform_3, window_bounds = array<i64: 1, 4>}, {pipeline_mode = #tpu.pipeline_mode<synchronous>, transform_indices = @transform_4, window_bounds = array<i64: 288, 1>}, {transform_indices = @transform_5, window_bounds = array<i64: 1, 4, 288, 4>}]} {
    %c0 = arith.constant 0 : index
    %c0_0 = arith.constant 0 : index
    %0 = vector.load %arg5[%c0, %c0_0] : memref<288x1xf32, #tpu.memory_space<vmem>>, vector<288x1xf32>
    %cst = arith.constant 0.000000e+00 : f32
    %1 = vector.broadcast %cst : f32 to vector<288x4xf32>
    %c0_1 = arith.constant 0 : index
    %c19 = arith.constant 19 : index
    %c0_2 = arith.constant 0 : index
    %2 = vector.load %arg1[%c0_1, %c19, %c0_2] : memref<1x342x4xbf16, #tpu.memory_space<vmem>>, vector<1x288x4xbf16>
    %3 = vector.shape_cast %2 : vector<1x288x4xbf16> to vector<288x4xbf16>
    %c1 = arith.constant 1 : index
    %c1_3 = arith.constant 1 : index
    %c0_4 = arith.constant 0 : index
    %c0_5 = arith.constant 0 : index
    %4 = vector.load %arg2[%c1, %c1_3, %c0_4, %c0_5] : memref<4x4x4x4xbf16, #tpu.memory_space<vmem>>, vector<1x1x4x4xbf16>
    %5 = vector.shape_cast %4 : vector<1x1x4x4xbf16> to vector<4x4xbf16>
    %cst_6 = arith.constant dense<0.000000e+00> : vector<288x4xf32>
    %6 = tpu.matmul %3, %5, %cst_6 {dimension_numbers = #tpu.dot_dimension_numbers<[1], [0], [0], [1], [0, 0, 1, 1], [], []>} : vector<288x4xbf16>, vector<4x4xbf16>, vector<288x4xf32> -> vector<288x4xf32>
    %7 = arith.addf %1, %6 : vector<288x4xf32>
    %c0_7 = arith.constant 0 : index
    %c18 = arith.constant 18 : index
    %c0_8 = arith.constant 0 : index
    %8 = vector.load %arg1[%c0_7, %c18, %c0_8] : memref<1x342x4xbf16, #tpu.memory_space<vmem>>, vector<1x288x4xbf16>
    %9 = vector.shape_cast %8 : vector<1x288x4xbf16> to vector<288x4xbf16>
    %c1_9 = arith.constant 1 : index
    %c3 = arith.constant 3 : index
    %c0_10 = arith.constant 0 : index
    %c0_11 = arith.constant 0 : index
    %10 = vector.load %arg2[%c1_9, %c3, %c0_10, %c0_11] : memref<4x4x4x4xbf16, #tpu.memory_space<vmem>>, vector<1x1x4x4xbf16>
    %11 = vector.shape_cast %10 : vector<1x1x4x4xbf16> to vector<4x4xbf16>
    %cst_12 = arith.constant dense<0.000000e+00> : vector<288x4xf32>
    %12 = tpu.matmul %9, %11, %cst_12 {dimension_numbers = #tpu.dot_dimension_numbers<[1], [0], [0], [1], [0, 0, 1, 1], [], []>} : vector<288x4xbf16>, vector<4x4xbf16>, vector<288x4xf32> -> vector<288x4xf32>
    %13 = arith.addf %7, %12 : vector<288x4xf32>
    %c0_13 = arith.constant 0 : index
    %c1_14 = arith.constant 1 : index
    %c0_15 = arith.constant 0 : index
    %14 = vector.load %arg1[%c0_13, %c1_14, %c0_15] : memref<1x342x4xbf16, #tpu.memory_space<vmem>>, vector<1x288x4xbf16>
    %15 = vector.shape_cast %14 : vector<1x288x4xbf16> to vector<288x4xbf16>
    %c3_16 = arith.constant 3 : index
    %c1_17 = arith.constant 1 : index
    %c0_18 = arith.constant 0 : index
    %c0_19 = arith.constant 0 : index
    %16 = vector.load %arg2[%c3_16, %c1_17, %c0_18, %c0_19] : memref<4x4x4x4xbf16, #tpu.memory_space<vmem>>, vector<1x1x4x4xbf16>
    %17 = vector.shape_cast %16 : vector<1x1x4x4xbf16> to vector<4x4xbf16>
    %cst_20 = arith.constant dense<0.000000e+00> : vector<288x4xf32>
    %18 = tpu.matmul %15, %17, %cst_20 {dimension_numbers = #tpu.dot_dimension_numbers<[1], [0], [0], [1], [0, 0, 1, 1], [], []>} : vector<288x4xbf16>, vector<4x4xbf16>, vector<288x4xf32> -> vector<288x4xf32>
    %19 = arith.addf %13, %18 : vector<288x4xf32>
    %c0_21 = arith.constant 0 : index
    %c0_22 = arith.constant 0 : index
    %c0_23 = arith.constant 0 : index
    %20 = vector.load %arg1[%c0_21, %c0_22, %c0_23] : memref<1x342x4xbf16, #tpu.memory_space<vmem>>, vector<1x288x4xbf16>
    %21 = vector.shape_cast %20 : vector<1x288x4xbf16> to vector<288x4xbf16>
    %c3_24 = arith.constant 3 : index
    %c3_25 = arith.constant 3 : index
    %c0_26 = arith.constant 0 : index
    %c0_27 = arith.constant 0 : index
    %22 = vector.load %arg2[%c3_24, %c3_25, %c0_26, %c0_27] : memref<4x4x4x4xbf16, #tpu.memory_space<vmem>>, vector<1x1x4x4xbf16>
    %23 = vector.shape_cast %22 : vector<1x1x4x4xbf16> to vector<4x4xbf16>
    %cst_28 = arith.constant dense<0.000000e+00> : vector<288x4xf32>
    %24 = tpu.matmul %21, %23, %cst_28 {dimension_numbers = #tpu.dot_dimension_numbers<[1], [0], [0], [1], [0, 0, 1, 1], [], []>} : vector<288x4xbf16>, vector<4x4xbf16>, vector<288x4xf32> -> vector<288x4xf32>
    %25 = arith.addf %19, %24 : vector<288x4xf32>
    %26 = vector.broadcast %0 : vector<288x1xf32> to vector<288x4xf32>
    %27 = arith.mulf %25, %26 : vector<288x4xf32>
    %c0_29 = arith.constant 0 : index
    %c0_30 = arith.constant 0 : index
    %c0_31 = arith.constant 0 : index
    %c0_32 = arith.constant 0 : index
    %28 = vector.load %arg6[%c0_29, %c0_30, %c0_31, %c0_32] : memref<1x4x288x4xf32, #tpu.memory_space<vmem>>, vector<1x1x288x4xf32>
    %29 = vector.shape_cast %28 : vector<1x1x288x4xf32> to vector<288x4xf32>
    %30 = vector.shape_cast %27 : vector<288x4xf32> to vector<1x1x288x4xf32>
    tpu.vector_store %arg6[%c0_29, %c0_30, %c0_31, %c0_32], %30 {strides = array<i32>} : memref<1x4x288x4xf32, #tpu.memory_space<vmem>>, vector<1x1x288x4xf32>,
    %cst_33 = arith.constant 0.000000e+00 : f32
    %31 = vector.broadcast %cst_33 : f32 to vector<288x4xf32>
    %c0_34 = arith.constant 0 : index
    %c19_35 = arith.constant 19 : index
    %c0_36 = arith.constant 0 : index
    %32 = vector.load %arg1[%c0_34, %c19_35, %c0_36] : memref<1x342x4xbf16, #tpu.memory_space<vmem>>, vector<1x288x4xbf16>
    %33 = vector.shape_cast %32 : vector<1x288x4xbf16> to vector<288x4xbf16>
    %c1_37 = arith.constant 1 : index
    %c2 = arith.constant 2 : index
    %c0_38 = arith.constant 0 : index
    %c0_39 = arith.constant 0 : index
    %34 = vector.load %arg2[%c1_37, %c2, %c0_38, %c0_39] : memref<4x4x4x4xbf16, #tpu.memory_space<vmem>>, vector<1x1x4x4xbf16>
    %35 = vector.shape_cast %34 : vector<1x1x4x4xbf16> to vector<4x4xbf16>
    %cst_40 = arith.constant dense<0.000000e+00> : vector<288x4xf32>
    %36 = tpu.matmul %33, %35, %cst_40 {dimension_numbers = #tpu.dot_dimension_numbers<[1], [0], [0], [1], [0, 0, 1, 1], [], []>} : vector<288x4xbf16>, vector<4x4xbf16>, vector<288x4xf32> -> vector<288x4xf32>
    %37 = arith.addf %31, %36 : vector<288x4xf32>
    %c0_41 = arith.constant 0 : index
    %c20 = arith.constant 20 : index
    %c0_42 = arith.constant 0 : index
    %38 = vector.load %arg1[%c0_41, %c20, %c0_42] : memref<1x342x4xbf16, #tpu.memory_space<vmem>>, vector<1x288x4xbf16>
    %39 = vector.shape_cast %38 : vector<1x288x4xbf16> to vector<288x4xbf16>
    %c1_43 = arith.constant 1 : index
    %c0_44 = arith.constant 0 : index
    %c0_45 = arith.constant 0 : index
    %c0_46 = arith.constant 0 : index
    %40 = vector.load %arg2[%c1_43, %c0_44, %c0_45, %c0_46] : memref<4x4x4x4xbf16, #tpu.memory_space<vmem>>, vector<1x1x4x4xbf16>
    %41 = vector.shape_cast %40 : vector<1x1x4x4xbf16> to vector<4x4xbf16>
    %cst_47 = arith.constant dense<0.000000e+00> : vector<288x4xf32>
    %42 = tpu.matmul %39, %41, %cst_47 {dimension_numbers = #tpu.dot_dimension_numbers<[1], [0], [0], [1], [0, 0, 1, 1], [], []>} : vector<288x4xbf16>, vector<4x4xbf16>, vector<288x4xf32> -> vector<288x4xf32>
    %43 = arith.addf %37, %42 : vector<288x4xf32>
    %c0_48 = arith.constant 0 : index
    %c1_49 = arith.constant 1 : index
    %c0_50 = arith.constant 0 : index
    %44 = vector.load %arg1[%c0_48, %c1_49, %c0_50] : memref<1x342x4xbf16, #tpu.memory_space<vmem>>, vector<1x288x4xbf16>
    %45 = vector.shape_cast %44 : vector<1x288x4xbf16> to vector<288x4xbf16>
    %c3_51 = arith.constant 3 : index
    %c2_52 = arith.constant 2 : index
    %c0_53 = arith.constant 0 : index
    %c0_54 = arith.constant 0 : index
    %46 = vector.load %arg2[%c3_51, %c2_52, %c0_53, %c0_54] : memref<4x4x4x4xbf16, #tpu.memory_space<vmem>>, vector<1x1x4x4xbf16>
    %47 = vector.shape_cast %46 : vector<1x1x4x4xbf16> to vector<4x4xbf16>
    %cst_55 = arith.constant dense<0.000000e+00> : vector<288x4xf32>
    %48 = tpu.matmul %45, %47, %cst_55 {dimension_numbers = #tpu.dot_dimension_numbers<[1], [0], [0], [1], [0, 0, 1, 1], [], []>} : vector<288x4xbf16>, vector<4x4xbf16>, vector<288x4xf32> -> vector<288x4xf32>
    %49 = arith.addf %43, %48 : vector<288x4xf32>
    %c0_56 = arith.constant 0 : index
    %c2_57 = arith.constant 2 : index
    %c0_58 = arith.constant 0 : index
    %50 = vector.load %arg1[%c0_56, %c2_57, %c0_58] : memref<1x342x4xbf16, #tpu.memory_space<vmem>>, vector<1x288x4xbf16>
    %51 = vector.shape_cast %50 : vector<1x288x4xbf16> to vector<288x4xbf16>
    %c3_59 = arith.constant 3 : index
    %c0_60 = arith.constant 0 : index
    %c0_61 = arith.constant 0 : index
    %c0_62 = arith.constant 0 : index
    %52 = vector.load %arg2[%c3_59, %c0_60, %c0_61, %c0_62] : memref<4x4x4x4xbf16, #tpu.memory_space<vmem>>, vector<1x1x4x4xbf16>
    %53 = vector.shape_cast %52 : vector<1x1x4x4xbf16> to vector<4x4xbf16>
    %cst_63 = arith.constant dense<0.000000e+00> : vector<288x4xf32>
    %54 = tpu.matmul %51, %53, %cst_63 {dimension_numbers = #tpu.dot_dimension_numbers<[1], [0], [0], [1], [0, 0, 1, 1], [], []>} : vector<288x4xbf16>, vector<4x4xbf16>, vector<288x4xf32> -> vector<288x4xf32>
    %55 = arith.addf %49, %54 : vector<288x4xf32>
    %56 = vector.broadcast %0 : vector<288x1xf32> to vector<288x4xf32>
    %57 = arith.mulf %55, %56 : vector<288x4xf32>
    %c0_64 = arith.constant 0 : index
    %c1_65 = arith.constant 1 : index
    %c0_66 = arith.constant 0 : index
    %c0_67 = arith.constant 0 : index
    %58 = vector.load %arg6[%c0_64, %c1_65, %c0_66, %c0_67] : memref<1x4x288x4xf32, #tpu.memory_space<vmem>>, vector<1x1x288x4xf32>
    %59 = vector.shape_cast %58 : vector<1x1x288x4xf32> to vector<288x4xf32>
    %60 = vector.shape_cast %57 : vector<288x4xf32> to vector<1x1x288x4xf32>
    tpu.vector_store %arg6[%c0_64, %c1_65, %c0_66, %c0_67], %60 {strides = array<i32>} : memref<1x4x288x4xf32, #tpu.memory_space<vmem>>, vector<1x1x288x4xf32>,
    %cst_68 = arith.constant 0.000000e+00 : f32
    %61 = vector.broadcast %cst_68 : f32 to vector<288x4xf32>
    %c0_69 = arith.constant 0 : index
    %c19_70 = arith.constant 19 : index
    %c0_71 = arith.constant 0 : index
    %62 = vector.load %arg1[%c0_69, %c19_70, %c0_71] : memref<1x342x4xbf16, #tpu.memory_space<vmem>>, vector<1x288x4xbf16>
    %63 = vector.shape_cast %62 : vector<1x288x4xbf16> to vector<288x4xbf16>
    %c2_72 = arith.constant 2 : index
    %c1_73 = arith.constant 1 : index
    %c0_74 = arith.constant 0 : index
    %c0_75 = arith.constant 0 : index
    %64 = vector.load %arg2[%c2_72, %c1_73, %c0_74, %c0_75] : memref<4x4x4x4xbf16, #tpu.memory_space<vmem>>, vector<1x1x4x4xbf16>
    %65 = vector.shape_cast %64 : vector<1x1x4x4xbf16> to vector<4x4xbf16>
    %cst_76 = arith.constant dense<0.000000e+00> : vector<288x4xf32>
    %66 = tpu.matmul %63, %65, %cst_76 {dimension_numbers = #tpu.dot_dimension_numbers<[1], [0], [0], [1], [0, 0, 1, 1], [], []>} : vector<288x4xbf16>, vector<4x4xbf16>, vector<288x4xf32> -> vector<288x4xf32>
    %67 = arith.addf %61, %66 : vector<288x4xf32>
    %c0_77 = arith.constant 0 : index
    %c18_78 = arith.constant 18 : index
    %c0_79 = arith.constant 0 : index
    %68 = vector.load %arg1[%c0_77, %c18_78, %c0_79] : memref<1x342x4xbf16, #tpu.memory_space<vmem>>, vector<1x288x4xbf16>
    %69 = vector.shape_cast %68 : vector<1x288x4xbf16> to vector<288x4xbf16>
    %c2_80 = arith.constant 2 : index
    %c3_81 = arith.constant 3 : index
    %c0_82 = arith.constant 0 : index
    %c0_83 = arith.constant 0 : index
    %70 = vector.load %arg2[%c2_80, %c3_81, %c0_82, %c0_83] : memref<4x4x4x4xbf16, #tpu.memory_space<vmem>>, vector<1x1x4x4xbf16>
    %71 = vector.shape_cast %70 : vector<1x1x4x4xbf16> to vector<4x4xbf16>
    %cst_84 = arith.constant dense<0.000000e+00> : vector<288x4xf32>
    %72 = tpu.matmul %69, %71, %cst_84 {dimension_numbers = #tpu.dot_dimension_numbers<[1], [0], [0], [1], [0, 0, 1, 1], [], []>} : vector<288x4xbf16>, vector<4x4xbf16>, vector<288x4xf32> -> vector<288x4xf32>
    %73 = arith.addf %67, %72 : vector<288x4xf32>
    %c0_85 = arith.constant 0 : index
    %c37 = arith.constant 37 : index
    %c0_86 = arith.constant 0 : index
    %74 = vector.load %arg1[%c0_85, %c37, %c0_86] : memref<1x342x4xbf16, #tpu.memory_space<vmem>>, vector<1x288x4xbf16>
    %75 = vector.shape_cast %74 : vector<1x288x4xbf16> to vector<288x4xbf16>
    %c0_87 = arith.constant 0 : index
    %c1_88 = arith.constant 1 : index
    %c0_89 = arith.constant 0 : index
    %c0_90 = arith.constant 0 : index
    %76 = vector.load %arg2[%c0_87, %c1_88, %c0_89, %c0_90] : memref<4x4x4x4xbf16, #tpu.memory_space<vmem>>, vector<1x1x4x4xbf16>
    %77 = vector.shape_cast %76 : vector<1x1x4x4xbf16> to vector<4x4xbf16>
    %cst_91 = arith.constant dense<0.000000e+00> : vector<288x4xf32>
    %78 = tpu.matmul %75, %77, %cst_91 {dimension_numbers = #tpu.dot_dimension_numbers<[1], [0], [0], [1], [0, 0, 1, 1], [], []>} : vector<288x4xbf16>, vector<4x4xbf16>, vector<288x4xf32> -> vector<288x4xf32>
    %79 = arith.addf %73, %78 : vector<288x4xf32>
    %c0_92 = arith.constant 0 : index
    %c36 = arith.constant 36 : index
    %c0_93 = arith.constant 0 : index
    %80 = vector.load %arg1[%c0_92, %c36, %c0_93] : memref<1x342x4xbf16, #tpu.memory_space<vmem>>, vector<1x288x4xbf16>
    %81 = vector.shape_cast %80 : vector<1x288x4xbf16> to vector<288x4xbf16>
    %c0_94 = arith.constant 0 : index
    %c3_95 = arith.constant 3 : index
    %c0_96 = arith.constant 0 : index
    %c0_97 = arith.constant 0 : index
    %82 = vector.load %arg2[%c0_94, %c3_95, %c0_96, %c0_97] : memref<4x4x4x4xbf16, #tpu.memory_space<vmem>>, vector<1x1x4x4xbf16>
    %83 = vector.shape_cast %82 : vector<1x1x4x4xbf16> to vector<4x4xbf16>
    %cst_98 = arith.constant dense<0.000000e+00> : vector<288x4xf32>
    %84 = tpu.matmul %81, %83, %cst_98 {dimension_numbers = #tpu.dot_dimension_numbers<[1], [0], [0], [1], [0, 0, 1, 1], [], []>} : vector<288x4xbf16>, vector<4x4xbf16>, vector<288x4xf32> -> vector<288x4xf32>
    %85 = arith.addf %79, %84 : vector<288x4xf32>
    %86 = vector.broadcast %0 : vector<288x1xf32> to vector<288x4xf32>
    %87 = arith.mulf %85, %86 : vector<288x4xf32>
    %c0_99 = arith.constant 0 : index
    %c2_100 = arith.constant 2 : index
    %c0_101 = arith.constant 0 : index
    %c0_102 = arith.constant 0 : index
    %88 = vector.load %arg6[%c0_99, %c2_100, %c0_101, %c0_102] : memref<1x4x288x4xf32, #tpu.memory_space<vmem>>, vector<1x1x288x4xf32>
    %89 = vector.shape_cast %88 : vector<1x1x288x4xf32> to vector<288x4xf32>
    %90 = vector.shape_cast %87 : vector<288x4xf32> to vector<1x1x288x4xf32>
    tpu.vector_store %arg6[%c0_99, %c2_100, %c0_101, %c0_102], %90 {strides = array<i32>} : memref<1x4x288x4xf32, #tpu.memory_space<vmem>>, vector<1x1x288x4xf32>,
    %cst_103 = arith.constant 0.000000e+00 : f32
    %91 = vector.broadcast %cst_103 : f32 to vector<288x4xf32>
    %c0_104 = arith.constant 0 : index
    %c19_105 = arith.constant 19 : index
    %c0_106 = arith.constant 0 : index
    %92 = vector.load %arg1[%c0_104, %c19_105, %c0_106] : memref<1x342x4xbf16, #tpu.memory_space<vmem>>, vector<1x288x4xbf16>
    %93 = vector.shape_cast %92 : vector<1x288x4xbf16> to vector<288x4xbf16>
    %c2_107 = arith.constant 2 : index
    %c2_108 = arith.constant 2 : index
    %c0_109 = arith.constant 0 : index
    %c0_110 = arith.constant 0 : index
    %94 = vector.load %arg2[%c2_107, %c2_108, %c0_109, %c0_110] : memref<4x4x4x4xbf16, #tpu.memory_space<vmem>>, vector<1x1x4x4xbf16>
    %95 = vector.shape_cast %94 : vector<1x1x4x4xbf16> to vector<4x4xbf16>
    %cst_111 = arith.constant dense<0.000000e+00> : vector<288x4xf32>
    %96 = tpu.matmul %93, %95, %cst_111 {dimension_numbers = #tpu.dot_dimension_numbers<[1], [0], [0], [1], [0, 0, 1, 1], [], []>} : vector<288x4xbf16>, vector<4x4xbf16>, vector<288x4xf32> -> vector<288x4xf32>
    %97 = arith.addf %91, %96 : vector<288x4xf32>
    %c0_112 = arith.constant 0 : index
    %c20_113 = arith.constant 20 : index
    %c0_114 = arith.constant 0 : index
    %98 = vector.load %arg1[%c0_112, %c20_113, %c0_114] : memref<1x342x4xbf16, #tpu.memory_space<vmem>>, vector<1x288x4xbf16>
    %99 = vector.shape_cast %98 : vector<1x288x4xbf16> to vector<288x4xbf16>
    %c2_115 = arith.constant 2 : index
    %c0_116 = arith.constant 0 : index
    %c0_117 = arith.constant 0 : index
    %c0_118 = arith.constant 0 : index
    %100 = vector.load %arg2[%c2_115, %c0_116, %c0_117, %c0_118] : memref<4x4x4x4xbf16, #tpu.memory_space<vmem>>, vector<1x1x4x4xbf16>
    %101 = vector.shape_cast %100 : vector<1x1x4x4xbf16> to vector<4x4xbf16>
    %cst_119 = arith.constant dense<0.000000e+00> : vector<288x4xf32>
    %102 = tpu.matmul %99, %101, %cst_119 {dimension_numbers = #tpu.dot_dimension_numbers<[1], [0], [0], [1], [0, 0, 1, 1], [], []>} : vector<288x4xbf16>, vector<4x4xbf16>, vector<288x4xf32> -> vector<288x4xf32>
    %103 = arith.addf %97, %102 : vector<288x4xf32>
    %c0_120 = arith.constant 0 : index
    %c37_121 = arith.constant 37 : index
    %c0_122 = arith.constant 0 : index
    %104 = vector.load %arg1[%c0_120, %c37_121, %c0_122] : memref<1x342x4xbf16, #tpu.memory_space<vmem>>, vector<1x288x4xbf16>
    %105 = vector.shape_cast %104 : vector<1x288x4xbf16> to vector<288x4xbf16>
    %c0_123 = arith.constant 0 : index
    %c2_124 = arith.constant 2 : index
    %c0_125 = arith.constant 0 : index
    %c0_126 = arith.constant 0 : index
    %106 = vector.load %arg2[%c0_123, %c2_124, %c0_125, %c0_126] : memref<4x4x4x4xbf16, #tpu.memory_space<vmem>>, vector<1x1x4x4xbf16>
    %107 = vector.shape_cast %106 : vector<1x1x4x4xbf16> to vector<4x4xbf16>
    %cst_127 = arith.constant dense<0.000000e+00> : vector<288x4xf32>
    %108 = tpu.matmul %105, %107, %cst_127 {dimension_numbers = #tpu.dot_dimension_numbers<[1], [0], [0], [1], [0, 0, 1, 1], [], []>} : vector<288x4xbf16>, vector<4x4xbf16>, vector<288x4xf32> -> vector<288x4xf32>
    %109 = arith.addf %103, %108 : vector<288x4xf32>
    %c0_128 = arith.constant 0 : index
    %c38 = arith.constant 38 : index
    %c0_129 = arith.constant 0 : index
    %110 = vector.load %arg1[%c0_128, %c38, %c0_129] : memref<1x342x4xbf16, #tpu.memory_space<vmem>>, vector<1x288x4xbf16>
    %111 = vector.shape_cast %110 : vector<1x288x4xbf16> to vector<288x4xbf16>
    %c0_130 = arith.constant 0 : index
    %c0_131 = arith.constant 0 : index
    %c0_132 = arith.constant 0 : index
    %c0_133 = arith.constant 0 : index
    %112 = vector.load %arg2[%c0_130, %c0_131, %c0_132, %c0_133] : memref<4x4x4x4xbf16, #tpu.memory_space<vmem>>, vector<1x1x4x4xbf16>
    %113 = vector.shape_cast %112 : vector<1x1x4x4xbf16> to vector<4x4xbf16>
    %cst_134 = arith.constant dense<0.000000e+00> : vector<288x4xf32>
    %114 = tpu.matmul %111, %113, %cst_134 {dimension_numbers = #tpu.dot_dimension_numbers<[1], [0], [0], [1], [0, 0, 1, 1], [], []>} : vector<288x4xbf16>, vector<4x4xbf16>, vector<288x4xf32> -> vector<288x4xf32>
    %115 = arith.addf %109, %114 : vector<288x4xf32>
    %116 = vector.broadcast %0 : vector<288x1xf32> to vector<288x4xf32>
    %117 = arith.mulf %115, %116 : vector<288x4xf32>
    %c0_135 = arith.constant 0 : index
    %c3_136 = arith.constant 3 : index
    %c0_137 = arith.constant 0 : index
    %c0_138 = arith.constant 0 : index
    %118 = vector.load %arg6[%c0_135, %c3_136, %c0_137, %c0_138] : memref<1x4x288x4xf32, #tpu.memory_space<vmem>>, vector<1x1x288x4xf32>
    %119 = vector.shape_cast %118 : vector<1x1x288x4xf32> to vector<288x4xf32>
    %120 = vector.shape_cast %117 : vector<288x4xf32> to vector<1x1x288x4xf32>
    tpu.vector_store %arg6[%c0_135, %c3_136, %c0_137, %c0_138], %120 {strides = array<i32>} : memref<1x4x288x4xf32, #tpu.memory_space<vmem>>, vector<1x1x288x4xf32>,
    %cst_139 = arith.constant 0.000000e+00 : f32
    %121 = vector.broadcast %cst_139 : f32 to vector<1x4xf32>
    %cst_140 = arith.constant 0.000000e+00 : f32
    %122 = vector.broadcast %cst_140 : f32 to vector<1x4xf32>
    %c0_141 = arith.constant 0 : index
    %c0_142 = arith.constant 0 : index
    %c0_143 = arith.constant 0 : index
    %c0_144 = arith.constant 0 : index
    %123 = vector.load %arg6[%c0_141, %c0_142, %c0_143, %c0_144] : memref<1x4x288x4xf32, #tpu.memory_space<vmem>>, vector<1x1x288x4xf32>
    %124 = vector.shape_cast %123 : vector<1x1x288x4xf32> to vector<288x4xf32>
    %cst_145 = arith.constant dense<0.000000e+00> : vector<4xf32>
    %125 = vector.multi_reduction <add>, %124, %cst_145 [0] : vector<288x4xf32> to vector<4xf32>
    %126 = vector.shape_cast %125 : vector<4xf32> to vector<1x4xf32>
    %127 = arith.addf %121, %126 : vector<1x4xf32>
    %128 = arith.mulf %124, %124 : vector<288x4xf32>
    %cst_146 = arith.constant dense<0.000000e+00> : vector<4xf32>
    %129 = vector.multi_reduction <add>, %128, %cst_146 [0] : vector<288x4xf32> to vector<4xf32>
    %130 = vector.shape_cast %129 : vector<4xf32> to vector<1x4xf32>
    %131 = arith.addf %122, %130 : vector<1x4xf32>
    %c0_147 = arith.constant 0 : index
    %c1_148 = arith.constant 1 : index
    %c0_149 = arith.constant 0 : index
    %c0_150 = arith.constant 0 : index
    %132 = vector.load %arg6[%c0_147, %c1_148, %c0_149, %c0_150] : memref<1x4x288x4xf32, #tpu.memory_space<vmem>>, vector<1x1x288x4xf32>
    %133 = vector.shape_cast %132 : vector<1x1x288x4xf32> to vector<288x4xf32>
    %cst_151 = arith.constant dense<0.000000e+00> : vector<4xf32>
    %134 = vector.multi_reduction <add>, %133, %cst_151 [0] : vector<288x4xf32> to vector<4xf32>
    %135 = vector.shape_cast %134 : vector<4xf32> to vector<1x4xf32>
    %136 = arith.addf %127, %135 : vector<1x4xf32>
    %137 = arith.mulf %133, %133 : vector<288x4xf32>
    %cst_152 = arith.constant dense<0.000000e+00> : vector<4xf32>
    %138 = vector.multi_reduction <add>, %137, %cst_152 [0] : vector<288x4xf32> to vector<4xf32>
    %139 = vector.shape_cast %138 : vector<4xf32> to vector<1x4xf32>
    %140 = arith.addf %131, %139 : vector<1x4xf32>
    %c0_153 = arith.constant 0 : index
    %c2_154 = arith.constant 2 : index
    %c0_155 = arith.constant 0 : index
    %c0_156 = arith.constant 0 : index
    %141 = vector.load %arg6[%c0_153, %c2_154, %c0_155, %c0_156] : memref<1x4x288x4xf32, #tpu.memory_space<vmem>>, vector<1x1x288x4xf32>
    %142 = vector.shape_cast %141 : vector<1x1x288x4xf32> to vector<288x4xf32>
    %cst_157 = arith.constant dense<0.000000e+00> : vector<4xf32>
    %143 = vector.multi_reduction <add>, %142, %cst_157 [0] : vector<288x4xf32> to vector<4xf32>
    %144 = vector.shape_cast %143 : vector<4xf32> to vector<1x4xf32>
    %145 = arith.addf %136, %144 : vector<1x4xf32>
    %146 = arith.mulf %142, %142 : vector<288x4xf32>
    %cst_158 = arith.constant dense<0.000000e+00> : vector<4xf32>
    %147 = vector.multi_reduction <add>, %146, %cst_158 [0] : vector<288x4xf32> to vector<4xf32>
    %148 = vector.shape_cast %147 : vector<4xf32> to vector<1x4xf32>
    %149 = arith.addf %140, %148 : vector<1x4xf32>
    %c0_159 = arith.constant 0 : index
    %c3_160 = arith.constant 3 : index
    %c0_161 = arith.constant 0 : index
    %c0_162 = arith.constant 0 : index
    %150 = vector.load %arg6[%c0_159, %c3_160, %c0_161, %c0_162] : memref<1x4x288x4xf32, #tpu.memory_space<vmem>>, vector<1x1x288x4xf32>
    %151 = vector.shape_cast %150 : vector<1x1x288x4xf32> to vector<288x4xf32>
    %cst_163 = arith.constant dense<0.000000e+00> : vector<4xf32>
    %152 = vector.multi_reduction <add>, %151, %cst_163 [0] : vector<288x4xf32> to vector<4xf32>
    %153 = vector.shape_cast %152 : vector<4xf32> to vector<1x4xf32>
    %154 = arith.addf %145, %153 : vector<1x4xf32>
    %155 = arith.mulf %151, %151 : vector<288x4xf32>
    %cst_164 = arith.constant dense<0.000000e+00> : vector<4xf32>
    %156 = vector.multi_reduction <add>, %155, %cst_164 [0] : vector<288x4xf32> to vector<4xf32>
    %157 = vector.shape_cast %156 : vector<4xf32> to vector<1x4xf32>
    %158 = arith.addf %149, %157 : vector<1x4xf32>
    %cst_165 = arith.constant 9.765625E-4 : f32
    %159 = vector.broadcast %cst_165 : f32 to vector<1x4xf32>
    %160 = arith.mulf %154, %159 : vector<1x4xf32>
    %cst_166 = arith.constant 9.765625E-4 : f32
    %161 = vector.broadcast %cst_166 : f32 to vector<1x4xf32>
    %162 = arith.mulf %158, %161 : vector<1x4xf32>
    %163 = arith.mulf %160, %160 : vector<1x4xf32>
    %164 = arith.subf %162, %163 : vector<1x4xf32>
    %c0_167 = arith.constant 0 : index
    %c0_168 = arith.constant 0 : index
    %165 = vector.load %arg3[%c0_167, %c0_168] : memref<1x4xf32, #tpu.memory_space<vmem>>, vector<1x4xf32>
    %cst_169 = arith.constant 9.99999974E-6 : f32
    %166 = vector.broadcast %cst_169 : f32 to vector<1x4xf32>
    %167 = arith.addf %164, %166 : vector<1x4xf32>
    %168 = math.rsqrt %167 : vector<1x4xf32>
    %169 = arith.mulf %165, %168 : vector<1x4xf32>
    %c0_170 = arith.constant 0 : index
    %c0_171 = arith.constant 0 : index
    %170 = vector.load %arg4[%c0_170, %c0_171] : memref<1x4xf32, #tpu.memory_space<vmem>>, vector<1x4xf32>
    %171 = arith.mulf %160, %169 : vector<1x4xf32>
    %172 = arith.subf %170, %171 : vector<1x4xf32>
    %c0_172 = arith.constant 0 : index
    %c0_173 = arith.constant 0 : index
    %c0_174 = arith.constant 0 : index
    %c0_175 = arith.constant 0 : index
    %173 = vector.load %arg6[%c0_172, %c0_173, %c0_174, %c0_175] : memref<1x4x288x4xf32, #tpu.memory_space<vmem>>, vector<1x1x288x4xf32>
    %174 = vector.shape_cast %173 : vector<1x1x288x4xf32> to vector<288x4xf32>
    %175 = vector.broadcast %169 : vector<1x4xf32> to vector<288x4xf32>
    %176 = arith.mulf %174, %175 : vector<288x4xf32>
    %177 = vector.broadcast %172 : vector<1x4xf32> to vector<288x4xf32>
    %178 = arith.addf %176, %177 : vector<288x4xf32>
    %cst_176 = arith.constant 0.000000e+00 : f32
    %179 = vector.broadcast %cst_176 : f32 to vector<288x4xf32>
    %180 = arith.maximumf %178, %179 : vector<288x4xf32>
    %c0_177 = arith.constant 0 : index
    %c0_178 = arith.constant 0 : index
    %c0_179 = arith.constant 0 : index
    %c0_180 = arith.constant 0 : index
    %181 = vector.load %arg6[%c0_177, %c0_178, %c0_179, %c0_180] : memref<1x4x288x4xf32, #tpu.memory_space<vmem>>, vector<1x1x288x4xf32>
    %182 = vector.shape_cast %181 : vector<1x1x288x4xf32> to vector<288x4xf32>
    %183 = vector.shape_cast %180 : vector<288x4xf32> to vector<1x1x288x4xf32>
    tpu.vector_store %arg6[%c0_177, %c0_178, %c0_179, %c0_180], %183 {strides = array<i32>} : memref<1x4x288x4xf32, #tpu.memory_space<vmem>>, vector<1x1x288x4xf32>,
    %c0_181 = arith.constant 0 : index
    %c1_182 = arith.constant 1 : index
    %c0_183 = arith.constant 0 : index
    %c0_184 = arith.constant 0 : index
    %184 = vector.load %arg6[%c0_181, %c1_182, %c0_183, %c0_184] : memref<1x4x288x4xf32, #tpu.memory_space<vmem>>, vector<1x1x288x4xf32>
    %185 = vector.shape_cast %184 : vector<1x1x288x4xf32> to vector<288x4xf32>
    %186 = vector.broadcast %169 : vector<1x4xf32> to vector<288x4xf32>
    %187 = arith.mulf %185, %186 : vector<288x4xf32>
    %188 = vector.broadcast %172 : vector<1x4xf32> to vector<288x4xf32>
    %189 = arith.addf %187, %188 : vector<288x4xf32>
    %cst_185 = arith.constant 0.000000e+00 : f32
    %190 = vector.broadcast %cst_185 : f32 to vector<288x4xf32>
    %191 = arith.maximumf %189, %190 : vector<288x4xf32>
    %c0_186 = arith.constant 0 : index
    %c1_187 = arith.constant 1 : index
    %c0_188 = arith.constant 0 : index
    %c0_189 = arith.constant 0 : index
    %192 = vector.load %arg6[%c0_186, %c1_187, %c0_188, %c0_189] : memref<1x4x288x4xf32, #tpu.memory_space<vmem>>, vector<1x1x288x4xf32>
    %193 = vector.shape_cast %192 : vector<1x1x288x4xf32> to vector<288x4xf32>
    %194 = vector.shape_cast %191 : vector<288x4xf32> to vector<1x1x288x4xf32>
    tpu.vector_store %arg6[%c0_186, %c1_187, %c0_188, %c0_189], %194 {strides = array<i32>} : memref<1x4x288x4xf32, #tpu.memory_space<vmem>>, vector<1x1x288x4xf32>,
    %c0_190 = arith.constant 0 : index
    %c2_191 = arith.constant 2 : index
    %c0_192 = arith.constant 0 : index
    %c0_193 = arith.constant 0 : index
    %195 = vector.load %arg6[%c0_190, %c2_191, %c0_192, %c0_193] : memref<1x4x288x4xf32, #tpu.memory_space<vmem>>, vector<1x1x288x4xf32>
    %196 = vector.shape_cast %195 : vector<1x1x288x4xf32> to vector<288x4xf32>
    %197 = vector.broadcast %169 : vector<1x4xf32> to vector<288x4xf32>
    %198 = arith.mulf %196, %197 : vector<288x4xf32>
    %199 = vector.broadcast %172 : vector<1x4xf32> to vector<288x4xf32>
    %200 = arith.addf %198, %199 : vector<288x4xf32>
    %cst_194 = arith.constant 0.000000e+00 : f32
    %201 = vector.broadcast %cst_194 : f32 to vector<288x4xf32>
    %202 = arith.maximumf %200, %201 : vector<288x4xf32>
    %c0_195 = arith.constant 0 : index
    %c2_196 = arith.constant 2 : index
    %c0_197 = arith.constant 0 : index
    %c0_198 = arith.constant 0 : index
    %203 = vector.load %arg6[%c0_195, %c2_196, %c0_197, %c0_198] : memref<1x4x288x4xf32, #tpu.memory_space<vmem>>, vector<1x1x288x4xf32>
    %204 = vector.shape_cast %203 : vector<1x1x288x4xf32> to vector<288x4xf32>
    %205 = vector.shape_cast %202 : vector<288x4xf32> to vector<1x1x288x4xf32>
    tpu.vector_store %arg6[%c0_195, %c2_196, %c0_197, %c0_198], %205 {strides = array<i32>} : memref<1x4x288x4xf32, #tpu.memory_space<vmem>>, vector<1x1x288x4xf32>,
    %c0_199 = arith.constant 0 : index
    %c3_200 = arith.constant 3 : index
    %c0_201 = arith.constant 0 : index
    %c0_202 = arith.constant 0 : index
    %206 = vector.load %arg6[%c0_199, %c3_200, %c0_201, %c0_202] : memref<1x4x288x4xf32, #tpu.memory_space<vmem>>, vector<1x1x288x4xf32>
    %207 = vector.shape_cast %206 : vector<1x1x288x4xf32> to vector<288x4xf32>
    %208 = vector.broadcast %169 : vector<1x4xf32> to vector<288x4xf32>
    %209 = arith.mulf %207, %208 : vector<288x4xf32>
    %210 = vector.broadcast %172 : vector<1x4xf32> to vector<288x4xf32>
    %211 = arith.addf %209, %210 : vector<288x4xf32>
    %cst_203 = arith.constant 0.000000e+00 : f32
    %212 = vector.broadcast %cst_203 : f32 to vector<288x4xf32>
    %213 = arith.maximumf %211, %212 : vector<288x4xf32>
    %c0_204 = arith.constant 0 : index
    %c3_205 = arith.constant 3 : index
    %c0_206 = arith.constant 0 : index
    %c0_207 = arith.constant 0 : index
    %214 = vector.load %arg6[%c0_204, %c3_205, %c0_206, %c0_207] : memref<1x4x288x4xf32, #tpu.memory_space<vmem>>, vector<1x1x288x4xf32>
    %215 = vector.shape_cast %214 : vector<1x1x288x4xf32> to vector<288x4xf32>
    %216 = vector.shape_cast %213 : vector<288x4xf32> to vector<1x1x288x4xf32>
    tpu.vector_store %arg6[%c0_204, %c3_205, %c0_206, %c0_207], %216 {strides = array<i32>} : memref<1x4x288x4xf32, #tpu.memory_space<vmem>>, vector<1x1x288x4xf32>,
    return
  }
  func.func @transform_0(%arg0: i32) -> (i32, i32, i32) {
    %c0_i32 = arith.constant 0 : i32
    %c0_i32_0 = arith.constant 0 : i32
    %c0_i32_1 = arith.constant 0 : i32
    return %arg0, %c0_i32, %c0_i32_0 : i32, i32, i32
  }
  func.func @transform_1(%arg0: i32) -> (i32, i32, i32, i32) {
    %c0_i32 = arith.constant 0 : i32
    %c0_i32_0 = arith.constant 0 : i32
    %c0_i32_1 = arith.constant 0 : i32
    %c0_i32_2 = arith.constant 0 : i32
    %c0_i32_3 = arith.constant 0 : i32
    return %c0_i32, %c0_i32_0, %c0_i32_1, %c0_i32_2 : i32, i32, i32, i32
  }
  func.func @transform_2(%arg0: i32) -> (i32, i32) {
    %c0_i32 = arith.constant 0 : i32
    %c0_i32_0 = arith.constant 0 : i32
    %c0_i32_1 = arith.constant 0 : i32
    return %c0_i32, %c0_i32_0 : i32, i32
  }
  func.func @transform_3(%arg0: i32) -> (i32, i32) {
    %c0_i32 = arith.constant 0 : i32
    %c0_i32_0 = arith.constant 0 : i32
    %c0_i32_1 = arith.constant 0 : i32
    return %c0_i32, %c0_i32_0 : i32, i32
  }
  func.func @transform_4(%arg0: i32) -> (i32, i32) {
    %c0_i32 = arith.constant 0 : i32
    %c0_i32_0 = arith.constant 0 : i32
    %c0_i32_1 = arith.constant 0 : i32
    return %c0_i32, %c0_i32_0 : i32, i32
  }
  func.func @transform_5(%arg0: i32) -> (i32, i32, i32, i32) {
    %c0_i32 = arith.constant 0 : i32
    %c0_i32_0 = arith.constant 0 : i32
    %c0_i32_1 = arith.constant 0 : i32
    %c0_i32_2 = arith.constant 0 : i32
    return %arg0, %c0_i32, %c0_i32_0, %c0_i32_1 : i32, i32, i32, i32
  }
}

</mosaic_0001>

<llo_original>
// kernel: tpu_custom_call.1
$region0: #{tpu_custom_call.1}
  #allocation0 [shape = 'u32[]', space=smem, size = 0x4, offset = 0x4, fixed_abs, tag = 'smem constant byte address 0x4 - core index']
  #allocation1 [shape = 'u32[144,128]{1,0:T(1,128)}', space=vmem, size = 0x12000, scoped, tag = 'internal scratch']
  %s0 = inlined_call_operand.vmem [shape: bf16[2,342,4], index: 0, kind: input, shape index: {}]
  %s1 = inlined_call_operand.hbm [shape: bf16[4,4,4,4], index: 1, kind: input, shape index: {}]
  %s2 = inlined_call_operand.hbm [shape: f32[1,4], index: 2, kind: input, shape index: {}]
  %s3 = inlined_call_operand.hbm [shape: f32[1,4], index: 3, kind: input, shape index: {}]
  %s4 = inlined_call_operand.vmem [shape: f32[288,1], index: 4, kind: input, shape index: {}]
  %s5 = inlined_call_operand.vmem [shape: f32[2,4,288,4], index: 5, kind: output, shape index: {}]
  %s6 = sld [smem:[#allocation0]]
  $region65: #{tpu_custom_call.1} parent=0
    _
  %s8 = ssub.s32 1, %s6
  %s9 = scalar_select 0, %s8, %s6
  $region1: #{tpu_custom_call.1} parent=0
    #allocation2 [shape = 'u8[16384]{0}', space=vmem, size = 0x4000, scoped, tag = 'input window, operand 1, single buffered']
    #allocation3 [shape = 's32[2]{0}', space=sflag, size = 0x8, scoped, tag = 'scoped memory for tpu_custom_call.1']
    #allocation4 [shape = 'u8[512]{0}', space=vmem, size = 0x400, scoped, tag = 'input window, operand 2, single buffered']
    #allocation5 [shape = 's32[1]{0}', space=sflag, size = 0x4, scoped, tag = 'scoped memory for tpu_custom_call.1']
    #allocation6 [shape = 'u8[512]{0}', space=vmem, size = 0x400, scoped, tag = 'input window, operand 3, single buffered']
    %10 = vsyncpa [#allocation3], 0
    %11 = vsyncpa [#allocation5], 0
    loop: start=0, step=1, limit=4
    $region2: #{tpu_custom_call.1} parent=1 // loop_pre_header
      _
    $region3: #{tpu_custom_call.1} parent=1 // loop_header
      %s13 = sphi 0, %s17
      %p14 = scmp.ge.s32.totalorder %s13, 4
      %s23 = sphi 0, %s25
      %s26 = sphi 0, %s23
      %s27 = sphi 0, %s26
      %s43 = sphi 0, %s27
      %s47 = sphi 0, %s47
      %s49 = sphi 0, %s47
      %s50 = sphi 0, %s49
      %s64 = sphi 0, %s50
      %s68 = sphi 0, %s68
      %s70 = sphi 0, %s68
      %s71 = sphi 0, %s70
      %s85 = sphi 0, %s71
      %s89 = sphi 0, %s89
      %s91 = sphi 0, %s89
      %s92 = sphi 0, %s91
      %s106 = sphi 0, %s92
      %s110 = sphi 0, %s110
      %s112 = sphi 0, %s110
      %s113 = sphi 0, %s112
      %s127 = sphi 0, %s113
      %s133 = sphi 0, %s135
      %s136 = sphi 0, %s133
      %s137 = sphi 0, %s136
      %s153 = sphi 0, %s137
    $region4: #{tpu_custom_call.1} parent=1 // loop_header_branch
      %16 = sbr.rel (%p14) target = $region8
    $region5: #{tpu_custom_call.1} parent=1 // loop_body
      %s18 = ssub.s32 %s13, 1
      %s19 = ssub.s32 %s13, 2
      %s20 = sadd.s32 %s13, 1
      %s21 = ssub.s32 %s13, %s20
      %p22 = scmp.eq.s32.totalorder %s21, 0
      %s24 = sadd.s32 %s23, 1
      %s25 = scalar_select %p22, %s23, %s24
      %p28 = pneg %p22
      %p29 = scmp.eq.s32.totalorder %s13, 1
      %p30 = por %p28, %p29
      %p31 = scmp.ne.s32.totalorder %s23, %s26
      %p32 = scmp.eq.s32.totalorder %s13, 0
      %p33 = por %p31, %p32
      %p34 = scmp.ne.s32.totalorder %s23, %s26
      %p35 = scmp.eq.s32.totalorder %s18, 1
      %p36 = por %p34, %p35
      %p37 = scmp.ne.s32.totalorder %s26, %s27
      %p38 = scmp.eq.s32.totalorder %s18, 0
      %p39 = por %p37, %p38
      %p40 = scmp.ne.s32.totalorder %s26, %s27
      %p41 = scmp.eq.s32.totalorder %s19, 1
      %p42 = por %p40, %p41
      %p44 = scmp.ne.s32.totalorder %s27, %s43
      %p45 = scmp.eq.s32.totalorder %s19, 0
      %p46 = por %p44, %p45
      %s48 = sadd.s32 %s47, 1
      %p51 = scmp.eq.s32.totalorder %s13, 1
      %p52 = scmp.ne.s32.totalorder %s47, %s49
      %p53 = scmp.eq.s32.totalorder %s13, 0
      %p54 = por %p52, %p53
      %p55 = scmp.ne.s32.totalorder %s47, %s49
      %p56 = scmp.eq.s32.totalorder %s18, 1
      %p57 = por %p55, %p56
      %p58 = scmp.ne.s32.totalorder %s49, %s50
      %p59 = scmp.eq.s32.totalorder %s18, 0
      %p60 = por %p58, %p59
      %p61 = scmp.ne.s32.totalorder %s49, %s50
      %p62 = scmp.eq.s32.totalorder %s19, 1
      %p63 = por %p61, %p62
      %p65 = scmp.ne.s32.totalorder %s50, %s64
      %p66 = scmp.eq.s32.totalorder %s19, 0
      %p67 = por %p65, %p66
      %s69 = sadd.s32 %s68, 1
      %p72 = scmp.eq.s32.totalorder %s13, 1
      %p73 = scmp.ne.s32.totalorder %s68, %s70
      %p74 = scmp.eq.s32.totalorder %s13, 0
      %p75 = por %p73, %p74
      %p76 = scmp.ne.s32.totalorder %s68, %s70
      %p77 = scmp.eq.s32.totalorder %s18, 1
      %p78 = por %p76, %p77
      %p79 = scmp.ne.s32.totalorder %s70, %s71
      %p80 = scmp.eq.s32.totalorder %s18, 0
      %p81 = por %p79, %p80
      %p82 = scmp.ne.s32.totalorder %s70, %s71
      %p83 = scmp.eq.s32.totalorder %s19, 1
      %p84 = por %p82, %p83
      %p86 = scmp.ne.s32.totalorder %s71, %s85
      %p87 = scmp.eq.s32.totalorder %s19, 0
      %p88 = por %p86, %p87
      %s90 = sadd.s32 %s89, 1
      %p93 = scmp.eq.s32.totalorder %s13, 1
      %p94 = scmp.ne.s32.totalorder %s89, %s91
      %p95 = scmp.eq.s32.totalorder %s13, 0
      %p96 = por %p94, %p95
      %p97 = scmp.ne.s32.totalorder %s89, %s91
      %p98 = scmp.eq.s32.totalorder %s18, 1
      %p99 = por %p97, %p98
      %p100 = scmp.ne.s32.totalorder %s91, %s92
      %p101 = scmp.eq.s32.totalorder %s18, 0
      %p102 = por %p100, %p101
      %p103 = scmp.ne.s32.totalorder %s91, %s92
      %p104 = scmp.eq.s32.totalorder %s19, 1
      %p105 = por %p103, %p104
      %p107 = scmp.ne.s32.totalorder %s92, %s106
      %p108 = scmp.eq.s32.totalorder %s19, 0
      %p109 = por %p107, %p108
      %s111 = sadd.s32 %s110, 1
      %p114 = scmp.eq.s32.totalorder %s13, 1
      %p115 = scmp.ne.s32.totalorder %s110, %s112
      %p116 = scmp.eq.s32.totalorder %s13, 0
      %p117 = por %p115, %p116
      %p118 = scmp.ne.s32.totalorder %s110, %s112
      %p119 = scmp.eq.s32.totalorder %s18, 1
      %p120 = por %p118, %p119
      %p121 = scmp.ne.s32.totalorder %s112, %s113
      %p122 = scmp.eq.s32.totalorder %s18, 0
      %p123 = por %p121, %p122
      %p124 = scmp.ne.s32.totalorder %s112, %s113
      %p125 = scmp.eq.s32.totalorder %s19, 1
      %p126 = por %p124, %p125
      %p128 = scmp.ne.s32.totalorder %s113, %s127
      %p129 = scmp.eq.s32.totalorder %s19, 0
      %p130 = por %p128, %p129
      %s131 = ssub.s32 %s13, %s20
      %p132 = scmp.eq.s32.totalorder %s131, 0
      %s134 = sadd.s32 %s133, 1
      %s135 = scalar_select %p132, %s133, %s134
      %p138 = pneg %p132
      %p139 = scmp.eq.s32.totalorder %s13, 1
      %p140 = por %p138, %p139
      %p141 = scmp.ne.s32.totalorder %s133, %s136
      %p142 = scmp.eq.s32.totalorder %s13, 0
      %p143 = por %p141, %p142
      %p144 = scmp.ne.s32.totalorder %s133, %s136
      %p145 = scmp.eq.s32.totalorder %s18, 1
      %p146 = por %p144, %p145
      %p147 = scmp.ne.s32.totalorder %s136, %s137
      %p148 = scmp.eq.s32.totalorder %s18, 0
      %p149 = por %p147, %p148
      %p150 = scmp.ne.s32.totalorder %s136, %s137
      %p151 = scmp.eq.s32.totalorder %s19, 1
      %p152 = por %p150, %p151
      %p154 = scmp.ne.s32.totalorder %s137, %s153
      %p155 = scmp.eq.s32.totalorder %s19, 0
      %p156 = por %p154, %p155
      %p157 = scmp.le.s32.totalorder 1, %s13
      %p158 = scmp.lt.s32.totalorder %s13, 3
      %p159 = pnand %p157, %p158
      %p160 = pneg %p159
      // Predicated region
      $region9: #{tpu_custom_call.1} parent=5 // pred_check
        _
      $region10: #{tpu_custom_call.1} parent=5 // pred_check_branch
        %162 = sbr.rel (%p159) target = $region12
      $region11: #{tpu_custom_call.1} parent=5 // pred_region
        %s163 = ssub.s32 %s13, 1
        // Predicated region
        $region13: #{tpu_custom_call.1} parent=11 // pred_check
          %p164 = pneg %p60
        $region14: #{tpu_custom_call.1} parent=11 // pred_check_branch
          %166 = sbr.rel (%p164) target = $region16
        $region15: #{tpu_custom_call.1} parent=11 // pred_region
          %s168 = ssub.s32 512, 512
          %169 = vsyncadd [#allocation3], %s168
          %s170 = sshll.u32 [#allocation2], 4
          %s171 = int_to_ptr.vmem [resolvable:$true] %s170
          %176 = dma.hbm_to_vmem [thread:$0]  %s1, 512, %s171, [#allocation3], 32, 32, 2
        $region16: #{tpu_custom_call.1} parent=11 // pred_fallthru
          _
        // Predicated region
        $region17: #{tpu_custom_call.1} parent=11 // pred_check
          %p177 = pneg %p81
        $region18: #{tpu_custom_call.1} parent=11 // pred_check_branch
          %179 = sbr.rel (%p177) target = $region20
        $region19: #{tpu_custom_call.1} parent=11 // pred_region
          %s181 = ssub.s32 16, 16
          %182 = vsyncadd [#allocation5], %s181
          %s184 = sshll.u32 [#allocation4], 4
          %s185 = int_to_ptr.vmem [resolvable:$true] %s184
          %187 = dma.hbm_to_vmem [thread:$0]  %s2, 16, %s185, [#allocation5]
        $region20: #{tpu_custom_call.1} parent=11 // pred_fallthru
          _
        // Predicated region
        $region21: #{tpu_custom_call.1} parent=11 // pred_check
          %p188 = pneg %p102
        $region22: #{tpu_custom_call.1} parent=11 // pred_check_branch
          %190 = sbr.rel (%p188) target = $region24
        $region23: #{tpu_custom_call.1} parent=11 // pred_region
          %s192 = ssub.s32 16, 16
          %193 = vsyncadd [#allocation5], %s192
          %s195 = sshll.u32 [#allocation6], 4
          %s196 = int_to_ptr.vmem [resolvable:$true] %s195
          %198 = dma.hbm_to_vmem [thread:$0]  %s3, 16, %s196, [#allocation5]
        $region24: #{tpu_custom_call.1} parent=11 // pred_fallthru
          _
        // Predicated region
        $region25: #{tpu_custom_call.1} parent=11 // pred_check
          %p199 = pneg %p123
        $region26: #{tpu_custom_call.1} parent=11 // pred_check_branch
          %201 = sbr.rel (%p199) target = $region28
        $region27: #{tpu_custom_call.1} parent=11 // pred_region
          _
        $region28: #{tpu_custom_call.1} parent=11 // pred_fallthru
          _
      $region12: #{tpu_custom_call.1} parent=5 // pred_fallthru
        _
      %p202 = scmp.lt.s32.totalorder %s13, 2
      // Predicated region
      $region29: #{tpu_custom_call.1} parent=5 // pred_check
        %p203 = pneg %p202
      $region30: #{tpu_custom_call.1} parent=5 // pred_check_branch
        %205 = sbr.rel (%p203) target = $region32
      $region31: #{tpu_custom_call.1} parent=5 // pred_region
        // Predicated region
        $region33: #{tpu_custom_call.1} parent=31 // pred_check
          %p206 = pneg %p33
        $region34: #{tpu_custom_call.1} parent=31 // pred_check_branch
          %208 = sbr.rel (%p206) target = $region36
        $region35: #{tpu_custom_call.1} parent=31 // pred_region
          %p209 = scmp.lt.s32.totalorder %s13, 1
          %s210 = scalar_select %p209, %s13, 1
          %s211 = smul.addr %s210, 43
          %s212 = smul.addr %s211, 4
          %s213 = scalar_lea.vmem %s0, %s212
        $region36: #{tpu_custom_call.1} parent=31 // pred_fallthru
          _
      $region32: #{tpu_custom_call.1} parent=5 // pred_fallthru
        _
      %p214 = scmp.le.s32.totalorder 1, %s13
      %p215 = scmp.lt.s32.totalorder %s13, 3
      %p216 = pnand %p214, %p215
      %p217 = pneg %p216
      // Predicated region
      $region37: #{tpu_custom_call.1} parent=5 // pred_check
        _
      $region38: #{tpu_custom_call.1} parent=5 // pred_check_branch
        %219 = sbr.rel (%p216) target = $region40
      $region39: #{tpu_custom_call.1} parent=5 // pred_region
        %s220 = ssub.s32 %s13, 1
        // Predicated region
        $region41: #{tpu_custom_call.1} parent=39 // pred_check
          %p221 = pneg %p60
        $region42: #{tpu_custom_call.1} parent=39 // pred_check_branch
          %223 = sbr.rel (%p221) target = $region44
        $region43: #{tpu_custom_call.1} parent=39 // pred_region
          %224 = dma.done [#allocation3], 512
        $region44: #{tpu_custom_call.1} parent=39 // pred_fallthru
          _
        // Predicated region
        $region45: #{tpu_custom_call.1} parent=39 // pred_check
          %p225 = pneg %p81
        $region46: #{tpu_custom_call.1} parent=39 // pred_check_branch
          %227 = sbr.rel (%p225) target = $region48
        $region47: #{tpu_custom_call.1} parent=39 // pred_region
          %228 = dma.done [#allocation5], 16
        $region48: #{tpu_custom_call.1} parent=39 // pred_fallthru
          _
        // Predicated region
        $region49: #{tpu_custom_call.1} parent=39 // pred_check
          %p229 = pneg %p102
        $region50: #{tpu_custom_call.1} parent=39 // pred_check_branch
          %231 = sbr.rel (%p229) target = $region52
        $region51: #{tpu_custom_call.1} parent=39 // pred_region
          %232 = dma.done [#allocation5], 16
        $region52: #{tpu_custom_call.1} parent=39 // pred_fallthru
          _
        %p233 = scmp.lt.s32.totalorder %s18, 1
        %s234 = scalar_select %p233, %s18, 1
        %s235 = smul.addr %s234, 43
        %s236 = smul.addr %s235, 4
        %s237 = scalar_lea.vmem %s0, %s236
        %p238 = pneg %p39
        %p239 = pneg %p36
        %p240 = pneg %p60
        %p241 = pneg %p57
        %p242 = pneg %p81
        %p243 = pneg %p78
        %p244 = pneg %p102
        %p245 = pneg %p99
        %p246 = pneg %p123
        %p247 = pneg %p120
        %p248 = pneg %p149
        %p249 = pneg %p146
        %p250 = scmp.lt.s32.totalorder %s18, 1
        %s251 = scalar_select %p250, %s18, 1
        %s252 = smul.addr %s251, 144
        %s253 = smul.addr %s252, 8
        %s254 = scalar_lea.vmem %s5, %s253
        %p255 = scmp.lt.s32.totalorder %s18, 1
        %s256 = scalar_select %p255, %s18, 1
        %s257 = smul.addr %s256, 43
        %s258 = smul.addr %s257, 4
        %s259 = scalar_lea.vmem %s0, %s258
        %p260 = scmp.lt.s32.totalorder %s18, 1
        %s261 = scalar_select %p260, %s18, 1
        %s262 = smul.addr %s261, 144
        %s263 = smul.addr %s262, 8
        %s264 = scalar_lea.vmem %s5, %s263
        %v266 = vld [vmem:[%s4] sm:$0xff]
        %v267 = vld [vmem:[%s4 + $0x8] sm:$0xff]
        %v268 = vld [vmem:[%s4 + $0x10] sm:$0xff]
        %v269 = vld [vmem:[%s4 + $0x18] sm:$0xff]
        %v270 = vld [vmem:[%s4 + $0x20] sm:$0xff]
        %v271 = vld [vmem:[%s4 + $0x28] sm:$0xff]
        %v272 = vld [vmem:[%s4 + $0x30] sm:$0xff]
        %v273 = vld [vmem:[%s4 + $0x38] sm:$0xff]
        %v274 = vld [vmem:[%s4 + $0x40] sm:$0xff]
        %v275 = vld [vmem:[%s4 + $0x48] sm:$0xff]
        %v276 = vld [vmem:[%s4 + $0x50] sm:$0xff]
        %v277 = vld [vmem:[%s4 + $0x58] sm:$0xff]
        %v278 = vld [vmem:[%s4 + $0x60] sm:$0xff]
        %v279 = vld [vmem:[%s4 + $0x68] sm:$0xff]
        %v280 = vld [vmem:[%s4 + $0x70] sm:$0xff]
        %v281 = vld [vmem:[%s4 + $0x78] sm:$0xff]
        %v282 = vld [vmem:[%s4 + $0x80] sm:$0xff]
        %v283 = vld [vmem:[%s4 + $0x88] sm:$0xff]
        %v284 = vld [vmem:[%s4 + $0x90] sm:$0xff]
        %v285 = vld [vmem:[%s4 + $0x98] sm:$0xff]
        %v286 = vld [vmem:[%s4 + $0xa0] sm:$0xff]
        %v287 = vld [vmem:[%s4 + $0xa8] sm:$0xff]
        %v288 = vld [vmem:[%s4 + $0xb0] sm:$0xff]
        %v289 = vld [vmem:[%s4 + $0xb8] sm:$0xff]
        %v290 = vld [vmem:[%s4 + $0xc0] sm:$0xff]
        %v291 = vld [vmem:[%s4 + $0xc8] sm:$0xff]
        %v292 = vld [vmem:[%s4 + $0xd0] sm:$0xff]
        %v293 = vld [vmem:[%s4 + $0xd8] sm:$0xff]
        %v294 = vld [vmem:[%s4 + $0xe0] sm:$0xff]
        %v295 = vld [vmem:[%s4 + $0xe8] sm:$0xff]
        %v296 = vld [vmem:[%s4 + $0xf0] sm:$0xff]
        %v297 = vld [vmem:[%s4 + $0xf8] sm:$0xff]
        %v298 = vld [vmem:[%s4 + $0x100] sm:$0xff]
        %v299 = vld [vmem:[%s4 + $0x108] sm:$0xff]
        %v300 = vld [vmem:[%s4 + $0x110] sm:$0xff]
        %v301 = vld [vmem:[%s4 + $0x118] sm:$0xff]
        %v302 = vld [vmem:[%s259 + $0x8] sm:$0xe]
        %v303 = vld [vmem:[%s259 + $0xc] sm:$0xf]
        %v304 = vld [vmem:[%s259 + $0x10] sm:$0xf]
        %v305 = vld [vmem:[%s259 + $0x14] sm:$0xf]
        %v306 = vld [vmem:[%s259 + $0x18] sm:$0xf]
        %v307 = vld [vmem:[%s259 + $0x1c] sm:$0xf]
        %v308 = vld [vmem:[%s259 + $0x20] sm:$0xf]
        %v309 = vld [vmem:[%s259 + $0x24] sm:$0xf]
        %v310 = vld [vmem:[%s259 + $0x28] sm:$0xf]
        %v311 = vld [vmem:[%s259 + $0x2c] sm:$0xf]
        %v312 = vld [vmem:[%s259 + $0x30] sm:$0xf]
        %v313 = vld [vmem:[%s259 + $0x34] sm:$0xf]
        %v314 = vld [vmem:[%s259 + $0x38] sm:$0xf]
        %v315 = vld [vmem:[%s259 + $0x3c] sm:$0xf]
        %v316 = vld [vmem:[%s259 + $0x40] sm:$0xf]
        %v317 = vld [vmem:[%s259 + $0x44] sm:$0xf]
        %v318 = vld [vmem:[%s259 + $0x48] sm:$0xf]
        %v319 = vld [vmem:[%s259 + $0x4c] sm:$0xf]
        %v320 = vld [vmem:[%s259 + $0x50] sm:$0xf]
        %v321 = vld [vmem:[%s259 + $0x54] sm:$0xf]
        %v322 = vld [vmem:[%s259 + $0x58] sm:$0xf]
        %v323 = vld [vmem:[%s259 + $0x5c] sm:$0xf]
        %v324 = vld [vmem:[%s259 + $0x60] sm:$0xf]
        %v325 = vld [vmem:[%s259 + $0x64] sm:$0xf]
        %v326 = vld [vmem:[%s259 + $0x68] sm:$0xf]
        %v327 = vld [vmem:[%s259 + $0x6c] sm:$0xf]
        %v328 = vld [vmem:[%s259 + $0x70] sm:$0xf]
        %v329 = vld [vmem:[%s259 + $0x74] sm:$0xf]
        %v330 = vld [vmem:[%s259 + $0x78] sm:$0xf]
        %v331 = vld [vmem:[%s259 + $0x7c] sm:$0xf]
        %v332 = vld [vmem:[%s259 + $0x80] sm:$0xf]
        %v333 = vld [vmem:[%s259 + $0x84] sm:$0xf]
        %v334 = vld [vmem:[%s259 + $0x88] sm:$0xf]
        %v335 = vld [vmem:[%s259 + $0x8c] sm:$0xf]
        %v336 = vld [vmem:[%s259 + $0x90] sm:$0xf]
        %v337 = vld [vmem:[%s259 + $0x94] sm:$0xf]
        %v338 = vld [vmem:[%s259 + $0x98] sm:$0x3]
        %s339 = scalar_lea.vmem [#allocation2], 10
        %v340 = vld [vmem:[%s339] sm:$0x3]
        %v341 = vld [vmem:[%s259 + $0x98] sm:$0x1]
        %s342 = scalar_lea.vmem [#allocation2], 14
        %v343 = vld [vmem:[%s342] sm:$0x3]
        %v381 = vunpack.c.l.b16 %v302
        %v382 = vunpack.c.l.b16 %v303
        %v383 = vunpack.c.l.b16 %v304
        %v384 = vunpack.c.l.b16 %v305
        %v385 = vunpack.c.l.b16 %v306
        %v386 = vunpack.c.l.b16 %v307
        %v387 = vunpack.c.l.b16 %v308
        %v388 = vunpack.c.l.b16 %v309
        %v389 = vunpack.c.l.b16 %v310
        %v390 = vunpack.c.l.b16 %v311
        %v391 = vunpack.c.l.b16 %v312
        %v392 = vunpack.c.l.b16 %v313
        %v393 = vunpack.c.l.b16 %v314
        %v394 = vunpack.c.l.b16 %v315
        %v395 = vunpack.c.l.b16 %v316
        %v396 = vunpack.c.l.b16 %v317
        %v397 = vunpack.c.l.b16 %v318
        %v398 = vunpack.c.l.b16 %v319
        %v399 = vunpack.c.l.b16 %v320
        %v400 = vunpack.c.l.b16 %v321
        %v401 = vunpack.c.l.b16 %v322
        %v402 = vunpack.c.l.b16 %v323
        %v403 = vunpack.c.l.b16 %v324
        %v404 = vunpack.c.l.b16 %v325
        %v405 = vunpack.c.l.b16 %v326
        %v406 = vunpack.c.l.b16 %v327
        %v407 = vunpack.c.l.b16 %v328
        %v408 = vunpack.c.l.b16 %v329
        %v409 = vunpack.c.l.b16 %v330
        %v410 = vunpack.c.l.b16 %v331
        %v411 = vunpack.c.l.b16 %v332
        %v412 = vunpack.c.l.b16 %v333
        %v413 = vunpack.c.l.b16 %v334
        %v414 = vunpack.c.l.b16 %v335
        %v415 = vunpack.c.l.b16 %v336
        %v416 = vunpack.c.l.b16 %v337
        %v417 = vunpack.c.l.b16 %v341
        %v418 = vpack.c.b16 %v382, %v381
        %v419 = vpack.c.b16 %v384, %v383
        %v420 = vpack.c.b16 %v386, %v385
        %v421 = vpack.c.b16 %v388, %v387
        %v422 = vpack.c.b16 %v390, %v389
        %v423 = vpack.c.b16 %v392, %v391
        %v424 = vpack.c.b16 %v394, %v393
        %v425 = vpack.c.b16 %v396, %v395
        %v426 = vpack.c.b16 %v398, %v397
        %v427 = vpack.c.b16 %v400, %v399
        %v428 = vpack.c.b16 %v402, %v401
        %v429 = vpack.c.b16 %v404, %v403
        %v430 = vpack.c.b16 %v406, %v405
        %v431 = vpack.c.b16 %v408, %v407
        %v432 = vpack.c.b16 %v410, %v409
        %v433 = vpack.c.b16 %v412, %v411
        %v434 = vpack.c.b16 %v414, %v413
        %v435 = vpack.c.b16 %v416, %v415
        %v436 = vpack.c.b16 %v417, %v417
        %vm437 = vcmask 1046528
        %v438 = vrot.slane %v418, 1
        %v439 = vrot.slane %v419, 1
        %v440 = vsel %vm437, %v438, %v439
        %v441 = vrot.slane %v420, 1
        %v442 = vsel %vm437, %v439, %v441
        %v443 = vrot.slane %v421, 1
        %v444 = vsel %vm437, %v441, %v443
        %v445 = vrot.slane %v422, 1
        %v446 = vsel %vm437, %v443, %v445
        %v447 = vrot.slane %v423, 1
        %v448 = vsel %vm437, %v445, %v447
        %v449 = vrot.slane %v424, 1
        %v450 = vsel %vm437, %v447, %v449
        %v451 = vrot.slane %v425, 1
        %v452 = vsel %vm437, %v449, %v451
        %v453 = vrot.slane %v426, 1
        %v454 = vsel %vm437, %v451, %v453
        %v455 = vrot.slane %v427, 1
        %v456 = vsel %vm437, %v453, %v455
        %v457 = vrot.slane %v428, 1
        %v458 = vsel %vm437, %v455, %v457
        %v459 = vrot.slane %v429, 1
        %v460 = vsel %vm437, %v457, %v459
        %v461 = vrot.slane %v430, 1
        %v462 = vsel %vm437, %v459, %v461
        %v463 = vrot.slane %v431, 1
        %v464 = vsel %vm437, %v461, %v463
        %v465 = vrot.slane %v432, 1
        %v466 = vsel %vm437, %v463, %v465
        %v467 = vrot.slane %v433, 1
        %v468 = vsel %vm437, %v465, %v467
        %v469 = vrot.slane %v434, 1
        %v470 = vsel %vm437, %v467, %v469
        %v471 = vrot.slane %v435, 1
        %v472 = vsel %vm437, %v469, %v471
        %v473 = vrot.slane %v436, 1
        %v474 = vsel %vm437, %v471, %v473
        %vm475 = vcmask 31744
        %v477 = vsel %vm475, %v440, 0
        %v480 = vsel %vm475, %v442, 0
        %v483 = vsel %vm475, %v444, 0
        %v486 = vsel %vm475, %v446, 0
        %v489 = vsel %vm475, %v448, 0
        %v492 = vsel %vm475, %v450, 0
        %v495 = vsel %vm475, %v452, 0
        %v498 = vsel %vm475, %v454, 0
        %v501 = vsel %vm475, %v456, 0
        %v504 = vsel %vm475, %v458, 0
        %v507 = vsel %vm475, %v460, 0
        %v510 = vsel %vm475, %v462, 0
        %v513 = vsel %vm475, %v464, 0
        %v516 = vsel %vm475, %v466, 0
        %v519 = vsel %vm475, %v468, 0
        %v522 = vsel %vm475, %v470, 0
        %v525 = vsel %vm475, %v472, 0
        %v528 = vsel %vm475, %v474, 0
        %vm530 = vcmask 1041408
        %v532 = vsel %vm530, %v343, 0
        %534 = vmatprep.subr.bf16.mxu0 0
        %535 = vmatpush1.bf16.msra.mxu0 0
        %536 = vmatprep.subr.bf16.mxu0 0
        %537 = vmatpush1.bf16.msra.mxu0 0
        %538 = vmatprep.subr.bf16.mxu0 0
        %539 = vmatpush1.bf16.msra.mxu0 0
        %540 = vmatprep.subr.bf16.mxu0 0
        %541 = vmatpush1.bf16.msra.mxu0 0
        %542 = vmatprep.subr.bf16.mxu0 0
        %543 = vmatpush1.bf16.msra.mxu0 0
        %544 = vmatprep.subr.bf16.mxu0 0
        %545 = vmatpush1.bf16.msra.mxu0 0
        %546 = vmatprep.subr.bf16.mxu0 0
        %547 = vmatpush1.bf16.msra.mxu0 0
        %548 = vmatprep.subr.bf16.mxu0 0
        %549 = vmatpush1.bf16.msra.mxu0 %v532
        %550 = vmatprep.subr.bf16.mxu0 0
        %551 = vmatpush2.bf16.msra.mxu0 0
        %552 = vmatprep.subr.bf16.mxu0 0
        %553 = vmatpush2.bf16.msra.mxu0 0
        %554 = vmatprep.subr.bf16.mxu0 0
        %555 = vmatpush2.bf16.msra.mxu0 0
        %556 = vmatprep.subr.bf16.mxu0 0
        %557 = vmatpush2.bf16.msra.mxu0 0
        %558 = vmatprep.subr.bf16.mxu0 0
        %559 = vmatpush2.bf16.msra.mxu0 0
        %560 = vmatprep.subr.bf16.mxu0 0
        %561 = vmatpush2.bf16.msra.mxu0 0
        %562 = vmatprep.subr.bf16.mxu0 0
        %563 = vmatpush2.bf16.msra.mxu0 0
        %564 = vmatprep.subr.bf16.mxu0 0
        %565 = vmatpush2.bf16.msra.mxu0 0
        %566 = vmatprep.mubr.bf16.mxu0 0
        %567 = vmatmul.mubr.bf16.gmra.mxu0 %v477
        %v568 = vpop.f32.mrf.mxu0
        %v569 = vadd.f32 0.0, %v568
        %v570 = vpop.f32.mrf.mxu0
        %v571 = vpop.f32.mrf.mxu0
        %v572 = vadd.f32 0.0, %v571
        %v573 = vpop.f32.mrf.mxu0
        %574 = vmatprep.mubr.bf16.mxu0 0
        %575 = vmatmul.mubr.bf16.gmra.mxu0 %v480
        %v576 = vpop.f32.mrf.mxu0
        %v577 = vadd.f32 0.0, %v576
        %v578 = vpop.f32.mrf.mxu0
        %v579 = vpop.f32.mrf.mxu0
        %v580 = vadd.f32 0.0, %v579
        %v581 = vpop.f32.mrf.mxu0
        %582 = vmatprep.mubr.bf16.mxu0 0
        %583 = vmatmul.mubr.bf16.gmra.mxu0 %v483
        %v584 = vpop.f32.mrf.mxu0
        %v585 = vadd.f32 0.0, %v584
        %v586 = vpop.f32.mrf.mxu0
        %v587 = vpop.f32.mrf.mxu0
        %v588 = vadd.f32 0.0, %v587
        %v589 = vpop.f32.mrf.mxu0
        %590 = vmatprep.mubr.bf16.mxu0 0
        %591 = vmatmul.mubr.bf16.gmra.mxu0 %v486
        %v592 = vpop.f32.mrf.mxu0
        %v593 = vadd.f32 0.0, %v592
        %v594 = vpop.f32.mrf.mxu0
        %v595 = vpop.f32.mrf.mxu0
        %v596 = vadd.f32 0.0, %v595
        %v597 = vpop.f32.mrf.mxu0
        %598 = vmatprep.mubr.bf16.mxu0 0
        %599 = vmatmul.mubr.bf16.gmra.mxu0 %v489
        %v600 = vpop.f32.mrf.mxu0
        %v601 = vadd.f32 0.0, %v600
        %v602 = vpop.f32.mrf.mxu0
        %v603 = vpop.f32.mrf.mxu0
        %v604 = vadd.f32 0.0, %v603
        %v605 = vpop.f32.mrf.mxu0
        %606 = vmatprep.mubr.bf16.mxu0 0
        %607 = vmatmul.mubr.bf16.gmra.mxu0 %v492
        %v608 = vpop.f32.mrf.mxu0
        %v609 = vadd.f32 0.0, %v608
        %v610 = vpop.f32.mrf.mxu0
        %v611 = vpop.f32.mrf.mxu0
        %v612 = vadd.f32 0.0, %v611
        %v613 = vpop.f32.mrf.mxu0
        %614 = vmatprep.mubr.bf16.mxu0 0
        %615 = vmatmul.mubr.bf16.gmra.mxu0 %v495
        %v616 = vpop.f32.mrf.mxu0
        %v617 = vadd.f32 0.0, %v616
        %v618 = vpop.f32.mrf.mxu0
        %v619 = vpop.f32.mrf.mxu0
        %v620 = vadd.f32 0.0, %v619
        %v621 = vpop.f32.mrf.mxu0
        %622 = vmatprep.mubr.bf16.mxu0 0
        %623 = vmatmul.mubr.bf16.gmra.mxu0 %v498
        %v624 = vpop.f32.mrf.mxu0
        %v625 = vadd.f32 0.0, %v624
        %v626 = vpop.f32.mrf.mxu0
        %v627 = vpop.f32.mrf.mxu0
        %v628 = vadd.f32 0.0, %v627
        %v629 = vpop.f32.mrf.mxu0
        %630 = vmatprep.mubr.bf16.mxu0 0
        %631 = vmatmul.mubr.bf16.gmra.mxu0 %v501
        %v632 = vpop.f32.mrf.mxu0
        %v633 = vadd.f32 0.0, %v632
        %v634 = vpop.f32.mrf.mxu0
        %v635 = vpop.f32.mrf.mxu0
        %v636 = vadd.f32 0.0, %v635
        %v637 = vpop.f32.mrf.mxu0
        %638 = vmatprep.mubr.bf16.mxu0 0
        %639 = vmatmul.mubr.bf16.gmra.mxu0 %v504
        %v640 = vpop.f32.mrf.mxu0
        %v641 = vadd.f32 0.0, %v640
        %v642 = vpop.f32.mrf.mxu0
        %v643 = vpop.f32.mrf.mxu0
        %v644 = vadd.f32 0.0, %v643
        %v645 = vpop.f32.mrf.mxu0
        %646 = vmatprep.mubr.bf16.mxu0 0
        %647 = vmatmul.mubr.bf16.gmra.mxu0 %v507
        %v648 = vpop.f32.mrf.mxu0
        %v649 = vadd.f32 0.0, %v648
        %v650 = vpop.f32.mrf.mxu0
        %v651 = vpop.f32.mrf.mxu0
        %v652 = vadd.f32 0.0, %v651
        %v653 = vpop.f32.mrf.mxu0
        %654 = vmatprep.mubr.bf16.mxu0 0
        %655 = vmatmul.mubr.bf16.gmra.mxu0 %v510
        %v656 = vpop.f32.mrf.mxu0
        %v657 = vadd.f32 0.0, %v656
        %v658 = vpop.f32.mrf.mxu0
        %v659 = vpop.f32.mrf.mxu0
        %v660 = vadd.f32 0.0, %v659
        %v661 = vpop.f32.mrf.mxu0
        %662 = vmatprep.mubr.bf16.mxu0 0
        %663 = vmatmul.mubr.bf16.gmra.mxu0 %v513
        %v664 = vpop.f32.mrf.mxu0
        %v665 = vadd.f32 0.0, %v664
        %v666 = vpop.f32.mrf.mxu0
        %v667 = vpop.f32.mrf.mxu0
        %v668 = vadd.f32 0.0, %v667
        %v669 = vpop.f32.mrf.mxu0
        %670 = vmatprep.mubr.bf16.mxu0 0
        %671 = vmatmul.mubr.bf16.gmra.mxu0 %v516
        %v672 = vpop.f32.mrf.mxu0
        %v673 = vadd.f32 0.0, %v672
        %v674 = vpop.f32.mrf.mxu0
        %v675 = vpop.f32.mrf.mxu0
        %v676 = vadd.f32 0.0, %v675
        %v677 = vpop.f32.mrf.mxu0
        %678 = vmatprep.mubr.bf16.mxu0 0
        %679 = vmatmul.mubr.bf16.gmra.mxu0 %v519
        %v680 = vpop.f32.mrf.mxu0
        %v681 = vadd.f32 0.0, %v680
        %v682 = vpop.f32.mrf.mxu0
        %v683 = vpop.f32.mrf.mxu0
        %v684 = vadd.f32 0.0, %v683
        %v685 = vpop.f32.mrf.mxu0
        %686 = vmatprep.mubr.bf16.mxu0 0
        %687 = vmatmul.mubr.bf16.gmra.mxu0 %v522
        %v688 = vpop.f32.mrf.mxu0
        %v689 = vadd.f32 0.0, %v688
        %v690 = vpop.f32.mrf.mxu0
        %v691 = vpop.f32.mrf.mxu0
        %v692 = vadd.f32 0.0, %v691
        %v693 = vpop.f32.mrf.mxu0
        %694 = vmatprep.mubr.bf16.mxu0 0
        %695 = vmatmul.mubr.bf16.gmra.mxu0 %v525
        %v696 = vpop.f32.mrf.mxu0
        %v697 = vadd.f32 0.0, %v696
        %v698 = vpop.f32.mrf.mxu0
        %v699 = vpop.f32.mrf.mxu0
        %v700 = vadd.f32 0.0, %v699
        %v701 = vpop.f32.mrf.mxu0
        %702 = vmatprep.mubr.bf16.mxu0 0
        %703 = vmatmul.mubr.bf16.gmra.mxu0 %v528
        %v704 = vpop.f32.mrf.mxu0
        %v705 = vadd.f32 0.0, %v704
        %v706 = vpop.f32.mrf.mxu0
        %v707 = vpop.f32.mrf.mxu0
        %v708 = vadd.f32 0.0, %v707
        %v709 = vpop.f32.mrf.mxu0
        %710 = vdwg.mxu0
        %v712 = vunpack.c.l.b16 %v338
        %v713 = vpack.c.b16 %v712, %v712
        %vm714 = vsmask.f32 6400
        %v716 = vshrl.u32 %v418, 16
        %v718 = vrot.slane %v716, 1
        %v719 = vshll.u32 %v418, 16
        %v721 = vrot.slane %v719, 2
        %v722 = vor.u32 %v718, %v721
        %v724 = vshrl.u32 %v419, 16
        %v726 = vrot.slane %v724, 1
        %v727 = vshll.u32 %v419, 16
        %v729 = vrot.slane %v727, 2
        %v730 = vor.u32 %v726, %v729
        %v731 = vsel %vm714, %v722, %v730
        %v733 = vshrl.u32 %v420, 16
        %v735 = vrot.slane %v733, 1
        %v736 = vshll.u32 %v420, 16
        %v738 = vrot.slane %v736, 2
        %v739 = vor.u32 %v735, %v738
        %v740 = vsel %vm714, %v730, %v739
        %v742 = vshrl.u32 %v421, 16
        %v744 = vrot.slane %v742, 1
        %v745 = vshll.u32 %v421, 16
        %v747 = vrot.slane %v745, 2
        %v748 = vor.u32 %v744, %v747
        %v749 = vsel %vm714, %v739, %v748
        %v751 = vshrl.u32 %v422, 16
        %v753 = vrot.slane %v751, 1
        %v754 = vshll.u32 %v422, 16
        %v756 = vrot.slane %v754, 2
        %v757 = vor.u32 %v753, %v756
        %v758 = vsel %vm714, %v748, %v757
        %v760 = vshrl.u32 %v423, 16
        %v762 = vrot.slane %v760, 1
        %v763 = vshll.u32 %v423, 16
        %v765 = vrot.slane %v763, 2
        %v766 = vor.u32 %v762, %v765
        %v767 = vsel %vm714, %v757, %v766
        %v769 = vshrl.u32 %v424, 16
        %v771 = vrot.slane %v769, 1
        %v772 = vshll.u32 %v424, 16
        %v774 = vrot.slane %v772, 2
        %v775 = vor.u32 %v771, %v774
        %v776 = vsel %vm714, %v766, %v775
        %v778 = vshrl.u32 %v425, 16
        %v780 = vrot.slane %v778, 1
        %v781 = vshll.u32 %v425, 16
        %v783 = vrot.slane %v781, 2
        %v784 = vor.u32 %v780, %v783
        %v785 = vsel %vm714, %v775, %v784
        %v787 = vshrl.u32 %v426, 16
        %v789 = vrot.slane %v787, 1
        %v790 = vshll.u32 %v426, 16
        %v792 = vrot.slane %v790, 2
        %v793 = vor.u32 %v789, %v792
        %v794 = vsel %vm714, %v784, %v793
        %v796 = vshrl.u32 %v427, 16
        %v798 = vrot.slane %v796, 1
        %v799 = vshll.u32 %v427, 16
        %v801 = vrot.slane %v799, 2
        %v802 = vor.u32 %v798, %v801
        %v803 = vsel %vm714, %v793, %v802
        %v805 = vshrl.u32 %v428, 16
        %v807 = vrot.slane %v805, 1
        %v808 = vshll.u32 %v428, 16
        %v810 = vrot.slane %v808, 2
        %v811 = vor.u32 %v807, %v810
        %v812 = vsel %vm714, %v802, %v811
        %v814 = vshrl.u32 %v429, 16
        %v816 = vrot.slane %v814, 1
        %v817 = vshll.u32 %v429, 16
        %v819 = vrot.slane %v817, 2
        %v820 = vor.u32 %v816, %v819
        %v821 = vsel %vm714, %v811, %v820
        %v823 = vshrl.u32 %v430, 16
        %v825 = vrot.slane %v823, 1
        %v826 = vshll.u32 %v430, 16
        %v828 = vrot.slane %v826, 2
        %v829 = vor.u32 %v825, %v828
        %v830 = vsel %vm714, %v820, %v829
        %v832 = vshrl.u32 %v431, 16
        %v834 = vrot.slane %v832, 1
        %v835 = vshll.u32 %v431, 16
        %v837 = vrot.slane %v835, 2
        %v838 = vor.u32 %v834, %v837
        %v839 = vsel %vm714, %v829, %v838
        %v841 = vshrl.u32 %v432, 16
        %v843 = vrot.slane %v841, 1
        %v844 = vshll.u32 %v432, 16
        %v846 = vrot.slane %v844, 2
        %v847 = vor.u32 %v843, %v846
        %v848 = vsel %vm714, %v838, %v847
        %v850 = vshrl.u32 %v433, 16
        %v852 = vrot.slane %v850, 1
        %v853 = vshll.u32 %v433, 16
        %v855 = vrot.slane %v853, 2
        %v856 = vor.u32 %v852, %v855
        %v857 = vsel %vm714, %v847, %v856
        %v859 = vshrl.u32 %v434, 16
        %v861 = vrot.slane %v859, 1
        %v862 = vshll.u32 %v434, 16
        %v864 = vrot.slane %v862, 2
        %v865 = vor.u32 %v861, %v864
        %v866 = vsel %vm714, %v856, %v865
        %v868 = vshrl.u32 %v435, 16
        %v870 = vrot.slane %v868, 1
        %v871 = vshll.u32 %v435, 16
        %v873 = vrot.slane %v871, 2
        %v874 = vor.u32 %v870, %v873
        %v875 = vsel %vm714, %v865, %v874
        %v877 = vshrl.u32 %v713, 16
        %v879 = vrot.slane %v877, 1
        %v880 = vshll.u32 %v713, 16
        %v882 = vrot.slane %v880, 2
        %v883 = vor.u32 %v879, %v882
        %v884 = vsel %vm714, %v874, %v883
        %v886 = vsel %vm475, %v731, 0
        %v889 = vsel %vm475, %v740, 0
        %v892 = vsel %vm475, %v749, 0
        %v895 = vsel %vm475, %v758, 0
        %v898 = vsel %vm475, %v767, 0
        %v901 = vsel %vm475, %v776, 0
        %v904 = vsel %vm475, %v785, 0
        %v907 = vsel %vm475, %v794, 0
        %v910 = vsel %vm475, %v803, 0
        %v913 = vsel %vm475, %v812, 0
        %v916 = vsel %vm475, %v821, 0
        %v919 = vsel %vm475, %v830, 0
        %v922 = vsel %vm475, %v839, 0
        %v925 = vsel %vm475, %v848, 0
        %v928 = vsel %vm475, %v857, 0
        %v931 = vsel %vm475, %v866, 0
        %v934 = vsel %vm475, %v875, 0
        %v937 = vsel %vm475, %v884, 0
        %v940 = vsel %vm530, %v340, 0
        %942 = vmatprep.subr.bf16.mxu0 0
        %943 = vmatpush1.bf16.msra.mxu0 0
        %944 = vmatprep.subr.bf16.mxu0 0
        %945 = vmatpush1.bf16.msra.mxu0 0
        %946 = vmatprep.subr.bf16.mxu0 0
        %947 = vmatpush1.bf16.msra.mxu0 0
        %948 = vmatprep.subr.bf16.mxu0 0
        %949 = vmatpush1.bf16.msra.mxu0 0
        %950 = vmatprep.subr.bf16.mxu0 0
        %951 = vmatpush1.bf16.msra.mxu0 0
        %952 = vmatprep.subr.bf16.mxu0 0
        %953 = vmatpush1.bf16.msra.mxu0 0
        %954 = vmatprep.subr.bf16.mxu0 0
        %955 = vmatpush1.bf16.msra.mxu0 0
        %956 = vmatprep.subr.bf16.mxu0 0
        %957 = vmatpush1.bf16.msra.mxu0 %v940
        %958 = vmatprep.subr.bf16.mxu0 0
        %959 = vmatpush2.bf16.msra.mxu0 0
        %960 = vmatprep.subr.bf16.mxu0 0
        %961 = vmatpush2.bf16.msra.mxu0 0
        %962 = vmatprep.subr.bf16.mxu0 0
        %963 = vmatpush2.bf16.msra.mxu0 0
        %964 = vmatprep.subr.bf16.mxu0 0
        %965 = vmatpush2.bf16.msra.mxu0 0
        %966 = vmatprep.subr.bf16.mxu0 0
        %967 = vmatpush2.bf16.msra.mxu0 0
        %968 = vmatprep.subr.bf16.mxu0 0
        %969 = vmatpush2.bf16.msra.mxu0 0
        %970 = vmatprep.subr.bf16.mxu0 0
        %971 = vmatpush2.bf16.msra.mxu0 0
        %972 = vmatprep.subr.bf16.mxu0 0
        %973 = vmatpush2.bf16.msra.mxu0 0
        %974 = vmatprep.mubr.bf16.mxu0 0
        %975 = vmatmul.mubr.bf16.gmra.mxu0 %v886
        %v976 = vpop.f32.mrf.mxu0
        %v977 = vadd.f32 %v569, %v976
        %v978 = vpop.f32.mrf.mxu0
        %v979 = vpop.f32.mrf.mxu0
        %v980 = vadd.f32 %v572, %v979
        %v981 = vpop.f32.mrf.mxu0
        %982 = vmatprep.mubr.bf16.mxu0 0
        %983 = vmatmul.mubr.bf16.gmra.mxu0 %v889
        %v984 = vpop.f32.mrf.mxu0
        %v985 = vadd.f32 %v577, %v984
        %v986 = vpop.f32.mrf.mxu0
        %v987 = vpop.f32.mrf.mxu0
        %v988 = vadd.f32 %v580, %v987
        %v989 = vpop.f32.mrf.mxu0
        %990 = vmatprep.mubr.bf16.mxu0 0
        %991 = vmatmul.mubr.bf16.gmra.mxu0 %v892
        %v992 = vpop.f32.mrf.mxu0
        %v993 = vadd.f32 %v585, %v992
        %v994 = vpop.f32.mrf.mxu0
        %v995 = vpop.f32.mrf.mxu0
        %v996 = vadd.f32 %v588, %v995
        %v997 = vpop.f32.mrf.mxu0
        %998 = vmatprep.mubr.bf16.mxu0 0
        %999 = vmatmul.mubr.bf16.gmra.mxu0 %v895
        %v1000 = vpop.f32.mrf.mxu0
        %v1001 = vadd.f32 %v593, %v1000
        %v1002 = vpop.f32.mrf.mxu0
        %v1003 = vpop.f32.mrf.mxu0
        %v1004 = vadd.f32 %v596, %v1003
        %v1005 = vpop.f32.mrf.mxu0
        %1006 = vmatprep.mubr.bf16.mxu0 0
        %1007 = vmatmul.mubr.bf16.gmra.mxu0 %v898
        %v1008 = vpop.f32.mrf.mxu0
        %v1009 = vadd.f32 %v601, %v1008
        %v1010 = vpop.f32.mrf.mxu0
        %v1011 = vpop.f32.mrf.mxu0
        %v1012 = vadd.f32 %v604, %v1011
        %v1013 = vpop.f32.mrf.mxu0
        %1014 = vmatprep.mubr.bf16.mxu0 0
        %1015 = vmatmul.mubr.bf16.gmra.mxu0 %v901
        %v1016 = vpop.f32.mrf.mxu0
        %v1017 = vadd.f32 %v609, %v1016
        %v1018 = vpop.f32.mrf.mxu0
        %v1019 = vpop.f32.mrf.mxu0
        %v1020 = vadd.f32 %v612, %v1019
        %v1021 = vpop.f32.mrf.mxu0
        %1022 = vmatprep.mubr.bf16.mxu0 0
        %1023 = vmatmul.mubr.bf16.gmra.mxu0 %v904
        %v1024 = vpop.f32.mrf.mxu0
        %v1025 = vadd.f32 %v617, %v1024
        %v1026 = vpop.f32.mrf.mxu0
        %v1027 = vpop.f32.mrf.mxu0
        %v1028 = vadd.f32 %v620, %v1027
        %v1029 = vpop.f32.mrf.mxu0
        %1030 = vmatprep.mubr.bf16.mxu0 0
        %1031 = vmatmul.mubr.bf16.gmra.mxu0 %v907
        %v1032 = vpop.f32.mrf.mxu0
        %v1033 = vadd.f32 %v625, %v1032
        %v1034 = vpop.f32.mrf.mxu0
        %v1035 = vpop.f32.mrf.mxu0
        %v1036 = vadd.f32 %v628, %v1035
        %v1037 = vpop.f32.mrf.mxu0
        %1038 = vmatprep.mubr.bf16.mxu0 0
        %1039 = vmatmul.mubr.bf16.gmra.mxu0 %v910
        %v1040 = vpop.f32.mrf.mxu0
        %v1041 = vadd.f32 %v633, %v1040
        %v1042 = vpop.f32.mrf.mxu0
        %v1043 = vpop.f32.mrf.mxu0
        %v1044 = vadd.f32 %v636, %v1043
        %v1045 = vpop.f32.mrf.mxu0
        %1046 = vmatprep.mubr.bf16.mxu0 0
        %1047 = vmatmul.mubr.bf16.gmra.mxu0 %v913
        %v1048 = vpop.f32.mrf.mxu0
        %v1049 = vadd.f32 %v641, %v1048
        %v1050 = vpop.f32.mrf.mxu0
        %v1051 = vpop.f32.mrf.mxu0
        %v1052 = vadd.f32 %v644, %v1051
        %v1053 = vpop.f32.mrf.mxu0
        %1054 = vmatprep.mubr.bf16.mxu0 0
        %1055 = vmatmul.mubr.bf16.gmra.mxu0 %v916
        %v1056 = vpop.f32.mrf.mxu0
        %v1057 = vadd.f32 %v649, %v1056
        %v1058 = vpop.f32.mrf.mxu0
        %v1059 = vpop.f32.mrf.mxu0
        %v1060 = vadd.f32 %v652, %v1059
        %v1061 = vpop.f32.mrf.mxu0
        %1062 = vmatprep.mubr.bf16.mxu0 0
        %1063 = vmatmul.mubr.bf16.gmra.mxu0 %v919
        %v1064 = vpop.f32.mrf.mxu0
        %v1065 = vadd.f32 %v657, %v1064
        %v1066 = vpop.f32.mrf.mxu0
        %v1067 = vpop.f32.mrf.mxu0
        %v1068 = vadd.f32 %v660, %v1067
        %v1069 = vpop.f32.mrf.mxu0
        %1070 = vmatprep.mubr.bf16.mxu0 0
        %1071 = vmatmul.mubr.bf16.gmra.mxu0 %v922
        %v1072 = vpop.f32.mrf.mxu0
        %v1073 = vadd.f32 %v665, %v1072
        %v1074 = vpop.f32.mrf.mxu0
        %v1075 = vpop.f32.mrf.mxu0
        %v1076 = vadd.f32 %v668, %v1075
        %v1077 = vpop.f32.mrf.mxu0
        %1078 = vmatprep.mubr.bf16.mxu0 0
        %1079 = vmatmul.mubr.bf16.gmra.mxu0 %v925
        %v1080 = vpop.f32.mrf.mxu0
        %v1081 = vadd.f32 %v673, %v1080
        %v1082 = vpop.f32.mrf.mxu0
        %v1083 = vpop.f32.mrf.mxu0
        %v1084 = vadd.f32 %v676, %v1083
        %v1085 = vpop.f32.mrf.mxu0
        %1086 = vmatprep.mubr.bf16.mxu0 0
        %1087 = vmatmul.mubr.bf16.gmra.mxu0 %v928
        %v1088 = vpop.f32.mrf.mxu0
        %v1089 = vadd.f32 %v681, %v1088
        %v1090 = vpop.f32.mrf.mxu0
        %v1091 = vpop.f32.mrf.mxu0
        %v1092 = vadd.f32 %v684, %v1091
        %v1093 = vpop.f32.mrf.mxu0
        %1094 = vmatprep.mubr.bf16.mxu0 0
        %1095 = vmatmul.mubr.bf16.gmra.mxu0 %v931
        %v1096 = vpop.f32.mrf.mxu0
        %v1097 = vadd.f32 %v689, %v1096
        %v1098 = vpop.f32.mrf.mxu0
        %v1099 = vpop.f32.mrf.mxu0
        %v1100 = vadd.f32 %v692, %v1099
        %v1101 = vpop.f32.mrf.mxu0
        %1102 = vmatprep.mubr.bf16.mxu0 0
        %1103 = vmatmul.mubr.bf16.gmra.mxu0 %v934
        %v1104 = vpop.f32.mrf.mxu0
        %v1105 = vadd.f32 %v697, %v1104
        %v1106 = vpop.f32.mrf.mxu0
        %v1107 = vpop.f32.mrf.mxu0
        %v1108 = vadd.f32 %v700, %v1107
        %v1109 = vpop.f32.mrf.mxu0
        %1110 = vmatprep.mubr.bf16.mxu0 0
        %1111 = vmatmul.mubr.bf16.gmra.mxu0 %v937
        %v1112 = vpop.f32.mrf.mxu0
        %v1113 = vadd.f32 %v705, %v1112
        %v1114 = vpop.f32.mrf.mxu0
        %v1115 = vpop.f32.mrf.mxu0
        %v1116 = vadd.f32 %v708, %v1115
        %v1117 = vpop.f32.mrf.mxu0
        %1118 = vdwg.mxu0
        %v1119 = vld [vmem:[%s259] sm:$0xf]
        %v1120 = vld [vmem:[%s259 + $0x4] sm:$0xf]
        %v1121 = vld [vmem:[%s259 + $0x8] sm:$0xf]
        %v1122 = vld [vmem:[%s259 + $0xc] sm:$0xf]
        %v1123 = vld [vmem:[%s259 + $0x10] sm:$0xf]
        %v1124 = vld [vmem:[%s259 + $0x14] sm:$0xf]
        %v1125 = vld [vmem:[%s259 + $0x18] sm:$0xf]
        %v1126 = vld [vmem:[%s259 + $0x1c] sm:$0xf]
        %v1127 = vld [vmem:[%s259 + $0x20] sm:$0xf]
        %v1128 = vld [vmem:[%s259 + $0x24] sm:$0xf]
        %v1129 = vld [vmem:[%s259 + $0x28] sm:$0xf]
        %v1130 = vld [vmem:[%s259 + $0x2c] sm:$0xf]
        %v1131 = vld [vmem:[%s259 + $0x30] sm:$0xf]
        %v1132 = vld [vmem:[%s259 + $0x34] sm:$0xf]
        %v1133 = vld [vmem:[%s259 + $0x38] sm:$0xf]
        %v1134 = vld [vmem:[%s259 + $0x3c] sm:$0xf]
        %v1135 = vld [vmem:[%s259 + $0x40] sm:$0xf]
        %v1136 = vld [vmem:[%s259 + $0x44] sm:$0xf]
        %v1137 = vld [vmem:[%s259 + $0x48] sm:$0xf]
        %v1138 = vld [vmem:[%s259 + $0x4c] sm:$0xf]
        %v1139 = vld [vmem:[%s259 + $0x50] sm:$0xf]
        %v1140 = vld [vmem:[%s259 + $0x54] sm:$0xf]
        %v1141 = vld [vmem:[%s259 + $0x58] sm:$0xf]
        %v1142 = vld [vmem:[%s259 + $0x5c] sm:$0xf]
        %v1143 = vld [vmem:[%s259 + $0x60] sm:$0xf]
        %v1144 = vld [vmem:[%s259 + $0x64] sm:$0xf]
        %v1145 = vld [vmem:[%s259 + $0x68] sm:$0xf]
        %v1146 = vld [vmem:[%s259 + $0x6c] sm:$0xf]
        %v1147 = vld [vmem:[%s259 + $0x70] sm:$0xf]
        %v1148 = vld [vmem:[%s259 + $0x74] sm:$0xf]
        %v1149 = vld [vmem:[%s259 + $0x78] sm:$0xf]
        %v1150 = vld [vmem:[%s259 + $0x7c] sm:$0xf]
        %v1151 = vld [vmem:[%s259 + $0x80] sm:$0xf]
        %v1152 = vld [vmem:[%s259 + $0x84] sm:$0xf]
        %v1153 = vld [vmem:[%s259 + $0x88] sm:$0xf]
        %v1154 = vld [vmem:[%s259 + $0x8c] sm:$0xf]
        %v1155 = vld [vmem:[%s259 + $0x90] sm:$0x1]
        %s1156 = scalar_lea.vmem [#allocation2], 26
        %v1157 = vld [vmem:[%s1156] sm:$0x3]
        %v1195 = vunpack.c.l.b16 %v1119
        %v1196 = vunpack.c.l.b16 %v1120
        %v1197 = vunpack.c.l.b16 %v1121
        %v1198 = vunpack.c.l.b16 %v1122
        %v1199 = vunpack.c.l.b16 %v1123
        %v1200 = vunpack.c.l.b16 %v1124
        %v1201 = vunpack.c.l.b16 %v1125
        %v1202 = vunpack.c.l.b16 %v1126
        %v1203 = vunpack.c.l.b16 %v1127
        %v1204 = vunpack.c.l.b16 %v1128
        %v1205 = vunpack.c.l.b16 %v1129
        %v1206 = vunpack.c.l.b16 %v1130
        %v1207 = vunpack.c.l.b16 %v1131
        %v1208 = vunpack.c.l.b16 %v1132
        %v1209 = vunpack.c.l.b16 %v1133
        %v1210 = vunpack.c.l.b16 %v1134
        %v1211 = vunpack.c.l.b16 %v1135
        %v1212 = vunpack.c.l.b16 %v1136
        %v1213 = vunpack.c.l.b16 %v1137
        %v1214 = vunpack.c.l.b16 %v1138
        %v1215 = vunpack.c.l.b16 %v1139
        %v1216 = vunpack.c.l.b16 %v1140
        %v1217 = vunpack.c.l.b16 %v1141
        %v1218 = vunpack.c.l.b16 %v1142
        %v1219 = vunpack.c.l.b16 %v1143
        %v1220 = vunpack.c.l.b16 %v1144
        %v1221 = vunpack.c.l.b16 %v1145
        %v1222 = vunpack.c.l.b16 %v1146
        %v1223 = vunpack.c.l.b16 %v1147
        %v1224 = vunpack.c.l.b16 %v1148
        %v1225 = vunpack.c.l.b16 %v1149
        %v1226 = vunpack.c.l.b16 %v1150
        %v1227 = vunpack.c.l.b16 %v1151
        %v1228 = vunpack.c.l.b16 %v1152
        %v1229 = vunpack.c.l.b16 %v1153
        %v1230 = vunpack.c.l.b16 %v1154
        %v1231 = vunpack.c.l.b16 %v1155
        %v1232 = vpack.c.b16 %v1196, %v1195
        %v1233 = vpack.c.b16 %v1198, %v1197
        %v1234 = vpack.c.b16 %v1200, %v1199
        %v1235 = vpack.c.b16 %v1202, %v1201
        %v1236 = vpack.c.b16 %v1204, %v1203
        %v1237 = vpack.c.b16 %v1206, %v1205
        %v1238 = vpack.c.b16 %v1208, %v1207
        %v1239 = vpack.c.b16 %v1210, %v1209
        %v1240 = vpack.c.b16 %v1212, %v1211
        %v1241 = vpack.c.b16 %v1214, %v1213
        %v1242 = vpack.c.b16 %v1216, %v1215
        %v1243 = vpack.c.b16 %v1218, %v1217
        %v1244 = vpack.c.b16 %v1220, %v1219
        %v1245 = vpack.c.b16 %v1222, %v1221
        %v1246 = vpack.c.b16 %v1224, %v1223
        %v1247 = vpack.c.b16 %v1226, %v1225
        %v1248 = vpack.c.b16 %v1228, %v1227
        %v1249 = vpack.c.b16 %v1230, %v1229
        %v1250 = vpack.c.b16 %v1231, %v1231
        %vm1251 = vsmask.f32 7424
        %v1253 = vshrl.u32 %v1232, 16
        %v1255 = vshll.u32 %v1232, 16
        %v1257 = vrot.slane %v1255, 1
        %v1258 = vor.u32 %v1253, %v1257
        %v1260 = vshll.u32 %v1233, 16
        %v1262 = vrot.slane %v1260, 1
        %v1263 = vsel %vm1251, %v1258, %v1262
        %v1264 = vshrl.u32 %v1233, 16
        %v1266 = vor.u32 %v1264, %v1262
        %v1268 = vshll.u32 %v1234, 16
        %v1270 = vrot.slane %v1268, 1
        %v1271 = vsel %vm1251, %v1266, %v1270
        %v1272 = vshrl.u32 %v1234, 16
        %v1274 = vor.u32 %v1272, %v1270
        %v1276 = vshll.u32 %v1235, 16
        %v1278 = vrot.slane %v1276, 1
        %v1279 = vsel %vm1251, %v1274, %v1278
        %v1280 = vshrl.u32 %v1235, 16
        %v1282 = vor.u32 %v1280, %v1278
        %v1284 = vshll.u32 %v1236, 16
        %v1286 = vrot.slane %v1284, 1
        %v1287 = vsel %vm1251, %v1282, %v1286
        %v1288 = vshrl.u32 %v1236, 16
        %v1290 = vor.u32 %v1288, %v1286
        %v1292 = vshll.u32 %v1237, 16
        %v1294 = vrot.slane %v1292, 1
        %v1295 = vsel %vm1251, %v1290, %v1294
        %v1296 = vshrl.u32 %v1237, 16
        %v1298 = vor.u32 %v1296, %v1294
        %v1300 = vshll.u32 %v1238, 16
        %v1302 = vrot.slane %v1300, 1
        %v1303 = vsel %vm1251, %v1298, %v1302
        %v1304 = vshrl.u32 %v1238, 16
        %v1306 = vor.u32 %v1304, %v1302
        %v1308 = vshll.u32 %v1239, 16
        %v1310 = vrot.slane %v1308, 1
        %v1311 = vsel %vm1251, %v1306, %v1310
        %v1312 = vshrl.u32 %v1239, 16
        %v1314 = vor.u32 %v1312, %v1310
        %v1316 = vshll.u32 %v1240, 16
        %v1318 = vrot.slane %v1316, 1
        %v1319 = vsel %vm1251, %v1314, %v1318
        %v1320 = vshrl.u32 %v1240, 16
        %v1322 = vor.u32 %v1320, %v1318
        %v1324 = vshll.u32 %v1241, 16
        %v1326 = vrot.slane %v1324, 1
        %v1327 = vsel %vm1251, %v1322, %v1326
        %v1328 = vshrl.u32 %v1241, 16
        %v1330 = vor.u32 %v1328, %v1326
        %v1332 = vshll.u32 %v1242, 16
        %v1334 = vrot.slane %v1332, 1
        %v1335 = vsel %vm1251, %v1330, %v1334
        %v1336 = vshrl.u32 %v1242, 16
        %v1338 = vor.u32 %v1336, %v1334
        %v1340 = vshll.u32 %v1243, 16
        %v1342 = vrot.slane %v1340, 1
        %v1343 = vsel %vm1251, %v1338, %v1342
        %v1344 = vshrl.u32 %v1243, 16
        %v1346 = vor.u32 %v1344, %v1342
        %v1348 = vshll.u32 %v1244, 16
        %v1350 = vrot.slane %v1348, 1
        %v1351 = vsel %vm1251, %v1346, %v1350
        %v1352 = vshrl.u32 %v1244, 16
        %v1354 = vor.u32 %v1352, %v1350
        %v1356 = vshll.u32 %v1245, 16
        %v1358 = vrot.slane %v1356, 1
        %v1359 = vsel %vm1251, %v1354, %v1358
        %v1360 = vshrl.u32 %v1245, 16
        %v1362 = vor.u32 %v1360, %v1358
        %v1364 = vshll.u32 %v1246, 16
        %v1366 = vrot.slane %v1364, 1
        %v1367 = vsel %vm1251, %v1362, %v1366
        %v1368 = vshrl.u32 %v1246, 16
        %v1370 = vor.u32 %v1368, %v1366
        %v1372 = vshll.u32 %v1247, 16
        %v1374 = vrot.slane %v1372, 1
        %v1375 = vsel %vm1251, %v1370, %v1374
        %v1376 = vshrl.u32 %v1247, 16
        %v1378 = vor.u32 %v1376, %v1374
        %v1380 = vshll.u32 %v1248, 16
        %v1382 = vrot.slane %v1380, 1
        %v1383 = vsel %vm1251, %v1378, %v1382
        %v1384 = vshrl.u32 %v1248, 16
        %v1386 = vor.u32 %v1384, %v1382
        %v1388 = vshll.u32 %v1249, 16
        %v1390 = vrot.slane %v1388, 1
        %v1391 = vsel %vm1251, %v1386, %v1390
        %v1392 = vshrl.u32 %v1249, 16
        %v1394 = vor.u32 %v1392, %v1390
        %v1396 = vshll.u32 %v1250, 16
        %v1398 = vrot.slane %v1396, 1
        %v1399 = vsel %vm1251, %v1394, %v1398
        %v1401 = vsel %vm475, %v1263, 0
        %v1404 = vsel %vm475, %v1271, 0
        %v1407 = vsel %vm475, %v1279, 0
        %v1410 = vsel %vm475, %v1287, 0
        %v1413 = vsel %vm475, %v1295, 0
        %v1416 = vsel %vm475, %v1303, 0
        %v1419 = vsel %vm475, %v1311, 0
        %v1422 = vsel %vm475, %v1319, 0
        %v1425 = vsel %vm475, %v1327, 0
        %v1428 = vsel %vm475, %v1335, 0
        %v1431 = vsel %vm475, %v1343, 0
        %v1434 = vsel %vm475, %v1351, 0
        %v1437 = vsel %vm475, %v1359, 0
        %v1440 = vsel %vm475, %v1367, 0
        %v1443 = vsel %vm475, %v1375, 0
        %v1446 = vsel %vm475, %v1383, 0
        %v1449 = vsel %vm475, %v1391, 0
        %v1452 = vsel %vm475, %v1399, 0
        %v1455 = vsel %vm530, %v1157, 0
        %1457 = vmatprep.subr.bf16.mxu0 0
        %1458 = vmatpush1.bf16.msra.mxu0 0
        %1459 = vmatprep.subr.bf16.mxu0 0
        %1460 = vmatpush1.bf16.msra.mxu0 0
        %1461 = vmatprep.subr.bf16.mxu0 0
        %1462 = vmatpush1.bf16.msra.mxu0 0
        %1463 = vmatprep.subr.bf16.mxu0 0
        %1464 = vmatpush1.bf16.msra.mxu0 0
        %1465 = vmatprep.subr.bf16.mxu0 0
        %1466 = vmatpush1.bf16.msra.mxu0 0
        %1467 = vmatprep.subr.bf16.mxu0 0
        %1468 = vmatpush1.bf16.msra.mxu0 0
        %1469 = vmatprep.subr.bf16.mxu0 0
        %1470 = vmatpush1.bf16.msra.mxu0 0
        %1471 = vmatprep.subr.bf16.mxu0 0
        %1472 = vmatpush1.bf16.msra.mxu0 %v1455
        %1473 = vmatprep.subr.bf16.mxu0 0
        %1474 = vmatpush2.bf16.msra.mxu0 0
        %1475 = vmatprep.subr.bf16.mxu0 0
        %1476 = vmatpush2.bf16.msra.mxu0 0
        %1477 = vmatprep.subr.bf16.mxu0 0
        %1478 = vmatpush2.bf16.msra.mxu0 0
        %1479 = vmatprep.subr.bf16.mxu0 0
        %1480 = vmatpush2.bf16.msra.mxu0 0
        %1481 = vmatprep.subr.bf16.mxu0 0
        %1482 = vmatpush2.bf16.msra.mxu0 0
        %1483 = vmatprep.subr.bf16.mxu0 0
        %1484 = vmatpush2.bf16.msra.mxu0 0
        %1485 = vmatprep.subr.bf16.mxu0 0
        %1486 = vmatpush2.bf16.msra.mxu0 0
        %1487 = vmatprep.subr.bf16.mxu0 0
        %1488 = vmatpush2.bf16.msra.mxu0 0
        %1489 = vmatprep.mubr.bf16.mxu0 0
        %1490 = vmatmul.mubr.bf16.gmra.mxu0 %v1401
        %v1491 = vpop.f32.mrf.mxu0
        %v1492 = vadd.f32 0.0, %v1491
        %v1493 = vpop.f32.mrf.mxu0
        %v1494 = vpop.f32.mrf.mxu0
        %v1495 = vadd.f32 0.0, %v1494
        %v1496 = vpop.f32.mrf.mxu0
        %1497 = vmatprep.mubr.bf16.mxu0 0
        %1498 = vmatmul.mubr.bf16.gmra.mxu0 %v1404
        %v1499 = vpop.f32.mrf.mxu0
        %v1500 = vadd.f32 0.0, %v1499
        %v1501 = vpop.f32.mrf.mxu0
        %v1502 = vpop.f32.mrf.mxu0
        %v1503 = vadd.f32 0.0, %v1502
        %v1504 = vpop.f32.mrf.mxu0
        %1505 = vmatprep.mubr.bf16.mxu0 0
        %1506 = vmatmul.mubr.bf16.gmra.mxu0 %v1407
        %v1507 = vpop.f32.mrf.mxu0
        %v1508 = vadd.f32 0.0, %v1507
        %v1509 = vpop.f32.mrf.mxu0
        %v1510 = vpop.f32.mrf.mxu0
        %v1511 = vadd.f32 0.0, %v1510
        %v1512 = vpop.f32.mrf.mxu0
        %1513 = vmatprep.mubr.bf16.mxu0 0
        %1514 = vmatmul.mubr.bf16.gmra.mxu0 %v1410
        %v1515 = vpop.f32.mrf.mxu0
        %v1516 = vadd.f32 0.0, %v1515
        %v1517 = vpop.f32.mrf.mxu0
        %v1518 = vpop.f32.mrf.mxu0
        %v1519 = vadd.f32 0.0, %v1518
        %v1520 = vpop.f32.mrf.mxu0
        %1521 = vmatprep.mubr.bf16.mxu0 0
        %1522 = vmatmul.mubr.bf16.gmra.mxu0 %v1413
        %v1523 = vpop.f32.mrf.mxu0
        %v1524 = vadd.f32 0.0, %v1523
        %v1525 = vpop.f32.mrf.mxu0
        %v1526 = vpop.f32.mrf.mxu0
        %v1527 = vadd.f32 0.0, %v1526
        %v1528 = vpop.f32.mrf.mxu0
        %1529 = vmatprep.mubr.bf16.mxu0 0
        %1530 = vmatmul.mubr.bf16.gmra.mxu0 %v1416
        %v1531 = vpop.f32.mrf.mxu0
        %v1532 = vadd.f32 0.0, %v1531
        %v1533 = vpop.f32.mrf.mxu0
        %v1534 = vpop.f32.mrf.mxu0
        %v1535 = vadd.f32 0.0, %v1534
        %v1536 = vpop.f32.mrf.mxu0
        %1537 = vmatprep.mubr.bf16.mxu0 0
        %1538 = vmatmul.mubr.bf16.gmra.mxu0 %v1419
        %v1539 = vpop.f32.mrf.mxu0
        %v1540 = vadd.f32 0.0, %v1539
        %v1541 = vpop.f32.mrf.mxu0
        %v1542 = vpop.f32.mrf.mxu0
        %v1543 = vadd.f32 0.0, %v1542
        %v1544 = vpop.f32.mrf.mxu0
        %1545 = vmatprep.mubr.bf16.mxu0 0
        %1546 = vmatmul.mubr.bf16.gmra.mxu0 %v1422
        %v1547 = vpop.f32.mrf.mxu0
        %v1548 = vadd.f32 0.0, %v1547
        %v1549 = vpop.f32.mrf.mxu0
        %v1550 = vpop.f32.mrf.mxu0
        %v1551 = vadd.f32 0.0, %v1550
        %v1552 = vpop.f32.mrf.mxu0
        %1553 = vmatprep.mubr.bf16.mxu0 0
        %1554 = vmatmul.mubr.bf16.gmra.mxu0 %v1425
        %v1555 = vpop.f32.mrf.mxu0
        %v1556 = vadd.f32 0.0, %v1555
        %v1557 = vpop.f32.mrf.mxu0
        %v1558 = vpop.f32.mrf.mxu0
        %v1559 = vadd.f32 0.0, %v1558
        %v1560 = vpop.f32.mrf.mxu0
        %1561 = vmatprep.mubr.bf16.mxu0 0
        %1562 = vmatmul.mubr.bf16.gmra.mxu0 %v1428
        %v1563 = vpop.f32.mrf.mxu0
        %v1564 = vadd.f32 0.0, %v1563
        %v1565 = vpop.f32.mrf.mxu0
        %v1566 = vpop.f32.mrf.mxu0
        %v1567 = vadd.f32 0.0, %v1566
        %v1568 = vpop.f32.mrf.mxu0
        %1569 = vmatprep.mubr.bf16.mxu0 0
        %1570 = vmatmul.mubr.bf16.gmra.mxu0 %v1431
        %v1571 = vpop.f32.mrf.mxu0
        %v1572 = vadd.f32 0.0, %v1571
        %v1573 = vpop.f32.mrf.mxu0
        %v1574 = vpop.f32.mrf.mxu0
        %v1575 = vadd.f32 0.0, %v1574
        %v1576 = vpop.f32.mrf.mxu0
        %1577 = vmatprep.mubr.bf16.mxu0 0
        %1578 = vmatmul.mubr.bf16.gmra.mxu0 %v1434
        %v1579 = vpop.f32.mrf.mxu0
        %v1580 = vadd.f32 0.0, %v1579
        %v1581 = vpop.f32.mrf.mxu0
        %v1582 = vpop.f32.mrf.mxu0
        %v1583 = vadd.f32 0.0, %v1582
        %v1584 = vpop.f32.mrf.mxu0
        %1585 = vmatprep.mubr.bf16.mxu0 0
        %1586 = vmatmul.mubr.bf16.gmra.mxu0 %v1437
        %v1587 = vpop.f32.mrf.mxu0
        %v1588 = vadd.f32 0.0, %v1587
        %v1589 = vpop.f32.mrf.mxu0
        %v1590 = vpop.f32.mrf.mxu0
        %v1591 = vadd.f32 0.0, %v1590
        %v1592 = vpop.f32.mrf.mxu0
        %1593 = vmatprep.mubr.bf16.mxu0 0
        %1594 = vmatmul.mubr.bf16.gmra.mxu0 %v1440
        %v1595 = vpop.f32.mrf.mxu0
        %v1596 = vadd.f32 0.0, %v1595
        %v1597 = vpop.f32.mrf.mxu0
        %v1598 = vpop.f32.mrf.mxu0
        %v1599 = vadd.f32 0.0, %v1598
        %v1600 = vpop.f32.mrf.mxu0
        %1601 = vmatprep.mubr.bf16.mxu0 0
        %1602 = vmatmul.mubr.bf16.gmra.mxu0 %v1443
        %v1603 = vpop.f32.mrf.mxu0
        %v1604 = vadd.f32 0.0, %v1603
        %v1605 = vpop.f32.mrf.mxu0
        %v1606 = vpop.f32.mrf.mxu0
        %v1607 = vadd.f32 0.0, %v1606
        %v1608 = vpop.f32.mrf.mxu0
        %1609 = vmatprep.mubr.bf16.mxu0 0
        %1610 = vmatmul.mubr.bf16.gmra.mxu0 %v1446
        %v1611 = vpop.f32.mrf.mxu0
        %v1612 = vadd.f32 0.0, %v1611
        %v1613 = vpop.f32.mrf.mxu0
        %v1614 = vpop.f32.mrf.mxu0
        %v1615 = vadd.f32 0.0, %v1614
        %v1616 = vpop.f32.mrf.mxu0
        %1617 = vmatprep.mubr.bf16.mxu0 0
        %1618 = vmatmul.mubr.bf16.gmra.mxu0 %v1449
        %v1619 = vpop.f32.mrf.mxu0
        %v1620 = vadd.f32 0.0, %v1619
        %v1621 = vpop.f32.mrf.mxu0
        %v1622 = vpop.f32.mrf.mxu0
        %v1623 = vadd.f32 0.0, %v1622
        %v1624 = vpop.f32.mrf.mxu0
        %1625 = vmatprep.mubr.bf16.mxu0 0
        %1626 = vmatmul.mubr.bf16.gmra.mxu0 %v1452
        %v1627 = vpop.f32.mrf.mxu0
        %v1628 = vadd.f32 0.0, %v1627
        %v1629 = vpop.f32.mrf.mxu0
        %v1630 = vpop.f32.mrf.mxu0
        %v1631 = vadd.f32 0.0, %v1630
        %v1632 = vpop.f32.mrf.mxu0
        %1633 = vdwg.mxu0
        %v1634 = vadd.f32 %v977, %v1492
        %v1635 = vadd.f32 %v980, %v1495
        %v1636 = vadd.f32 %v985, %v1500
        %v1637 = vadd.f32 %v988, %v1503
        %v1638 = vadd.f32 %v993, %v1508
        %v1639 = vadd.f32 %v996, %v1511
        %v1640 = vadd.f32 %v1001, %v1516
        %v1641 = vadd.f32 %v1004, %v1519
        %v1642 = vadd.f32 %v1009, %v1524
        %v1643 = vadd.f32 %v1012, %v1527
        %v1644 = vadd.f32 %v1017, %v1532
        %v1645 = vadd.f32 %v1020, %v1535
        %v1646 = vadd.f32 %v1025, %v1540
        %v1647 = vadd.f32 %v1028, %v1543
        %v1648 = vadd.f32 %v1033, %v1548
        %v1649 = vadd.f32 %v1036, %v1551
        %v1650 = vadd.f32 %v1041, %v1556
        %v1651 = vadd.f32 %v1044, %v1559
        %v1652 = vadd.f32 %v1049, %v1564
        %v1653 = vadd.f32 %v1052, %v1567
        %v1654 = vadd.f32 %v1057, %v1572
        %v1655 = vadd.f32 %v1060, %v1575
        %v1656 = vadd.f32 %v1065, %v1580
        %v1657 = vadd.f32 %v1068, %v1583
        %v1658 = vadd.f32 %v1073, %v1588
        %v1659 = vadd.f32 %v1076, %v1591
        %v1660 = vadd.f32 %v1081, %v1596
        %v1661 = vadd.f32 %v1084, %v1599
        %v1662 = vadd.f32 %v1089, %v1604
        %v1663 = vadd.f32 %v1092, %v1607
        %v1664 = vadd.f32 %v1097, %v1612
        %v1665 = vadd.f32 %v1100, %v1615
        %v1666 = vadd.f32 %v1105, %v1620
        %v1667 = vadd.f32 %v1108, %v1623
        %v1668 = vadd.f32 %v1113, %v1628
        %v1669 = vadd.f32 %v1116, %v1631
        %v1670 = vld [vmem:[%s259] sm:$0xf]
        %v1671 = vld [vmem:[%s259 + $0x4] sm:$0xf]
        %v1672 = vld [vmem:[%s259 + $0x8] sm:$0xf]
        %v1673 = vld [vmem:[%s259 + $0xc] sm:$0xf]
        %v1674 = vld [vmem:[%s259 + $0x10] sm:$0xf]
        %v1675 = vld [vmem:[%s259 + $0x14] sm:$0xf]
        %v1676 = vld [vmem:[%s259 + $0x18] sm:$0xf]
        %v1677 = vld [vmem:[%s259 + $0x1c] sm:$0xf]
        %v1678 = vld [vmem:[%s259 + $0x20] sm:$0xf]
        %v1679 = vld [vmem:[%s259 + $0x24] sm:$0xf]
        %v1680 = vld [vmem:[%s259 + $0x28] sm:$0xf]
        %v1681 = vld [vmem:[%s259 + $0x2c] sm:$0xf]
        %v1682 = vld [vmem:[%s259 + $0x30] sm:$0xf]
        %v1683 = vld [vmem:[%s259 + $0x34] sm:$0xf]
        %v1684 = vld [vmem:[%s259 + $0x38] sm:$0xf]
        %v1685 = vld [vmem:[%s259 + $0x3c] sm:$0xf]
        %v1686 = vld [vmem:[%s259 + $0x40] sm:$0xf]
        %v1687 = vld [vmem:[%s259 + $0x44] sm:$0xf]
        %v1688 = vld [vmem:[%s259 + $0x48] sm:$0xf]
        %v1689 = vld [vmem:[%s259 + $0x4c] sm:$0xf]
        %v1690 = vld [vmem:[%s259 + $0x50] sm:$0xf]
        %v1691 = vld [vmem:[%s259 + $0x54] sm:$0xf]
        %v1692 = vld [vmem:[%s259 + $0x58] sm:$0xf]
        %v1693 = vld [vmem:[%s259 + $0x5c] sm:$0xf]
        %v1694 = vld [vmem:[%s259 + $0x60] sm:$0xf]
        %v1695 = vld [vmem:[%s259 + $0x64] sm:$0xf]
        %v1696 = vld [vmem:[%s259 + $0x68] sm:$0xf]
        %v1697 = vld [vmem:[%s259 + $0x6c] sm:$0xf]
        %v1698 = vld [vmem:[%s259 + $0x70] sm:$0xf]
        %v1699 = vld [vmem:[%s259 + $0x74] sm:$0xf]
        %v1700 = vld [vmem:[%s259 + $0x78] sm:$0xf]
        %v1701 = vld [vmem:[%s259 + $0x7c] sm:$0xf]
        %v1702 = vld [vmem:[%s259 + $0x80] sm:$0xf]
        %v1703 = vld [vmem:[%s259 + $0x84] sm:$0xf]
        %v1704 = vld [vmem:[%s259 + $0x88] sm:$0xf]
        %v1705 = vld [vmem:[%s259 + $0x8c] sm:$0xf]
        %s1706 = scalar_lea.vmem [#allocation2], 30
        %v1707 = vld [vmem:[%s1706] sm:$0x3]
        %v1744 = vunpack.c.l.b16 %v1670
        %v1745 = vunpack.c.l.b16 %v1671
        %v1746 = vunpack.c.l.b16 %v1672
        %v1747 = vunpack.c.l.b16 %v1673
        %v1748 = vunpack.c.l.b16 %v1674
        %v1749 = vunpack.c.l.b16 %v1675
        %v1750 = vunpack.c.l.b16 %v1676
        %v1751 = vunpack.c.l.b16 %v1677
        %v1752 = vunpack.c.l.b16 %v1678
        %v1753 = vunpack.c.l.b16 %v1679
        %v1754 = vunpack.c.l.b16 %v1680
        %v1755 = vunpack.c.l.b16 %v1681
        %v1756 = vunpack.c.l.b16 %v1682
        %v1757 = vunpack.c.l.b16 %v1683
        %v1758 = vunpack.c.l.b16 %v1684
        %v1759 = vunpack.c.l.b16 %v1685
        %v1760 = vunpack.c.l.b16 %v1686
        %v1761 = vunpack.c.l.b16 %v1687
        %v1762 = vunpack.c.l.b16 %v1688
        %v1763 = vunpack.c.l.b16 %v1689
        %v1764 = vunpack.c.l.b16 %v1690
        %v1765 = vunpack.c.l.b16 %v1691
        %v1766 = vunpack.c.l.b16 %v1692
        %v1767 = vunpack.c.l.b16 %v1693
        %v1768 = vunpack.c.l.b16 %v1694
        %v1769 = vunpack.c.l.b16 %v1695
        %v1770 = vunpack.c.l.b16 %v1696
        %v1771 = vunpack.c.l.b16 %v1697
        %v1772 = vunpack.c.l.b16 %v1698
        %v1773 = vunpack.c.l.b16 %v1699
        %v1774 = vunpack.c.l.b16 %v1700
        %v1775 = vunpack.c.l.b16 %v1701
        %v1776 = vunpack.c.l.b16 %v1702
        %v1777 = vunpack.c.l.b16 %v1703
        %v1778 = vunpack.c.l.b16 %v1704
        %v1779 = vunpack.c.l.b16 %v1705
        %v1780 = vpack.c.b16 %v1745, %v1744
        %v1781 = vpack.c.b16 %v1747, %v1746
        %v1782 = vpack.c.b16 %v1749, %v1748
        %v1783 = vpack.c.b16 %v1751, %v1750
        %v1784 = vpack.c.b16 %v1753, %v1752
        %v1785 = vpack.c.b16 %v1755, %v1754
        %v1786 = vpack.c.b16 %v1757, %v1756
        %v1787 = vpack.c.b16 %v1759, %v1758
        %v1788 = vpack.c.b16 %v1761, %v1760
        %v1789 = vpack.c.b16 %v1763, %v1762
        %v1790 = vpack.c.b16 %v1765, %v1764
        %v1791 = vpack.c.b16 %v1767, %v1766
        %v1792 = vpack.c.b16 %v1769, %v1768
        %v1793 = vpack.c.b16 %v1771, %v1770
        %v1794 = vpack.c.b16 %v1773, %v1772
        %v1795 = vpack.c.b16 %v1775, %v1774
        %v1796 = vpack.c.b16 %v1777, %v1776
        %v1797 = vpack.c.b16 %v1779, %v1778
        %v1799 = vsel %vm475, %v1780, 0
        %v1802 = vsel %vm475, %v1781, 0
        %v1805 = vsel %vm475, %v1782, 0
        %v1808 = vsel %vm475, %v1783, 0
        %v1811 = vsel %vm475, %v1784, 0
        %v1814 = vsel %vm475, %v1785, 0
        %v1817 = vsel %vm475, %v1786, 0
        %v1820 = vsel %vm475, %v1787, 0
        %v1823 = vsel %vm475, %v1788, 0
        %v1826 = vsel %vm475, %v1789, 0
        %v1829 = vsel %vm475, %v1790, 0
        %v1832 = vsel %vm475, %v1791, 0
        %v1835 = vsel %vm475, %v1792, 0
        %v1838 = vsel %vm475, %v1793, 0
        %v1841 = vsel %vm475, %v1794, 0
        %v1844 = vsel %vm475, %v1795, 0
        %v1847 = vsel %vm475, %v1796, 0
        %v1850 = vsel %vm475, %v1797, 0
        %v1853 = vsel %vm530, %v1707, 0
        %1855 = vmatprep.subr.bf16.mxu0 0
        %1856 = vmatpush1.bf16.msra.mxu0 0
        %1857 = vmatprep.subr.bf16.mxu0 0
        %1858 = vmatpush1.bf16.msra.mxu0 0
        %1859 = vmatprep.subr.bf16.mxu0 0
        %1860 = vmatpush1.bf16.msra.mxu0 0
        %1861 = vmatprep.subr.bf16.mxu0 0
        %1862 = vmatpush1.bf16.msra.mxu0 0
        %1863 = vmatprep.subr.bf16.mxu0 0
        %1864 = vmatpush1.bf16.msra.mxu0 0
        %1865 = vmatprep.subr.bf16.mxu0 0
        %1866 = vmatpush1.bf16.msra.mxu0 0
        %1867 = vmatprep.subr.bf16.mxu0 0
        %1868 = vmatpush1.bf16.msra.mxu0 0
        %1869 = vmatprep.subr.bf16.mxu0 0
        %1870 = vmatpush1.bf16.msra.mxu0 %v1853
        %1871 = vmatprep.subr.bf16.mxu0 0
        %1872 = vmatpush2.bf16.msra.mxu0 0
        %1873 = vmatprep.subr.bf16.mxu0 0
        %1874 = vmatpush2.bf16.msra.mxu0 0
        %1875 = vmatprep.subr.bf16.mxu0 0
        %1876 = vmatpush2.bf16.msra.mxu0 0
        %1877 = vmatprep.subr.bf16.mxu0 0
        %1878 = vmatpush2.bf16.msra.mxu0 0
        %1879 = vmatprep.subr.bf16.mxu0 0
        %1880 = vmatpush2.bf16.msra.mxu0 0
        %1881 = vmatprep.subr.bf16.mxu0 0
        %1882 = vmatpush2.bf16.msra.mxu0 0
        %1883 = vmatprep.subr.bf16.mxu0 0
        %1884 = vmatpush2.bf16.msra.mxu0 0
        %1885 = vmatprep.subr.bf16.mxu0 0
        %1886 = vmatpush2.bf16.msra.mxu0 0
        %1887 = vmatprep.mubr.bf16.mxu0 0
        %1888 = vmatmul.mubr.bf16.gmra.mxu0 %v1799
        %v1889 = vpop.f32.mrf.mxu0
        %v1890 = vadd.f32 0.0, %v1889
        %v1891 = vpop.f32.mrf.mxu0
        %v1892 = vpop.f32.mrf.mxu0
        %v1893 = vadd.f32 0.0, %v1892
        %v1894 = vpop.f32.mrf.mxu0
        %1895 = vmatprep.mubr.bf16.mxu0 0
        %1896 = vmatmul.mubr.bf16.gmra.mxu0 %v1802
        %v1897 = vpop.f32.mrf.mxu0
        %v1898 = vadd.f32 0.0, %v1897
        %v1899 = vpop.f32.mrf.mxu0
        %v1900 = vpop.f32.mrf.mxu0
        %v1901 = vadd.f32 0.0, %v1900
        %v1902 = vpop.f32.mrf.mxu0
        %1903 = vmatprep.mubr.bf16.mxu0 0
        %1904 = vmatmul.mubr.bf16.gmra.mxu0 %v1805
        %v1905 = vpop.f32.mrf.mxu0
        %v1906 = vadd.f32 0.0, %v1905
        %v1907 = vpop.f32.mrf.mxu0
        %v1908 = vpop.f32.mrf.mxu0
        %v1909 = vadd.f32 0.0, %v1908
        %v1910 = vpop.f32.mrf.mxu0
        %1911 = vmatprep.mubr.bf16.mxu0 0
        %1912 = vmatmul.mubr.bf16.gmra.mxu0 %v1808
        %v1913 = vpop.f32.mrf.mxu0
        %v1914 = vadd.f32 0.0, %v1913
        %v1915 = vpop.f32.mrf.mxu0
        %v1916 = vpop.f32.mrf.mxu0
        %v1917 = vadd.f32 0.0, %v1916
        %v1918 = vpop.f32.mrf.mxu0
        %1919 = vmatprep.mubr.bf16.mxu0 0
        %1920 = vmatmul.mubr.bf16.gmra.mxu0 %v1811
        %v1921 = vpop.f32.mrf.mxu0
        %v1922 = vadd.f32 0.0, %v1921
        %v1923 = vpop.f32.mrf.mxu0
        %v1924 = vpop.f32.mrf.mxu0
        %v1925 = vadd.f32 0.0, %v1924
        %v1926 = vpop.f32.mrf.mxu0
        %1927 = vmatprep.mubr.bf16.mxu0 0
        %1928 = vmatmul.mubr.bf16.gmra.mxu0 %v1814
        %v1929 = vpop.f32.mrf.mxu0
        %v1930 = vadd.f32 0.0, %v1929
        %v1931 = vpop.f32.mrf.mxu0
        %v1932 = vpop.f32.mrf.mxu0
        %v1933 = vadd.f32 0.0, %v1932
        %v1934 = vpop.f32.mrf.mxu0
        %1935 = vmatprep.mubr.bf16.mxu0 0
        %1936 = vmatmul.mubr.bf16.gmra.mxu0 %v1817
        %v1937 = vpop.f32.mrf.mxu0
        %v1938 = vadd.f32 0.0, %v1937
        %v1939 = vpop.f32.mrf.mxu0
        %v1940 = vpop.f32.mrf.mxu0
        %v1941 = vadd.f32 0.0, %v1940
        %v1942 = vpop.f32.mrf.mxu0
        %1943 = vmatprep.mubr.bf16.mxu0 0
        %1944 = vmatmul.mubr.bf16.gmra.mxu0 %v1820
        %v1945 = vpop.f32.mrf.mxu0
        %v1946 = vadd.f32 0.0, %v1945
        %v1947 = vpop.f32.mrf.mxu0
        %v1948 = vpop.f32.mrf.mxu0
        %v1949 = vadd.f32 0.0, %v1948
        %v1950 = vpop.f32.mrf.mxu0
        %1951 = vmatprep.mubr.bf16.mxu0 0
        %1952 = vmatmul.mubr.bf16.gmra.mxu0 %v1823
        %v1953 = vpop.f32.mrf.mxu0
        %v1954 = vadd.f32 0.0, %v1953
        %v1955 = vpop.f32.mrf.mxu0
        %v1956 = vpop.f32.mrf.mxu0
        %v1957 = vadd.f32 0.0, %v1956
        %v1958 = vpop.f32.mrf.mxu0
        %1959 = vmatprep.mubr.bf16.mxu0 0
        %1960 = vmatmul.mubr.bf16.gmra.mxu0 %v1826
        %v1961 = vpop.f32.mrf.mxu0
        %v1962 = vadd.f32 0.0, %v1961
        %v1963 = vpop.f32.mrf.mxu0
        %v1964 = vpop.f32.mrf.mxu0
        %v1965 = vadd.f32 0.0, %v1964
        %v1966 = vpop.f32.mrf.mxu0
        %1967 = vmatprep.mubr.bf16.mxu0 0
        %1968 = vmatmul.mubr.bf16.gmra.mxu0 %v1829
        %v1969 = vpop.f32.mrf.mxu0
        %v1970 = vadd.f32 0.0, %v1969
        %v1971 = vpop.f32.mrf.mxu0
        %v1972 = vpop.f32.mrf.mxu0
        %v1973 = vadd.f32 0.0, %v1972
        %v1974 = vpop.f32.mrf.mxu0
        %1975 = vmatprep.mubr.bf16.mxu0 0
        %1976 = vmatmul.mubr.bf16.gmra.mxu0 %v1832
        %v1977 = vpop.f32.mrf.mxu0
        %v1978 = vadd.f32 0.0, %v1977
        %v1979 = vpop.f32.mrf.mxu0
        %v1980 = vpop.f32.mrf.mxu0
        %v1981 = vadd.f32 0.0, %v1980
        %v1982 = vpop.f32.mrf.mxu0
        %1983 = vmatprep.mubr.bf16.mxu0 0
        %1984 = vmatmul.mubr.bf16.gmra.mxu0 %v1835
        %v1985 = vpop.f32.mrf.mxu0
        %v1986 = vadd.f32 0.0, %v1985
        %v1987 = vpop.f32.mrf.mxu0
        %v1988 = vpop.f32.mrf.mxu0
        %v1989 = vadd.f32 0.0, %v1988
        %v1990 = vpop.f32.mrf.mxu0
        %1991 = vmatprep.mubr.bf16.mxu0 0
        %1992 = vmatmul.mubr.bf16.gmra.mxu0 %v1838
        %v1993 = vpop.f32.mrf.mxu0
        %v1994 = vadd.f32 0.0, %v1993
        %v1995 = vpop.f32.mrf.mxu0
        %v1996 = vpop.f32.mrf.mxu0
        %v1997 = vadd.f32 0.0, %v1996
        %v1998 = vpop.f32.mrf.mxu0
        %1999 = vmatprep.mubr.bf16.mxu0 0
        %2000 = vmatmul.mubr.bf16.gmra.mxu0 %v1841
        %v2001 = vpop.f32.mrf.mxu0
        %v2002 = vadd.f32 0.0, %v2001
        %v2003 = vpop.f32.mrf.mxu0
        %v2004 = vpop.f32.mrf.mxu0
        %v2005 = vadd.f32 0.0, %v2004
        %v2006 = vpop.f32.mrf.mxu0
        %2007 = vmatprep.mubr.bf16.mxu0 0
        %2008 = vmatmul.mubr.bf16.gmra.mxu0 %v1844
        %v2009 = vpop.f32.mrf.mxu0
        %v2010 = vadd.f32 0.0, %v2009
        %v2011 = vpop.f32.mrf.mxu0
        %v2012 = vpop.f32.mrf.mxu0
        %v2013 = vadd.f32 0.0, %v2012
        %v2014 = vpop.f32.mrf.mxu0
        %2015 = vmatprep.mubr.bf16.mxu0 0
        %2016 = vmatmul.mubr.bf16.gmra.mxu0 %v1847
        %v2017 = vpop.f32.mrf.mxu0
        %v2018 = vadd.f32 0.0, %v2017
        %v2019 = vpop.f32.mrf.mxu0
        %v2020 = vpop.f32.mrf.mxu0
        %v2021 = vadd.f32 0.0, %v2020
        %v2022 = vpop.f32.mrf.mxu0
        %2023 = vmatprep.mubr.bf16.mxu0 0
        %2024 = vmatmul.mubr.bf16.gmra.mxu0 %v1850
        %v2025 = vpop.f32.mrf.mxu0
        %v2026 = vadd.f32 0.0, %v2025
        %v2027 = vpop.f32.mrf.mxu0
        %v2028 = vpop.f32.mrf.mxu0
        %v2029 = vadd.f32 0.0, %v2028
        %v2030 = vpop.f32.mrf.mxu0
        %2031 = vdwg.mxu0
        %v2032 = vadd.f32 %v1634, %v1890
        %v2033 = vadd.f32 %v1635, %v1893
        %v2034 = vadd.f32 %v1636, %v1898
        %v2035 = vadd.f32 %v1637, %v1901
        %v2036 = vadd.f32 %v1638, %v1906
        %v2037 = vadd.f32 %v1639, %v1909
        %v2038 = vadd.f32 %v1640, %v1914
        %v2039 = vadd.f32 %v1641, %v1917
        %v2040 = vadd.f32 %v1642, %v1922
        %v2041 = vadd.f32 %v1643, %v1925
        %v2042 = vadd.f32 %v1644, %v1930
        %v2043 = vadd.f32 %v1645, %v1933
        %v2044 = vadd.f32 %v1646, %v1938
        %v2045 = vadd.f32 %v1647, %v1941
        %v2046 = vadd.f32 %v1648, %v1946
        %v2047 = vadd.f32 %v1649, %v1949
        %v2048 = vadd.f32 %v1650, %v1954
        %v2049 = vadd.f32 %v1651, %v1957
        %v2050 = vadd.f32 %v1652, %v1962
        %v2051 = vadd.f32 %v1653, %v1965
        %v2052 = vadd.f32 %v1654, %v1970
        %v2053 = vadd.f32 %v1655, %v1973
        %v2054 = vadd.f32 %v1656, %v1978
        %v2055 = vadd.f32 %v1657, %v1981
        %v2056 = vadd.f32 %v1658, %v1986
        %v2057 = vadd.f32 %v1659, %v1989
        %v2058 = vadd.f32 %v1660, %v1994
        %v2059 = vadd.f32 %v1661, %v1997
        %v2060 = vadd.f32 %v1662, %v2002
        %v2061 = vadd.f32 %v1663, %v2005
        %v2062 = vadd.f32 %v1664, %v2010
        %v2063 = vadd.f32 %v1665, %v2013
        %v2064 = vadd.f32 %v1666, %v2018
        %v2065 = vadd.f32 %v1667, %v2021
        %v2066 = vadd.f32 %v1668, %v2026
        %v2067 = vadd.f32 %v1669, %v2029
        %2069 = vset.pattern.permute.xlu0 0
        %2070 = vperm.xlu0 %2069, %v266
        %v2071 = vpop.permute.xlu0 %2070
        %2074 = vset.pattern.permute.xlu0 0
        %2075 = vperm.xlu0 %2074, %v267
        %v2076 = vpop.permute.xlu0 %2075
        %2079 = vset.pattern.permute.xlu0 0
        %2080 = vperm.xlu0 %2079, %v268
        %v2081 = vpop.permute.xlu0 %2080
        %2084 = vset.pattern.permute.xlu0 0
        %2085 = vperm.xlu0 %2084, %v269
        %v2086 = vpop.permute.xlu0 %2085
        %2089 = vset.pattern.permute.xlu0 0
        %2090 = vperm.xlu0 %2089, %v270
        %v2091 = vpop.permute.xlu0 %2090
        %2094 = vset.pattern.permute.xlu0 0
        %2095 = vperm.xlu0 %2094, %v271
        %v2096 = vpop.permute.xlu0 %2095
        %2099 = vset.pattern.permute.xlu0 0
        %2100 = vperm.xlu0 %2099, %v272
        %v2101 = vpop.permute.xlu0 %2100
        %2104 = vset.pattern.permute.xlu0 0
        %2105 = vperm.xlu0 %2104, %v273
        %v2106 = vpop.permute.xlu0 %2105
        %2109 = vset.pattern.permute.xlu0 0
        %2110 = vperm.xlu0 %2109, %v274
        %v2111 = vpop.permute.xlu0 %2110
        %2114 = vset.pattern.permute.xlu0 0
        %2115 = vperm.xlu0 %2114, %v275
        %v2116 = vpop.permute.xlu0 %2115
        %2119 = vset.pattern.permute.xlu0 0
        %2120 = vperm.xlu0 %2119, %v276
        %v2121 = vpop.permute.xlu0 %2120
        %2124 = vset.pattern.permute.xlu0 0
        %2125 = vperm.xlu0 %2124, %v277
        %v2126 = vpop.permute.xlu0 %2125
        %2129 = vset.pattern.permute.xlu0 0
        %2130 = vperm.xlu0 %2129, %v278
        %v2131 = vpop.permute.xlu0 %2130
        %2134 = vset.pattern.permute.xlu0 0
        %2135 = vperm.xlu0 %2134, %v279
        %v2136 = vpop.permute.xlu0 %2135
        %2139 = vset.pattern.permute.xlu0 0
        %2140 = vperm.xlu0 %2139, %v280
        %v2141 = vpop.permute.xlu0 %2140
        %2144 = vset.pattern.permute.xlu0 0
        %2145 = vperm.xlu0 %2144, %v281
        %v2146 = vpop.permute.xlu0 %2145
        %2149 = vset.pattern.permute.xlu0 0
        %2150 = vperm.xlu0 %2149, %v282
        %v2151 = vpop.permute.xlu0 %2150
        %2154 = vset.pattern.permute.xlu0 0
        %2155 = vperm.xlu0 %2154, %v283
        %v2156 = vpop.permute.xlu0 %2155
        %2159 = vset.pattern.permute.xlu0 0
        %2160 = vperm.xlu0 %2159, %v284
        %v2161 = vpop.permute.xlu0 %2160
        %2164 = vset.pattern.permute.xlu0 0
        %2165 = vperm.xlu0 %2164, %v285
        %v2166 = vpop.permute.xlu0 %2165
        %2169 = vset.pattern.permute.xlu0 0
        %2170 = vperm.xlu0 %2169, %v286
        %v2171 = vpop.permute.xlu0 %2170
        %2174 = vset.pattern.permute.xlu0 0
        %2175 = vperm.xlu0 %2174, %v287
        %v2176 = vpop.permute.xlu0 %2175
        %2179 = vset.pattern.permute.xlu0 0
        %2180 = vperm.xlu0 %2179, %v288
        %v2181 = vpop.permute.xlu0 %2180
        %2184 = vset.pattern.permute.xlu0 0
        %2185 = vperm.xlu0 %2184, %v289
        %v2186 = vpop.permute.xlu0 %2185
        %2189 = vset.pattern.permute.xlu0 0
        %2190 = vperm.xlu0 %2189, %v290
        %v2191 = vpop.permute.xlu0 %2190
        %2194 = vset.pattern.permute.xlu0 0
        %2195 = vperm.xlu0 %2194, %v291
        %v2196 = vpop.permute.xlu0 %2195
        %2199 = vset.pattern.permute.xlu0 0
        %2200 = vperm.xlu0 %2199, %v292
        %v2201 = vpop.permute.xlu0 %2200
        %2204 = vset.pattern.permute.xlu0 0
        %2205 = vperm.xlu0 %2204, %v293
        %v2206 = vpop.permute.xlu0 %2205
        %2209 = vset.pattern.permute.xlu0 0
        %2210 = vperm.xlu0 %2209, %v294
        %v2211 = vpop.permute.xlu0 %2210
        %2214 = vset.pattern.permute.xlu0 0
        %2215 = vperm.xlu0 %2214, %v295
        %v2216 = vpop.permute.xlu0 %2215
        %2219 = vset.pattern.permute.xlu0 0
        %2220 = vperm.xlu0 %2219, %v296
        %v2221 = vpop.permute.xlu0 %2220
        %2224 = vset.pattern.permute.xlu0 0
        %2225 = vperm.xlu0 %2224, %v297
        %v2226 = vpop.permute.xlu0 %2225
        %2229 = vset.pattern.permute.xlu0 0
        %2230 = vperm.xlu0 %2229, %v298
        %v2231 = vpop.permute.xlu0 %2230
        %2234 = vset.pattern.permute.xlu0 0
        %2235 = vperm.xlu0 %2234, %v299
        %v2236 = vpop.permute.xlu0 %2235
        %2239 = vset.pattern.permute.xlu0 0
        %2240 = vperm.xlu0 %2239, %v300
        %v2241 = vpop.permute.xlu0 %2240
        %2244 = vset.pattern.permute.xlu0 0
        %2245 = vperm.xlu0 %2244, %v301
        %v2246 = vpop.permute.xlu0 %2245
        %v2248 = vmul.f32 %v2032, %v2071
        %v2249 = vmul.f32 %v2033, %v2076
        %v2250 = vmul.f32 %v2034, %v2081
        %v2251 = vmul.f32 %v2035, %v2086
        %v2252 = vmul.f32 %v2036, %v2091
        %v2253 = vmul.f32 %v2037, %v2096
        %v2254 = vmul.f32 %v2038, %v2101
        %v2255 = vmul.f32 %v2039, %v2106
        %v2256 = vmul.f32 %v2040, %v2111
        %v2257 = vmul.f32 %v2041, %v2116
        %v2258 = vmul.f32 %v2042, %v2121
        %v2259 = vmul.f32 %v2043, %v2126
        %v2260 = vmul.f32 %v2044, %v2131
        %v2261 = vmul.f32 %v2045, %v2136
        %v2262 = vmul.f32 %v2046, %v2141
        %v2263 = vmul.f32 %v2047, %v2146
        %v2264 = vmul.f32 %v2048, %v2151
        %v2265 = vmul.f32 %v2049, %v2156
        %v2266 = vmul.f32 %v2050, %v2161
        %v2267 = vmul.f32 %v2051, %v2166
        %v2268 = vmul.f32 %v2052, %v2171
        %v2269 = vmul.f32 %v2053, %v2176
        %v2270 = vmul.f32 %v2054, %v2181
        %v2271 = vmul.f32 %v2055, %v2186
        %v2272 = vmul.f32 %v2056, %v2191
        %v2273 = vmul.f32 %v2057, %v2196
        %v2274 = vmul.f32 %v2058, %v2201
        %v2275 = vmul.f32 %v2059, %v2206
        %v2276 = vmul.f32 %v2060, %v2211
        %v2277 = vmul.f32 %v2061, %v2216
        %v2278 = vmul.f32 %v2062, %v2221
        %v2279 = vmul.f32 %v2063, %v2226
        %v2280 = vmul.f32 %v2064, %v2231
        %v2281 = vmul.f32 %v2065, %v2236
        %v2282 = vmul.f32 %v2066, %v2241
        %v2283 = vmul.f32 %v2067, %v2246
        %2284 = vst.msk [vmem:[%s264] sm:$0xff] %vm475, %v2248
        %2285 = vst.msk [vmem:[%s264 + $0x8] sm:$0xff] %vm475, %v2249
        %2286 = vst.msk [vmem:[%s264 + $0x10] sm:$0xff] %vm475, %v2250
        %2287 = vst.msk [vmem:[%s264 + $0x18] sm:$0xff] %vm475, %v2251
        %2288 = vst.msk [vmem:[%s264 + $0x20] sm:$0xff] %vm475, %v2252
        %2289 = vst.msk [vmem:[%s264 + $0x28] sm:$0xff] %vm475, %v2253
        %2290 = vst.msk [vmem:[%s264 + $0x30] sm:$0xff] %vm475, %v2254
        %2291 = vst.msk [vmem:[%s264 + $0x38] sm:$0xff] %vm475, %v2255
        %2292 = vst.msk [vmem:[%s264 + $0x40] sm:$0xff] %vm475, %v2256
        %2293 = vst.msk [vmem:[%s264 + $0x48] sm:$0xff] %vm475, %v2257
        %2294 = vst.msk [vmem:[%s264 + $0x50] sm:$0xff] %vm475, %v2258
        %2295 = vst.msk [vmem:[%s264 + $0x58] sm:$0xff] %vm475, %v2259
        %2296 = vst.msk [vmem:[%s264 + $0x60] sm:$0xff] %vm475, %v2260
        %2297 = vst.msk [vmem:[%s264 + $0x68] sm:$0xff] %vm475, %v2261
        %2298 = vst.msk [vmem:[%s264 + $0x70] sm:$0xff] %vm475, %v2262
        %2299 = vst.msk [vmem:[%s264 + $0x78] sm:$0xff] %vm475, %v2263
        %2300 = vst.msk [vmem:[%s264 + $0x80] sm:$0xff] %vm475, %v2264
        %2301 = vst.msk [vmem:[%s264 + $0x88] sm:$0xff] %vm475, %v2265
        %2302 = vst.msk [vmem:[%s264 + $0x90] sm:$0xff] %vm475, %v2266
        %2303 = vst.msk [vmem:[%s264 + $0x98] sm:$0xff] %vm475, %v2267
        %2304 = vst.msk [vmem:[%s264 + $0xa0] sm:$0xff] %vm475, %v2268
        %2305 = vst.msk [vmem:[%s264 + $0xa8] sm:$0xff] %vm475, %v2269
        %2306 = vst.msk [vmem:[%s264 + $0xb0] sm:$0xff] %vm475, %v2270
        %2307 = vst.msk [vmem:[%s264 + $0xb8] sm:$0xff] %vm475, %v2271
        %2308 = vst.msk [vmem:[%s264 + $0xc0] sm:$0xff] %vm475, %v2272
        %2309 = vst.msk [vmem:[%s264 + $0xc8] sm:$0xff] %vm475, %v2273
        %2310 = vst.msk [vmem:[%s264 + $0xd0] sm:$0xff] %vm475, %v2274
        %2311 = vst.msk [vmem:[%s264 + $0xd8] sm:$0xff] %vm475, %v2275
        %2312 = vst.msk [vmem:[%s264 + $0xe0] sm:$0xff] %vm475, %v2276
        %2313 = vst.msk [vmem:[%s264 + $0xe8] sm:$0xff] %vm475, %v2277
        %2314 = vst.msk [vmem:[%s264 + $0xf0] sm:$0xff] %vm475, %v2278
        %2315 = vst.msk [vmem:[%s264 + $0xf8] sm:$0xff] %vm475, %v2279
        %2316 = vst.msk [vmem:[%s264 + $0x100] sm:$0xff] %vm475, %v2280
        %2317 = vst.msk [vmem:[%s264 + $0x108] sm:$0xff] %vm475, %v2281
        %2318 = vst.msk [vmem:[%s264 + $0x110] sm:$0xff] %vm475, %v2282
        %2319 = vst.msk [vmem:[%s264 + $0x118] sm:$0xff] %vm475, %v2283
        %v2320 = vld [vmem:[%s259 + $0x8] sm:$0xe]
        %v2321 = vld [vmem:[%s259 + $0xc] sm:$0xf]
        %v2322 = vld [vmem:[%s259 + $0x10] sm:$0xf]
        %v2323 = vld [vmem:[%s259 + $0x14] sm:$0xf]
        %v2324 = vld [vmem:[%s259 + $0x18] sm:$0xf]
        %v2325 = vld [vmem:[%s259 + $0x1c] sm:$0xf]
        %v2326 = vld [vmem:[%s259 + $0x20] sm:$0xf]
        %v2327 = vld [vmem:[%s259 + $0x24] sm:$0xf]
        %v2328 = vld [vmem:[%s259 + $0x28] sm:$0xf]
        %v2329 = vld [vmem:[%s259 + $0x2c] sm:$0xf]
        %v2330 = vld [vmem:[%s259 + $0x30] sm:$0xf]
        %v2331 = vld [vmem:[%s259 + $0x34] sm:$0xf]
        %v2332 = vld [vmem:[%s259 + $0x38] sm:$0xf]
        %v2333 = vld [vmem:[%s259 + $0x3c] sm:$0xf]
        %v2334 = vld [vmem:[%s259 + $0x40] sm:$0xf]
        %v2335 = vld [vmem:[%s259 + $0x44] sm:$0xf]
        %v2336 = vld [vmem:[%s259 + $0x48] sm:$0xf]
        %v2337 = vld [vmem:[%s259 + $0x4c] sm:$0xf]
        %v2338 = vld [vmem:[%s259 + $0x50] sm:$0xf]
        %v2339 = vld [vmem:[%s259 + $0x54] sm:$0xf]
        %v2340 = vld [vmem:[%s259 + $0x58] sm:$0xf]
        %v2341 = vld [vmem:[%s259 + $0x5c] sm:$0xf]
        %v2342 = vld [vmem:[%s259 + $0x60] sm:$0xf]
        %v2343 = vld [vmem:[%s259 + $0x64] sm:$0xf]
        %v2344 = vld [vmem:[%s259 + $0x68] sm:$0xf]
        %v2345 = vld [vmem:[%s259 + $0x6c] sm:$0xf]
        %v2346 = vld [vmem:[%s259 + $0x70] sm:$0xf]
        %v2347 = vld [vmem:[%s259 + $0x74] sm:$0xf]
        %v2348 = vld [vmem:[%s259 + $0x78] sm:$0xf]
        %v2349 = vld [vmem:[%s259 + $0x7c] sm:$0xf]
        %v2350 = vld [vmem:[%s259 + $0x80] sm:$0xf]
        %v2351 = vld [vmem:[%s259 + $0x84] sm:$0xf]
        %v2352 = vld [vmem:[%s259 + $0x88] sm:$0xf]
        %v2353 = vld [vmem:[%s259 + $0x8c] sm:$0xf]
        %v2354 = vld [vmem:[%s259 + $0x90] sm:$0xf]
        %v2355 = vld [vmem:[%s259 + $0x94] sm:$0xf]
        %v2356 = vld [vmem:[%s259 + $0x98] sm:$0x3]
        %s2357 = scalar_lea.vmem [#allocation2], 12
        %v2358 = vld [vmem:[%s2357] sm:$0x3]
        %v2359 = vld [vmem:[%s259 + $0x8] sm:$0xc]
        %s2360 = scalar_lea.vmem [#allocation2], 8
        %v2361 = vld [vmem:[%s2360] sm:$0x3]
        %v2399 = vunpack.c.l.b16 %v2359
        %v2400 = vunpack.c.l.b16 %v2321
        %v2401 = vunpack.c.l.b16 %v2322
        %v2402 = vunpack.c.l.b16 %v2323
        %v2403 = vunpack.c.l.b16 %v2324
        %v2404 = vunpack.c.l.b16 %v2325
        %v2405 = vunpack.c.l.b16 %v2326
        %v2406 = vunpack.c.l.b16 %v2327
        %v2407 = vunpack.c.l.b16 %v2328
        %v2408 = vunpack.c.l.b16 %v2329
        %v2409 = vunpack.c.l.b16 %v2330
        %v2410 = vunpack.c.l.b16 %v2331
        %v2411 = vunpack.c.l.b16 %v2332
        %v2412 = vunpack.c.l.b16 %v2333
        %v2413 = vunpack.c.l.b16 %v2334
        %v2414 = vunpack.c.l.b16 %v2335
        %v2415 = vunpack.c.l.b16 %v2336
        %v2416 = vunpack.c.l.b16 %v2337
        %v2417 = vunpack.c.l.b16 %v2338
        %v2418 = vunpack.c.l.b16 %v2339
        %v2419 = vunpack.c.l.b16 %v2340
        %v2420 = vunpack.c.l.b16 %v2341
        %v2421 = vunpack.c.l.b16 %v2342
        %v2422 = vunpack.c.l.b16 %v2343
        %v2423 = vunpack.c.l.b16 %v2344
        %v2424 = vunpack.c.l.b16 %v2345
        %v2425 = vunpack.c.l.b16 %v2346
        %v2426 = vunpack.c.l.b16 %v2347
        %v2427 = vunpack.c.l.b16 %v2348
        %v2428 = vunpack.c.l.b16 %v2349
        %v2429 = vunpack.c.l.b16 %v2350
        %v2430 = vunpack.c.l.b16 %v2351
        %v2431 = vunpack.c.l.b16 %v2352
        %v2432 = vunpack.c.l.b16 %v2353
        %v2433 = vunpack.c.l.b16 %v2354
        %v2434 = vunpack.c.l.b16 %v2355
        %v2435 = vunpack.c.l.b16 %v2356
        %v2436 = vpack.c.b16 %v2400, %v2399
        %v2437 = vpack.c.b16 %v2402, %v2401
        %v2438 = vpack.c.b16 %v2404, %v2403
        %v2439 = vpack.c.b16 %v2406, %v2405
        %v2440 = vpack.c.b16 %v2408, %v2407
        %v2441 = vpack.c.b16 %v2410, %v2409
        %v2442 = vpack.c.b16 %v2412, %v2411
        %v2443 = vpack.c.b16 %v2414, %v2413
        %v2444 = vpack.c.b16 %v2416, %v2415
        %v2445 = vpack.c.b16 %v2418, %v2417
        %v2446 = vpack.c.b16 %v2420, %v2419
        %v2447 = vpack.c.b16 %v2422, %v2421
        %v2448 = vpack.c.b16 %v2424, %v2423
        %v2449 = vpack.c.b16 %v2426, %v2425
        %v2450 = vpack.c.b16 %v2428, %v2427
        %v2451 = vpack.c.b16 %v2430, %v2429
        %v2452 = vpack.c.b16 %v2432, %v2431
        %v2453 = vpack.c.b16 %v2434, %v2433
        %v2454 = vpack.c.b16 %v2435, %v2435
        %vm2455 = vcmask 1045504
        %v2456 = vrot.slane %v2436, 2
        %v2457 = vrot.slane %v2437, 2
        %v2458 = vsel %vm2455, %v2456, %v2457
        %v2459 = vrot.slane %v2438, 2
        %v2460 = vsel %vm2455, %v2457, %v2459
        %v2461 = vrot.slane %v2439, 2
        %v2462 = vsel %vm2455, %v2459, %v2461
        %v2463 = vrot.slane %v2440, 2
        %v2464 = vsel %vm2455, %v2461, %v2463
        %v2465 = vrot.slane %v2441, 2
        %v2466 = vsel %vm2455, %v2463, %v2465
        %v2467 = vrot.slane %v2442, 2
        %v2468 = vsel %vm2455, %v2465, %v2467
        %v2469 = vrot.slane %v2443, 2
        %v2470 = vsel %vm2455, %v2467, %v2469
        %v2471 = vrot.slane %v2444, 2
        %v2472 = vsel %vm2455, %v2469, %v2471
        %v2473 = vrot.slane %v2445, 2
        %v2474 = vsel %vm2455, %v2471, %v2473
        %v2475 = vrot.slane %v2446, 2
        %v2476 = vsel %vm2455, %v2473, %v2475
        %v2477 = vrot.slane %v2447, 2
        %v2478 = vsel %vm2455, %v2475, %v2477
        %v2479 = vrot.slane %v2448, 2
        %v2480 = vsel %vm2455, %v2477, %v2479
        %v2481 = vrot.slane %v2449, 2
        %v2482 = vsel %vm2455, %v2479, %v2481
        %v2483 = vrot.slane %v2450, 2
        %v2484 = vsel %vm2455, %v2481, %v2483
        %v2485 = vrot.slane %v2451, 2
        %v2486 = vsel %vm2455, %v2483, %v2485
        %v2487 = vrot.slane %v2452, 2
        %v2488 = vsel %vm2455, %v2485, %v2487
        %v2489 = vrot.slane %v2453, 2
        %v2490 = vsel %vm2455, %v2487, %v2489
        %v2491 = vrot.slane %v2454, 2
        %v2492 = vsel %vm2455, %v2489, %v2491
        %v2494 = vsel %vm475, %v2458, 0
        %v2497 = vsel %vm475, %v2460, 0
        %v2500 = vsel %vm475, %v2462, 0
        %v2503 = vsel %vm475, %v2464, 0
        %v2506 = vsel %vm475, %v2466, 0
        %v2509 = vsel %vm475, %v2468, 0
        %v2512 = vsel %vm475, %v2470, 0
        %v2515 = vsel %vm475, %v2472, 0
        %v2518 = vsel %vm475, %v2474, 0
        %v2521 = vsel %vm475, %v2476, 0
        %v2524 = vsel %vm475, %v2478, 0
        %v2527 = vsel %vm475, %v2480, 0
        %v2530 = vsel %vm475, %v2482, 0
        %v2533 = vsel %vm475, %v2484, 0
        %v2536 = vsel %vm475, %v2486, 0
        %v2539 = vsel %vm475, %v2488, 0
        %v2542 = vsel %vm475, %v2490, 0
        %v2545 = vsel %vm475, %v2492, 0
        %v2548 = vsel %vm530, %v2361, 0
        %2550 = vmatprep.subr.bf16.mxu0 0
        %2551 = vmatpush1.bf16.msra.mxu0 0
        %2552 = vmatprep.subr.bf16.mxu0 0
        %2553 = vmatpush1.bf16.msra.mxu0 0
        %2554 = vmatprep.subr.bf16.mxu0 0
        %2555 = vmatpush1.bf16.msra.mxu0 0
        %2556 = vmatprep.subr.bf16.mxu0 0
        %2557 = vmatpush1.bf16.msra.mxu0 0
        %2558 = vmatprep.subr.bf16.mxu0 0
        %2559 = vmatpush1.bf16.msra.mxu0 0
        %2560 = vmatprep.subr.bf16.mxu0 0
        %2561 = vmatpush1.bf16.msra.mxu0 0
        %2562 = vmatprep.subr.bf16.mxu0 0
        %2563 = vmatpush1.bf16.msra.mxu0 0
        %2564 = vmatprep.subr.bf16.mxu0 0
        %2565 = vmatpush1.bf16.msra.mxu0 %v2548
        %2566 = vmatprep.subr.bf16.mxu0 0
        %2567 = vmatpush2.bf16.msra.mxu0 0
        %2568 = vmatprep.subr.bf16.mxu0 0
        %2569 = vmatpush2.bf16.msra.mxu0 0
        %2570 = vmatprep.subr.bf16.mxu0 0
        %2571 = vmatpush2.bf16.msra.mxu0 0
        %2572 = vmatprep.subr.bf16.mxu0 0
        %2573 = vmatpush2.bf16.msra.mxu0 0
        %2574 = vmatprep.subr.bf16.mxu0 0
        %2575 = vmatpush2.bf16.msra.mxu0 0
        %2576 = vmatprep.subr.bf16.mxu0 0
        %2577 = vmatpush2.bf16.msra.mxu0 0
        %2578 = vmatprep.subr.bf16.mxu0 0
        %2579 = vmatpush2.bf16.msra.mxu0 0
        %2580 = vmatprep.subr.bf16.mxu0 0
        %2581 = vmatpush2.bf16.msra.mxu0 0
        %2582 = vmatprep.mubr.bf16.mxu0 0
        %2583 = vmatmul.mubr.bf16.gmra.mxu0 %v2494
        %v2584 = vpop.f32.mrf.mxu0
        %v2585 = vadd.f32 0.0, %v2584
        %v2586 = vpop.f32.mrf.mxu0
        %v2587 = vpop.f32.mrf.mxu0
        %v2588 = vadd.f32 0.0, %v2587
        %v2589 = vpop.f32.mrf.mxu0
        %2590 = vmatprep.mubr.bf16.mxu0 0
        %2591 = vmatmul.mubr.bf16.gmra.mxu0 %v2497
        %v2592 = vpop.f32.mrf.mxu0
        %v2593 = vadd.f32 0.0, %v2592
        %v2594 = vpop.f32.mrf.mxu0
        %v2595 = vpop.f32.mrf.mxu0
        %v2596 = vadd.f32 0.0, %v2595
        %v2597 = vpop.f32.mrf.mxu0
        %2598 = vmatprep.mubr.bf16.mxu0 0
        %2599 = vmatmul.mubr.bf16.gmra.mxu0 %v2500
        %v2600 = vpop.f32.mrf.mxu0
        %v2601 = vadd.f32 0.0, %v2600
        %v2602 = vpop.f32.mrf.mxu0
        %v2603 = vpop.f32.mrf.mxu0
        %v2604 = vadd.f32 0.0, %v2603
        %v2605 = vpop.f32.mrf.mxu0
        %2606 = vmatprep.mubr.bf16.mxu0 0
        %2607 = vmatmul.mubr.bf16.gmra.mxu0 %v2503
        %v2608 = vpop.f32.mrf.mxu0
        %v2609 = vadd.f32 0.0, %v2608
        %v2610 = vpop.f32.mrf.mxu0
        %v2611 = vpop.f32.mrf.mxu0
        %v2612 = vadd.f32 0.0, %v2611
        %v2613 = vpop.f32.mrf.mxu0
        %2614 = vmatprep.mubr.bf16.mxu0 0
        %2615 = vmatmul.mubr.bf16.gmra.mxu0 %v2506
        %v2616 = vpop.f32.mrf.mxu0
        %v2617 = vadd.f32 0.0, %v2616
        %v2618 = vpop.f32.mrf.mxu0
        %v2619 = vpop.f32.mrf.mxu0
        %v2620 = vadd.f32 0.0, %v2619
        %v2621 = vpop.f32.mrf.mxu0
        %2622 = vmatprep.mubr.bf16.mxu0 0
        %2623 = vmatmul.mubr.bf16.gmra.mxu0 %v2509
        %v2624 = vpop.f32.mrf.mxu0
        %v2625 = vadd.f32 0.0, %v2624
        %v2626 = vpop.f32.mrf.mxu0
        %v2627 = vpop.f32.mrf.mxu0
        %v2628 = vadd.f32 0.0, %v2627
        %v2629 = vpop.f32.mrf.mxu0
        %2630 = vmatprep.mubr.bf16.mxu0 0
        %2631 = vmatmul.mubr.bf16.gmra.mxu0 %v2512
        %v2632 = vpop.f32.mrf.mxu0
        %v2633 = vadd.f32 0.0, %v2632
        %v2634 = vpop.f32.mrf.mxu0
        %v2635 = vpop.f32.mrf.mxu0
        %v2636 = vadd.f32 0.0, %v2635
        %v2637 = vpop.f32.mrf.mxu0
        %2638 = vmatprep.mubr.bf16.mxu0 0
        %2639 = vmatmul.mubr.bf16.gmra.mxu0 %v2515
        %v2640 = vpop.f32.mrf.mxu0
        %v2641 = vadd.f32 0.0, %v2640
        %v2642 = vpop.f32.mrf.mxu0
        %v2643 = vpop.f32.mrf.mxu0
        %v2644 = vadd.f32 0.0, %v2643
        %v2645 = vpop.f32.mrf.mxu0
        %2646 = vmatprep.mubr.bf16.mxu0 0
        %2647 = vmatmul.mubr.bf16.gmra.mxu0 %v2518
        %v2648 = vpop.f32.mrf.mxu0
        %v2649 = vadd.f32 0.0, %v2648
        %v2650 = vpop.f32.mrf.mxu0
        %v2651 = vpop.f32.mrf.mxu0
        %v2652 = vadd.f32 0.0, %v2651
        %v2653 = vpop.f32.mrf.mxu0
        %2654 = vmatprep.mubr.bf16.mxu0 0
        %2655 = vmatmul.mubr.bf16.gmra.mxu0 %v2521
        %v2656 = vpop.f32.mrf.mxu0
        %v2657 = vadd.f32 0.0, %v2656
        %v2658 = vpop.f32.mrf.mxu0
        %v2659 = vpop.f32.mrf.mxu0
        %v2660 = vadd.f32 0.0, %v2659
        %v2661 = vpop.f32.mrf.mxu0
        %2662 = vmatprep.mubr.bf16.mxu0 0
        %2663 = vmatmul.mubr.bf16.gmra.mxu0 %v2524
        %v2664 = vpop.f32.mrf.mxu0
        %v2665 = vadd.f32 0.0, %v2664
        %v2666 = vpop.f32.mrf.mxu0
        %v2667 = vpop.f32.mrf.mxu0
        %v2668 = vadd.f32 0.0, %v2667
        %v2669 = vpop.f32.mrf.mxu0
        %2670 = vmatprep.mubr.bf16.mxu0 0
        %2671 = vmatmul.mubr.bf16.gmra.mxu0 %v2527
        %v2672 = vpop.f32.mrf.mxu0
        %v2673 = vadd.f32 0.0, %v2672
        %v2674 = vpop.f32.mrf.mxu0
        %v2675 = vpop.f32.mrf.mxu0
        %v2676 = vadd.f32 0.0, %v2675
        %v2677 = vpop.f32.mrf.mxu0
        %2678 = vmatprep.mubr.bf16.mxu0 0
        %2679 = vmatmul.mubr.bf16.gmra.mxu0 %v2530
        %v2680 = vpop.f32.mrf.mxu0
        %v2681 = vadd.f32 0.0, %v2680
        %v2682 = vpop.f32.mrf.mxu0
        %v2683 = vpop.f32.mrf.mxu0
        %v2684 = vadd.f32 0.0, %v2683
        %v2685 = vpop.f32.mrf.mxu0
        %2686 = vmatprep.mubr.bf16.mxu0 0
        %2687 = vmatmul.mubr.bf16.gmra.mxu0 %v2533
        %v2688 = vpop.f32.mrf.mxu0
        %v2689 = vadd.f32 0.0, %v2688
        %v2690 = vpop.f32.mrf.mxu0
        %v2691 = vpop.f32.mrf.mxu0
        %v2692 = vadd.f32 0.0, %v2691
        %v2693 = vpop.f32.mrf.mxu0
        %2694 = vmatprep.mubr.bf16.mxu0 0
        %2695 = vmatmul.mubr.bf16.gmra.mxu0 %v2536
        %v2696 = vpop.f32.mrf.mxu0
        %v2697 = vadd.f32 0.0, %v2696
        %v2698 = vpop.f32.mrf.mxu0
        %v2699 = vpop.f32.mrf.mxu0
        %v2700 = vadd.f32 0.0, %v2699
        %v2701 = vpop.f32.mrf.mxu0
        %2702 = vmatprep.mubr.bf16.mxu0 0
        %2703 = vmatmul.mubr.bf16.gmra.mxu0 %v2539
        %v2704 = vpop.f32.mrf.mxu0
        %v2705 = vadd.f32 0.0, %v2704
        %v2706 = vpop.f32.mrf.mxu0
        %v2707 = vpop.f32.mrf.mxu0
        %v2708 = vadd.f32 0.0, %v2707
        %v2709 = vpop.f32.mrf.mxu0
        %2710 = vmatprep.mubr.bf16.mxu0 0
        %2711 = vmatmul.mubr.bf16.gmra.mxu0 %v2542
        %v2712 = vpop.f32.mrf.mxu0
        %v2713 = vadd.f32 0.0, %v2712
        %v2714 = vpop.f32.mrf.mxu0
        %v2715 = vpop.f32.mrf.mxu0
        %v2716 = vadd.f32 0.0, %v2715
        %v2717 = vpop.f32.mrf.mxu0
        %2718 = vmatprep.mubr.bf16.mxu0 0
        %2719 = vmatmul.mubr.bf16.gmra.mxu0 %v2545
        %v2720 = vpop.f32.mrf.mxu0
        %v2721 = vadd.f32 0.0, %v2720
        %v2722 = vpop.f32.mrf.mxu0
        %v2723 = vpop.f32.mrf.mxu0
        %v2724 = vadd.f32 0.0, %v2723
        %v2725 = vpop.f32.mrf.mxu0
        %2726 = vdwg.mxu0
        %v2728 = vunpack.c.l.b16 %v2320
        %v2729 = vpack.c.b16 %v2400, %v2728
        %v2731 = vshrl.u32 %v2729, 16
        %v2733 = vrot.slane %v2731, 1
        %v2734 = vshll.u32 %v2729, 16
        %v2736 = vrot.slane %v2734, 2
        %v2737 = vor.u32 %v2733, %v2736
        %v2739 = vshrl.u32 %v2437, 16
        %v2741 = vrot.slane %v2739, 1
        %v2742 = vshll.u32 %v2437, 16
        %v2744 = vrot.slane %v2742, 2
        %v2745 = vor.u32 %v2741, %v2744
        %v2746 = vsel %vm714, %v2737, %v2745
        %v2748 = vshrl.u32 %v2438, 16
        %v2750 = vrot.slane %v2748, 1
        %v2751 = vshll.u32 %v2438, 16
        %v2753 = vrot.slane %v2751, 2
        %v2754 = vor.u32 %v2750, %v2753
        %v2755 = vsel %vm714, %v2745, %v2754
        %v2757 = vshrl.u32 %v2439, 16
        %v2759 = vrot.slane %v2757, 1
        %v2760 = vshll.u32 %v2439, 16
        %v2762 = vrot.slane %v2760, 2
        %v2763 = vor.u32 %v2759, %v2762
        %v2764 = vsel %vm714, %v2754, %v2763
        %v2766 = vshrl.u32 %v2440, 16
        %v2768 = vrot.slane %v2766, 1
        %v2769 = vshll.u32 %v2440, 16
        %v2771 = vrot.slane %v2769, 2
        %v2772 = vor.u32 %v2768, %v2771
        %v2773 = vsel %vm714, %v2763, %v2772
        %v2775 = vshrl.u32 %v2441, 16
        %v2777 = vrot.slane %v2775, 1
        %v2778 = vshll.u32 %v2441, 16
        %v2780 = vrot.slane %v2778, 2
        %v2781 = vor.u32 %v2777, %v2780
        %v2782 = vsel %vm714, %v2772, %v2781
        %v2784 = vshrl.u32 %v2442, 16
        %v2786 = vrot.slane %v2784, 1
        %v2787 = vshll.u32 %v2442, 16
        %v2789 = vrot.slane %v2787, 2
        %v2790 = vor.u32 %v2786, %v2789
        %v2791 = vsel %vm714, %v2781, %v2790
        %v2793 = vshrl.u32 %v2443, 16
        %v2795 = vrot.slane %v2793, 1
        %v2796 = vshll.u32 %v2443, 16
        %v2798 = vrot.slane %v2796, 2
        %v2799 = vor.u32 %v2795, %v2798
        %v2800 = vsel %vm714, %v2790, %v2799
        %v2802 = vshrl.u32 %v2444, 16
        %v2804 = vrot.slane %v2802, 1
        %v2805 = vshll.u32 %v2444, 16
        %v2807 = vrot.slane %v2805, 2
        %v2808 = vor.u32 %v2804, %v2807
        %v2809 = vsel %vm714, %v2799, %v2808
        %v2811 = vshrl.u32 %v2445, 16
        %v2813 = vrot.slane %v2811, 1
        %v2814 = vshll.u32 %v2445, 16
        %v2816 = vrot.slane %v2814, 2
        %v2817 = vor.u32 %v2813, %v2816
        %v2818 = vsel %vm714, %v2808, %v2817
        %v2820 = vshrl.u32 %v2446, 16
        %v2822 = vrot.slane %v2820, 1
        %v2823 = vshll.u32 %v2446, 16
        %v2825 = vrot.slane %v2823, 2
        %v2826 = vor.u32 %v2822, %v2825
        %v2827 = vsel %vm714, %v2817, %v2826
        %v2829 = vshrl.u32 %v2447, 16
        %v2831 = vrot.slane %v2829, 1
        %v2832 = vshll.u32 %v2447, 16
        %v2834 = vrot.slane %v2832, 2
        %v2835 = vor.u32 %v2831, %v2834
        %v2836 = vsel %vm714, %v2826, %v2835
        %v2838 = vshrl.u32 %v2448, 16
        %v2840 = vrot.slane %v2838, 1
        %v2841 = vshll.u32 %v2448, 16
        %v2843 = vrot.slane %v2841, 2
        %v2844 = vor.u32 %v2840, %v2843
        %v2845 = vsel %vm714, %v2835, %v2844
        %v2847 = vshrl.u32 %v2449, 16
        %v2849 = vrot.slane %v2847, 1
        %v2850 = vshll.u32 %v2449, 16
        %v2852 = vrot.slane %v2850, 2
        %v2853 = vor.u32 %v2849, %v2852
        %v2854 = vsel %vm714, %v2844, %v2853
        %v2856 = vshrl.u32 %v2450, 16
        %v2858 = vrot.slane %v2856, 1
        %v2859 = vshll.u32 %v2450, 16
        %v2861 = vrot.slane %v2859, 2
        %v2862 = vor.u32 %v2858, %v2861
        %v2863 = vsel %vm714, %v2853, %v2862
        %v2865 = vshrl.u32 %v2451, 16
        %v2867 = vrot.slane %v2865, 1
        %v2868 = vshll.u32 %v2451, 16
        %v2870 = vrot.slane %v2868, 2
        %v2871 = vor.u32 %v2867, %v2870
        %v2872 = vsel %vm714, %v2862, %v2871
        %v2874 = vshrl.u32 %v2452, 16
        %v2876 = vrot.slane %v2874, 1
        %v2877 = vshll.u32 %v2452, 16
        %v2879 = vrot.slane %v2877, 2
        %v2880 = vor.u32 %v2876, %v2879
        %v2881 = vsel %vm714, %v2871, %v2880
        %v2883 = vshrl.u32 %v2453, 16
        %v2885 = vrot.slane %v2883, 1
        %v2886 = vshll.u32 %v2453, 16
        %v2888 = vrot.slane %v2886, 2
        %v2889 = vor.u32 %v2885, %v2888
        %v2890 = vsel %vm714, %v2880, %v2889
        %v2892 = vshrl.u32 %v2454, 16
        %v2894 = vrot.slane %v2892, 1
        %v2895 = vshll.u32 %v2454, 16
        %v2897 = vrot.slane %v2895, 2
        %v2898 = vor.u32 %v2894, %v2897
        %v2899 = vsel %vm714, %v2889, %v2898
        %v2901 = vsel %vm475, %v2746, 0
        %v2904 = vsel %vm475, %v2755, 0
        %v2907 = vsel %vm475, %v2764, 0
        %v2910 = vsel %vm475, %v2773, 0
        %v2913 = vsel %vm475, %v2782, 0
        %v2916 = vsel %vm475, %v2791, 0
        %v2919 = vsel %vm475, %v2800, 0
        %v2922 = vsel %vm475, %v2809, 0
        %v2925 = vsel %vm475, %v2818, 0
        %v2928 = vsel %vm475, %v2827, 0
        %v2931 = vsel %vm475, %v2836, 0
        %v2934 = vsel %vm475, %v2845, 0
        %v2937 = vsel %vm475, %v2854, 0
        %v2940 = vsel %vm475, %v2863, 0
        %v2943 = vsel %vm475, %v2872, 0
        %v2946 = vsel %vm475, %v2881, 0
        %v2949 = vsel %vm475, %v2890, 0
        %v2952 = vsel %vm475, %v2899, 0
        %v2955 = vsel %vm530, %v2358, 0
        %2957 = vmatprep.subr.bf16.mxu0 0
        %2958 = vmatpush1.bf16.msra.mxu0 0
        %2959 = vmatprep.subr.bf16.mxu0 0
        %2960 = vmatpush1.bf16.msra.mxu0 0
        %2961 = vmatprep.subr.bf16.mxu0 0
        %2962 = vmatpush1.bf16.msra.mxu0 0
        %2963 = vmatprep.subr.bf16.mxu0 0
        %2964 = vmatpush1.bf16.msra.mxu0 0
        %2965 = vmatprep.subr.bf16.mxu0 0
        %2966 = vmatpush1.bf16.msra.mxu0 0
        %2967 = vmatprep.subr.bf16.mxu0 0
        %2968 = vmatpush1.bf16.msra.mxu0 0
        %2969 = vmatprep.subr.bf16.mxu0 0
        %2970 = vmatpush1.bf16.msra.mxu0 0
        %2971 = vmatprep.subr.bf16.mxu0 0
        %2972 = vmatpush1.bf16.msra.mxu0 %v2955
        %2973 = vmatprep.subr.bf16.mxu0 0
        %2974 = vmatpush2.bf16.msra.mxu0 0
        %2975 = vmatprep.subr.bf16.mxu0 0
        %2976 = vmatpush2.bf16.msra.mxu0 0
        %2977 = vmatprep.subr.bf16.mxu0 0
        %2978 = vmatpush2.bf16.msra.mxu0 0
        %2979 = vmatprep.subr.bf16.mxu0 0
        %2980 = vmatpush2.bf16.msra.mxu0 0
        %2981 = vmatprep.subr.bf16.mxu0 0
        %2982 = vmatpush2.bf16.msra.mxu0 0
        %2983 = vmatprep.subr.bf16.mxu0 0
        %2984 = vmatpush2.bf16.msra.mxu0 0
        %2985 = vmatprep.subr.bf16.mxu0 0
        %2986 = vmatpush2.bf16.msra.mxu0 0
        %2987 = vmatprep.subr.bf16.mxu0 0
        %2988 = vmatpush2.bf16.msra.mxu0 0
        %2989 = vmatprep.mubr.bf16.mxu0 0
        %2990 = vmatmul.mubr.bf16.gmra.mxu0 %v2901
        %v2991 = vpop.f32.mrf.mxu0
        %v2992 = vadd.f32 %v2585, %v2991
        %v2993 = vpop.f32.mrf.mxu0
        %v2994 = vpop.f32.mrf.mxu0
        %v2995 = vadd.f32 %v2588, %v2994
        %v2996 = vpop.f32.mrf.mxu0
        %2997 = vmatprep.mubr.bf16.mxu0 0
        %2998 = vmatmul.mubr.bf16.gmra.mxu0 %v2904
        %v2999 = vpop.f32.mrf.mxu0
        %v3000 = vadd.f32 %v2593, %v2999
        %v3001 = vpop.f32.mrf.mxu0
        %v3002 = vpop.f32.mrf.mxu0
        %v3003 = vadd.f32 %v2596, %v3002
        %v3004 = vpop.f32.mrf.mxu0
        %3005 = vmatprep.mubr.bf16.mxu0 0
        %3006 = vmatmul.mubr.bf16.gmra.mxu0 %v2907
        %v3007 = vpop.f32.mrf.mxu0
        %v3008 = vadd.f32 %v2601, %v3007
        %v3009 = vpop.f32.mrf.mxu0
        %v3010 = vpop.f32.mrf.mxu0
        %v3011 = vadd.f32 %v2604, %v3010
        %v3012 = vpop.f32.mrf.mxu0
        %3013 = vmatprep.mubr.bf16.mxu0 0
        %3014 = vmatmul.mubr.bf16.gmra.mxu0 %v2910
        %v3015 = vpop.f32.mrf.mxu0
        %v3016 = vadd.f32 %v2609, %v3015
        %v3017 = vpop.f32.mrf.mxu0
        %v3018 = vpop.f32.mrf.mxu0
        %v3019 = vadd.f32 %v2612, %v3018
        %v3020 = vpop.f32.mrf.mxu0
        %3021 = vmatprep.mubr.bf16.mxu0 0
        %3022 = vmatmul.mubr.bf16.gmra.mxu0 %v2913
        %v3023 = vpop.f32.mrf.mxu0
        %v3024 = vadd.f32 %v2617, %v3023
        %v3025 = vpop.f32.mrf.mxu0
        %v3026 = vpop.f32.mrf.mxu0
        %v3027 = vadd.f32 %v2620, %v3026
        %v3028 = vpop.f32.mrf.mxu0
        %3029 = vmatprep.mubr.bf16.mxu0 0
        %3030 = vmatmul.mubr.bf16.gmra.mxu0 %v2916
        %v3031 = vpop.f32.mrf.mxu0
        %v3032 = vadd.f32 %v2625, %v3031
        %v3033 = vpop.f32.mrf.mxu0
        %v3034 = vpop.f32.mrf.mxu0
        %v3035 = vadd.f32 %v2628, %v3034
        %v3036 = vpop.f32.mrf.mxu0
        %3037 = vmatprep.mubr.bf16.mxu0 0
        %3038 = vmatmul.mubr.bf16.gmra.mxu0 %v2919
        %v3039 = vpop.f32.mrf.mxu0
        %v3040 = vadd.f32 %v2633, %v3039
        %v3041 = vpop.f32.mrf.mxu0
        %v3042 = vpop.f32.mrf.mxu0
        %v3043 = vadd.f32 %v2636, %v3042
        %v3044 = vpop.f32.mrf.mxu0
        %3045 = vmatprep.mubr.bf16.mxu0 0
        %3046 = vmatmul.mubr.bf16.gmra.mxu0 %v2922
        %v3047 = vpop.f32.mrf.mxu0
        %v3048 = vadd.f32 %v2641, %v3047
        %v3049 = vpop.f32.mrf.mxu0
        %v3050 = vpop.f32.mrf.mxu0
        %v3051 = vadd.f32 %v2644, %v3050
        %v3052 = vpop.f32.mrf.mxu0
        %3053 = vmatprep.mubr.bf16.mxu0 0
        %3054 = vmatmul.mubr.bf16.gmra.mxu0 %v2925
        %v3055 = vpop.f32.mrf.mxu0
        %v3056 = vadd.f32 %v2649, %v3055
        %v3057 = vpop.f32.mrf.mxu0
        %v3058 = vpop.f32.mrf.mxu0
        %v3059 = vadd.f32 %v2652, %v3058
        %v3060 = vpop.f32.mrf.mxu0
        %3061 = vmatprep.mubr.bf16.mxu0 0
        %3062 = vmatmul.mubr.bf16.gmra.mxu0 %v2928
        %v3063 = vpop.f32.mrf.mxu0
        %v3064 = vadd.f32 %v2657, %v3063
        %v3065 = vpop.f32.mrf.mxu0
        %v3066 = vpop.f32.mrf.mxu0
        %v3067 = vadd.f32 %v2660, %v3066
        %v3068 = vpop.f32.mrf.mxu0
        %3069 = vmatprep.mubr.bf16.mxu0 0
        %3070 = vmatmul.mubr.bf16.gmra.mxu0 %v2931
        %v3071 = vpop.f32.mrf.mxu0
        %v3072 = vadd.f32 %v2665, %v3071
        %v3073 = vpop.f32.mrf.mxu0
        %v3074 = vpop.f32.mrf.mxu0
        %v3075 = vadd.f32 %v2668, %v3074
        %v3076 = vpop.f32.mrf.mxu0
        %3077 = vmatprep.mubr.bf16.mxu0 0
        %3078 = vmatmul.mubr.bf16.gmra.mxu0 %v2934
        %v3079 = vpop.f32.mrf.mxu0
        %v3080 = vadd.f32 %v2673, %v3079
        %v3081 = vpop.f32.mrf.mxu0
        %v3082 = vpop.f32.mrf.mxu0
        %v3083 = vadd.f32 %v2676, %v3082
        %v3084 = vpop.f32.mrf.mxu0
        %3085 = vmatprep.mubr.bf16.mxu0 0
        %3086 = vmatmul.mubr.bf16.gmra.mxu0 %v2937
        %v3087 = vpop.f32.mrf.mxu0
        %v3088 = vadd.f32 %v2681, %v3087
        %v3089 = vpop.f32.mrf.mxu0
        %v3090 = vpop.f32.mrf.mxu0
        %v3091 = vadd.f32 %v2684, %v3090
        %v3092 = vpop.f32.mrf.mxu0
        %3093 = vmatprep.mubr.bf16.mxu0 0
        %3094 = vmatmul.mubr.bf16.gmra.mxu0 %v2940
        %v3095 = vpop.f32.mrf.mxu0
        %v3096 = vadd.f32 %v2689, %v3095
        %v3097 = vpop.f32.mrf.mxu0
        %v3098 = vpop.f32.mrf.mxu0
        %v3099 = vadd.f32 %v2692, %v3098
        %v3100 = vpop.f32.mrf.mxu0
        %3101 = vmatprep.mubr.bf16.mxu0 0
        %3102 = vmatmul.mubr.bf16.gmra.mxu0 %v2943
        %v3103 = vpop.f32.mrf.mxu0
        %v3104 = vadd.f32 %v2697, %v3103
        %v3105 = vpop.f32.mrf.mxu0
        %v3106 = vpop.f32.mrf.mxu0
        %v3107 = vadd.f32 %v2700, %v3106
        %v3108 = vpop.f32.mrf.mxu0
        %3109 = vmatprep.mubr.bf16.mxu0 0
        %3110 = vmatmul.mubr.bf16.gmra.mxu0 %v2946
        %v3111 = vpop.f32.mrf.mxu0
        %v3112 = vadd.f32 %v2705, %v3111
        %v3113 = vpop.f32.mrf.mxu0
        %v3114 = vpop.f32.mrf.mxu0
        %v3115 = vadd.f32 %v2708, %v3114
        %v3116 = vpop.f32.mrf.mxu0
        %3117 = vmatprep.mubr.bf16.mxu0 0
        %3118 = vmatmul.mubr.bf16.gmra.mxu0 %v2949
        %v3119 = vpop.f32.mrf.mxu0
        %v3120 = vadd.f32 %v2713, %v3119
        %v3121 = vpop.f32.mrf.mxu0
        %v3122 = vpop.f32.mrf.mxu0
        %v3123 = vadd.f32 %v2716, %v3122
        %v3124 = vpop.f32.mrf.mxu0
        %3125 = vmatprep.mubr.bf16.mxu0 0
        %3126 = vmatmul.mubr.bf16.gmra.mxu0 %v2952
        %v3127 = vpop.f32.mrf.mxu0
        %v3128 = vadd.f32 %v2721, %v3127
        %v3129 = vpop.f32.mrf.mxu0
        %v3130 = vpop.f32.mrf.mxu0
        %v3131 = vadd.f32 %v2724, %v3130
        %v3132 = vpop.f32.mrf.mxu0
        %3133 = vdwg.mxu0
        %v3134 = vld [vmem:[%s259] sm:$0xf]
        %v3135 = vld [vmem:[%s259 + $0x4] sm:$0xf]
        %v3136 = vld [vmem:[%s259 + $0x8] sm:$0xf]
        %v3137 = vld [vmem:[%s259 + $0xc] sm:$0xf]
        %v3138 = vld [vmem:[%s259 + $0x10] sm:$0xf]
        %v3139 = vld [vmem:[%s259 + $0x14] sm:$0xf]
        %v3140 = vld [vmem:[%s259 + $0x18] sm:$0xf]
        %v3141 = vld [vmem:[%s259 + $0x1c] sm:$0xf]
        %v3142 = vld [vmem:[%s259 + $0x20] sm:$0xf]
        %v3143 = vld [vmem:[%s259 + $0x24] sm:$0xf]
        %v3144 = vld [vmem:[%s259 + $0x28] sm:$0xf]
        %v3145 = vld [vmem:[%s259 + $0x2c] sm:$0xf]
        %v3146 = vld [vmem:[%s259 + $0x30] sm:$0xf]
        %v3147 = vld [vmem:[%s259 + $0x34] sm:$0xf]
        %v3148 = vld [vmem:[%s259 + $0x38] sm:$0xf]
        %v3149 = vld [vmem:[%s259 + $0x3c] sm:$0xf]
        %v3150 = vld [vmem:[%s259 + $0x40] sm:$0xf]
        %v3151 = vld [vmem:[%s259 + $0x44] sm:$0xf]
        %v3152 = vld [vmem:[%s259 + $0x48] sm:$0xf]
        %v3153 = vld [vmem:[%s259 + $0x4c] sm:$0xf]
        %v3154 = vld [vmem:[%s259 + $0x50] sm:$0xf]
        %v3155 = vld [vmem:[%s259 + $0x54] sm:$0xf]
        %v3156 = vld [vmem:[%s259 + $0x58] sm:$0xf]
        %v3157 = vld [vmem:[%s259 + $0x5c] sm:$0xf]
        %v3158 = vld [vmem:[%s259 + $0x60] sm:$0xf]
        %v3159 = vld [vmem:[%s259 + $0x64] sm:$0xf]
        %v3160 = vld [vmem:[%s259 + $0x68] sm:$0xf]
        %v3161 = vld [vmem:[%s259 + $0x6c] sm:$0xf]
        %v3162 = vld [vmem:[%s259 + $0x70] sm:$0xf]
        %v3163 = vld [vmem:[%s259 + $0x74] sm:$0xf]
        %v3164 = vld [vmem:[%s259 + $0x78] sm:$0xf]
        %v3165 = vld [vmem:[%s259 + $0x7c] sm:$0xf]
        %v3166 = vld [vmem:[%s259 + $0x80] sm:$0xf]
        %v3167 = vld [vmem:[%s259 + $0x84] sm:$0xf]
        %v3168 = vld [vmem:[%s259 + $0x88] sm:$0xf]
        %v3169 = vld [vmem:[%s259 + $0x8c] sm:$0xf]
        %v3170 = vld [vmem:[%s259 + $0x90] sm:$0x1]
        %s3171 = scalar_lea.vmem [#allocation2], 28
        %v3172 = vld [vmem:[%s3171] sm:$0x3]
        %v3210 = vunpack.c.l.b16 %v3134
        %v3211 = vunpack.c.l.b16 %v3135
        %v3212 = vunpack.c.l.b16 %v3136
        %v3213 = vunpack.c.l.b16 %v3137
        %v3214 = vunpack.c.l.b16 %v3138
        %v3215 = vunpack.c.l.b16 %v3139
        %v3216 = vunpack.c.l.b16 %v3140
        %v3217 = vunpack.c.l.b16 %v3141
        %v3218 = vunpack.c.l.b16 %v3142
        %v3219 = vunpack.c.l.b16 %v3143
        %v3220 = vunpack.c.l.b16 %v3144
        %v3221 = vunpack.c.l.b16 %v3145
        %v3222 = vunpack.c.l.b16 %v3146
        %v3223 = vunpack.c.l.b16 %v3147
        %v3224 = vunpack.c.l.b16 %v3148
        %v3225 = vunpack.c.l.b16 %v3149
        %v3226 = vunpack.c.l.b16 %v3150
        %v3227 = vunpack.c.l.b16 %v3151
        %v3228 = vunpack.c.l.b16 %v3152
        %v3229 = vunpack.c.l.b16 %v3153
        %v3230 = vunpack.c.l.b16 %v3154
        %v3231 = vunpack.c.l.b16 %v3155
        %v3232 = vunpack.c.l.b16 %v3156
        %v3233 = vunpack.c.l.b16 %v3157
        %v3234 = vunpack.c.l.b16 %v3158
        %v3235 = vunpack.c.l.b16 %v3159
        %v3236 = vunpack.c.l.b16 %v3160
        %v3237 = vunpack.c.l.b16 %v3161
        %v3238 = vunpack.c.l.b16 %v3162
        %v3239 = vunpack.c.l.b16 %v3163
        %v3240 = vunpack.c.l.b16 %v3164
        %v3241 = vunpack.c.l.b16 %v3165
        %v3242 = vunpack.c.l.b16 %v3166
        %v3243 = vunpack.c.l.b16 %v3167
        %v3244 = vunpack.c.l.b16 %v3168
        %v3245 = vunpack.c.l.b16 %v3169
        %v3246 = vunpack.c.l.b16 %v3170
        %v3247 = vpack.c.b16 %v3211, %v3210
        %v3248 = vpack.c.b16 %v3213, %v3212
        %v3249 = vpack.c.b16 %v3215, %v3214
        %v3250 = vpack.c.b16 %v3217, %v3216
        %v3251 = vpack.c.b16 %v3219, %v3218
        %v3252 = vpack.c.b16 %v3221, %v3220
        %v3253 = vpack.c.b16 %v3223, %v3222
        %v3254 = vpack.c.b16 %v3225, %v3224
        %v3255 = vpack.c.b16 %v3227, %v3226
        %v3256 = vpack.c.b16 %v3229, %v3228
        %v3257 = vpack.c.b16 %v3231, %v3230
        %v3258 = vpack.c.b16 %v3233, %v3232
        %v3259 = vpack.c.b16 %v3235, %v3234
        %v3260 = vpack.c.b16 %v3237, %v3236
        %v3261 = vpack.c.b16 %v3239, %v3238
        %v3262 = vpack.c.b16 %v3241, %v3240
        %v3263 = vpack.c.b16 %v3243, %v3242
        %v3264 = vpack.c.b16 %v3245, %v3244
        %v3265 = vpack.c.b16 %v3246, %v3246
        %v3267 = vshrl.u32 %v3247, 16
        %v3269 = vshll.u32 %v3247, 16
        %v3271 = vrot.slane %v3269, 1
        %v3272 = vor.u32 %v3267, %v3271
        %v3274 = vshll.u32 %v3248, 16
        %v3276 = vrot.slane %v3274, 1
        %v3277 = vsel %vm1251, %v3272, %v3276
        %v3278 = vshrl.u32 %v3248, 16
        %v3280 = vor.u32 %v3278, %v3276
        %v3282 = vshll.u32 %v3249, 16
        %v3284 = vrot.slane %v3282, 1
        %v3285 = vsel %vm1251, %v3280, %v3284
        %v3286 = vshrl.u32 %v3249, 16
        %v3288 = vor.u32 %v3286, %v3284
        %v3290 = vshll.u32 %v3250, 16
        %v3292 = vrot.slane %v3290, 1
        %v3293 = vsel %vm1251, %v3288, %v3292
        %v3294 = vshrl.u32 %v3250, 16
        %v3296 = vor.u32 %v3294, %v3292
        %v3298 = vshll.u32 %v3251, 16
        %v3300 = vrot.slane %v3298, 1
        %v3301 = vsel %vm1251, %v3296, %v3300
        %v3302 = vshrl.u32 %v3251, 16
        %v3304 = vor.u32 %v3302, %v3300
        %v3306 = vshll.u32 %v3252, 16
        %v3308 = vrot.slane %v3306, 1
        %v3309 = vsel %vm1251, %v3304, %v3308
        %v3310 = vshrl.u32 %v3252, 16
        %v3312 = vor.u32 %v3310, %v3308
        %v3314 = vshll.u32 %v3253, 16
        %v3316 = vrot.slane %v3314, 1
        %v3317 = vsel %vm1251, %v3312, %v3316
        %v3318 = vshrl.u32 %v3253, 16
        %v3320 = vor.u32 %v3318, %v3316
        %v3322 = vshll.u32 %v3254, 16
        %v3324 = vrot.slane %v3322, 1
        %v3325 = vsel %vm1251, %v3320, %v3324
        %v3326 = vshrl.u32 %v3254, 16
        %v3328 = vor.u32 %v3326, %v3324
        %v3330 = vshll.u32 %v3255, 16
        %v3332 = vrot.slane %v3330, 1
        %v3333 = vsel %vm1251, %v3328, %v3332
        %v3334 = vshrl.u32 %v3255, 16
        %v3336 = vor.u32 %v3334, %v3332
        %v3338 = vshll.u32 %v3256, 16
        %v3340 = vrot.slane %v3338, 1
        %v3341 = vsel %vm1251, %v3336, %v3340
        %v3342 = vshrl.u32 %v3256, 16
        %v3344 = vor.u32 %v3342, %v3340
        %v3346 = vshll.u32 %v3257, 16
        %v3348 = vrot.slane %v3346, 1
        %v3349 = vsel %vm1251, %v3344, %v3348
        %v3350 = vshrl.u32 %v3257, 16
        %v3352 = vor.u32 %v3350, %v3348
        %v3354 = vshll.u32 %v3258, 16
        %v3356 = vrot.slane %v3354, 1
        %v3357 = vsel %vm1251, %v3352, %v3356
        %v3358 = vshrl.u32 %v3258, 16
        %v3360 = vor.u32 %v3358, %v3356
        %v3362 = vshll.u32 %v3259, 16
        %v3364 = vrot.slane %v3362, 1
        %v3365 = vsel %vm1251, %v3360, %v3364
        %v3366 = vshrl.u32 %v3259, 16
        %v3368 = vor.u32 %v3366, %v3364
        %v3370 = vshll.u32 %v3260, 16
        %v3372 = vrot.slane %v3370, 1
        %v3373 = vsel %vm1251, %v3368, %v3372
        %v3374 = vshrl.u32 %v3260, 16
        %v3376 = vor.u32 %v3374, %v3372
        %v3378 = vshll.u32 %v3261, 16
        %v3380 = vrot.slane %v3378, 1
        %v3381 = vsel %vm1251, %v3376, %v3380
        %v3382 = vshrl.u32 %v3261, 16
        %v3384 = vor.u32 %v3382, %v3380
        %v3386 = vshll.u32 %v3262, 16
        %v3388 = vrot.slane %v3386, 1
        %v3389 = vsel %vm1251, %v3384, %v3388
        %v3390 = vshrl.u32 %v3262, 16
        %v3392 = vor.u32 %v3390, %v3388
        %v3394 = vshll.u32 %v3263, 16
        %v3396 = vrot.slane %v3394, 1
        %v3397 = vsel %vm1251, %v3392, %v3396
        %v3398 = vshrl.u32 %v3263, 16
        %v3400 = vor.u32 %v3398, %v3396
        %v3402 = vshll.u32 %v3264, 16
        %v3404 = vrot.slane %v3402, 1
        %v3405 = vsel %vm1251, %v3400, %v3404
        %v3406 = vshrl.u32 %v3264, 16
        %v3408 = vor.u32 %v3406, %v3404
        %v3410 = vshll.u32 %v3265, 16
        %v3412 = vrot.slane %v3410, 1
        %v3413 = vsel %vm1251, %v3408, %v3412
        %v3415 = vsel %vm475, %v3277, 0
        %v3418 = vsel %vm475, %v3285, 0
        %v3421 = vsel %vm475, %v3293, 0
        %v3424 = vsel %vm475, %v3301, 0
        %v3427 = vsel %vm475, %v3309, 0
        %v3430 = vsel %vm475, %v3317, 0
        %v3433 = vsel %vm475, %v3325, 0
        %v3436 = vsel %vm475, %v3333, 0
        %v3439 = vsel %vm475, %v3341, 0
        %v3442 = vsel %vm475, %v3349, 0
        %v3445 = vsel %vm475, %v3357, 0
        %v3448 = vsel %vm475, %v3365, 0
        %v3451 = vsel %vm475, %v3373, 0
        %v3454 = vsel %vm475, %v3381, 0
        %v3457 = vsel %vm475, %v3389, 0
        %v3460 = vsel %vm475, %v3397, 0
        %v3463 = vsel %vm475, %v3405, 0
        %v3466 = vsel %vm475, %v3413, 0
        %v3469 = vsel %vm530, %v3172, 0
        %3471 = vmatprep.subr.bf16.mxu0 0
        %3472 = vmatpush1.bf16.msra.mxu0 0
        %3473 = vmatprep.subr.bf16.mxu0 0
        %3474 = vmatpush1.bf16.msra.mxu0 0
        %3475 = vmatprep.subr.bf16.mxu0 0
        %3476 = vmatpush1.bf16.msra.mxu0 0
        %3477 = vmatprep.subr.bf16.mxu0 0
        %3478 = vmatpush1.bf16.msra.mxu0 0
        %3479 = vmatprep.subr.bf16.mxu0 0
        %3480 = vmatpush1.bf16.msra.mxu0 0
        %3481 = vmatprep.subr.bf16.mxu0 0
        %3482 = vmatpush1.bf16.msra.mxu0 0
        %3483 = vmatprep.subr.bf16.mxu0 0
        %3484 = vmatpush1.bf16.msra.mxu0 0
        %3485 = vmatprep.subr.bf16.mxu0 0
        %3486 = vmatpush1.bf16.msra.mxu0 %v3469
        %3487 = vmatprep.subr.bf16.mxu0 0
        %3488 = vmatpush2.bf16.msra.mxu0 0
        %3489 = vmatprep.subr.bf16.mxu0 0
        %3490 = vmatpush2.bf16.msra.mxu0 0
        %3491 = vmatprep.subr.bf16.mxu0 0
        %3492 = vmatpush2.bf16.msra.mxu0 0
        %3493 = vmatprep.subr.bf16.mxu0 0
        %3494 = vmatpush2.bf16.msra.mxu0 0
        %3495 = vmatprep.subr.bf16.mxu0 0
        %3496 = vmatpush2.bf16.msra.mxu0 0
        %3497 = vmatprep.subr.bf16.mxu0 0
        %3498 = vmatpush2.bf16.msra.mxu0 0
        %3499 = vmatprep.subr.bf16.mxu0 0
        %3500 = vmatpush2.bf16.msra.mxu0 0
        %3501 = vmatprep.subr.bf16.mxu0 0
        %3502 = vmatpush2.bf16.msra.mxu0 0
        %3503 = vmatprep.mubr.bf16.mxu0 0
        %3504 = vmatmul.mubr.bf16.gmra.mxu0 %v3415
        %v3505 = vpop.f32.mrf.mxu0
        %v3506 = vadd.f32 0.0, %v3505
        %v3507 = vpop.f32.mrf.mxu0
        %v3508 = vpop.f32.mrf.mxu0
        %v3509 = vadd.f32 0.0, %v3508
        %v3510 = vpop.f32.mrf.mxu0
        %3511 = vmatprep.mubr.bf16.mxu0 0
        %3512 = vmatmul.mubr.bf16.gmra.mxu0 %v3418
        %v3513 = vpop.f32.mrf.mxu0
        %v3514 = vadd.f32 0.0, %v3513
        %v3515 = vpop.f32.mrf.mxu0
        %v3516 = vpop.f32.mrf.mxu0
        %v3517 = vadd.f32 0.0, %v3516
        %v3518 = vpop.f32.mrf.mxu0
        %3519 = vmatprep.mubr.bf16.mxu0 0
        %3520 = vmatmul.mubr.bf16.gmra.mxu0 %v3421
        %v3521 = vpop.f32.mrf.mxu0
        %v3522 = vadd.f32 0.0, %v3521
        %v3523 = vpop.f32.mrf.mxu0
        %v3524 = vpop.f32.mrf.mxu0
        %v3525 = vadd.f32 0.0, %v3524
        %v3526 = vpop.f32.mrf.mxu0
        %3527 = vmatprep.mubr.bf16.mxu0 0
        %3528 = vmatmul.mubr.bf16.gmra.mxu0 %v3424
        %v3529 = vpop.f32.mrf.mxu0
        %v3530 = vadd.f32 0.0, %v3529
        %v3531 = vpop.f32.mrf.mxu0
        %v3532 = vpop.f32.mrf.mxu0
        %v3533 = vadd.f32 0.0, %v3532
        %v3534 = vpop.f32.mrf.mxu0
        %3535 = vmatprep.mubr.bf16.mxu0 0
        %3536 = vmatmul.mubr.bf16.gmra.mxu0 %v3427
        %v3537 = vpop.f32.mrf.mxu0
        %v3538 = vadd.f32 0.0, %v3537
        %v3539 = vpop.f32.mrf.mxu0
        %v3540 = vpop.f32.mrf.mxu0
        %v3541 = vadd.f32 0.0, %v3540
        %v3542 = vpop.f32.mrf.mxu0
        %3543 = vmatprep.mubr.bf16.mxu0 0
        %3544 = vmatmul.mubr.bf16.gmra.mxu0 %v3430
        %v3545 = vpop.f32.mrf.mxu0
        %v3546 = vadd.f32 0.0, %v3545
        %v3547 = vpop.f32.mrf.mxu0
        %v3548 = vpop.f32.mrf.mxu0
        %v3549 = vadd.f32 0.0, %v3548
        %v3550 = vpop.f32.mrf.mxu0
        %3551 = vmatprep.mubr.bf16.mxu0 0
        %3552 = vmatmul.mubr.bf16.gmra.mxu0 %v3433
        %v3553 = vpop.f32.mrf.mxu0
        %v3554 = vadd.f32 0.0, %v3553
        %v3555 = vpop.f32.mrf.mxu0
        %v3556 = vpop.f32.mrf.mxu0
        %v3557 = vadd.f32 0.0, %v3556
        %v3558 = vpop.f32.mrf.mxu0
        %3559 = vmatprep.mubr.bf16.mxu0 0
        %3560 = vmatmul.mubr.bf16.gmra.mxu0 %v3436
        %v3561 = vpop.f32.mrf.mxu0
        %v3562 = vadd.f32 0.0, %v3561
        %v3563 = vpop.f32.mrf.mxu0
        %v3564 = vpop.f32.mrf.mxu0
        %v3565 = vadd.f32 0.0, %v3564
        %v3566 = vpop.f32.mrf.mxu0
        %3567 = vmatprep.mubr.bf16.mxu0 0
        %3568 = vmatmul.mubr.bf16.gmra.mxu0 %v3439
        %v3569 = vpop.f32.mrf.mxu0
        %v3570 = vadd.f32 0.0, %v3569
        %v3571 = vpop.f32.mrf.mxu0
        %v3572 = vpop.f32.mrf.mxu0
        %v3573 = vadd.f32 0.0, %v3572
        %v3574 = vpop.f32.mrf.mxu0
        %3575 = vmatprep.mubr.bf16.mxu0 0
        %3576 = vmatmul.mubr.bf16.gmra.mxu0 %v3442
        %v3577 = vpop.f32.mrf.mxu0
        %v3578 = vadd.f32 0.0, %v3577
        %v3579 = vpop.f32.mrf.mxu0
        %v3580 = vpop.f32.mrf.mxu0
        %v3581 = vadd.f32 0.0, %v3580
        %v3582 = vpop.f32.mrf.mxu0
        %3583 = vmatprep.mubr.bf16.mxu0 0
        %3584 = vmatmul.mubr.bf16.gmra.mxu0 %v3445
        %v3585 = vpop.f32.mrf.mxu0
        %v3586 = vadd.f32 0.0, %v3585
        %v3587 = vpop.f32.mrf.mxu0
        %v3588 = vpop.f32.mrf.mxu0
        %v3589 = vadd.f32 0.0, %v3588
        %v3590 = vpop.f32.mrf.mxu0
        %3591 = vmatprep.mubr.bf16.mxu0 0
        %3592 = vmatmul.mubr.bf16.gmra.mxu0 %v3448
        %v3593 = vpop.f32.mrf.mxu0
        %v3594 = vadd.f32 0.0, %v3593
        %v3595 = vpop.f32.mrf.mxu0
        %v3596 = vpop.f32.mrf.mxu0
        %v3597 = vadd.f32 0.0, %v3596
        %v3598 = vpop.f32.mrf.mxu0
        %3599 = vmatprep.mubr.bf16.mxu0 0
        %3600 = vmatmul.mubr.bf16.gmra.mxu0 %v3451
        %v3601 = vpop.f32.mrf.mxu0
        %v3602 = vadd.f32 0.0, %v3601
        %v3603 = vpop.f32.mrf.mxu0
        %v3604 = vpop.f32.mrf.mxu0
        %v3605 = vadd.f32 0.0, %v3604
        %v3606 = vpop.f32.mrf.mxu0
        %3607 = vmatprep.mubr.bf16.mxu0 0
        %3608 = vmatmul.mubr.bf16.gmra.mxu0 %v3454
        %v3609 = vpop.f32.mrf.mxu0
        %v3610 = vadd.f32 0.0, %v3609
        %v3611 = vpop.f32.mrf.mxu0
        %v3612 = vpop.f32.mrf.mxu0
        %v3613 = vadd.f32 0.0, %v3612
        %v3614 = vpop.f32.mrf.mxu0
        %3615 = vmatprep.mubr.bf16.mxu0 0
        %3616 = vmatmul.mubr.bf16.gmra.mxu0 %v3457
        %v3617 = vpop.f32.mrf.mxu0
        %v3618 = vadd.f32 0.0, %v3617
        %v3619 = vpop.f32.mrf.mxu0
        %v3620 = vpop.f32.mrf.mxu0
        %v3621 = vadd.f32 0.0, %v3620
        %v3622 = vpop.f32.mrf.mxu0
        %3623 = vmatprep.mubr.bf16.mxu0 0
        %3624 = vmatmul.mubr.bf16.gmra.mxu0 %v3460
        %v3625 = vpop.f32.mrf.mxu0
        %v3626 = vadd.f32 0.0, %v3625
        %v3627 = vpop.f32.mrf.mxu0
        %v3628 = vpop.f32.mrf.mxu0
        %v3629 = vadd.f32 0.0, %v3628
        %v3630 = vpop.f32.mrf.mxu0
        %3631 = vmatprep.mubr.bf16.mxu0 0
        %3632 = vmatmul.mubr.bf16.gmra.mxu0 %v3463
        %v3633 = vpop.f32.mrf.mxu0
        %v3634 = vadd.f32 0.0, %v3633
        %v3635 = vpop.f32.mrf.mxu0
        %v3636 = vpop.f32.mrf.mxu0
        %v3637 = vadd.f32 0.0, %v3636
        %v3638 = vpop.f32.mrf.mxu0
        %3639 = vmatprep.mubr.bf16.mxu0 0
        %3640 = vmatmul.mubr.bf16.gmra.mxu0 %v3466
        %v3641 = vpop.f32.mrf.mxu0
        %v3642 = vadd.f32 0.0, %v3641
        %v3643 = vpop.f32.mrf.mxu0
        %v3644 = vpop.f32.mrf.mxu0
        %v3645 = vadd.f32 0.0, %v3644
        %v3646 = vpop.f32.mrf.mxu0
        %3647 = vdwg.mxu0
        %v3648 = vadd.f32 %v2992, %v3506
        %v3649 = vadd.f32 %v2995, %v3509
        %v3650 = vadd.f32 %v3000, %v3514
        %v3651 = vadd.f32 %v3003, %v3517
        %v3652 = vadd.f32 %v3008, %v3522
        %v3653 = vadd.f32 %v3011, %v3525
        %v3654 = vadd.f32 %v3016, %v3530
        %v3655 = vadd.f32 %v3019, %v3533
        %v3656 = vadd.f32 %v3024, %v3538
        %v3657 = vadd.f32 %v3027, %v3541
        %v3658 = vadd.f32 %v3032, %v3546
        %v3659 = vadd.f32 %v3035, %v3549
        %v3660 = vadd.f32 %v3040, %v3554
        %v3661 = vadd.f32 %v3043, %v3557
        %v3662 = vadd.f32 %v3048, %v3562
        %v3663 = vadd.f32 %v3051, %v3565
        %v3664 = vadd.f32 %v3056, %v3570
        %v3665 = vadd.f32 %v3059, %v3573
        %v3666 = vadd.f32 %v3064, %v3578
        %v3667 = vadd.f32 %v3067, %v3581
        %v3668 = vadd.f32 %v3072, %v3586
        %v3669 = vadd.f32 %v3075, %v3589
        %v3670 = vadd.f32 %v3080, %v3594
        %v3671 = vadd.f32 %v3083, %v3597
        %v3672 = vadd.f32 %v3088, %v3602
        %v3673 = vadd.f32 %v3091, %v3605
        %v3674 = vadd.f32 %v3096, %v3610
        %v3675 = vadd.f32 %v3099, %v3613
        %v3676 = vadd.f32 %v3104, %v3618
        %v3677 = vadd.f32 %v3107, %v3621
        %v3678 = vadd.f32 %v3112, %v3626
        %v3679 = vadd.f32 %v3115, %v3629
        %v3680 = vadd.f32 %v3120, %v3634
        %v3681 = vadd.f32 %v3123, %v3637
        %v3682 = vadd.f32 %v3128, %v3642
        %v3683 = vadd.f32 %v3131, %v3645
        %v3684 = vld [vmem:[%s259] sm:$0xe]
        %s3685 = scalar_lea.vmem [#allocation2], 24
        %v3686 = vld [vmem:[%s3685] sm:$0x3]
        %v3688 = vunpack.c.l.b16 %v3684
        %v3689 = vpack.c.b16 %v3211, %v3688
        %v3690 = vrot.slane %v3689, 1
        %v3691 = vrot.slane %v3248, 1
        %v3692 = vsel %vm437, %v3690, %v3691
        %v3693 = vrot.slane %v3249, 1
        %v3694 = vsel %vm437, %v3691, %v3693
        %v3695 = vrot.slane %v3250, 1
        %v3696 = vsel %vm437, %v3693, %v3695
        %v3697 = vrot.slane %v3251, 1
        %v3698 = vsel %vm437, %v3695, %v3697
        %v3699 = vrot.slane %v3252, 1
        %v3700 = vsel %vm437, %v3697, %v3699
        %v3701 = vrot.slane %v3253, 1
        %v3702 = vsel %vm437, %v3699, %v3701
        %v3703 = vrot.slane %v3254, 1
        %v3704 = vsel %vm437, %v3701, %v3703
        %v3705 = vrot.slane %v3255, 1
        %v3706 = vsel %vm437, %v3703, %v3705
        %v3707 = vrot.slane %v3256, 1
        %v3708 = vsel %vm437, %v3705, %v3707
        %v3709 = vrot.slane %v3257, 1
        %v3710 = vsel %vm437, %v3707, %v3709
        %v3711 = vrot.slane %v3258, 1
        %v3712 = vsel %vm437, %v3709, %v3711
        %v3713 = vrot.slane %v3259, 1
        %v3714 = vsel %vm437, %v3711, %v3713
        %v3715 = vrot.slane %v3260, 1
        %v3716 = vsel %vm437, %v3713, %v3715
        %v3717 = vrot.slane %v3261, 1
        %v3718 = vsel %vm437, %v3715, %v3717
        %v3719 = vrot.slane %v3262, 1
        %v3720 = vsel %vm437, %v3717, %v3719
        %v3721 = vrot.slane %v3263, 1
        %v3722 = vsel %vm437, %v3719, %v3721
        %v3723 = vrot.slane %v3264, 1
        %v3724 = vsel %vm437, %v3721, %v3723
        %v3725 = vrot.slane %v3265, 1
        %v3726 = vsel %vm437, %v3723, %v3725
        %v3728 = vsel %vm475, %v3692, 0
        %v3731 = vsel %vm475, %v3694, 0
        %v3734 = vsel %vm475, %v3696, 0
        %v3737 = vsel %vm475, %v3698, 0
        %v3740 = vsel %vm475, %v3700, 0
        %v3743 = vsel %vm475, %v3702, 0
        %v3746 = vsel %vm475, %v3704, 0
        %v3749 = vsel %vm475, %v3706, 0
        %v3752 = vsel %vm475, %v3708, 0
        %v3755 = vsel %vm475, %v3710, 0
        %v3758 = vsel %vm475, %v3712, 0
        %v3761 = vsel %vm475, %v3714, 0
        %v3764 = vsel %vm475, %v3716, 0
        %v3767 = vsel %vm475, %v3718, 0
        %v3770 = vsel %vm475, %v3720, 0
        %v3773 = vsel %vm475, %v3722, 0
        %v3776 = vsel %vm475, %v3724, 0
        %v3779 = vsel %vm475, %v3726, 0
        %v3782 = vsel %vm530, %v3686, 0
        %3784 = vmatprep.subr.bf16.mxu0 0
        %3785 = vmatpush1.bf16.msra.mxu0 0
        %3786 = vmatprep.subr.bf16.mxu0 0
        %3787 = vmatpush1.bf16.msra.mxu0 0
        %3788 = vmatprep.subr.bf16.mxu0 0
        %3789 = vmatpush1.bf16.msra.mxu0 0
        %3790 = vmatprep.subr.bf16.mxu0 0
        %3791 = vmatpush1.bf16.msra.mxu0 0
        %3792 = vmatprep.subr.bf16.mxu0 0
        %3793 = vmatpush1.bf16.msra.mxu0 0
        %3794 = vmatprep.subr.bf16.mxu0 0
        %3795 = vmatpush1.bf16.msra.mxu0 0
        %3796 = vmatprep.subr.bf16.mxu0 0
        %3797 = vmatpush1.bf16.msra.mxu0 0
        %3798 = vmatprep.subr.bf16.mxu0 0
        %3799 = vmatpush1.bf16.msra.mxu0 %v3782
        %3800 = vmatprep.subr.bf16.mxu0 0
        %3801 = vmatpush2.bf16.msra.mxu0 0
        %3802 = vmatprep.subr.bf16.mxu0 0
        %3803 = vmatpush2.bf16.msra.mxu0 0
        %3804 = vmatprep.subr.bf16.mxu0 0
        %3805 = vmatpush2.bf16.msra.mxu0 0
        %3806 = vmatprep.subr.bf16.mxu0 0
        %3807 = vmatpush2.bf16.msra.mxu0 0
        %3808 = vmatprep.subr.bf16.mxu0 0
        %3809 = vmatpush2.bf16.msra.mxu0 0
        %3810 = vmatprep.subr.bf16.mxu0 0
        %3811 = vmatpush2.bf16.msra.mxu0 0
        %3812 = vmatprep.subr.bf16.mxu0 0
        %3813 = vmatpush2.bf16.msra.mxu0 0
        %3814 = vmatprep.subr.bf16.mxu0 0
        %3815 = vmatpush2.bf16.msra.mxu0 0
        %3816 = vmatprep.mubr.bf16.mxu0 0
        %3817 = vmatmul.mubr.bf16.gmra.mxu0 %v3728
        %v3818 = vpop.f32.mrf.mxu0
        %v3819 = vadd.f32 0.0, %v3818
        %v3820 = vpop.f32.mrf.mxu0
        %v3821 = vpop.f32.mrf.mxu0
        %v3822 = vadd.f32 0.0, %v3821
        %v3823 = vpop.f32.mrf.mxu0
        %3824 = vmatprep.mubr.bf16.mxu0 0
        %3825 = vmatmul.mubr.bf16.gmra.mxu0 %v3731
        %v3826 = vpop.f32.mrf.mxu0
        %v3827 = vadd.f32 0.0, %v3826
        %v3828 = vpop.f32.mrf.mxu0
        %v3829 = vpop.f32.mrf.mxu0
        %v3830 = vadd.f32 0.0, %v3829
        %v3831 = vpop.f32.mrf.mxu0
        %3832 = vmatprep.mubr.bf16.mxu0 0
        %3833 = vmatmul.mubr.bf16.gmra.mxu0 %v3734
        %v3834 = vpop.f32.mrf.mxu0
        %v3835 = vadd.f32 0.0, %v3834
        %v3836 = vpop.f32.mrf.mxu0
        %v3837 = vpop.f32.mrf.mxu0
        %v3838 = vadd.f32 0.0, %v3837
        %v3839 = vpop.f32.mrf.mxu0
        %3840 = vmatprep.mubr.bf16.mxu0 0
        %3841 = vmatmul.mubr.bf16.gmra.mxu0 %v3737
        %v3842 = vpop.f32.mrf.mxu0
        %v3843 = vadd.f32 0.0, %v3842
        %v3844 = vpop.f32.mrf.mxu0
        %v3845 = vpop.f32.mrf.mxu0
        %v3846 = vadd.f32 0.0, %v3845
        %v3847 = vpop.f32.mrf.mxu0
        %3848 = vmatprep.mubr.bf16.mxu0 0
        %3849 = vmatmul.mubr.bf16.gmra.mxu0 %v3740
        %v3850 = vpop.f32.mrf.mxu0
        %v3851 = vadd.f32 0.0, %v3850
        %v3852 = vpop.f32.mrf.mxu0
        %v3853 = vpop.f32.mrf.mxu0
        %v3854 = vadd.f32 0.0, %v3853
        %v3855 = vpop.f32.mrf.mxu0
        %3856 = vmatprep.mubr.bf16.mxu0 0
        %3857 = vmatmul.mubr.bf16.gmra.mxu0 %v3743
        %v3858 = vpop.f32.mrf.mxu0
        %v3859 = vadd.f32 0.0, %v3858
        %v3860 = vpop.f32.mrf.mxu0
        %v3861 = vpop.f32.mrf.mxu0
        %v3862 = vadd.f32 0.0, %v3861
        %v3863 = vpop.f32.mrf.mxu0
        %3864 = vmatprep.mubr.bf16.mxu0 0
        %3865 = vmatmul.mubr.bf16.gmra.mxu0 %v3746
        %v3866 = vpop.f32.mrf.mxu0
        %v3867 = vadd.f32 0.0, %v3866
        %v3868 = vpop.f32.mrf.mxu0
        %v3869 = vpop.f32.mrf.mxu0
        %v3870 = vadd.f32 0.0, %v3869
        %v3871 = vpop.f32.mrf.mxu0
        %3872 = vmatprep.mubr.bf16.mxu0 0
        %3873 = vmatmul.mubr.bf16.gmra.mxu0 %v3749
        %v3874 = vpop.f32.mrf.mxu0
        %v3875 = vadd.f32 0.0, %v3874
        %v3876 = vpop.f32.mrf.mxu0
        %v3877 = vpop.f32.mrf.mxu0
        %v3878 = vadd.f32 0.0, %v3877
        %v3879 = vpop.f32.mrf.mxu0
        %3880 = vmatprep.mubr.bf16.mxu0 0
        %3881 = vmatmul.mubr.bf16.gmra.mxu0 %v3752
        %v3882 = vpop.f32.mrf.mxu0
        %v3883 = vadd.f32 0.0, %v3882
        %v3884 = vpop.f32.mrf.mxu0
        %v3885 = vpop.f32.mrf.mxu0
        %v3886 = vadd.f32 0.0, %v3885
        %v3887 = vpop.f32.mrf.mxu0
        %3888 = vmatprep.mubr.bf16.mxu0 0
        %3889 = vmatmul.mubr.bf16.gmra.mxu0 %v3755
        %v3890 = vpop.f32.mrf.mxu0
        %v3891 = vadd.f32 0.0, %v3890
        %v3892 = vpop.f32.mrf.mxu0
        %v3893 = vpop.f32.mrf.mxu0
        %v3894 = vadd.f32 0.0, %v3893
        %v3895 = vpop.f32.mrf.mxu0
        %3896 = vmatprep.mubr.bf16.mxu0 0
        %3897 = vmatmul.mubr.bf16.gmra.mxu0 %v3758
        %v3898 = vpop.f32.mrf.mxu0
        %v3899 = vadd.f32 0.0, %v3898
        %v3900 = vpop.f32.mrf.mxu0
        %v3901 = vpop.f32.mrf.mxu0
        %v3902 = vadd.f32 0.0, %v3901
        %v3903 = vpop.f32.mrf.mxu0
        %3904 = vmatprep.mubr.bf16.mxu0 0
        %3905 = vmatmul.mubr.bf16.gmra.mxu0 %v3761
        %v3906 = vpop.f32.mrf.mxu0
        %v3907 = vadd.f32 0.0, %v3906
        %v3908 = vpop.f32.mrf.mxu0
        %v3909 = vpop.f32.mrf.mxu0
        %v3910 = vadd.f32 0.0, %v3909
        %v3911 = vpop.f32.mrf.mxu0
        %3912 = vmatprep.mubr.bf16.mxu0 0
        %3913 = vmatmul.mubr.bf16.gmra.mxu0 %v3764
        %v3914 = vpop.f32.mrf.mxu0
        %v3915 = vadd.f32 0.0, %v3914
        %v3916 = vpop.f32.mrf.mxu0
        %v3917 = vpop.f32.mrf.mxu0
        %v3918 = vadd.f32 0.0, %v3917
        %v3919 = vpop.f32.mrf.mxu0
        %3920 = vmatprep.mubr.bf16.mxu0 0
        %3921 = vmatmul.mubr.bf16.gmra.mxu0 %v3767
        %v3922 = vpop.f32.mrf.mxu0
        %v3923 = vadd.f32 0.0, %v3922
        %v3924 = vpop.f32.mrf.mxu0
        %v3925 = vpop.f32.mrf.mxu0
        %v3926 = vadd.f32 0.0, %v3925
        %v3927 = vpop.f32.mrf.mxu0
        %3928 = vmatprep.mubr.bf16.mxu0 0
        %3929 = vmatmul.mubr.bf16.gmra.mxu0 %v3770
        %v3930 = vpop.f32.mrf.mxu0
        %v3931 = vadd.f32 0.0, %v3930
        %v3932 = vpop.f32.mrf.mxu0
        %v3933 = vpop.f32.mrf.mxu0
        %v3934 = vadd.f32 0.0, %v3933
        %v3935 = vpop.f32.mrf.mxu0
        %3936 = vmatprep.mubr.bf16.mxu0 0
        %3937 = vmatmul.mubr.bf16.gmra.mxu0 %v3773
        %v3938 = vpop.f32.mrf.mxu0
        %v3939 = vadd.f32 0.0, %v3938
        %v3940 = vpop.f32.mrf.mxu0
        %v3941 = vpop.f32.mrf.mxu0
        %v3942 = vadd.f32 0.0, %v3941
        %v3943 = vpop.f32.mrf.mxu0
        %3944 = vmatprep.mubr.bf16.mxu0 0
        %3945 = vmatmul.mubr.bf16.gmra.mxu0 %v3776
        %v3946 = vpop.f32.mrf.mxu0
        %v3947 = vadd.f32 0.0, %v3946
        %v3948 = vpop.f32.mrf.mxu0
        %v3949 = vpop.f32.mrf.mxu0
        %v3950 = vadd.f32 0.0, %v3949
        %v3951 = vpop.f32.mrf.mxu0
        %3952 = vmatprep.mubr.bf16.mxu0 0
        %3953 = vmatmul.mubr.bf16.gmra.mxu0 %v3779
        %v3954 = vpop.f32.mrf.mxu0
        %v3955 = vadd.f32 0.0, %v3954
        %v3956 = vpop.f32.mrf.mxu0
        %v3957 = vpop.f32.mrf.mxu0
        %v3958 = vadd.f32 0.0, %v3957
        %v3959 = vpop.f32.mrf.mxu0
        %3960 = vdwg.mxu0
        %v3961 = vadd.f32 %v3648, %v3819
        %v3962 = vadd.f32 %v3649, %v3822
        %v3963 = vadd.f32 %v3650, %v3827
        %v3964 = vadd.f32 %v3651, %v3830
        %v3965 = vadd.f32 %v3652, %v3835
        %v3966 = vadd.f32 %v3653, %v3838
        %v3967 = vadd.f32 %v3654, %v3843
        %v3968 = vadd.f32 %v3655, %v3846
        %v3969 = vadd.f32 %v3656, %v3851
        %v3970 = vadd.f32 %v3657, %v3854
        %v3971 = vadd.f32 %v3658, %v3859
        %v3972 = vadd.f32 %v3659, %v3862
        %v3973 = vadd.f32 %v3660, %v3867
        %v3974 = vadd.f32 %v3661, %v3870
        %v3975 = vadd.f32 %v3662, %v3875
        %v3976 = vadd.f32 %v3663, %v3878
        %v3977 = vadd.f32 %v3664, %v3883
        %v3978 = vadd.f32 %v3665, %v3886
        %v3979 = vadd.f32 %v3666, %v3891
        %v3980 = vadd.f32 %v3667, %v3894
        %v3981 = vadd.f32 %v3668, %v3899
        %v3982 = vadd.f32 %v3669, %v3902
        %v3983 = vadd.f32 %v3670, %v3907
        %v3984 = vadd.f32 %v3671, %v3910
        %v3985 = vadd.f32 %v3672, %v3915
        %v3986 = vadd.f32 %v3673, %v3918
        %v3987 = vadd.f32 %v3674, %v3923
        %v3988 = vadd.f32 %v3675, %v3926
        %v3989 = vadd.f32 %v3676, %v3931
        %v3990 = vadd.f32 %v3677, %v3934
        %v3991 = vadd.f32 %v3678, %v3939
        %v3992 = vadd.f32 %v3679, %v3942
        %v3993 = vadd.f32 %v3680, %v3947
        %v3994 = vadd.f32 %v3681, %v3950
        %v3995 = vadd.f32 %v3682, %v3955
        %v3996 = vadd.f32 %v3683, %v3958
        %v3997 = vmul.f32 %v3961, %v2071
        %v3998 = vmul.f32 %v3962, %v2076
        %v3999 = vmul.f32 %v3963, %v2081
        %v4000 = vmul.f32 %v3964, %v2086
        %v4001 = vmul.f32 %v3965, %v2091
        %v4002 = vmul.f32 %v3966, %v2096
        %v4003 = vmul.f32 %v3967, %v2101
        %v4004 = vmul.f32 %v3968, %v2106
        %v4005 = vmul.f32 %v3969, %v2111
        %v4006 = vmul.f32 %v3970, %v2116
        %v4007 = vmul.f32 %v3971, %v2121
        %v4008 = vmul.f32 %v3972, %v2126
        %v4009 = vmul.f32 %v3973, %v2131
        %v4010 = vmul.f32 %v3974, %v2136
        %v4011 = vmul.f32 %v3975, %v2141
        %v4012 = vmul.f32 %v3976, %v2146
        %v4013 = vmul.f32 %v3977, %v2151
        %v4014 = vmul.f32 %v3978, %v2156
        %v4015 = vmul.f32 %v3979, %v2161
        %v4016 = vmul.f32 %v3980, %v2166
        %v4017 = vmul.f32 %v3981, %v2171
        %v4018 = vmul.f32 %v3982, %v2176
        %v4019 = vmul.f32 %v3983, %v2181
        %v4020 = vmul.f32 %v3984, %v2186
        %v4021 = vmul.f32 %v3985, %v2191
        %v4022 = vmul.f32 %v3986, %v2196
        %v4023 = vmul.f32 %v3987, %v2201
        %v4024 = vmul.f32 %v3988, %v2206
        %v4025 = vmul.f32 %v3989, %v2211
        %v4026 = vmul.f32 %v3990, %v2216
        %v4027 = vmul.f32 %v3991, %v2221
        %v4028 = vmul.f32 %v3992, %v2226
        %v4029 = vmul.f32 %v3993, %v2231
        %v4030 = vmul.f32 %v3994, %v2236
        %v4031 = vmul.f32 %v3995, %v2241
        %v4032 = vmul.f32 %v3996, %v2246
        %s4033 = scalar_lea.vmem %s264, 288
        %4034 = vst.msk [vmem:[%s4033] sm:$0xff] %vm475, %v3997
        %4035 = vst.msk [vmem:[%s4033 + $0x8] sm:$0xff] %vm475, %v3998
        %4036 = vst.msk [vmem:[%s4033 + $0x10] sm:$0xff] %vm475, %v3999
        %4037 = vst.msk [vmem:[%s4033 + $0x18] sm:$0xff] %vm475, %v4000
        %4038 = vst.msk [vmem:[%s4033 + $0x20] sm:$0xff] %vm475, %v4001
        %4039 = vst.msk [vmem:[%s4033 + $0x28] sm:$0xff] %vm475, %v4002
        %4040 = vst.msk [vmem:[%s4033 + $0x30] sm:$0xff] %vm475, %v4003
        %4041 = vst.msk [vmem:[%s4033 + $0x38] sm:$0xff] %vm475, %v4004
        %4042 = vst.msk [vmem:[%s4033 + $0x40] sm:$0xff] %vm475, %v4005
        %4043 = vst.msk [vmem:[%s4033 + $0x48] sm:$0xff] %vm475, %v4006
        %4044 = vst.msk [vmem:[%s4033 + $0x50] sm:$0xff] %vm475, %v4007
        %4045 = vst.msk [vmem:[%s4033 + $0x58] sm:$0xff] %vm475, %v4008
        %4046 = vst.msk [vmem:[%s4033 + $0x60] sm:$0xff] %vm475, %v4009
        %4047 = vst.msk [vmem:[%s4033 + $0x68] sm:$0xff] %vm475, %v4010
        %4048 = vst.msk [vmem:[%s4033 + $0x70] sm:$0xff] %vm475, %v4011
        %4049 = vst.msk [vmem:[%s4033 + $0x78] sm:$0xff] %vm475, %v4012
        %4050 = vst.msk [vmem:[%s4033 + $0x80] sm:$0xff] %vm475, %v4013
        %4051 = vst.msk [vmem:[%s4033 + $0x88] sm:$0xff] %vm475, %v4014
        %4052 = vst.msk [vmem:[%s4033 + $0x90] sm:$0xff] %vm475, %v4015
        %4053 = vst.msk [vmem:[%s4033 + $0x98] sm:$0xff] %vm475, %v4016
        %4054 = vst.msk [vmem:[%s4033 + $0xa0] sm:$0xff] %vm475, %v4017
        %4055 = vst.msk [vmem:[%s4033 + $0xa8] sm:$0xff] %vm475, %v4018
        %4056 = vst.msk [vmem:[%s4033 + $0xb0] sm:$0xff] %vm475, %v4019
        %4057 = vst.msk [vmem:[%s4033 + $0xb8] sm:$0xff] %vm475, %v4020
        %4058 = vst.msk [vmem:[%s4033 + $0xc0] sm:$0xff] %vm475, %v4021
        %4059 = vst.msk [vmem:[%s4033 + $0xc8] sm:$0xff] %vm475, %v4022
        %4060 = vst.msk [vmem:[%s4033 + $0xd0] sm:$0xff] %vm475, %v4023
        %4061 = vst.msk [vmem:[%s4033 + $0xd8] sm:$0xff] %vm475, %v4024
        %4062 = vst.msk [vmem:[%s4033 + $0xe0] sm:$0xff] %vm475, %v4025
        %4063 = vst.msk [vmem:[%s4033 + $0xe8] sm:$0xff] %vm475, %v4026
        %4064 = vst.msk [vmem:[%s4033 + $0xf0] sm:$0xff] %vm475, %v4027
        %4065 = vst.msk [vmem:[%s4033 + $0xf8] sm:$0xff] %vm475, %v4028
        %4066 = vst.msk [vmem:[%s4033 + $0x100] sm:$0xff] %vm475, %v4029
        %4067 = vst.msk [vmem:[%s4033 + $0x108] sm:$0xff] %vm475, %v4030
        %4068 = vst.msk [vmem:[%s4033 + $0x110] sm:$0xff] %vm475, %v4031
        %4069 = vst.msk [vmem:[%s4033 + $0x118] sm:$0xff] %vm475, %v4032
        %v4070 = vld [vmem:[%s259 + $0x8] sm:$0xe]
        %v4071 = vld [vmem:[%s259 + $0xc] sm:$0xf]
        %v4072 = vld [vmem:[%s259 + $0x10] sm:$0xf]
        %v4073 = vld [vmem:[%s259 + $0x14] sm:$0xf]
        %v4074 = vld [vmem:[%s259 + $0x18] sm:$0xf]
        %v4075 = vld [vmem:[%s259 + $0x1c] sm:$0xf]
        %v4076 = vld [vmem:[%s259 + $0x20] sm:$0xf]
        %v4077 = vld [vmem:[%s259 + $0x24] sm:$0xf]
        %v4078 = vld [vmem:[%s259 + $0x28] sm:$0xf]
        %v4079 = vld [vmem:[%s259 + $0x2c] sm:$0xf]
        %v4080 = vld [vmem:[%s259 + $0x30] sm:$0xf]
        %v4081 = vld [vmem:[%s259 + $0x34] sm:$0xf]
        %v4082 = vld [vmem:[%s259 + $0x38] sm:$0xf]
        %v4083 = vld [vmem:[%s259 + $0x3c] sm:$0xf]
        %v4084 = vld [vmem:[%s259 + $0x40] sm:$0xf]
        %v4085 = vld [vmem:[%s259 + $0x44] sm:$0xf]
        %v4086 = vld [vmem:[%s259 + $0x48] sm:$0xf]
        %v4087 = vld [vmem:[%s259 + $0x4c] sm:$0xf]
        %v4088 = vld [vmem:[%s259 + $0x50] sm:$0xf]
        %v4089 = vld [vmem:[%s259 + $0x54] sm:$0xf]
        %v4090 = vld [vmem:[%s259 + $0x58] sm:$0xf]
        %v4091 = vld [vmem:[%s259 + $0x5c] sm:$0xf]
        %v4092 = vld [vmem:[%s259 + $0x60] sm:$0xf]
        %v4093 = vld [vmem:[%s259 + $0x64] sm:$0xf]
        %v4094 = vld [vmem:[%s259 + $0x68] sm:$0xf]
        %v4095 = vld [vmem:[%s259 + $0x6c] sm:$0xf]
        %v4096 = vld [vmem:[%s259 + $0x70] sm:$0xf]
        %v4097 = vld [vmem:[%s259 + $0x74] sm:$0xf]
        %v4098 = vld [vmem:[%s259 + $0x78] sm:$0xf]
        %v4099 = vld [vmem:[%s259 + $0x7c] sm:$0xf]
        %v4100 = vld [vmem:[%s259 + $0x80] sm:$0xf]
        %v4101 = vld [vmem:[%s259 + $0x84] sm:$0xf]
        %v4102 = vld [vmem:[%s259 + $0x88] sm:$0xf]
        %v4103 = vld [vmem:[%s259 + $0x8c] sm:$0xf]
        %v4104 = vld [vmem:[%s259 + $0x90] sm:$0xf]
        %v4105 = vld [vmem:[%s259 + $0x94] sm:$0xf]
        %v4106 = vld [vmem:[%s259 + $0x98] sm:$0x3]
        %s4107 = scalar_lea.vmem [#allocation2], 18
        %v4108 = vld [vmem:[%s4107] sm:$0x3]
        %v4109 = vld [vmem:[%s259 + $0x98] sm:$0x1]
        %s4110 = scalar_lea.vmem [#allocation2], 22
        %v4111 = vld [vmem:[%s4110] sm:$0x3]
        %v4149 = vunpack.c.l.b16 %v4070
        %v4150 = vunpack.c.l.b16 %v4071
        %v4151 = vunpack.c.l.b16 %v4072
        %v4152 = vunpack.c.l.b16 %v4073
        %v4153 = vunpack.c.l.b16 %v4074
        %v4154 = vunpack.c.l.b16 %v4075
        %v4155 = vunpack.c.l.b16 %v4076
        %v4156 = vunpack.c.l.b16 %v4077
        %v4157 = vunpack.c.l.b16 %v4078
        %v4158 = vunpack.c.l.b16 %v4079
        %v4159 = vunpack.c.l.b16 %v4080
        %v4160 = vunpack.c.l.b16 %v4081
        %v4161 = vunpack.c.l.b16 %v4082
        %v4162 = vunpack.c.l.b16 %v4083
        %v4163 = vunpack.c.l.b16 %v4084
        %v4164 = vunpack.c.l.b16 %v4085
        %v4165 = vunpack.c.l.b16 %v4086
        %v4166 = vunpack.c.l.b16 %v4087
        %v4167 = vunpack.c.l.b16 %v4088
        %v4168 = vunpack.c.l.b16 %v4089
        %v4169 = vunpack.c.l.b16 %v4090
        %v4170 = vunpack.c.l.b16 %v4091
        %v4171 = vunpack.c.l.b16 %v4092
        %v4172 = vunpack.c.l.b16 %v4093
        %v4173 = vunpack.c.l.b16 %v4094
        %v4174 = vunpack.c.l.b16 %v4095
        %v4175 = vunpack.c.l.b16 %v4096
        %v4176 = vunpack.c.l.b16 %v4097
        %v4177 = vunpack.c.l.b16 %v4098
        %v4178 = vunpack.c.l.b16 %v4099
        %v4179 = vunpack.c.l.b16 %v4100
        %v4180 = vunpack.c.l.b16 %v4101
        %v4181 = vunpack.c.l.b16 %v4102
        %v4182 = vunpack.c.l.b16 %v4103
        %v4183 = vunpack.c.l.b16 %v4104
        %v4184 = vunpack.c.l.b16 %v4105
        %v4185 = vunpack.c.l.b16 %v4109
        %v4186 = vpack.c.b16 %v4150, %v4149
        %v4187 = vpack.c.b16 %v4152, %v4151
        %v4188 = vpack.c.b16 %v4154, %v4153
        %v4189 = vpack.c.b16 %v4156, %v4155
        %v4190 = vpack.c.b16 %v4158, %v4157
        %v4191 = vpack.c.b16 %v4160, %v4159
        %v4192 = vpack.c.b16 %v4162, %v4161
        %v4193 = vpack.c.b16 %v4164, %v4163
        %v4194 = vpack.c.b16 %v4166, %v4165
        %v4195 = vpack.c.b16 %v4168, %v4167
        %v4196 = vpack.c.b16 %v4170, %v4169
        %v4197 = vpack.c.b16 %v4172, %v4171
        %v4198 = vpack.c.b16 %v4174, %v4173
        %v4199 = vpack.c.b16 %v4176, %v4175
        %v4200 = vpack.c.b16 %v4178, %v4177
        %v4201 = vpack.c.b16 %v4180, %v4179
        %v4202 = vpack.c.b16 %v4182, %v4181
        %v4203 = vpack.c.b16 %v4184, %v4183
        %v4204 = vpack.c.b16 %v4185, %v4185
        %v4205 = vrot.slane %v4186, 1
        %v4206 = vrot.slane %v4187, 1
        %v4207 = vsel %vm437, %v4205, %v4206
        %v4208 = vrot.slane %v4188, 1
        %v4209 = vsel %vm437, %v4206, %v4208
        %v4210 = vrot.slane %v4189, 1
        %v4211 = vsel %vm437, %v4208, %v4210
        %v4212 = vrot.slane %v4190, 1
        %v4213 = vsel %vm437, %v4210, %v4212
        %v4214 = vrot.slane %v4191, 1
        %v4215 = vsel %vm437, %v4212, %v4214
        %v4216 = vrot.slane %v4192, 1
        %v4217 = vsel %vm437, %v4214, %v4216
        %v4218 = vrot.slane %v4193, 1
        %v4219 = vsel %vm437, %v4216, %v4218
        %v4220 = vrot.slane %v4194, 1
        %v4221 = vsel %vm437, %v4218, %v4220
        %v4222 = vrot.slane %v4195, 1
        %v4223 = vsel %vm437, %v4220, %v4222
        %v4224 = vrot.slane %v4196, 1
        %v4225 = vsel %vm437, %v4222, %v4224
        %v4226 = vrot.slane %v4197, 1
        %v4227 = vsel %vm437, %v4224, %v4226
        %v4228 = vrot.slane %v4198, 1
        %v4229 = vsel %vm437, %v4226, %v4228
        %v4230 = vrot.slane %v4199, 1
        %v4231 = vsel %vm437, %v4228, %v4230
        %v4232 = vrot.slane %v4200, 1
        %v4233 = vsel %vm437, %v4230, %v4232
        %v4234 = vrot.slane %v4201, 1
        %v4235 = vsel %vm437, %v4232, %v4234
        %v4236 = vrot.slane %v4202, 1
        %v4237 = vsel %vm437, %v4234, %v4236
        %v4238 = vrot.slane %v4203, 1
        %v4239 = vsel %vm437, %v4236, %v4238
        %v4240 = vrot.slane %v4204, 1
        %v4241 = vsel %vm437, %v4238, %v4240
        %v4243 = vsel %vm475, %v4207, 0
        %v4246 = vsel %vm475, %v4209, 0
        %v4249 = vsel %vm475, %v4211, 0
        %v4252 = vsel %vm475, %v4213, 0
        %v4255 = vsel %vm475, %v4215, 0
        %v4258 = vsel %vm475, %v4217, 0
        %v4261 = vsel %vm475, %v4219, 0
        %v4264 = vsel %vm475, %v4221, 0
        %v4267 = vsel %vm475, %v4223, 0
        %v4270 = vsel %vm475, %v4225, 0
        %v4273 = vsel %vm475, %v4227, 0
        %v4276 = vsel %vm475, %v4229, 0
        %v4279 = vsel %vm475, %v4231, 0
        %v4282 = vsel %vm475, %v4233, 0
        %v4285 = vsel %vm475, %v4235, 0
        %v4288 = vsel %vm475, %v4237, 0
        %v4291 = vsel %vm475, %v4239, 0
        %v4294 = vsel %vm475, %v4241, 0
        %v4297 = vsel %vm530, %v4111, 0
        %4299 = vmatprep.subr.bf16.mxu0 0
        %4300 = vmatpush1.bf16.msra.mxu0 0
        %4301 = vmatprep.subr.bf16.mxu0 0
        %4302 = vmatpush1.bf16.msra.mxu0 0
        %4303 = vmatprep.subr.bf16.mxu0 0
        %4304 = vmatpush1.bf16.msra.mxu0 0
        %4305 = vmatprep.subr.bf16.mxu0 0
        %4306 = vmatpush1.bf16.msra.mxu0 0
        %4307 = vmatprep.subr.bf16.mxu0 0
        %4308 = vmatpush1.bf16.msra.mxu0 0
        %4309 = vmatprep.subr.bf16.mxu0 0
        %4310 = vmatpush1.bf16.msra.mxu0 0
        %4311 = vmatprep.subr.bf16.mxu0 0
        %4312 = vmatpush1.bf16.msra.mxu0 0
        %4313 = vmatprep.subr.bf16.mxu0 0
        %4314 = vmatpush1.bf16.msra.mxu0 %v4297
        %4315 = vmatprep.subr.bf16.mxu0 0
        %4316 = vmatpush2.bf16.msra.mxu0 0
        %4317 = vmatprep.subr.bf16.mxu0 0
        %4318 = vmatpush2.bf16.msra.mxu0 0
        %4319 = vmatprep.subr.bf16.mxu0 0
        %4320 = vmatpush2.bf16.msra.mxu0 0
        %4321 = vmatprep.subr.bf16.mxu0 0
        %4322 = vmatpush2.bf16.msra.mxu0 0
        %4323 = vmatprep.subr.bf16.mxu0 0
        %4324 = vmatpush2.bf16.msra.mxu0 0
        %4325 = vmatprep.subr.bf16.mxu0 0
        %4326 = vmatpush2.bf16.msra.mxu0 0
        %4327 = vmatprep.subr.bf16.mxu0 0
        %4328 = vmatpush2.bf16.msra.mxu0 0
        %4329 = vmatprep.subr.bf16.mxu0 0
        %4330 = vmatpush2.bf16.msra.mxu0 0
        %4331 = vmatprep.mubr.bf16.mxu0 0
        %4332 = vmatmul.mubr.bf16.gmra.mxu0 %v4243
        %v4333 = vpop.f32.mrf.mxu0
        %v4334 = vadd.f32 0.0, %v4333
        %v4335 = vpop.f32.mrf.mxu0
        %v4336 = vpop.f32.mrf.mxu0
        %v4337 = vadd.f32 0.0, %v4336
        %v4338 = vpop.f32.mrf.mxu0
        %4339 = vmatprep.mubr.bf16.mxu0 0
        %4340 = vmatmul.mubr.bf16.gmra.mxu0 %v4246
        %v4341 = vpop.f32.mrf.mxu0
        %v4342 = vadd.f32 0.0, %v4341
        %v4343 = vpop.f32.mrf.mxu0
        %v4344 = vpop.f32.mrf.mxu0
        %v4345 = vadd.f32 0.0, %v4344
        %v4346 = vpop.f32.mrf.mxu0
        %4347 = vmatprep.mubr.bf16.mxu0 0
        %4348 = vmatmul.mubr.bf16.gmra.mxu0 %v4249
        %v4349 = vpop.f32.mrf.mxu0
        %v4350 = vadd.f32 0.0, %v4349
        %v4351 = vpop.f32.mrf.mxu0
        %v4352 = vpop.f32.mrf.mxu0
        %v4353 = vadd.f32 0.0, %v4352
        %v4354 = vpop.f32.mrf.mxu0
        %4355 = vmatprep.mubr.bf16.mxu0 0
        %4356 = vmatmul.mubr.bf16.gmra.mxu0 %v4252
        %v4357 = vpop.f32.mrf.mxu0
        %v4358 = vadd.f32 0.0, %v4357
        %v4359 = vpop.f32.mrf.mxu0
        %v4360 = vpop.f32.mrf.mxu0
        %v4361 = vadd.f32 0.0, %v4360
        %v4362 = vpop.f32.mrf.mxu0
        %4363 = vmatprep.mubr.bf16.mxu0 0
        %4364 = vmatmul.mubr.bf16.gmra.mxu0 %v4255
        %v4365 = vpop.f32.mrf.mxu0
        %v4366 = vadd.f32 0.0, %v4365
        %v4367 = vpop.f32.mrf.mxu0
        %v4368 = vpop.f32.mrf.mxu0
        %v4369 = vadd.f32 0.0, %v4368
        %v4370 = vpop.f32.mrf.mxu0
        %4371 = vmatprep.mubr.bf16.mxu0 0
        %4372 = vmatmul.mubr.bf16.gmra.mxu0 %v4258
        %v4373 = vpop.f32.mrf.mxu0
        %v4374 = vadd.f32 0.0, %v4373
        %v4375 = vpop.f32.mrf.mxu0
        %v4376 = vpop.f32.mrf.mxu0
        %v4377 = vadd.f32 0.0, %v4376
        %v4378 = vpop.f32.mrf.mxu0
        %4379 = vmatprep.mubr.bf16.mxu0 0
        %4380 = vmatmul.mubr.bf16.gmra.mxu0 %v4261
        %v4381 = vpop.f32.mrf.mxu0
        %v4382 = vadd.f32 0.0, %v4381
        %v4383 = vpop.f32.mrf.mxu0
        %v4384 = vpop.f32.mrf.mxu0
        %v4385 = vadd.f32 0.0, %v4384
        %v4386 = vpop.f32.mrf.mxu0
        %4387 = vmatprep.mubr.bf16.mxu0 0
        %4388 = vmatmul.mubr.bf16.gmra.mxu0 %v4264
        %v4389 = vpop.f32.mrf.mxu0
        %v4390 = vadd.f32 0.0, %v4389
        %v4391 = vpop.f32.mrf.mxu0
        %v4392 = vpop.f32.mrf.mxu0
        %v4393 = vadd.f32 0.0, %v4392
        %v4394 = vpop.f32.mrf.mxu0
        %4395 = vmatprep.mubr.bf16.mxu0 0
        %4396 = vmatmul.mubr.bf16.gmra.mxu0 %v4267
        %v4397 = vpop.f32.mrf.mxu0
        %v4398 = vadd.f32 0.0, %v4397
        %v4399 = vpop.f32.mrf.mxu0
        %v4400 = vpop.f32.mrf.mxu0
        %v4401 = vadd.f32 0.0, %v4400
        %v4402 = vpop.f32.mrf.mxu0
        %4403 = vmatprep.mubr.bf16.mxu0 0
        %4404 = vmatmul.mubr.bf16.gmra.mxu0 %v4270
        %v4405 = vpop.f32.mrf.mxu0
        %v4406 = vadd.f32 0.0, %v4405
        %v4407 = vpop.f32.mrf.mxu0
        %v4408 = vpop.f32.mrf.mxu0
        %v4409 = vadd.f32 0.0, %v4408
        %v4410 = vpop.f32.mrf.mxu0
        %4411 = vmatprep.mubr.bf16.mxu0 0
        %4412 = vmatmul.mubr.bf16.gmra.mxu0 %v4273
        %v4413 = vpop.f32.mrf.mxu0
        %v4414 = vadd.f32 0.0, %v4413
        %v4415 = vpop.f32.mrf.mxu0
        %v4416 = vpop.f32.mrf.mxu0
        %v4417 = vadd.f32 0.0, %v4416
        %v4418 = vpop.f32.mrf.mxu0
        %4419 = vmatprep.mubr.bf16.mxu0 0
        %4420 = vmatmul.mubr.bf16.gmra.mxu0 %v4276
        %v4421 = vpop.f32.mrf.mxu0
        %v4422 = vadd.f32 0.0, %v4421
        %v4423 = vpop.f32.mrf.mxu0
        %v4424 = vpop.f32.mrf.mxu0
        %v4425 = vadd.f32 0.0, %v4424
        %v4426 = vpop.f32.mrf.mxu0
        %4427 = vmatprep.mubr.bf16.mxu0 0
        %4428 = vmatmul.mubr.bf16.gmra.mxu0 %v4279
        %v4429 = vpop.f32.mrf.mxu0
        %v4430 = vadd.f32 0.0, %v4429
        %v4431 = vpop.f32.mrf.mxu0
        %v4432 = vpop.f32.mrf.mxu0
        %v4433 = vadd.f32 0.0, %v4432
        %v4434 = vpop.f32.mrf.mxu0
        %4435 = vmatprep.mubr.bf16.mxu0 0
        %4436 = vmatmul.mubr.bf16.gmra.mxu0 %v4282
        %v4437 = vpop.f32.mrf.mxu0
        %v4438 = vadd.f32 0.0, %v4437
        %v4439 = vpop.f32.mrf.mxu0
        %v4440 = vpop.f32.mrf.mxu0
        %v4441 = vadd.f32 0.0, %v4440
        %v4442 = vpop.f32.mrf.mxu0
        %4443 = vmatprep.mubr.bf16.mxu0 0
        %4444 = vmatmul.mubr.bf16.gmra.mxu0 %v4285
        %v4445 = vpop.f32.mrf.mxu0
        %v4446 = vadd.f32 0.0, %v4445
        %v4447 = vpop.f32.mrf.mxu0
        %v4448 = vpop.f32.mrf.mxu0
        %v4449 = vadd.f32 0.0, %v4448
        %v4450 = vpop.f32.mrf.mxu0
        %4451 = vmatprep.mubr.bf16.mxu0 0
        %4452 = vmatmul.mubr.bf16.gmra.mxu0 %v4288
        %v4453 = vpop.f32.mrf.mxu0
        %v4454 = vadd.f32 0.0, %v4453
        %v4455 = vpop.f32.mrf.mxu0
        %v4456 = vpop.f32.mrf.mxu0
        %v4457 = vadd.f32 0.0, %v4456
        %v4458 = vpop.f32.mrf.mxu0
        %4459 = vmatprep.mubr.bf16.mxu0 0
        %4460 = vmatmul.mubr.bf16.gmra.mxu0 %v4291
        %v4461 = vpop.f32.mrf.mxu0
        %v4462 = vadd.f32 0.0, %v4461
        %v4463 = vpop.f32.mrf.mxu0
        %v4464 = vpop.f32.mrf.mxu0
        %v4465 = vadd.f32 0.0, %v4464
        %v4466 = vpop.f32.mrf.mxu0
        %4467 = vmatprep.mubr.bf16.mxu0 0
        %4468 = vmatmul.mubr.bf16.gmra.mxu0 %v4294
        %v4469 = vpop.f32.mrf.mxu0
        %v4470 = vadd.f32 0.0, %v4469
        %v4471 = vpop.f32.mrf.mxu0
        %v4472 = vpop.f32.mrf.mxu0
        %v4473 = vadd.f32 0.0, %v4472
        %v4474 = vpop.f32.mrf.mxu0
        %4475 = vdwg.mxu0
        %v4477 = vunpack.c.l.b16 %v4106
        %v4478 = vpack.c.b16 %v4477, %v4477
        %v4480 = vshrl.u32 %v4186, 16
        %v4482 = vrot.slane %v4480, 1
        %v4483 = vshll.u32 %v4186, 16
        %v4485 = vrot.slane %v4483, 2
        %v4486 = vor.u32 %v4482, %v4485
        %v4488 = vshrl.u32 %v4187, 16
        %v4490 = vrot.slane %v4488, 1
        %v4491 = vshll.u32 %v4187, 16
        %v4493 = vrot.slane %v4491, 2
        %v4494 = vor.u32 %v4490, %v4493
        %v4495 = vsel %vm714, %v4486, %v4494
        %v4497 = vshrl.u32 %v4188, 16
        %v4499 = vrot.slane %v4497, 1
        %v4500 = vshll.u32 %v4188, 16
        %v4502 = vrot.slane %v4500, 2
        %v4503 = vor.u32 %v4499, %v4502
        %v4504 = vsel %vm714, %v4494, %v4503
        %v4506 = vshrl.u32 %v4189, 16
        %v4508 = vrot.slane %v4506, 1
        %v4509 = vshll.u32 %v4189, 16
        %v4511 = vrot.slane %v4509, 2
        %v4512 = vor.u32 %v4508, %v4511
        %v4513 = vsel %vm714, %v4503, %v4512
        %v4515 = vshrl.u32 %v4190, 16
        %v4517 = vrot.slane %v4515, 1
        %v4518 = vshll.u32 %v4190, 16
        %v4520 = vrot.slane %v4518, 2
        %v4521 = vor.u32 %v4517, %v4520
        %v4522 = vsel %vm714, %v4512, %v4521
        %v4524 = vshrl.u32 %v4191, 16
        %v4526 = vrot.slane %v4524, 1
        %v4527 = vshll.u32 %v4191, 16
        %v4529 = vrot.slane %v4527, 2
        %v4530 = vor.u32 %v4526, %v4529
        %v4531 = vsel %vm714, %v4521, %v4530
        %v4533 = vshrl.u32 %v4192, 16
        %v4535 = vrot.slane %v4533, 1
        %v4536 = vshll.u32 %v4192, 16
        %v4538 = vrot.slane %v4536, 2
        %v4539 = vor.u32 %v4535, %v4538
        %v4540 = vsel %vm714, %v4530, %v4539
        %v4542 = vshrl.u32 %v4193, 16
        %v4544 = vrot.slane %v4542, 1
        %v4545 = vshll.u32 %v4193, 16
        %v4547 = vrot.slane %v4545, 2
        %v4548 = vor.u32 %v4544, %v4547
        %v4549 = vsel %vm714, %v4539, %v4548
        %v4551 = vshrl.u32 %v4194, 16
        %v4553 = vrot.slane %v4551, 1
        %v4554 = vshll.u32 %v4194, 16
        %v4556 = vrot.slane %v4554, 2
        %v4557 = vor.u32 %v4553, %v4556
        %v4558 = vsel %vm714, %v4548, %v4557
        %v4560 = vshrl.u32 %v4195, 16
        %v4562 = vrot.slane %v4560, 1
        %v4563 = vshll.u32 %v4195, 16
        %v4565 = vrot.slane %v4563, 2
        %v4566 = vor.u32 %v4562, %v4565
        %v4567 = vsel %vm714, %v4557, %v4566
        %v4569 = vshrl.u32 %v4196, 16
        %v4571 = vrot.slane %v4569, 1
        %v4572 = vshll.u32 %v4196, 16
        %v4574 = vrot.slane %v4572, 2
        %v4575 = vor.u32 %v4571, %v4574
        %v4576 = vsel %vm714, %v4566, %v4575
        %v4578 = vshrl.u32 %v4197, 16
        %v4580 = vrot.slane %v4578, 1
        %v4581 = vshll.u32 %v4197, 16
        %v4583 = vrot.slane %v4581, 2
        %v4584 = vor.u32 %v4580, %v4583
        %v4585 = vsel %vm714, %v4575, %v4584
        %v4587 = vshrl.u32 %v4198, 16
        %v4589 = vrot.slane %v4587, 1
        %v4590 = vshll.u32 %v4198, 16
        %v4592 = vrot.slane %v4590, 2
        %v4593 = vor.u32 %v4589, %v4592
        %v4594 = vsel %vm714, %v4584, %v4593
        %v4596 = vshrl.u32 %v4199, 16
        %v4598 = vrot.slane %v4596, 1
        %v4599 = vshll.u32 %v4199, 16
        %v4601 = vrot.slane %v4599, 2
        %v4602 = vor.u32 %v4598, %v4601
        %v4603 = vsel %vm714, %v4593, %v4602
        %v4605 = vshrl.u32 %v4200, 16
        %v4607 = vrot.slane %v4605, 1
        %v4608 = vshll.u32 %v4200, 16
        %v4610 = vrot.slane %v4608, 2
        %v4611 = vor.u32 %v4607, %v4610
        %v4612 = vsel %vm714, %v4602, %v4611
        %v4614 = vshrl.u32 %v4201, 16
        %v4616 = vrot.slane %v4614, 1
        %v4617 = vshll.u32 %v4201, 16
        %v4619 = vrot.slane %v4617, 2
        %v4620 = vor.u32 %v4616, %v4619
        %v4621 = vsel %vm714, %v4611, %v4620
        %v4623 = vshrl.u32 %v4202, 16
        %v4625 = vrot.slane %v4623, 1
        %v4626 = vshll.u32 %v4202, 16
        %v4628 = vrot.slane %v4626, 2
        %v4629 = vor.u32 %v4625, %v4628
        %v4630 = vsel %vm714, %v4620, %v4629
        %v4632 = vshrl.u32 %v4203, 16
        %v4634 = vrot.slane %v4632, 1
        %v4635 = vshll.u32 %v4203, 16
        %v4637 = vrot.slane %v4635, 2
        %v4638 = vor.u32 %v4634, %v4637
        %v4639 = vsel %vm714, %v4629, %v4638
        %v4641 = vshrl.u32 %v4478, 16
        %v4643 = vrot.slane %v4641, 1
        %v4644 = vshll.u32 %v4478, 16
        %v4646 = vrot.slane %v4644, 2
        %v4647 = vor.u32 %v4643, %v4646
        %v4648 = vsel %vm714, %v4638, %v4647
        %v4650 = vsel %vm475, %v4495, 0
        %v4653 = vsel %vm475, %v4504, 0
        %v4656 = vsel %vm475, %v4513, 0
        %v4659 = vsel %vm475, %v4522, 0
        %v4662 = vsel %vm475, %v4531, 0
        %v4665 = vsel %vm475, %v4540, 0
        %v4668 = vsel %vm475, %v4549, 0
        %v4671 = vsel %vm475, %v4558, 0
        %v4674 = vsel %vm475, %v4567, 0
        %v4677 = vsel %vm475, %v4576, 0
        %v4680 = vsel %vm475, %v4585, 0
        %v4683 = vsel %vm475, %v4594, 0
        %v4686 = vsel %vm475, %v4603, 0
        %v4689 = vsel %vm475, %v4612, 0
        %v4692 = vsel %vm475, %v4621, 0
        %v4695 = vsel %vm475, %v4630, 0
        %v4698 = vsel %vm475, %v4639, 0
        %v4701 = vsel %vm475, %v4648, 0
        %v4704 = vsel %vm530, %v4108, 0
        %4706 = vmatprep.subr.bf16.mxu0 0
        %4707 = vmatpush1.bf16.msra.mxu0 0
        %4708 = vmatprep.subr.bf16.mxu0 0
        %4709 = vmatpush1.bf16.msra.mxu0 0
        %4710 = vmatprep.subr.bf16.mxu0 0
        %4711 = vmatpush1.bf16.msra.mxu0 0
        %4712 = vmatprep.subr.bf16.mxu0 0
        %4713 = vmatpush1.bf16.msra.mxu0 0
        %4714 = vmatprep.subr.bf16.mxu0 0
        %4715 = vmatpush1.bf16.msra.mxu0 0
        %4716 = vmatprep.subr.bf16.mxu0 0
        %4717 = vmatpush1.bf16.msra.mxu0 0
        %4718 = vmatprep.subr.bf16.mxu0 0
        %4719 = vmatpush1.bf16.msra.mxu0 0
        %4720 = vmatprep.subr.bf16.mxu0 0
        %4721 = vmatpush1.bf16.msra.mxu0 %v4704
        %4722 = vmatprep.subr.bf16.mxu0 0
        %4723 = vmatpush2.bf16.msra.mxu0 0
        %4724 = vmatprep.subr.bf16.mxu0 0
        %4725 = vmatpush2.bf16.msra.mxu0 0
        %4726 = vmatprep.subr.bf16.mxu0 0
        %4727 = vmatpush2.bf16.msra.mxu0 0
        %4728 = vmatprep.subr.bf16.mxu0 0
        %4729 = vmatpush2.bf16.msra.mxu0 0
        %4730 = vmatprep.subr.bf16.mxu0 0
        %4731 = vmatpush2.bf16.msra.mxu0 0
        %4732 = vmatprep.subr.bf16.mxu0 0
        %4733 = vmatpush2.bf16.msra.mxu0 0
        %4734 = vmatprep.subr.bf16.mxu0 0
        %4735 = vmatpush2.bf16.msra.mxu0 0
        %4736 = vmatprep.subr.bf16.mxu0 0
        %4737 = vmatpush2.bf16.msra.mxu0 0
        %4738 = vmatprep.mubr.bf16.mxu0 0
        %4739 = vmatmul.mubr.bf16.gmra.mxu0 %v4650
        %v4740 = vpop.f32.mrf.mxu0
        %v4741 = vadd.f32 %v4334, %v4740
        %v4742 = vpop.f32.mrf.mxu0
        %v4743 = vpop.f32.mrf.mxu0
        %v4744 = vadd.f32 %v4337, %v4743
        %v4745 = vpop.f32.mrf.mxu0
        %4746 = vmatprep.mubr.bf16.mxu0 0
        %4747 = vmatmul.mubr.bf16.gmra.mxu0 %v4653
        %v4748 = vpop.f32.mrf.mxu0
        %v4749 = vadd.f32 %v4342, %v4748
        %v4750 = vpop.f32.mrf.mxu0
        %v4751 = vpop.f32.mrf.mxu0
        %v4752 = vadd.f32 %v4345, %v4751
        %v4753 = vpop.f32.mrf.mxu0
        %4754 = vmatprep.mubr.bf16.mxu0 0
        %4755 = vmatmul.mubr.bf16.gmra.mxu0 %v4656
        %v4756 = vpop.f32.mrf.mxu0
        %v4757 = vadd.f32 %v4350, %v4756
        %v4758 = vpop.f32.mrf.mxu0
        %v4759 = vpop.f32.mrf.mxu0
        %v4760 = vadd.f32 %v4353, %v4759
        %v4761 = vpop.f32.mrf.mxu0
        %4762 = vmatprep.mubr.bf16.mxu0 0
        %4763 = vmatmul.mubr.bf16.gmra.mxu0 %v4659
        %v4764 = vpop.f32.mrf.mxu0
        %v4765 = vadd.f32 %v4358, %v4764
        %v4766 = vpop.f32.mrf.mxu0
        %v4767 = vpop.f32.mrf.mxu0
        %v4768 = vadd.f32 %v4361, %v4767
        %v4769 = vpop.f32.mrf.mxu0
        %4770 = vmatprep.mubr.bf16.mxu0 0
        %4771 = vmatmul.mubr.bf16.gmra.mxu0 %v4662
        %v4772 = vpop.f32.mrf.mxu0
        %v4773 = vadd.f32 %v4366, %v4772
        %v4774 = vpop.f32.mrf.mxu0
        %v4775 = vpop.f32.mrf.mxu0
        %v4776 = vadd.f32 %v4369, %v4775
        %v4777 = vpop.f32.mrf.mxu0
        %4778 = vmatprep.mubr.bf16.mxu0 0
        %4779 = vmatmul.mubr.bf16.gmra.mxu0 %v4665
        %v4780 = vpop.f32.mrf.mxu0
        %v4781 = vadd.f32 %v4374, %v4780
        %v4782 = vpop.f32.mrf.mxu0
        %v4783 = vpop.f32.mrf.mxu0
        %v4784 = vadd.f32 %v4377, %v4783
        %v4785 = vpop.f32.mrf.mxu0
        %4786 = vmatprep.mubr.bf16.mxu0 0
        %4787 = vmatmul.mubr.bf16.gmra.mxu0 %v4668
        %v4788 = vpop.f32.mrf.mxu0
        %v4789 = vadd.f32 %v4382, %v4788
        %v4790 = vpop.f32.mrf.mxu0
        %v4791 = vpop.f32.mrf.mxu0
        %v4792 = vadd.f32 %v4385, %v4791
        %v4793 = vpop.f32.mrf.mxu0
        %4794 = vmatprep.mubr.bf16.mxu0 0
        %4795 = vmatmul.mubr.bf16.gmra.mxu0 %v4671
        %v4796 = vpop.f32.mrf.mxu0
        %v4797 = vadd.f32 %v4390, %v4796
        %v4798 = vpop.f32.mrf.mxu0
        %v4799 = vpop.f32.mrf.mxu0
        %v4800 = vadd.f32 %v4393, %v4799
        %v4801 = vpop.f32.mrf.mxu0
        %4802 = vmatprep.mubr.bf16.mxu0 0
        %4803 = vmatmul.mubr.bf16.gmra.mxu0 %v4674
        %v4804 = vpop.f32.mrf.mxu0
        %v4805 = vadd.f32 %v4398, %v4804
        %v4806 = vpop.f32.mrf.mxu0
        %v4807 = vpop.f32.mrf.mxu0
        %v4808 = vadd.f32 %v4401, %v4807
        %v4809 = vpop.f32.mrf.mxu0
        %4810 = vmatprep.mubr.bf16.mxu0 0
        %4811 = vmatmul.mubr.bf16.gmra.mxu0 %v4677
        %v4812 = vpop.f32.mrf.mxu0
        %v4813 = vadd.f32 %v4406, %v4812
        %v4814 = vpop.f32.mrf.mxu0
        %v4815 = vpop.f32.mrf.mxu0
        %v4816 = vadd.f32 %v4409, %v4815
        %v4817 = vpop.f32.mrf.mxu0
        %4818 = vmatprep.mubr.bf16.mxu0 0
        %4819 = vmatmul.mubr.bf16.gmra.mxu0 %v4680
        %v4820 = vpop.f32.mrf.mxu0
        %v4821 = vadd.f32 %v4414, %v4820
        %v4822 = vpop.f32.mrf.mxu0
        %v4823 = vpop.f32.mrf.mxu0
        %v4824 = vadd.f32 %v4417, %v4823
        %v4825 = vpop.f32.mrf.mxu0
        %4826 = vmatprep.mubr.bf16.mxu0 0
        %4827 = vmatmul.mubr.bf16.gmra.mxu0 %v4683
        %v4828 = vpop.f32.mrf.mxu0
        %v4829 = vadd.f32 %v4422, %v4828
        %v4830 = vpop.f32.mrf.mxu0
        %v4831 = vpop.f32.mrf.mxu0
        %v4832 = vadd.f32 %v4425, %v4831
        %v4833 = vpop.f32.mrf.mxu0
        %4834 = vmatprep.mubr.bf16.mxu0 0
        %4835 = vmatmul.mubr.bf16.gmra.mxu0 %v4686
        %v4836 = vpop.f32.mrf.mxu0
        %v4837 = vadd.f32 %v4430, %v4836
        %v4838 = vpop.f32.mrf.mxu0
        %v4839 = vpop.f32.mrf.mxu0
        %v4840 = vadd.f32 %v4433, %v4839
        %v4841 = vpop.f32.mrf.mxu0
        %4842 = vmatprep.mubr.bf16.mxu0 0
        %4843 = vmatmul.mubr.bf16.gmra.mxu0 %v4689
        %v4844 = vpop.f32.mrf.mxu0
        %v4845 = vadd.f32 %v4438, %v4844
        %v4846 = vpop.f32.mrf.mxu0
        %v4847 = vpop.f32.mrf.mxu0
        %v4848 = vadd.f32 %v4441, %v4847
        %v4849 = vpop.f32.mrf.mxu0
        %4850 = vmatprep.mubr.bf16.mxu0 0
        %4851 = vmatmul.mubr.bf16.gmra.mxu0 %v4692
        %v4852 = vpop.f32.mrf.mxu0
        %v4853 = vadd.f32 %v4446, %v4852
        %v4854 = vpop.f32.mrf.mxu0
        %v4855 = vpop.f32.mrf.mxu0
        %v4856 = vadd.f32 %v4449, %v4855
        %v4857 = vpop.f32.mrf.mxu0
        %4858 = vmatprep.mubr.bf16.mxu0 0
        %4859 = vmatmul.mubr.bf16.gmra.mxu0 %v4695
        %v4860 = vpop.f32.mrf.mxu0
        %v4861 = vadd.f32 %v4454, %v4860
        %v4862 = vpop.f32.mrf.mxu0
        %v4863 = vpop.f32.mrf.mxu0
        %v4864 = vadd.f32 %v4457, %v4863
        %v4865 = vpop.f32.mrf.mxu0
        %4866 = vmatprep.mubr.bf16.mxu0 0
        %4867 = vmatmul.mubr.bf16.gmra.mxu0 %v4698
        %v4868 = vpop.f32.mrf.mxu0
        %v4869 = vadd.f32 %v4462, %v4868
        %v4870 = vpop.f32.mrf.mxu0
        %v4871 = vpop.f32.mrf.mxu0
        %v4872 = vadd.f32 %v4465, %v4871
        %v4873 = vpop.f32.mrf.mxu0
        %4874 = vmatprep.mubr.bf16.mxu0 0
        %4875 = vmatmul.mubr.bf16.gmra.mxu0 %v4701
        %v4876 = vpop.f32.mrf.mxu0
        %v4877 = vadd.f32 %v4470, %v4876
        %v4878 = vpop.f32.mrf.mxu0
        %v4879 = vpop.f32.mrf.mxu0
        %v4880 = vadd.f32 %v4473, %v4879
        %v4881 = vpop.f32.mrf.mxu0
        %4882 = vdwg.mxu0
        %v4883 = vld [vmem:[%s259 + $0x10] sm:$0xc]
        %v4884 = vld [vmem:[%s259 + $0x14] sm:$0xf]
        %v4885 = vld [vmem:[%s259 + $0x18] sm:$0xf]
        %v4886 = vld [vmem:[%s259 + $0x1c] sm:$0xf]
        %v4887 = vld [vmem:[%s259 + $0x20] sm:$0xf]
        %v4888 = vld [vmem:[%s259 + $0x24] sm:$0xf]
        %v4889 = vld [vmem:[%s259 + $0x28] sm:$0xf]
        %v4890 = vld [vmem:[%s259 + $0x2c] sm:$0xf]
        %v4891 = vld [vmem:[%s259 + $0x30] sm:$0xf]
        %v4892 = vld [vmem:[%s259 + $0x34] sm:$0xf]
        %v4893 = vld [vmem:[%s259 + $0x38] sm:$0xf]
        %v4894 = vld [vmem:[%s259 + $0x3c] sm:$0xf]
        %v4895 = vld [vmem:[%s259 + $0x40] sm:$0xf]
        %v4896 = vld [vmem:[%s259 + $0x44] sm:$0xf]
        %v4897 = vld [vmem:[%s259 + $0x48] sm:$0xf]
        %v4898 = vld [vmem:[%s259 + $0x4c] sm:$0xf]
        %v4899 = vld [vmem:[%s259 + $0x50] sm:$0xf]
        %v4900 = vld [vmem:[%s259 + $0x54] sm:$0xf]
        %v4901 = vld [vmem:[%s259 + $0x58] sm:$0xf]
        %v4902 = vld [vmem:[%s259 + $0x5c] sm:$0xf]
        %v4903 = vld [vmem:[%s259 + $0x60] sm:$0xf]
        %v4904 = vld [vmem:[%s259 + $0x64] sm:$0xf]
        %v4905 = vld [vmem:[%s259 + $0x68] sm:$0xf]
        %v4906 = vld [vmem:[%s259 + $0x6c] sm:$0xf]
        %v4907 = vld [vmem:[%s259 + $0x70] sm:$0xf]
        %v4908 = vld [vmem:[%s259 + $0x74] sm:$0xf]
        %v4909 = vld [vmem:[%s259 + $0x78] sm:$0xf]
        %v4910 = vld [vmem:[%s259 + $0x7c] sm:$0xf]
        %v4911 = vld [vmem:[%s259 + $0x80] sm:$0xf]
        %v4912 = vld [vmem:[%s259 + $0x84] sm:$0xf]
        %v4913 = vld [vmem:[%s259 + $0x88] sm:$0xf]
        %v4914 = vld [vmem:[%s259 + $0x8c] sm:$0xf]
        %v4915 = vld [vmem:[%s259 + $0x90] sm:$0xf]
        %v4916 = vld [vmem:[%s259 + $0x94] sm:$0xf]
        %v4917 = vld [vmem:[%s259 + $0x98] sm:$0xf]
        %v4918 = vld [vmem:[%s259 + $0x9c] sm:$0xf]
        %v4919 = vld [vmem:[%s259 + $0xa0] sm:$0x7]
        %s4920 = scalar_lea.vmem [#allocation2], 2
        %v4921 = vld [vmem:[%s4920] sm:$0x3]
        %v4959 = vunpack.c.l.b16 %v4883
        %v4960 = vunpack.c.l.b16 %v4884
        %v4961 = vunpack.c.l.b16 %v4885
        %v4962 = vunpack.c.l.b16 %v4886
        %v4963 = vunpack.c.l.b16 %v4887
        %v4964 = vunpack.c.l.b16 %v4888
        %v4965 = vunpack.c.l.b16 %v4889
        %v4966 = vunpack.c.l.b16 %v4890
        %v4967 = vunpack.c.l.b16 %v4891
        %v4968 = vunpack.c.l.b16 %v4892
        %v4969 = vunpack.c.l.b16 %v4893
        %v4970 = vunpack.c.l.b16 %v4894
        %v4971 = vunpack.c.l.b16 %v4895
        %v4972 = vunpack.c.l.b16 %v4896
        %v4973 = vunpack.c.l.b16 %v4897
        %v4974 = vunpack.c.l.b16 %v4898
        %v4975 = vunpack.c.l.b16 %v4899
        %v4976 = vunpack.c.l.b16 %v4900
        %v4977 = vunpack.c.l.b16 %v4901
        %v4978 = vunpack.c.l.b16 %v4902
        %v4979 = vunpack.c.l.b16 %v4903
        %v4980 = vunpack.c.l.b16 %v4904
        %v4981 = vunpack.c.l.b16 %v4905
        %v4982 = vunpack.c.l.b16 %v4906
        %v4983 = vunpack.c.l.b16 %v4907
        %v4984 = vunpack.c.l.b16 %v4908
        %v4985 = vunpack.c.l.b16 %v4909
        %v4986 = vunpack.c.l.b16 %v4910
        %v4987 = vunpack.c.l.b16 %v4911
        %v4988 = vunpack.c.l.b16 %v4912
        %v4989 = vunpack.c.l.b16 %v4913
        %v4990 = vunpack.c.l.b16 %v4914
        %v4991 = vunpack.c.l.b16 %v4915
        %v4992 = vunpack.c.l.b16 %v4916
        %v4993 = vunpack.c.l.b16 %v4917
        %v4994 = vunpack.c.l.b16 %v4918
        %v4995 = vunpack.c.l.b16 %v4919
        %v4996 = vpack.c.b16 %v4960, %v4959
        %v4997 = vpack.c.b16 %v4962, %v4961
        %v4998 = vpack.c.b16 %v4964, %v4963
        %v4999 = vpack.c.b16 %v4966, %v4965
        %v5000 = vpack.c.b16 %v4968, %v4967
        %v5001 = vpack.c.b16 %v4970, %v4969
        %v5002 = vpack.c.b16 %v4972, %v4971
        %v5003 = vpack.c.b16 %v4974, %v4973
        %v5004 = vpack.c.b16 %v4976, %v4975
        %v5005 = vpack.c.b16 %v4978, %v4977
        %v5006 = vpack.c.b16 %v4980, %v4979
        %v5007 = vpack.c.b16 %v4982, %v4981
        %v5008 = vpack.c.b16 %v4984, %v4983
        %v5009 = vpack.c.b16 %v4986, %v4985
        %v5010 = vpack.c.b16 %v4988, %v4987
        %v5011 = vpack.c.b16 %v4990, %v4989
        %v5012 = vpack.c.b16 %v4992, %v4991
        %v5013 = vpack.c.b16 %v4994, %v4993
        %v5014 = vpack.c.b16 %v4995, %v4995
        %vm5015 = vsmask.f32 5376
        %v5017 = vshrl.u32 %v4996, 16
        %v5019 = vrot.slane %v5017, 2
        %v5020 = vshll.u32 %v4996, 16
        %v5022 = vrot.slane %v5020, 3
        %v5023 = vor.u32 %v5019, %v5022
        %v5025 = vshrl.u32 %v4997, 16
        %v5027 = vrot.slane %v5025, 2
        %v5028 = vshll.u32 %v4997, 16
        %v5030 = vrot.slane %v5028, 3
        %v5031 = vor.u32 %v5027, %v5030
        %v5032 = vsel %vm5015, %v5023, %v5031
        %v5034 = vshrl.u32 %v4998, 16
        %v5036 = vrot.slane %v5034, 2
        %v5037 = vshll.u32 %v4998, 16
        %v5039 = vrot.slane %v5037, 3
        %v5040 = vor.u32 %v5036, %v5039
        %v5041 = vsel %vm5015, %v5031, %v5040
        %v5043 = vshrl.u32 %v4999, 16
        %v5045 = vrot.slane %v5043, 2
        %v5046 = vshll.u32 %v4999, 16
        %v5048 = vrot.slane %v5046, 3
        %v5049 = vor.u32 %v5045, %v5048
        %v5050 = vsel %vm5015, %v5040, %v5049
        %v5052 = vshrl.u32 %v5000, 16
        %v5054 = vrot.slane %v5052, 2
        %v5055 = vshll.u32 %v5000, 16
        %v5057 = vrot.slane %v5055, 3
        %v5058 = vor.u32 %v5054, %v5057
        %v5059 = vsel %vm5015, %v5049, %v5058
        %v5061 = vshrl.u32 %v5001, 16
        %v5063 = vrot.slane %v5061, 2
        %v5064 = vshll.u32 %v5001, 16
        %v5066 = vrot.slane %v5064, 3
        %v5067 = vor.u32 %v5063, %v5066
        %v5068 = vsel %vm5015, %v5058, %v5067
        %v5070 = vshrl.u32 %v5002, 16
        %v5072 = vrot.slane %v5070, 2
        %v5073 = vshll.u32 %v5002, 16
        %v5075 = vrot.slane %v5073, 3
        %v5076 = vor.u32 %v5072, %v5075
        %v5077 = vsel %vm5015, %v5067, %v5076
        %v5079 = vshrl.u32 %v5003, 16
        %v5081 = vrot.slane %v5079, 2
        %v5082 = vshll.u32 %v5003, 16
        %v5084 = vrot.slane %v5082, 3
        %v5085 = vor.u32 %v5081, %v5084
        %v5086 = vsel %vm5015, %v5076, %v5085
        %v5088 = vshrl.u32 %v5004, 16
        %v5090 = vrot.slane %v5088, 2
        %v5091 = vshll.u32 %v5004, 16
        %v5093 = vrot.slane %v5091, 3
        %v5094 = vor.u32 %v5090, %v5093
        %v5095 = vsel %vm5015, %v5085, %v5094
        %v5097 = vshrl.u32 %v5005, 16
        %v5099 = vrot.slane %v5097, 2
        %v5100 = vshll.u32 %v5005, 16
        %v5102 = vrot.slane %v5100, 3
        %v5103 = vor.u32 %v5099, %v5102
        %v5104 = vsel %vm5015, %v5094, %v5103
        %v5106 = vshrl.u32 %v5006, 16
        %v5108 = vrot.slane %v5106, 2
        %v5109 = vshll.u32 %v5006, 16
        %v5111 = vrot.slane %v5109, 3
        %v5112 = vor.u32 %v5108, %v5111
        %v5113 = vsel %vm5015, %v5103, %v5112
        %v5115 = vshrl.u32 %v5007, 16
        %v5117 = vrot.slane %v5115, 2
        %v5118 = vshll.u32 %v5007, 16
        %v5120 = vrot.slane %v5118, 3
        %v5121 = vor.u32 %v5117, %v5120
        %v5122 = vsel %vm5015, %v5112, %v5121
        %v5124 = vshrl.u32 %v5008, 16
        %v5126 = vrot.slane %v5124, 2
        %v5127 = vshll.u32 %v5008, 16
        %v5129 = vrot.slane %v5127, 3
        %v5130 = vor.u32 %v5126, %v5129
        %v5131 = vsel %vm5015, %v5121, %v5130
        %v5133 = vshrl.u32 %v5009, 16
        %v5135 = vrot.slane %v5133, 2
        %v5136 = vshll.u32 %v5009, 16
        %v5138 = vrot.slane %v5136, 3
        %v5139 = vor.u32 %v5135, %v5138
        %v5140 = vsel %vm5015, %v5130, %v5139
        %v5142 = vshrl.u32 %v5010, 16
        %v5144 = vrot.slane %v5142, 2
        %v5145 = vshll.u32 %v5010, 16
        %v5147 = vrot.slane %v5145, 3
        %v5148 = vor.u32 %v5144, %v5147
        %v5149 = vsel %vm5015, %v5139, %v5148
        %v5151 = vshrl.u32 %v5011, 16
        %v5153 = vrot.slane %v5151, 2
        %v5154 = vshll.u32 %v5011, 16
        %v5156 = vrot.slane %v5154, 3
        %v5157 = vor.u32 %v5153, %v5156
        %v5158 = vsel %vm5015, %v5148, %v5157
        %v5160 = vshrl.u32 %v5012, 16
        %v5162 = vrot.slane %v5160, 2
        %v5163 = vshll.u32 %v5012, 16
        %v5165 = vrot.slane %v5163, 3
        %v5166 = vor.u32 %v5162, %v5165
        %v5167 = vsel %vm5015, %v5157, %v5166
        %v5169 = vshrl.u32 %v5013, 16
        %v5171 = vrot.slane %v5169, 2
        %v5172 = vshll.u32 %v5013, 16
        %v5174 = vrot.slane %v5172, 3
        %v5175 = vor.u32 %v5171, %v5174
        %v5176 = vsel %vm5015, %v5166, %v5175
        %v5178 = vshrl.u32 %v5014, 16
        %v5180 = vrot.slane %v5178, 2
        %v5181 = vshll.u32 %v5014, 16
        %v5183 = vrot.slane %v5181, 3
        %v5184 = vor.u32 %v5180, %v5183
        %v5185 = vsel %vm5015, %v5175, %v5184
        %v5187 = vsel %vm475, %v5032, 0
        %v5190 = vsel %vm475, %v5041, 0
        %v5193 = vsel %vm475, %v5050, 0
        %v5196 = vsel %vm475, %v5059, 0
        %v5199 = vsel %vm475, %v5068, 0
        %v5202 = vsel %vm475, %v5077, 0
        %v5205 = vsel %vm475, %v5086, 0
        %v5208 = vsel %vm475, %v5095, 0
        %v5211 = vsel %vm475, %v5104, 0
        %v5214 = vsel %vm475, %v5113, 0
        %v5217 = vsel %vm475, %v5122, 0
        %v5220 = vsel %vm475, %v5131, 0
        %v5223 = vsel %vm475, %v5140, 0
        %v5226 = vsel %vm475, %v5149, 0
        %v5229 = vsel %vm475, %v5158, 0
        %v5232 = vsel %vm475, %v5167, 0
        %v5235 = vsel %vm475, %v5176, 0
        %v5238 = vsel %vm475, %v5185, 0
        %v5241 = vsel %vm530, %v4921, 0
        %5243 = vmatprep.subr.bf16.mxu0 0
        %5244 = vmatpush1.bf16.msra.mxu0 0
        %5245 = vmatprep.subr.bf16.mxu0 0
        %5246 = vmatpush1.bf16.msra.mxu0 0
        %5247 = vmatprep.subr.bf16.mxu0 0
        %5248 = vmatpush1.bf16.msra.mxu0 0
        %5249 = vmatprep.subr.bf16.mxu0 0
        %5250 = vmatpush1.bf16.msra.mxu0 0
        %5251 = vmatprep.subr.bf16.mxu0 0
        %5252 = vmatpush1.bf16.msra.mxu0 0
        %5253 = vmatprep.subr.bf16.mxu0 0
        %5254 = vmatpush1.bf16.msra.mxu0 0
        %5255 = vmatprep.subr.bf16.mxu0 0
        %5256 = vmatpush1.bf16.msra.mxu0 0
        %5257 = vmatprep.subr.bf16.mxu0 0
        %5258 = vmatpush1.bf16.msra.mxu0 %v5241
        %5259 = vmatprep.subr.bf16.mxu0 0
        %5260 = vmatpush2.bf16.msra.mxu0 0
        %5261 = vmatprep.subr.bf16.mxu0 0
        %5262 = vmatpush2.bf16.msra.mxu0 0
        %5263 = vmatprep.subr.bf16.mxu0 0
        %5264 = vmatpush2.bf16.msra.mxu0 0
        %5265 = vmatprep.subr.bf16.mxu0 0
        %5266 = vmatpush2.bf16.msra.mxu0 0
        %5267 = vmatprep.subr.bf16.mxu0 0
        %5268 = vmatpush2.bf16.msra.mxu0 0
        %5269 = vmatprep.subr.bf16.mxu0 0
        %5270 = vmatpush2.bf16.msra.mxu0 0
        %5271 = vmatprep.subr.bf16.mxu0 0
        %5272 = vmatpush2.bf16.msra.mxu0 0
        %5273 = vmatprep.subr.bf16.mxu0 0
        %5274 = vmatpush2.bf16.msra.mxu0 0
        %5275 = vmatprep.mubr.bf16.mxu0 0
        %5276 = vmatmul.mubr.bf16.gmra.mxu0 %v5187
        %v5277 = vpop.f32.mrf.mxu0
        %v5278 = vadd.f32 0.0, %v5277
        %v5279 = vpop.f32.mrf.mxu0
        %v5280 = vpop.f32.mrf.mxu0
        %v5281 = vadd.f32 0.0, %v5280
        %v5282 = vpop.f32.mrf.mxu0
        %5283 = vmatprep.mubr.bf16.mxu0 0
        %5284 = vmatmul.mubr.bf16.gmra.mxu0 %v5190
        %v5285 = vpop.f32.mrf.mxu0
        %v5286 = vadd.f32 0.0, %v5285
        %v5287 = vpop.f32.mrf.mxu0
        %v5288 = vpop.f32.mrf.mxu0
        %v5289 = vadd.f32 0.0, %v5288
        %v5290 = vpop.f32.mrf.mxu0
        %5291 = vmatprep.mubr.bf16.mxu0 0
        %5292 = vmatmul.mubr.bf16.gmra.mxu0 %v5193
        %v5293 = vpop.f32.mrf.mxu0
        %v5294 = vadd.f32 0.0, %v5293
        %v5295 = vpop.f32.mrf.mxu0
        %v5296 = vpop.f32.mrf.mxu0
        %v5297 = vadd.f32 0.0, %v5296
        %v5298 = vpop.f32.mrf.mxu0
        %5299 = vmatprep.mubr.bf16.mxu0 0
        %5300 = vmatmul.mubr.bf16.gmra.mxu0 %v5196
        %v5301 = vpop.f32.mrf.mxu0
        %v5302 = vadd.f32 0.0, %v5301
        %v5303 = vpop.f32.mrf.mxu0
        %v5304 = vpop.f32.mrf.mxu0
        %v5305 = vadd.f32 0.0, %v5304
        %v5306 = vpop.f32.mrf.mxu0
        %5307 = vmatprep.mubr.bf16.mxu0 0
        %5308 = vmatmul.mubr.bf16.gmra.mxu0 %v5199
        %v5309 = vpop.f32.mrf.mxu0
        %v5310 = vadd.f32 0.0, %v5309
        %v5311 = vpop.f32.mrf.mxu0
        %v5312 = vpop.f32.mrf.mxu0
        %v5313 = vadd.f32 0.0, %v5312
        %v5314 = vpop.f32.mrf.mxu0
        %5315 = vmatprep.mubr.bf16.mxu0 0
        %5316 = vmatmul.mubr.bf16.gmra.mxu0 %v5202
        %v5317 = vpop.f32.mrf.mxu0
        %v5318 = vadd.f32 0.0, %v5317
        %v5319 = vpop.f32.mrf.mxu0
        %v5320 = vpop.f32.mrf.mxu0
        %v5321 = vadd.f32 0.0, %v5320
        %v5322 = vpop.f32.mrf.mxu0
        %5323 = vmatprep.mubr.bf16.mxu0 0
        %5324 = vmatmul.mubr.bf16.gmra.mxu0 %v5205
        %v5325 = vpop.f32.mrf.mxu0
        %v5326 = vadd.f32 0.0, %v5325
        %v5327 = vpop.f32.mrf.mxu0
        %v5328 = vpop.f32.mrf.mxu0
        %v5329 = vadd.f32 0.0, %v5328
        %v5330 = vpop.f32.mrf.mxu0
        %5331 = vmatprep.mubr.bf16.mxu0 0
        %5332 = vmatmul.mubr.bf16.gmra.mxu0 %v5208
        %v5333 = vpop.f32.mrf.mxu0
        %v5334 = vadd.f32 0.0, %v5333
        %v5335 = vpop.f32.mrf.mxu0
        %v5336 = vpop.f32.mrf.mxu0
        %v5337 = vadd.f32 0.0, %v5336
        %v5338 = vpop.f32.mrf.mxu0
        %5339 = vmatprep.mubr.bf16.mxu0 0
        %5340 = vmatmul.mubr.bf16.gmra.mxu0 %v5211
        %v5341 = vpop.f32.mrf.mxu0
        %v5342 = vadd.f32 0.0, %v5341
        %v5343 = vpop.f32.mrf.mxu0
        %v5344 = vpop.f32.mrf.mxu0
        %v5345 = vadd.f32 0.0, %v5344
        %v5346 = vpop.f32.mrf.mxu0
        %5347 = vmatprep.mubr.bf16.mxu0 0
        %5348 = vmatmul.mubr.bf16.gmra.mxu0 %v5214
        %v5349 = vpop.f32.mrf.mxu0
        %v5350 = vadd.f32 0.0, %v5349
        %v5351 = vpop.f32.mrf.mxu0
        %v5352 = vpop.f32.mrf.mxu0
        %v5353 = vadd.f32 0.0, %v5352
        %v5354 = vpop.f32.mrf.mxu0
        %5355 = vmatprep.mubr.bf16.mxu0 0
        %5356 = vmatmul.mubr.bf16.gmra.mxu0 %v5217
        %v5357 = vpop.f32.mrf.mxu0
        %v5358 = vadd.f32 0.0, %v5357
        %v5359 = vpop.f32.mrf.mxu0
        %v5360 = vpop.f32.mrf.mxu0
        %v5361 = vadd.f32 0.0, %v5360
        %v5362 = vpop.f32.mrf.mxu0
        %5363 = vmatprep.mubr.bf16.mxu0 0
        %5364 = vmatmul.mubr.bf16.gmra.mxu0 %v5220
        %v5365 = vpop.f32.mrf.mxu0
        %v5366 = vadd.f32 0.0, %v5365
        %v5367 = vpop.f32.mrf.mxu0
        %v5368 = vpop.f32.mrf.mxu0
        %v5369 = vadd.f32 0.0, %v5368
        %v5370 = vpop.f32.mrf.mxu0
        %5371 = vmatprep.mubr.bf16.mxu0 0
        %5372 = vmatmul.mubr.bf16.gmra.mxu0 %v5223
        %v5373 = vpop.f32.mrf.mxu0
        %v5374 = vadd.f32 0.0, %v5373
        %v5375 = vpop.f32.mrf.mxu0
        %v5376 = vpop.f32.mrf.mxu0
        %v5377 = vadd.f32 0.0, %v5376
        %v5378 = vpop.f32.mrf.mxu0
        %5379 = vmatprep.mubr.bf16.mxu0 0
        %5380 = vmatmul.mubr.bf16.gmra.mxu0 %v5226
        %v5381 = vpop.f32.mrf.mxu0
        %v5382 = vadd.f32 0.0, %v5381
        %v5383 = vpop.f32.mrf.mxu0
        %v5384 = vpop.f32.mrf.mxu0
        %v5385 = vadd.f32 0.0, %v5384
        %v5386 = vpop.f32.mrf.mxu0
        %5387 = vmatprep.mubr.bf16.mxu0 0
        %5388 = vmatmul.mubr.bf16.gmra.mxu0 %v5229
        %v5389 = vpop.f32.mrf.mxu0
        %v5390 = vadd.f32 0.0, %v5389
        %v5391 = vpop.f32.mrf.mxu0
        %v5392 = vpop.f32.mrf.mxu0
        %v5393 = vadd.f32 0.0, %v5392
        %v5394 = vpop.f32.mrf.mxu0
        %5395 = vmatprep.mubr.bf16.mxu0 0
        %5396 = vmatmul.mubr.bf16.gmra.mxu0 %v5232
        %v5397 = vpop.f32.mrf.mxu0
        %v5398 = vadd.f32 0.0, %v5397
        %v5399 = vpop.f32.mrf.mxu0
        %v5400 = vpop.f32.mrf.mxu0
        %v5401 = vadd.f32 0.0, %v5400
        %v5402 = vpop.f32.mrf.mxu0
        %5403 = vmatprep.mubr.bf16.mxu0 0
        %5404 = vmatmul.mubr.bf16.gmra.mxu0 %v5235
        %v5405 = vpop.f32.mrf.mxu0
        %v5406 = vadd.f32 0.0, %v5405
        %v5407 = vpop.f32.mrf.mxu0
        %v5408 = vpop.f32.mrf.mxu0
        %v5409 = vadd.f32 0.0, %v5408
        %v5410 = vpop.f32.mrf.mxu0
        %5411 = vmatprep.mubr.bf16.mxu0 0
        %5412 = vmatmul.mubr.bf16.gmra.mxu0 %v5238
        %v5413 = vpop.f32.mrf.mxu0
        %v5414 = vadd.f32 0.0, %v5413
        %v5415 = vpop.f32.mrf.mxu0
        %v5416 = vpop.f32.mrf.mxu0
        %v5417 = vadd.f32 0.0, %v5416
        %v5418 = vpop.f32.mrf.mxu0
        %5419 = vdwg.mxu0
        %v5420 = vadd.f32 %v4741, %v5278
        %v5421 = vadd.f32 %v4744, %v5281
        %v5422 = vadd.f32 %v4749, %v5286
        %v5423 = vadd.f32 %v4752, %v5289
        %v5424 = vadd.f32 %v4757, %v5294
        %v5425 = vadd.f32 %v4760, %v5297
        %v5426 = vadd.f32 %v4765, %v5302
        %v5427 = vadd.f32 %v4768, %v5305
        %v5428 = vadd.f32 %v4773, %v5310
        %v5429 = vadd.f32 %v4776, %v5313
        %v5430 = vadd.f32 %v4781, %v5318
        %v5431 = vadd.f32 %v4784, %v5321
        %v5432 = vadd.f32 %v4789, %v5326
        %v5433 = vadd.f32 %v4792, %v5329
        %v5434 = vadd.f32 %v4797, %v5334
        %v5435 = vadd.f32 %v4800, %v5337
        %v5436 = vadd.f32 %v4805, %v5342
        %v5437 = vadd.f32 %v4808, %v5345
        %v5438 = vadd.f32 %v4813, %v5350
        %v5439 = vadd.f32 %v4816, %v5353
        %v5440 = vadd.f32 %v4821, %v5358
        %v5441 = vadd.f32 %v4824, %v5361
        %v5442 = vadd.f32 %v4829, %v5366
        %v5443 = vadd.f32 %v4832, %v5369
        %v5444 = vadd.f32 %v4837, %v5374
        %v5445 = vadd.f32 %v4840, %v5377
        %v5446 = vadd.f32 %v4845, %v5382
        %v5447 = vadd.f32 %v4848, %v5385
        %v5448 = vadd.f32 %v4853, %v5390
        %v5449 = vadd.f32 %v4856, %v5393
        %v5450 = vadd.f32 %v4861, %v5398
        %v5451 = vadd.f32 %v4864, %v5401
        %v5452 = vadd.f32 %v4869, %v5406
        %v5453 = vadd.f32 %v4872, %v5409
        %v5454 = vadd.f32 %v4877, %v5414
        %v5455 = vadd.f32 %v4880, %v5417
        %v5456 = vld [vmem:[%s259 + $0xa0] sm:$0x3]
        %s5457 = scalar_lea.vmem [#allocation2], 6
        %v5458 = vld [vmem:[%s5457] sm:$0x3]
        %v5460 = vunpack.c.l.b16 %v5456
        %v5461 = vpack.c.b16 %v5460, %v5460
        %v5462 = vrot.slane %v4996, 2
        %v5463 = vrot.slane %v4997, 2
        %v5464 = vsel %vm2455, %v5462, %v5463
        %v5465 = vrot.slane %v4998, 2
        %v5466 = vsel %vm2455, %v5463, %v5465
        %v5467 = vrot.slane %v4999, 2
        %v5468 = vsel %vm2455, %v5465, %v5467
        %v5469 = vrot.slane %v5000, 2
        %v5470 = vsel %vm2455, %v5467, %v5469
        %v5471 = vrot.slane %v5001, 2
        %v5472 = vsel %vm2455, %v5469, %v5471
        %v5473 = vrot.slane %v5002, 2
        %v5474 = vsel %vm2455, %v5471, %v5473
        %v5475 = vrot.slane %v5003, 2
        %v5476 = vsel %vm2455, %v5473, %v5475
        %v5477 = vrot.slane %v5004, 2
        %v5478 = vsel %vm2455, %v5475, %v5477
        %v5479 = vrot.slane %v5005, 2
        %v5480 = vsel %vm2455, %v5477, %v5479
        %v5481 = vrot.slane %v5006, 2
        %v5482 = vsel %vm2455, %v5479, %v5481
        %v5483 = vrot.slane %v5007, 2
        %v5484 = vsel %vm2455, %v5481, %v5483
        %v5485 = vrot.slane %v5008, 2
        %v5486 = vsel %vm2455, %v5483, %v5485
        %v5487 = vrot.slane %v5009, 2
        %v5488 = vsel %vm2455, %v5485, %v5487
        %v5489 = vrot.slane %v5010, 2
        %v5490 = vsel %vm2455, %v5487, %v5489
        %v5491 = vrot.slane %v5011, 2
        %v5492 = vsel %vm2455, %v5489, %v5491
        %v5493 = vrot.slane %v5012, 2
        %v5494 = vsel %vm2455, %v5491, %v5493
        %v5495 = vrot.slane %v5013, 2
        %v5496 = vsel %vm2455, %v5493, %v5495
        %v5497 = vrot.slane %v5461, 2
        %v5498 = vsel %vm2455, %v5495, %v5497
        %v5500 = vsel %vm475, %v5464, 0
        %v5503 = vsel %vm475, %v5466, 0
        %v5506 = vsel %vm475, %v5468, 0
        %v5509 = vsel %vm475, %v5470, 0
        %v5512 = vsel %vm475, %v5472, 0
        %v5515 = vsel %vm475, %v5474, 0
        %v5518 = vsel %vm475, %v5476, 0
        %v5521 = vsel %vm475, %v5478, 0
        %v5524 = vsel %vm475, %v5480, 0
        %v5527 = vsel %vm475, %v5482, 0
        %v5530 = vsel %vm475, %v5484, 0
        %v5533 = vsel %vm475, %v5486, 0
        %v5536 = vsel %vm475, %v5488, 0
        %v5539 = vsel %vm475, %v5490, 0
        %v5542 = vsel %vm475, %v5492, 0
        %v5545 = vsel %vm475, %v5494, 0
        %v5548 = vsel %vm475, %v5496, 0
        %v5551 = vsel %vm475, %v5498, 0
        %v5554 = vsel %vm530, %v5458, 0
        %5556 = vmatprep.subr.bf16.mxu0 0
        %5557 = vmatpush1.bf16.msra.mxu0 0
        %5558 = vmatprep.subr.bf16.mxu0 0
        %5559 = vmatpush1.bf16.msra.mxu0 0
        %5560 = vmatprep.subr.bf16.mxu0 0
        %5561 = vmatpush1.bf16.msra.mxu0 0
        %5562 = vmatprep.subr.bf16.mxu0 0
        %5563 = vmatpush1.bf16.msra.mxu0 0
        %5564 = vmatprep.subr.bf16.mxu0 0
        %5565 = vmatpush1.bf16.msra.mxu0 0
        %5566 = vmatprep.subr.bf16.mxu0 0
        %5567 = vmatpush1.bf16.msra.mxu0 0
        %5568 = vmatprep.subr.bf16.mxu0 0
        %5569 = vmatpush1.bf16.msra.mxu0 0
        %5570 = vmatprep.subr.bf16.mxu0 0
        %5571 = vmatpush1.bf16.msra.mxu0 %v5554
        %5572 = vmatprep.subr.bf16.mxu0 0
        %5573 = vmatpush2.bf16.msra.mxu0 0
        %5574 = vmatprep.subr.bf16.mxu0 0
        %5575 = vmatpush2.bf16.msra.mxu0 0
        %5576 = vmatprep.subr.bf16.mxu0 0
        %5577 = vmatpush2.bf16.msra.mxu0 0
        %5578 = vmatprep.subr.bf16.mxu0 0
        %5579 = vmatpush2.bf16.msra.mxu0 0
        %5580 = vmatprep.subr.bf16.mxu0 0
        %5581 = vmatpush2.bf16.msra.mxu0 0
        %5582 = vmatprep.subr.bf16.mxu0 0
        %5583 = vmatpush2.bf16.msra.mxu0 0
        %5584 = vmatprep.subr.bf16.mxu0 0
        %5585 = vmatpush2.bf16.msra.mxu0 0
        %5586 = vmatprep.subr.bf16.mxu0 0
        %5587 = vmatpush2.bf16.msra.mxu0 0
        %5588 = vmatprep.mubr.bf16.mxu0 0
        %5589 = vmatmul.mubr.bf16.gmra.mxu0 %v5500
        %v5590 = vpop.f32.mrf.mxu0
        %v5591 = vadd.f32 0.0, %v5590
        %v5592 = vpop.f32.mrf.mxu0
        %v5593 = vpop.f32.mrf.mxu0
        %v5594 = vadd.f32 0.0, %v5593
        %v5595 = vpop.f32.mrf.mxu0
        %5596 = vmatprep.mubr.bf16.mxu0 0
        %5597 = vmatmul.mubr.bf16.gmra.mxu0 %v5503
        %v5598 = vpop.f32.mrf.mxu0
        %v5599 = vadd.f32 0.0, %v5598
        %v5600 = vpop.f32.mrf.mxu0
        %v5601 = vpop.f32.mrf.mxu0
        %v5602 = vadd.f32 0.0, %v5601
        %v5603 = vpop.f32.mrf.mxu0
        %5604 = vmatprep.mubr.bf16.mxu0 0
        %5605 = vmatmul.mubr.bf16.gmra.mxu0 %v5506
        %v5606 = vpop.f32.mrf.mxu0
        %v5607 = vadd.f32 0.0, %v5606
        %v5608 = vpop.f32.mrf.mxu0
        %v5609 = vpop.f32.mrf.mxu0
        %v5610 = vadd.f32 0.0, %v5609
        %v5611 = vpop.f32.mrf.mxu0
        %5612 = vmatprep.mubr.bf16.mxu0 0
        %5613 = vmatmul.mubr.bf16.gmra.mxu0 %v5509
        %v5614 = vpop.f32.mrf.mxu0
        %v5615 = vadd.f32 0.0, %v5614
        %v5616 = vpop.f32.mrf.mxu0
        %v5617 = vpop.f32.mrf.mxu0
        %v5618 = vadd.f32 0.0, %v5617
        %v5619 = vpop.f32.mrf.mxu0
        %5620 = vmatprep.mubr.bf16.mxu0 0
        %5621 = vmatmul.mubr.bf16.gmra.mxu0 %v5512
        %v5622 = vpop.f32.mrf.mxu0
        %v5623 = vadd.f32 0.0, %v5622
        %v5624 = vpop.f32.mrf.mxu0
        %v5625 = vpop.f32.mrf.mxu0
        %v5626 = vadd.f32 0.0, %v5625
        %v5627 = vpop.f32.mrf.mxu0
        %5628 = vmatprep.mubr.bf16.mxu0 0
        %5629 = vmatmul.mubr.bf16.gmra.mxu0 %v5515
        %v5630 = vpop.f32.mrf.mxu0
        %v5631 = vadd.f32 0.0, %v5630
        %v5632 = vpop.f32.mrf.mxu0
        %v5633 = vpop.f32.mrf.mxu0
        %v5634 = vadd.f32 0.0, %v5633
        %v5635 = vpop.f32.mrf.mxu0
        %5636 = vmatprep.mubr.bf16.mxu0 0
        %5637 = vmatmul.mubr.bf16.gmra.mxu0 %v5518
        %v5638 = vpop.f32.mrf.mxu0
        %v5639 = vadd.f32 0.0, %v5638
        %v5640 = vpop.f32.mrf.mxu0
        %v5641 = vpop.f32.mrf.mxu0
        %v5642 = vadd.f32 0.0, %v5641
        %v5643 = vpop.f32.mrf.mxu0
        %5644 = vmatprep.mubr.bf16.mxu0 0
        %5645 = vmatmul.mubr.bf16.gmra.mxu0 %v5521
        %v5646 = vpop.f32.mrf.mxu0
        %v5647 = vadd.f32 0.0, %v5646
        %v5648 = vpop.f32.mrf.mxu0
        %v5649 = vpop.f32.mrf.mxu0
        %v5650 = vadd.f32 0.0, %v5649
        %v5651 = vpop.f32.mrf.mxu0
        %5652 = vmatprep.mubr.bf16.mxu0 0
        %5653 = vmatmul.mubr.bf16.gmra.mxu0 %v5524
        %v5654 = vpop.f32.mrf.mxu0
        %v5655 = vadd.f32 0.0, %v5654
        %v5656 = vpop.f32.mrf.mxu0
        %v5657 = vpop.f32.mrf.mxu0
        %v5658 = vadd.f32 0.0, %v5657
        %v5659 = vpop.f32.mrf.mxu0
        %5660 = vmatprep.mubr.bf16.mxu0 0
        %5661 = vmatmul.mubr.bf16.gmra.mxu0 %v5527
        %v5662 = vpop.f32.mrf.mxu0
        %v5663 = vadd.f32 0.0, %v5662
        %v5664 = vpop.f32.mrf.mxu0
        %v5665 = vpop.f32.mrf.mxu0
        %v5666 = vadd.f32 0.0, %v5665
        %v5667 = vpop.f32.mrf.mxu0
        %5668 = vmatprep.mubr.bf16.mxu0 0
        %5669 = vmatmul.mubr.bf16.gmra.mxu0 %v5530
        %v5670 = vpop.f32.mrf.mxu0
        %v5671 = vadd.f32 0.0, %v5670
        %v5672 = vpop.f32.mrf.mxu0
        %v5673 = vpop.f32.mrf.mxu0
        %v5674 = vadd.f32 0.0, %v5673
        %v5675 = vpop.f32.mrf.mxu0
        %5676 = vmatprep.mubr.bf16.mxu0 0
        %5677 = vmatmul.mubr.bf16.gmra.mxu0 %v5533
        %v5678 = vpop.f32.mrf.mxu0
        %v5679 = vadd.f32 0.0, %v5678
        %v5680 = vpop.f32.mrf.mxu0
        %v5681 = vpop.f32.mrf.mxu0
        %v5682 = vadd.f32 0.0, %v5681
        %v5683 = vpop.f32.mrf.mxu0
        %5684 = vmatprep.mubr.bf16.mxu0 0
        %5685 = vmatmul.mubr.bf16.gmra.mxu0 %v5536
        %v5686 = vpop.f32.mrf.mxu0
        %v5687 = vadd.f32 0.0, %v5686
        %v5688 = vpop.f32.mrf.mxu0
        %v5689 = vpop.f32.mrf.mxu0
        %v5690 = vadd.f32 0.0, %v5689
        %v5691 = vpop.f32.mrf.mxu0
        %5692 = vmatprep.mubr.bf16.mxu0 0
        %5693 = vmatmul.mubr.bf16.gmra.mxu0 %v5539
        %v5694 = vpop.f32.mrf.mxu0
        %v5695 = vadd.f32 0.0, %v5694
        %v5696 = vpop.f32.mrf.mxu0
        %v5697 = vpop.f32.mrf.mxu0
        %v5698 = vadd.f32 0.0, %v5697
        %v5699 = vpop.f32.mrf.mxu0
        %5700 = vmatprep.mubr.bf16.mxu0 0
        %5701 = vmatmul.mubr.bf16.gmra.mxu0 %v5542
        %v5702 = vpop.f32.mrf.mxu0
        %v5703 = vadd.f32 0.0, %v5702
        %v5704 = vpop.f32.mrf.mxu0
        %v5705 = vpop.f32.mrf.mxu0
        %v5706 = vadd.f32 0.0, %v5705
        %v5707 = vpop.f32.mrf.mxu0
        %5708 = vmatprep.mubr.bf16.mxu0 0
        %5709 = vmatmul.mubr.bf16.gmra.mxu0 %v5545
        %v5710 = vpop.f32.mrf.mxu0
        %v5711 = vadd.f32 0.0, %v5710
        %v5712 = vpop.f32.mrf.mxu0
        %v5713 = vpop.f32.mrf.mxu0
        %v5714 = vadd.f32 0.0, %v5713
        %v5715 = vpop.f32.mrf.mxu0
        %5716 = vmatprep.mubr.bf16.mxu0 0
        %5717 = vmatmul.mubr.bf16.gmra.mxu0 %v5548
        %v5718 = vpop.f32.mrf.mxu0
        %v5719 = vadd.f32 0.0, %v5718
        %v5720 = vpop.f32.mrf.mxu0
        %v5721 = vpop.f32.mrf.mxu0
        %v5722 = vadd.f32 0.0, %v5721
        %v5723 = vpop.f32.mrf.mxu0
        %5724 = vmatprep.mubr.bf16.mxu0 0
        %5725 = vmatmul.mubr.bf16.gmra.mxu0 %v5551
        %v5726 = vpop.f32.mrf.mxu0
        %v5727 = vadd.f32 0.0, %v5726
        %v5728 = vpop.f32.mrf.mxu0
        %v5729 = vpop.f32.mrf.mxu0
        %v5730 = vadd.f32 0.0, %v5729
        %v5731 = vpop.f32.mrf.mxu0
        %5732 = vdwg.mxu0
        %v5733 = vadd.f32 %v5420, %v5591
        %v5734 = vadd.f32 %v5421, %v5594
        %v5735 = vadd.f32 %v5422, %v5599
        %v5736 = vadd.f32 %v5423, %v5602
        %v5737 = vadd.f32 %v5424, %v5607
        %v5738 = vadd.f32 %v5425, %v5610
        %v5739 = vadd.f32 %v5426, %v5615
        %v5740 = vadd.f32 %v5427, %v5618
        %v5741 = vadd.f32 %v5428, %v5623
        %v5742 = vadd.f32 %v5429, %v5626
        %v5743 = vadd.f32 %v5430, %v5631
        %v5744 = vadd.f32 %v5431, %v5634
        %v5745 = vadd.f32 %v5432, %v5639
        %v5746 = vadd.f32 %v5433, %v5642
        %v5747 = vadd.f32 %v5434, %v5647
        %v5748 = vadd.f32 %v5435, %v5650
        %v5749 = vadd.f32 %v5436, %v5655
        %v5750 = vadd.f32 %v5437, %v5658
        %v5751 = vadd.f32 %v5438, %v5663
        %v5752 = vadd.f32 %v5439, %v5666
        %v5753 = vadd.f32 %v5440, %v5671
        %v5754 = vadd.f32 %v5441, %v5674
        %v5755 = vadd.f32 %v5442, %v5679
        %v5756 = vadd.f32 %v5443, %v5682
        %v5757 = vadd.f32 %v5444, %v5687
        %v5758 = vadd.f32 %v5445, %v5690
        %v5759 = vadd.f32 %v5446, %v5695
        %v5760 = vadd.f32 %v5447, %v5698
        %v5761 = vadd.f32 %v5448, %v5703
        %v5762 = vadd.f32 %v5449, %v5706
        %v5763 = vadd.f32 %v5450, %v5711
        %v5764 = vadd.f32 %v5451, %v5714
        %v5765 = vadd.f32 %v5452, %v5719
        %v5766 = vadd.f32 %v5453, %v5722
        %v5767 = vadd.f32 %v5454, %v5727
        %v5768 = vadd.f32 %v5455, %v5730
        %v5769 = vmul.f32 %v5733, %v2071
        %v5770 = vmul.f32 %v5734, %v2076
        %v5771 = vmul.f32 %v5735, %v2081
        %v5772 = vmul.f32 %v5736, %v2086
        %v5773 = vmul.f32 %v5737, %v2091
        %v5774 = vmul.f32 %v5738, %v2096
        %v5775 = vmul.f32 %v5739, %v2101
        %v5776 = vmul.f32 %v5740, %v2106
        %v5777 = vmul.f32 %v5741, %v2111
        %v5778 = vmul.f32 %v5742, %v2116
        %v5779 = vmul.f32 %v5743, %v2121
        %v5780 = vmul.f32 %v5744, %v2126
        %v5781 = vmul.f32 %v5745, %v2131
        %v5782 = vmul.f32 %v5746, %v2136
        %v5783 = vmul.f32 %v5747, %v2141
        %v5784 = vmul.f32 %v5748, %v2146
        %v5785 = vmul.f32 %v5749, %v2151
        %v5786 = vmul.f32 %v5750, %v2156
        %v5787 = vmul.f32 %v5751, %v2161
        %v5788 = vmul.f32 %v5752, %v2166
        %v5789 = vmul.f32 %v5753, %v2171
        %v5790 = vmul.f32 %v5754, %v2176
        %v5791 = vmul.f32 %v5755, %v2181
        %v5792 = vmul.f32 %v5756, %v2186
        %v5793 = vmul.f32 %v5757, %v2191
        %v5794 = vmul.f32 %v5758, %v2196
        %v5795 = vmul.f32 %v5759, %v2201
        %v5796 = vmul.f32 %v5760, %v2206
        %v5797 = vmul.f32 %v5761, %v2211
        %v5798 = vmul.f32 %v5762, %v2216
        %v5799 = vmul.f32 %v5763, %v2221
        %v5800 = vmul.f32 %v5764, %v2226
        %v5801 = vmul.f32 %v5765, %v2231
        %v5802 = vmul.f32 %v5766, %v2236
        %v5803 = vmul.f32 %v5767, %v2241
        %v5804 = vmul.f32 %v5768, %v2246
        %s5805 = scalar_lea.vmem %s264, 576
        %5806 = vst.msk [vmem:[%s5805] sm:$0xff] %vm475, %v5769
        %5807 = vst.msk [vmem:[%s5805 + $0x8] sm:$0xff] %vm475, %v5770
        %5808 = vst.msk [vmem:[%s5805 + $0x10] sm:$0xff] %vm475, %v5771
        %5809 = vst.msk [vmem:[%s5805 + $0x18] sm:$0xff] %vm475, %v5772
        %5810 = vst.msk [vmem:[%s5805 + $0x20] sm:$0xff] %vm475, %v5773
        %5811 = vst.msk [vmem:[%s5805 + $0x28] sm:$0xff] %vm475, %v5774
        %5812 = vst.msk [vmem:[%s5805 + $0x30] sm:$0xff] %vm475, %v5775
        %5813 = vst.msk [vmem:[%s5805 + $0x38] sm:$0xff] %vm475, %v5776
        %5814 = vst.msk [vmem:[%s5805 + $0x40] sm:$0xff] %vm475, %v5777
        %5815 = vst.msk [vmem:[%s5805 + $0x48] sm:$0xff] %vm475, %v5778
        %5816 = vst.msk [vmem:[%s5805 + $0x50] sm:$0xff] %vm475, %v5779
        %5817 = vst.msk [vmem:[%s5805 + $0x58] sm:$0xff] %vm475, %v5780
        %5818 = vst.msk [vmem:[%s5805 + $0x60] sm:$0xff] %vm475, %v5781
        %5819 = vst.msk [vmem:[%s5805 + $0x68] sm:$0xff] %vm475, %v5782
        %5820 = vst.msk [vmem:[%s5805 + $0x70] sm:$0xff] %vm475, %v5783
        %5821 = vst.msk [vmem:[%s5805 + $0x78] sm:$0xff] %vm475, %v5784
        %5822 = vst.msk [vmem:[%s5805 + $0x80] sm:$0xff] %vm475, %v5785
        %5823 = vst.msk [vmem:[%s5805 + $0x88] sm:$0xff] %vm475, %v5786
        %5824 = vst.msk [vmem:[%s5805 + $0x90] sm:$0xff] %vm475, %v5787
        %5825 = vst.msk [vmem:[%s5805 + $0x98] sm:$0xff] %vm475, %v5788
        %5826 = vst.msk [vmem:[%s5805 + $0xa0] sm:$0xff] %vm475, %v5789
        %5827 = vst.msk [vmem:[%s5805 + $0xa8] sm:$0xff] %vm475, %v5790
        %5828 = vst.msk [vmem:[%s5805 + $0xb0] sm:$0xff] %vm475, %v5791
        %5829 = vst.msk [vmem:[%s5805 + $0xb8] sm:$0xff] %vm475, %v5792
        %5830 = vst.msk [vmem:[%s5805 + $0xc0] sm:$0xff] %vm475, %v5793
        %5831 = vst.msk [vmem:[%s5805 + $0xc8] sm:$0xff] %vm475, %v5794
        %5832 = vst.msk [vmem:[%s5805 + $0xd0] sm:$0xff] %vm475, %v5795
        %5833 = vst.msk [vmem:[%s5805 + $0xd8] sm:$0xff] %vm475, %v5796
        %5834 = vst.msk [vmem:[%s5805 + $0xe0] sm:$0xff] %vm475, %v5797
        %5835 = vst.msk [vmem:[%s5805 + $0xe8] sm:$0xff] %vm475, %v5798
        %5836 = vst.msk [vmem:[%s5805 + $0xf0] sm:$0xff] %vm475, %v5799
        %5837 = vst.msk [vmem:[%s5805 + $0xf8] sm:$0xff] %vm475, %v5800
        %5838 = vst.msk [vmem:[%s5805 + $0x100] sm:$0xff] %vm475, %v5801
        %5839 = vst.msk [vmem:[%s5805 + $0x108] sm:$0xff] %vm475, %v5802
        %5840 = vst.msk [vmem:[%s5805 + $0x110] sm:$0xff] %vm475, %v5803
        %5841 = vst.msk [vmem:[%s5805 + $0x118] sm:$0xff] %vm475, %v5804
        %v5842 = vld [vmem:[%s259 + $0x8] sm:$0xe]
        %v5843 = vld [vmem:[%s259 + $0xc] sm:$0xf]
        %v5844 = vld [vmem:[%s259 + $0x10] sm:$0xf]
        %v5845 = vld [vmem:[%s259 + $0x14] sm:$0xf]
        %v5846 = vld [vmem:[%s259 + $0x18] sm:$0xf]
        %v5847 = vld [vmem:[%s259 + $0x1c] sm:$0xf]
        %v5848 = vld [vmem:[%s259 + $0x20] sm:$0xf]
        %v5849 = vld [vmem:[%s259 + $0x24] sm:$0xf]
        %v5850 = vld [vmem:[%s259 + $0x28] sm:$0xf]
        %v5851 = vld [vmem:[%s259 + $0x2c] sm:$0xf]
        %v5852 = vld [vmem:[%s259 + $0x30] sm:$0xf]
        %v5853 = vld [vmem:[%s259 + $0x34] sm:$0xf]
        %v5854 = vld [vmem:[%s259 + $0x38] sm:$0xf]
        %v5855 = vld [vmem:[%s259 + $0x3c] sm:$0xf]
        %v5856 = vld [vmem:[%s259 + $0x40] sm:$0xf]
        %v5857 = vld [vmem:[%s259 + $0x44] sm:$0xf]
        %v5858 = vld [vmem:[%s259 + $0x48] sm:$0xf]
        %v5859 = vld [vmem:[%s259 + $0x4c] sm:$0xf]
        %v5860 = vld [vmem:[%s259 + $0x50] sm:$0xf]
        %v5861 = vld [vmem:[%s259 + $0x54] sm:$0xf]
        %v5862 = vld [vmem:[%s259 + $0x58] sm:$0xf]
        %v5863 = vld [vmem:[%s259 + $0x5c] sm:$0xf]
        %v5864 = vld [vmem:[%s259 + $0x60] sm:$0xf]
        %v5865 = vld [vmem:[%s259 + $0x64] sm:$0xf]
        %v5866 = vld [vmem:[%s259 + $0x68] sm:$0xf]
        %v5867 = vld [vmem:[%s259 + $0x6c] sm:$0xf]
        %v5868 = vld [vmem:[%s259 + $0x70] sm:$0xf]
        %v5869 = vld [vmem:[%s259 + $0x74] sm:$0xf]
        %v5870 = vld [vmem:[%s259 + $0x78] sm:$0xf]
        %v5871 = vld [vmem:[%s259 + $0x7c] sm:$0xf]
        %v5872 = vld [vmem:[%s259 + $0x80] sm:$0xf]
        %v5873 = vld [vmem:[%s259 + $0x84] sm:$0xf]
        %v5874 = vld [vmem:[%s259 + $0x88] sm:$0xf]
        %v5875 = vld [vmem:[%s259 + $0x8c] sm:$0xf]
        %v5876 = vld [vmem:[%s259 + $0x90] sm:$0xf]
        %v5877 = vld [vmem:[%s259 + $0x94] sm:$0xf]
        %v5878 = vld [vmem:[%s259 + $0x98] sm:$0x3]
        %s5879 = scalar_lea.vmem [#allocation2], 20
        %v5880 = vld [vmem:[%s5879] sm:$0x3]
        %v5881 = vld [vmem:[%s259 + $0x8] sm:$0xc]
        %s5882 = scalar_lea.vmem [#allocation2], 16
        %v5883 = vld [vmem:[%s5882] sm:$0x3]
        %v5921 = vunpack.c.l.b16 %v5881
        %v5922 = vunpack.c.l.b16 %v5843
        %v5923 = vunpack.c.l.b16 %v5844
        %v5924 = vunpack.c.l.b16 %v5845
        %v5925 = vunpack.c.l.b16 %v5846
        %v5926 = vunpack.c.l.b16 %v5847
        %v5927 = vunpack.c.l.b16 %v5848
        %v5928 = vunpack.c.l.b16 %v5849
        %v5929 = vunpack.c.l.b16 %v5850
        %v5930 = vunpack.c.l.b16 %v5851
        %v5931 = vunpack.c.l.b16 %v5852
        %v5932 = vunpack.c.l.b16 %v5853
        %v5933 = vunpack.c.l.b16 %v5854
        %v5934 = vunpack.c.l.b16 %v5855
        %v5935 = vunpack.c.l.b16 %v5856
        %v5936 = vunpack.c.l.b16 %v5857
        %v5937 = vunpack.c.l.b16 %v5858
        %v5938 = vunpack.c.l.b16 %v5859
        %v5939 = vunpack.c.l.b16 %v5860
        %v5940 = vunpack.c.l.b16 %v5861
        %v5941 = vunpack.c.l.b16 %v5862
        %v5942 = vunpack.c.l.b16 %v5863
        %v5943 = vunpack.c.l.b16 %v5864
        %v5944 = vunpack.c.l.b16 %v5865
        %v5945 = vunpack.c.l.b16 %v5866
        %v5946 = vunpack.c.l.b16 %v5867
        %v5947 = vunpack.c.l.b16 %v5868
        %v5948 = vunpack.c.l.b16 %v5869
        %v5949 = vunpack.c.l.b16 %v5870
        %v5950 = vunpack.c.l.b16 %v5871
        %v5951 = vunpack.c.l.b16 %v5872
        %v5952 = vunpack.c.l.b16 %v5873
        %v5953 = vunpack.c.l.b16 %v5874
        %v5954 = vunpack.c.l.b16 %v5875
        %v5955 = vunpack.c.l.b16 %v5876
        %v5956 = vunpack.c.l.b16 %v5877
        %v5957 = vunpack.c.l.b16 %v5878
        %v5958 = vpack.c.b16 %v5922, %v5921
        %v5959 = vpack.c.b16 %v5924, %v5923
        %v5960 = vpack.c.b16 %v5926, %v5925
        %v5961 = vpack.c.b16 %v5928, %v5927
        %v5962 = vpack.c.b16 %v5930, %v5929
        %v5963 = vpack.c.b16 %v5932, %v5931
        %v5964 = vpack.c.b16 %v5934, %v5933
        %v5965 = vpack.c.b16 %v5936, %v5935
        %v5966 = vpack.c.b16 %v5938, %v5937
        %v5967 = vpack.c.b16 %v5940, %v5939
        %v5968 = vpack.c.b16 %v5942, %v5941
        %v5969 = vpack.c.b16 %v5944, %v5943
        %v5970 = vpack.c.b16 %v5946, %v5945
        %v5971 = vpack.c.b16 %v5948, %v5947
        %v5972 = vpack.c.b16 %v5950, %v5949
        %v5973 = vpack.c.b16 %v5952, %v5951
        %v5974 = vpack.c.b16 %v5954, %v5953
        %v5975 = vpack.c.b16 %v5956, %v5955
        %v5976 = vpack.c.b16 %v5957, %v5957
        %v5977 = vrot.slane %v5958, 2
        %v5978 = vrot.slane %v5959, 2
        %v5979 = vsel %vm2455, %v5977, %v5978
        %v5980 = vrot.slane %v5960, 2
        %v5981 = vsel %vm2455, %v5978, %v5980
        %v5982 = vrot.slane %v5961, 2
        %v5983 = vsel %vm2455, %v5980, %v5982
        %v5984 = vrot.slane %v5962, 2
        %v5985 = vsel %vm2455, %v5982, %v5984
        %v5986 = vrot.slane %v5963, 2
        %v5987 = vsel %vm2455, %v5984, %v5986
        %v5988 = vrot.slane %v5964, 2
        %v5989 = vsel %vm2455, %v5986, %v5988
        %v5990 = vrot.slane %v5965, 2
        %v5991 = vsel %vm2455, %v5988, %v5990
        %v5992 = vrot.slane %v5966, 2
        %v5993 = vsel %vm2455, %v5990, %v5992
        %v5994 = vrot.slane %v5967, 2
        %v5995 = vsel %vm2455, %v5992, %v5994
        %v5996 = vrot.slane %v5968, 2
        %v5997 = vsel %vm2455, %v5994, %v5996
        %v5998 = vrot.slane %v5969, 2
        %v5999 = vsel %vm2455, %v5996, %v5998
        %v6000 = vrot.slane %v5970, 2
        %v6001 = vsel %vm2455, %v5998, %v6000
        %v6002 = vrot.slane %v5971, 2
        %v6003 = vsel %vm2455, %v6000, %v6002
        %v6004 = vrot.slane %v5972, 2
        %v6005 = vsel %vm2455, %v6002, %v6004
        %v6006 = vrot.slane %v5973, 2
        %v6007 = vsel %vm2455, %v6004, %v6006
        %v6008 = vrot.slane %v5974, 2
        %v6009 = vsel %vm2455, %v6006, %v6008
        %v6010 = vrot.slane %v5975, 2
        %v6011 = vsel %vm2455, %v6008, %v6010
        %v6012 = vrot.slane %v5976, 2
        %v6013 = vsel %vm2455, %v6010, %v6012
        %v6015 = vsel %vm475, %v5979, 0
        %v6018 = vsel %vm475, %v5981, 0
        %v6021 = vsel %vm475, %v5983, 0
        %v6024 = vsel %vm475, %v5985, 0
        %v6027 = vsel %vm475, %v5987, 0
        %v6030 = vsel %vm475, %v5989, 0
        %v6033 = vsel %vm475, %v5991, 0
        %v6036 = vsel %vm475, %v5993, 0
        %v6039 = vsel %vm475, %v5995, 0
        %v6042 = vsel %vm475, %v5997, 0
        %v6045 = vsel %vm475, %v5999, 0
        %v6048 = vsel %vm475, %v6001, 0
        %v6051 = vsel %vm475, %v6003, 0
        %v6054 = vsel %vm475, %v6005, 0
        %v6057 = vsel %vm475, %v6007, 0
        %v6060 = vsel %vm475, %v6009, 0
        %v6063 = vsel %vm475, %v6011, 0
        %v6066 = vsel %vm475, %v6013, 0
        %v6069 = vsel %vm530, %v5883, 0
        %6071 = vmatprep.subr.bf16.mxu0 0
        %6072 = vmatpush1.bf16.msra.mxu0 0
        %6073 = vmatprep.subr.bf16.mxu0 0
        %6074 = vmatpush1.bf16.msra.mxu0 0
        %6075 = vmatprep.subr.bf16.mxu0 0
        %6076 = vmatpush1.bf16.msra.mxu0 0
        %6077 = vmatprep.subr.bf16.mxu0 0
        %6078 = vmatpush1.bf16.msra.mxu0 0
        %6079 = vmatprep.subr.bf16.mxu0 0
        %6080 = vmatpush1.bf16.msra.mxu0 0
        %6081 = vmatprep.subr.bf16.mxu0 0
        %6082 = vmatpush1.bf16.msra.mxu0 0
        %6083 = vmatprep.subr.bf16.mxu0 0
        %6084 = vmatpush1.bf16.msra.mxu0 0
        %6085 = vmatprep.subr.bf16.mxu0 0
        %6086 = vmatpush1.bf16.msra.mxu0 %v6069
        %6087 = vmatprep.subr.bf16.mxu0 0
        %6088 = vmatpush2.bf16.msra.mxu0 0
        %6089 = vmatprep.subr.bf16.mxu0 0
        %6090 = vmatpush2.bf16.msra.mxu0 0
        %6091 = vmatprep.subr.bf16.mxu0 0
        %6092 = vmatpush2.bf16.msra.mxu0 0
        %6093 = vmatprep.subr.bf16.mxu0 0
        %6094 = vmatpush2.bf16.msra.mxu0 0
        %6095 = vmatprep.subr.bf16.mxu0 0
        %6096 = vmatpush2.bf16.msra.mxu0 0
        %6097 = vmatprep.subr.bf16.mxu0 0
        %6098 = vmatpush2.bf16.msra.mxu0 0
        %6099 = vmatprep.subr.bf16.mxu0 0
        %6100 = vmatpush2.bf16.msra.mxu0 0
        %6101 = vmatprep.subr.bf16.mxu0 0
        %6102 = vmatpush2.bf16.msra.mxu0 0
        %6103 = vmatprep.mubr.bf16.mxu0 0
        %6104 = vmatmul.mubr.bf16.gmra.mxu0 %v6015
        %v6105 = vpop.f32.mrf.mxu0
        %v6106 = vadd.f32 0.0, %v6105
        %v6107 = vpop.f32.mrf.mxu0
        %v6108 = vpop.f32.mrf.mxu0
        %v6109 = vadd.f32 0.0, %v6108
        %v6110 = vpop.f32.mrf.mxu0
        %6111 = vmatprep.mubr.bf16.mxu0 0
        %6112 = vmatmul.mubr.bf16.gmra.mxu0 %v6018
        %v6113 = vpop.f32.mrf.mxu0
        %v6114 = vadd.f32 0.0, %v6113
        %v6115 = vpop.f32.mrf.mxu0
        %v6116 = vpop.f32.mrf.mxu0
        %v6117 = vadd.f32 0.0, %v6116
        %v6118 = vpop.f32.mrf.mxu0
        %6119 = vmatprep.mubr.bf16.mxu0 0
        %6120 = vmatmul.mubr.bf16.gmra.mxu0 %v6021
        %v6121 = vpop.f32.mrf.mxu0
        %v6122 = vadd.f32 0.0, %v6121
        %v6123 = vpop.f32.mrf.mxu0
        %v6124 = vpop.f32.mrf.mxu0
        %v6125 = vadd.f32 0.0, %v6124
        %v6126 = vpop.f32.mrf.mxu0
        %6127 = vmatprep.mubr.bf16.mxu0 0
        %6128 = vmatmul.mubr.bf16.gmra.mxu0 %v6024
        %v6129 = vpop.f32.mrf.mxu0
        %v6130 = vadd.f32 0.0, %v6129
        %v6131 = vpop.f32.mrf.mxu0
        %v6132 = vpop.f32.mrf.mxu0
        %v6133 = vadd.f32 0.0, %v6132
        %v6134 = vpop.f32.mrf.mxu0
        %6135 = vmatprep.mubr.bf16.mxu0 0
        %6136 = vmatmul.mubr.bf16.gmra.mxu0 %v6027
        %v6137 = vpop.f32.mrf.mxu0
        %v6138 = vadd.f32 0.0, %v6137
        %v6139 = vpop.f32.mrf.mxu0
        %v6140 = vpop.f32.mrf.mxu0
        %v6141 = vadd.f32 0.0, %v6140
        %v6142 = vpop.f32.mrf.mxu0
        %6143 = vmatprep.mubr.bf16.mxu0 0
        %6144 = vmatmul.mubr.bf16.gmra.mxu0 %v6030
        %v6145 = vpop.f32.mrf.mxu0
        %v6146 = vadd.f32 0.0, %v6145
        %v6147 = vpop.f32.mrf.mxu0
        %v6148 = vpop.f32.mrf.mxu0
        %v6149 = vadd.f32 0.0, %v6148
        %v6150 = vpop.f32.mrf.mxu0
        %6151 = vmatprep.mubr.bf16.mxu0 0
        %6152 = vmatmul.mubr.bf16.gmra.mxu0 %v6033
        %v6153 = vpop.f32.mrf.mxu0
        %v6154 = vadd.f32 0.0, %v6153
        %v6155 = vpop.f32.mrf.mxu0
        %v6156 = vpop.f32.mrf.mxu0
        %v6157 = vadd.f32 0.0, %v6156
        %v6158 = vpop.f32.mrf.mxu0
        %6159 = vmatprep.mubr.bf16.mxu0 0
        %6160 = vmatmul.mubr.bf16.gmra.mxu0 %v6036
        %v6161 = vpop.f32.mrf.mxu0
        %v6162 = vadd.f32 0.0, %v6161
        %v6163 = vpop.f32.mrf.mxu0
        %v6164 = vpop.f32.mrf.mxu0
        %v6165 = vadd.f32 0.0, %v6164
        %v6166 = vpop.f32.mrf.mxu0
        %6167 = vmatprep.mubr.bf16.mxu0 0
        %6168 = vmatmul.mubr.bf16.gmra.mxu0 %v6039
        %v6169 = vpop.f32.mrf.mxu0
        %v6170 = vadd.f32 0.0, %v6169
        %v6171 = vpop.f32.mrf.mxu0
        %v6172 = vpop.f32.mrf.mxu0
        %v6173 = vadd.f32 0.0, %v6172
        %v6174 = vpop.f32.mrf.mxu0
        %6175 = vmatprep.mubr.bf16.mxu0 0
        %6176 = vmatmul.mubr.bf16.gmra.mxu0 %v6042
        %v6177 = vpop.f32.mrf.mxu0
        %v6178 = vadd.f32 0.0, %v6177
        %v6179 = vpop.f32.mrf.mxu0
        %v6180 = vpop.f32.mrf.mxu0
        %v6181 = vadd.f32 0.0, %v6180
        %v6182 = vpop.f32.mrf.mxu0
        %6183 = vmatprep.mubr.bf16.mxu0 0
        %6184 = vmatmul.mubr.bf16.gmra.mxu0 %v6045
        %v6185 = vpop.f32.mrf.mxu0
        %v6186 = vadd.f32 0.0, %v6185
        %v6187 = vpop.f32.mrf.mxu0
        %v6188 = vpop.f32.mrf.mxu0
        %v6189 = vadd.f32 0.0, %v6188
        %v6190 = vpop.f32.mrf.mxu0
        %6191 = vmatprep.mubr.bf16.mxu0 0
        %6192 = vmatmul.mubr.bf16.gmra.mxu0 %v6048
        %v6193 = vpop.f32.mrf.mxu0
        %v6194 = vadd.f32 0.0, %v6193
        %v6195 = vpop.f32.mrf.mxu0
        %v6196 = vpop.f32.mrf.mxu0
        %v6197 = vadd.f32 0.0, %v6196
        %v6198 = vpop.f32.mrf.mxu0
        %6199 = vmatprep.mubr.bf16.mxu0 0
        %6200 = vmatmul.mubr.bf16.gmra.mxu0 %v6051
        %v6201 = vpop.f32.mrf.mxu0
        %v6202 = vadd.f32 0.0, %v6201
        %v6203 = vpop.f32.mrf.mxu0
        %v6204 = vpop.f32.mrf.mxu0
        %v6205 = vadd.f32 0.0, %v6204
        %v6206 = vpop.f32.mrf.mxu0
        %6207 = vmatprep.mubr.bf16.mxu0 0
        %6208 = vmatmul.mubr.bf16.gmra.mxu0 %v6054
        %v6209 = vpop.f32.mrf.mxu0
        %v6210 = vadd.f32 0.0, %v6209
        %v6211 = vpop.f32.mrf.mxu0
        %v6212 = vpop.f32.mrf.mxu0
        %v6213 = vadd.f32 0.0, %v6212
        %v6214 = vpop.f32.mrf.mxu0
        %6215 = vmatprep.mubr.bf16.mxu0 0
        %6216 = vmatmul.mubr.bf16.gmra.mxu0 %v6057
        %v6217 = vpop.f32.mrf.mxu0
        %v6218 = vadd.f32 0.0, %v6217
        %v6219 = vpop.f32.mrf.mxu0
        %v6220 = vpop.f32.mrf.mxu0
        %v6221 = vadd.f32 0.0, %v6220
        %v6222 = vpop.f32.mrf.mxu0
        %6223 = vmatprep.mubr.bf16.mxu0 0
        %6224 = vmatmul.mubr.bf16.gmra.mxu0 %v6060
        %v6225 = vpop.f32.mrf.mxu0
        %v6226 = vadd.f32 0.0, %v6225
        %v6227 = vpop.f32.mrf.mxu0
        %v6228 = vpop.f32.mrf.mxu0
        %v6229 = vadd.f32 0.0, %v6228
        %v6230 = vpop.f32.mrf.mxu0
        %6231 = vmatprep.mubr.bf16.mxu0 0
        %6232 = vmatmul.mubr.bf16.gmra.mxu0 %v6063
        %v6233 = vpop.f32.mrf.mxu0
        %v6234 = vadd.f32 0.0, %v6233
        %v6235 = vpop.f32.mrf.mxu0
        %v6236 = vpop.f32.mrf.mxu0
        %v6237 = vadd.f32 0.0, %v6236
        %v6238 = vpop.f32.mrf.mxu0
        %6239 = vmatprep.mubr.bf16.mxu0 0
        %6240 = vmatmul.mubr.bf16.gmra.mxu0 %v6066
        %v6241 = vpop.f32.mrf.mxu0
        %v6242 = vadd.f32 0.0, %v6241
        %v6243 = vpop.f32.mrf.mxu0
        %v6244 = vpop.f32.mrf.mxu0
        %v6245 = vadd.f32 0.0, %v6244
        %v6246 = vpop.f32.mrf.mxu0
        %6247 = vdwg.mxu0
        %v6249 = vunpack.c.l.b16 %v5842
        %v6250 = vpack.c.b16 %v5922, %v6249
        %v6252 = vshrl.u32 %v6250, 16
        %v6254 = vrot.slane %v6252, 1
        %v6255 = vshll.u32 %v6250, 16
        %v6257 = vrot.slane %v6255, 2
        %v6258 = vor.u32 %v6254, %v6257
        %v6260 = vshrl.u32 %v5959, 16
        %v6262 = vrot.slane %v6260, 1
        %v6263 = vshll.u32 %v5959, 16
        %v6265 = vrot.slane %v6263, 2
        %v6266 = vor.u32 %v6262, %v6265
        %v6267 = vsel %vm714, %v6258, %v6266
        %v6269 = vshrl.u32 %v5960, 16
        %v6271 = vrot.slane %v6269, 1
        %v6272 = vshll.u32 %v5960, 16
        %v6274 = vrot.slane %v6272, 2
        %v6275 = vor.u32 %v6271, %v6274
        %v6276 = vsel %vm714, %v6266, %v6275
        %v6278 = vshrl.u32 %v5961, 16
        %v6280 = vrot.slane %v6278, 1
        %v6281 = vshll.u32 %v5961, 16
        %v6283 = vrot.slane %v6281, 2
        %v6284 = vor.u32 %v6280, %v6283
        %v6285 = vsel %vm714, %v6275, %v6284
        %v6287 = vshrl.u32 %v5962, 16
        %v6289 = vrot.slane %v6287, 1
        %v6290 = vshll.u32 %v5962, 16
        %v6292 = vrot.slane %v6290, 2
        %v6293 = vor.u32 %v6289, %v6292
        %v6294 = vsel %vm714, %v6284, %v6293
        %v6296 = vshrl.u32 %v5963, 16
        %v6298 = vrot.slane %v6296, 1
        %v6299 = vshll.u32 %v5963, 16
        %v6301 = vrot.slane %v6299, 2
        %v6302 = vor.u32 %v6298, %v6301
        %v6303 = vsel %vm714, %v6293, %v6302
        %v6305 = vshrl.u32 %v5964, 16
        %v6307 = vrot.slane %v6305, 1
        %v6308 = vshll.u32 %v5964, 16
        %v6310 = vrot.slane %v6308, 2
        %v6311 = vor.u32 %v6307, %v6310
        %v6312 = vsel %vm714, %v6302, %v6311
        %v6314 = vshrl.u32 %v5965, 16
        %v6316 = vrot.slane %v6314, 1
        %v6317 = vshll.u32 %v5965, 16
        %v6319 = vrot.slane %v6317, 2
        %v6320 = vor.u32 %v6316, %v6319
        %v6321 = vsel %vm714, %v6311, %v6320
        %v6323 = vshrl.u32 %v5966, 16
        %v6325 = vrot.slane %v6323, 1
        %v6326 = vshll.u32 %v5966, 16
        %v6328 = vrot.slane %v6326, 2
        %v6329 = vor.u32 %v6325, %v6328
        %v6330 = vsel %vm714, %v6320, %v6329
        %v6332 = vshrl.u32 %v5967, 16
        %v6334 = vrot.slane %v6332, 1
        %v6335 = vshll.u32 %v5967, 16
        %v6337 = vrot.slane %v6335, 2
        %v6338 = vor.u32 %v6334, %v6337
        %v6339 = vsel %vm714, %v6329, %v6338
        %v6341 = vshrl.u32 %v5968, 16
        %v6343 = vrot.slane %v6341, 1
        %v6344 = vshll.u32 %v5968, 16
        %v6346 = vrot.slane %v6344, 2
        %v6347 = vor.u32 %v6343, %v6346
        %v6348 = vsel %vm714, %v6338, %v6347
        %v6350 = vshrl.u32 %v5969, 16
        %v6352 = vrot.slane %v6350, 1
        %v6353 = vshll.u32 %v5969, 16
        %v6355 = vrot.slane %v6353, 2
        %v6356 = vor.u32 %v6352, %v6355
        %v6357 = vsel %vm714, %v6347, %v6356
        %v6359 = vshrl.u32 %v5970, 16
        %v6361 = vrot.slane %v6359, 1
        %v6362 = vshll.u32 %v5970, 16
        %v6364 = vrot.slane %v6362, 2
        %v6365 = vor.u32 %v6361, %v6364
        %v6366 = vsel %vm714, %v6356, %v6365
        %v6368 = vshrl.u32 %v5971, 16
        %v6370 = vrot.slane %v6368, 1
        %v6371 = vshll.u32 %v5971, 16
        %v6373 = vrot.slane %v6371, 2
        %v6374 = vor.u32 %v6370, %v6373
        %v6375 = vsel %vm714, %v6365, %v6374
        %v6377 = vshrl.u32 %v5972, 16
        %v6379 = vrot.slane %v6377, 1
        %v6380 = vshll.u32 %v5972, 16
        %v6382 = vrot.slane %v6380, 2
        %v6383 = vor.u32 %v6379, %v6382
        %v6384 = vsel %vm714, %v6374, %v6383
        %v6386 = vshrl.u32 %v5973, 16
        %v6388 = vrot.slane %v6386, 1
        %v6389 = vshll.u32 %v5973, 16
        %v6391 = vrot.slane %v6389, 2
        %v6392 = vor.u32 %v6388, %v6391
        %v6393 = vsel %vm714, %v6383, %v6392
        %v6395 = vshrl.u32 %v5974, 16
        %v6397 = vrot.slane %v6395, 1
        %v6398 = vshll.u32 %v5974, 16
        %v6400 = vrot.slane %v6398, 2
        %v6401 = vor.u32 %v6397, %v6400
        %v6402 = vsel %vm714, %v6392, %v6401
        %v6404 = vshrl.u32 %v5975, 16
        %v6406 = vrot.slane %v6404, 1
        %v6407 = vshll.u32 %v5975, 16
        %v6409 = vrot.slane %v6407, 2
        %v6410 = vor.u32 %v6406, %v6409
        %v6411 = vsel %vm714, %v6401, %v6410
        %v6413 = vshrl.u32 %v5976, 16
        %v6415 = vrot.slane %v6413, 1
        %v6416 = vshll.u32 %v5976, 16
        %v6418 = vrot.slane %v6416, 2
        %v6419 = vor.u32 %v6415, %v6418
        %v6420 = vsel %vm714, %v6410, %v6419
        %v6422 = vsel %vm475, %v6267, 0
        %v6425 = vsel %vm475, %v6276, 0
        %v6428 = vsel %vm475, %v6285, 0
        %v6431 = vsel %vm475, %v6294, 0
        %v6434 = vsel %vm475, %v6303, 0
        %v6437 = vsel %vm475, %v6312, 0
        %v6440 = vsel %vm475, %v6321, 0
        %v6443 = vsel %vm475, %v6330, 0
        %v6446 = vsel %vm475, %v6339, 0
        %v6449 = vsel %vm475, %v6348, 0
        %v6452 = vsel %vm475, %v6357, 0
        %v6455 = vsel %vm475, %v6366, 0
        %v6458 = vsel %vm475, %v6375, 0
        %v6461 = vsel %vm475, %v6384, 0
        %v6464 = vsel %vm475, %v6393, 0
        %v6467 = vsel %vm475, %v6402, 0
        %v6470 = vsel %vm475, %v6411, 0
        %v6473 = vsel %vm475, %v6420, 0
        %v6476 = vsel %vm530, %v5880, 0
        %6478 = vmatprep.subr.bf16.mxu0 0
        %6479 = vmatpush1.bf16.msra.mxu0 0
        %6480 = vmatprep.subr.bf16.mxu0 0
        %6481 = vmatpush1.bf16.msra.mxu0 0
        %6482 = vmatprep.subr.bf16.mxu0 0
        %6483 = vmatpush1.bf16.msra.mxu0 0
        %6484 = vmatprep.subr.bf16.mxu0 0
        %6485 = vmatpush1.bf16.msra.mxu0 0
        %6486 = vmatprep.subr.bf16.mxu0 0
        %6487 = vmatpush1.bf16.msra.mxu0 0
        %6488 = vmatprep.subr.bf16.mxu0 0
        %6489 = vmatpush1.bf16.msra.mxu0 0
        %6490 = vmatprep.subr.bf16.mxu0 0
        %6491 = vmatpush1.bf16.msra.mxu0 0
        %6492 = vmatprep.subr.bf16.mxu0 0
        %6493 = vmatpush1.bf16.msra.mxu0 %v6476
        %6494 = vmatprep.subr.bf16.mxu0 0
        %6495 = vmatpush2.bf16.msra.mxu0 0
        %6496 = vmatprep.subr.bf16.mxu0 0
        %6497 = vmatpush2.bf16.msra.mxu0 0
        %6498 = vmatprep.subr.bf16.mxu0 0
        %6499 = vmatpush2.bf16.msra.mxu0 0
        %6500 = vmatprep.subr.bf16.mxu0 0
        %6501 = vmatpush2.bf16.msra.mxu0 0
        %6502 = vmatprep.subr.bf16.mxu0 0
        %6503 = vmatpush2.bf16.msra.mxu0 0
        %6504 = vmatprep.subr.bf16.mxu0 0
        %6505 = vmatpush2.bf16.msra.mxu0 0
        %6506 = vmatprep.subr.bf16.mxu0 0
        %6507 = vmatpush2.bf16.msra.mxu0 0
        %6508 = vmatprep.subr.bf16.mxu0 0
        %6509 = vmatpush2.bf16.msra.mxu0 0
        %6510 = vmatprep.mubr.bf16.mxu0 0
        %6511 = vmatmul.mubr.bf16.gmra.mxu0 %v6422
        %v6512 = vpop.f32.mrf.mxu0
        %v6513 = vadd.f32 %v6106, %v6512
        %v6514 = vpop.f32.mrf.mxu0
        %v6515 = vpop.f32.mrf.mxu0
        %v6516 = vadd.f32 %v6109, %v6515
        %v6517 = vpop.f32.mrf.mxu0
        %6518 = vmatprep.mubr.bf16.mxu0 0
        %6519 = vmatmul.mubr.bf16.gmra.mxu0 %v6425
        %v6520 = vpop.f32.mrf.mxu0
        %v6521 = vadd.f32 %v6114, %v6520
        %v6522 = vpop.f32.mrf.mxu0
        %v6523 = vpop.f32.mrf.mxu0
        %v6524 = vadd.f32 %v6117, %v6523
        %v6525 = vpop.f32.mrf.mxu0
        %6526 = vmatprep.mubr.bf16.mxu0 0
        %6527 = vmatmul.mubr.bf16.gmra.mxu0 %v6428
        %v6528 = vpop.f32.mrf.mxu0
        %v6529 = vadd.f32 %v6122, %v6528
        %v6530 = vpop.f32.mrf.mxu0
        %v6531 = vpop.f32.mrf.mxu0
        %v6532 = vadd.f32 %v6125, %v6531
        %v6533 = vpop.f32.mrf.mxu0
        %6534 = vmatprep.mubr.bf16.mxu0 0
        %6535 = vmatmul.mubr.bf16.gmra.mxu0 %v6431
        %v6536 = vpop.f32.mrf.mxu0
        %v6537 = vadd.f32 %v6130, %v6536
        %v6538 = vpop.f32.mrf.mxu0
        %v6539 = vpop.f32.mrf.mxu0
        %v6540 = vadd.f32 %v6133, %v6539
        %v6541 = vpop.f32.mrf.mxu0
        %6542 = vmatprep.mubr.bf16.mxu0 0
        %6543 = vmatmul.mubr.bf16.gmra.mxu0 %v6434
        %v6544 = vpop.f32.mrf.mxu0
        %v6545 = vadd.f32 %v6138, %v6544
        %v6546 = vpop.f32.mrf.mxu0
        %v6547 = vpop.f32.mrf.mxu0
        %v6548 = vadd.f32 %v6141, %v6547
        %v6549 = vpop.f32.mrf.mxu0
        %6550 = vmatprep.mubr.bf16.mxu0 0
        %6551 = vmatmul.mubr.bf16.gmra.mxu0 %v6437
        %v6552 = vpop.f32.mrf.mxu0
        %v6553 = vadd.f32 %v6146, %v6552
        %v6554 = vpop.f32.mrf.mxu0
        %v6555 = vpop.f32.mrf.mxu0
        %v6556 = vadd.f32 %v6149, %v6555
        %v6557 = vpop.f32.mrf.mxu0
        %6558 = vmatprep.mubr.bf16.mxu0 0
        %6559 = vmatmul.mubr.bf16.gmra.mxu0 %v6440
        %v6560 = vpop.f32.mrf.mxu0
        %v6561 = vadd.f32 %v6154, %v6560
        %v6562 = vpop.f32.mrf.mxu0
        %v6563 = vpop.f32.mrf.mxu0
        %v6564 = vadd.f32 %v6157, %v6563
        %v6565 = vpop.f32.mrf.mxu0
        %6566 = vmatprep.mubr.bf16.mxu0 0
        %6567 = vmatmul.mubr.bf16.gmra.mxu0 %v6443
        %v6568 = vpop.f32.mrf.mxu0
        %v6569 = vadd.f32 %v6162, %v6568
        %v6570 = vpop.f32.mrf.mxu0
        %v6571 = vpop.f32.mrf.mxu0
        %v6572 = vadd.f32 %v6165, %v6571
        %v6573 = vpop.f32.mrf.mxu0
        %6574 = vmatprep.mubr.bf16.mxu0 0
        %6575 = vmatmul.mubr.bf16.gmra.mxu0 %v6446
        %v6576 = vpop.f32.mrf.mxu0
        %v6577 = vadd.f32 %v6170, %v6576
        %v6578 = vpop.f32.mrf.mxu0
        %v6579 = vpop.f32.mrf.mxu0
        %v6580 = vadd.f32 %v6173, %v6579
        %v6581 = vpop.f32.mrf.mxu0
        %6582 = vmatprep.mubr.bf16.mxu0 0
        %6583 = vmatmul.mubr.bf16.gmra.mxu0 %v6449
        %v6584 = vpop.f32.mrf.mxu0
        %v6585 = vadd.f32 %v6178, %v6584
        %v6586 = vpop.f32.mrf.mxu0
        %v6587 = vpop.f32.mrf.mxu0
        %v6588 = vadd.f32 %v6181, %v6587
        %v6589 = vpop.f32.mrf.mxu0
        %6590 = vmatprep.mubr.bf16.mxu0 0
        %6591 = vmatmul.mubr.bf16.gmra.mxu0 %v6452
        %v6592 = vpop.f32.mrf.mxu0
        %v6593 = vadd.f32 %v6186, %v6592
        %v6594 = vpop.f32.mrf.mxu0
        %v6595 = vpop.f32.mrf.mxu0
        %v6596 = vadd.f32 %v6189, %v6595
        %v6597 = vpop.f32.mrf.mxu0
        %6598 = vmatprep.mubr.bf16.mxu0 0
        %6599 = vmatmul.mubr.bf16.gmra.mxu0 %v6455
        %v6600 = vpop.f32.mrf.mxu0
        %v6601 = vadd.f32 %v6194, %v6600
        %v6602 = vpop.f32.mrf.mxu0
        %v6603 = vpop.f32.mrf.mxu0
        %v6604 = vadd.f32 %v6197, %v6603
        %v6605 = vpop.f32.mrf.mxu0
        %6606 = vmatprep.mubr.bf16.mxu0 0
        %6607 = vmatmul.mubr.bf16.gmra.mxu0 %v6458
        %v6608 = vpop.f32.mrf.mxu0
        %v6609 = vadd.f32 %v6202, %v6608
        %v6610 = vpop.f32.mrf.mxu0
        %v6611 = vpop.f32.mrf.mxu0
        %v6612 = vadd.f32 %v6205, %v6611
        %v6613 = vpop.f32.mrf.mxu0
        %6614 = vmatprep.mubr.bf16.mxu0 0
        %6615 = vmatmul.mubr.bf16.gmra.mxu0 %v6461
        %v6616 = vpop.f32.mrf.mxu0
        %v6617 = vadd.f32 %v6210, %v6616
        %v6618 = vpop.f32.mrf.mxu0
        %v6619 = vpop.f32.mrf.mxu0
        %v6620 = vadd.f32 %v6213, %v6619
        %v6621 = vpop.f32.mrf.mxu0
        %6622 = vmatprep.mubr.bf16.mxu0 0
        %6623 = vmatmul.mubr.bf16.gmra.mxu0 %v6464
        %v6624 = vpop.f32.mrf.mxu0
        %v6625 = vadd.f32 %v6218, %v6624
        %v6626 = vpop.f32.mrf.mxu0
        %v6627 = vpop.f32.mrf.mxu0
        %v6628 = vadd.f32 %v6221, %v6627
        %v6629 = vpop.f32.mrf.mxu0
        %6630 = vmatprep.mubr.bf16.mxu0 0
        %6631 = vmatmul.mubr.bf16.gmra.mxu0 %v6467
        %v6632 = vpop.f32.mrf.mxu0
        %v6633 = vadd.f32 %v6226, %v6632
        %v6634 = vpop.f32.mrf.mxu0
        %v6635 = vpop.f32.mrf.mxu0
        %v6636 = vadd.f32 %v6229, %v6635
        %v6637 = vpop.f32.mrf.mxu0
        %6638 = vmatprep.mubr.bf16.mxu0 0
        %6639 = vmatmul.mubr.bf16.gmra.mxu0 %v6470
        %v6640 = vpop.f32.mrf.mxu0
        %v6641 = vadd.f32 %v6234, %v6640
        %v6642 = vpop.f32.mrf.mxu0
        %v6643 = vpop.f32.mrf.mxu0
        %v6644 = vadd.f32 %v6237, %v6643
        %v6645 = vpop.f32.mrf.mxu0
        %6646 = vmatprep.mubr.bf16.mxu0 0
        %6647 = vmatmul.mubr.bf16.gmra.mxu0 %v6473
        %v6648 = vpop.f32.mrf.mxu0
        %v6649 = vadd.f32 %v6242, %v6648
        %v6650 = vpop.f32.mrf.mxu0
        %v6651 = vpop.f32.mrf.mxu0
        %v6652 = vadd.f32 %v6245, %v6651
        %v6653 = vpop.f32.mrf.mxu0
        %6654 = vdwg.mxu0
        %v6655 = vld [vmem:[%s259 + $0x10] sm:$0xc]
        %v6656 = vld [vmem:[%s259 + $0x14] sm:$0xf]
        %v6657 = vld [vmem:[%s259 + $0x18] sm:$0xf]
        %v6658 = vld [vmem:[%s259 + $0x1c] sm:$0xf]
        %v6659 = vld [vmem:[%s259 + $0x20] sm:$0xf]
        %v6660 = vld [vmem:[%s259 + $0x24] sm:$0xf]
        %v6661 = vld [vmem:[%s259 + $0x28] sm:$0xf]
        %v6662 = vld [vmem:[%s259 + $0x2c] sm:$0xf]
        %v6663 = vld [vmem:[%s259 + $0x30] sm:$0xf]
        %v6664 = vld [vmem:[%s259 + $0x34] sm:$0xf]
        %v6665 = vld [vmem:[%s259 + $0x38] sm:$0xf]
        %v6666 = vld [vmem:[%s259 + $0x3c] sm:$0xf]
        %v6667 = vld [vmem:[%s259 + $0x40] sm:$0xf]
        %v6668 = vld [vmem:[%s259 + $0x44] sm:$0xf]
        %v6669 = vld [vmem:[%s259 + $0x48] sm:$0xf]
        %v6670 = vld [vmem:[%s259 + $0x4c] sm:$0xf]
        %v6671 = vld [vmem:[%s259 + $0x50] sm:$0xf]
        %v6672 = vld [vmem:[%s259 + $0x54] sm:$0xf]
        %v6673 = vld [vmem:[%s259 + $0x58] sm:$0xf]
        %v6674 = vld [vmem:[%s259 + $0x5c] sm:$0xf]
        %v6675 = vld [vmem:[%s259 + $0x60] sm:$0xf]
        %v6676 = vld [vmem:[%s259 + $0x64] sm:$0xf]
        %v6677 = vld [vmem:[%s259 + $0x68] sm:$0xf]
        %v6678 = vld [vmem:[%s259 + $0x6c] sm:$0xf]
        %v6679 = vld [vmem:[%s259 + $0x70] sm:$0xf]
        %v6680 = vld [vmem:[%s259 + $0x74] sm:$0xf]
        %v6681 = vld [vmem:[%s259 + $0x78] sm:$0xf]
        %v6682 = vld [vmem:[%s259 + $0x7c] sm:$0xf]
        %v6683 = vld [vmem:[%s259 + $0x80] sm:$0xf]
        %v6684 = vld [vmem:[%s259 + $0x84] sm:$0xf]
        %v6685 = vld [vmem:[%s259 + $0x88] sm:$0xf]
        %v6686 = vld [vmem:[%s259 + $0x8c] sm:$0xf]
        %v6687 = vld [vmem:[%s259 + $0x90] sm:$0xf]
        %v6688 = vld [vmem:[%s259 + $0x94] sm:$0xf]
        %v6689 = vld [vmem:[%s259 + $0x98] sm:$0xf]
        %v6690 = vld [vmem:[%s259 + $0x9c] sm:$0xf]
        %v6691 = vld [vmem:[%s259 + $0xa0] sm:$0x7]
        %s6692 = scalar_lea.vmem [#allocation2], 4
        %v6693 = vld [vmem:[%s6692] sm:$0x3]
        %v6731 = vunpack.c.l.b16 %v6655
        %v6732 = vunpack.c.l.b16 %v6656
        %v6733 = vunpack.c.l.b16 %v6657
        %v6734 = vunpack.c.l.b16 %v6658
        %v6735 = vunpack.c.l.b16 %v6659
        %v6736 = vunpack.c.l.b16 %v6660
        %v6737 = vunpack.c.l.b16 %v6661
        %v6738 = vunpack.c.l.b16 %v6662
        %v6739 = vunpack.c.l.b16 %v6663
        %v6740 = vunpack.c.l.b16 %v6664
        %v6741 = vunpack.c.l.b16 %v6665
        %v6742 = vunpack.c.l.b16 %v6666
        %v6743 = vunpack.c.l.b16 %v6667
        %v6744 = vunpack.c.l.b16 %v6668
        %v6745 = vunpack.c.l.b16 %v6669
        %v6746 = vunpack.c.l.b16 %v6670
        %v6747 = vunpack.c.l.b16 %v6671
        %v6748 = vunpack.c.l.b16 %v6672
        %v6749 = vunpack.c.l.b16 %v6673
        %v6750 = vunpack.c.l.b16 %v6674
        %v6751 = vunpack.c.l.b16 %v6675
        %v6752 = vunpack.c.l.b16 %v6676
        %v6753 = vunpack.c.l.b16 %v6677
        %v6754 = vunpack.c.l.b16 %v6678
        %v6755 = vunpack.c.l.b16 %v6679
        %v6756 = vunpack.c.l.b16 %v6680
        %v6757 = vunpack.c.l.b16 %v6681
        %v6758 = vunpack.c.l.b16 %v6682
        %v6759 = vunpack.c.l.b16 %v6683
        %v6760 = vunpack.c.l.b16 %v6684
        %v6761 = vunpack.c.l.b16 %v6685
        %v6762 = vunpack.c.l.b16 %v6686
        %v6763 = vunpack.c.l.b16 %v6687
        %v6764 = vunpack.c.l.b16 %v6688
        %v6765 = vunpack.c.l.b16 %v6689
        %v6766 = vunpack.c.l.b16 %v6690
        %v6767 = vunpack.c.l.b16 %v6691
        %v6768 = vpack.c.b16 %v6732, %v6731
        %v6769 = vpack.c.b16 %v6734, %v6733
        %v6770 = vpack.c.b16 %v6736, %v6735
        %v6771 = vpack.c.b16 %v6738, %v6737
        %v6772 = vpack.c.b16 %v6740, %v6739
        %v6773 = vpack.c.b16 %v6742, %v6741
        %v6774 = vpack.c.b16 %v6744, %v6743
        %v6775 = vpack.c.b16 %v6746, %v6745
        %v6776 = vpack.c.b16 %v6748, %v6747
        %v6777 = vpack.c.b16 %v6750, %v6749
        %v6778 = vpack.c.b16 %v6752, %v6751
        %v6779 = vpack.c.b16 %v6754, %v6753
        %v6780 = vpack.c.b16 %v6756, %v6755
        %v6781 = vpack.c.b16 %v6758, %v6757
        %v6782 = vpack.c.b16 %v6760, %v6759
        %v6783 = vpack.c.b16 %v6762, %v6761
        %v6784 = vpack.c.b16 %v6764, %v6763
        %v6785 = vpack.c.b16 %v6766, %v6765
        %v6786 = vpack.c.b16 %v6767, %v6767
        %v6788 = vshrl.u32 %v6768, 16
        %v6790 = vrot.slane %v6788, 2
        %v6791 = vshll.u32 %v6768, 16
        %v6793 = vrot.slane %v6791, 3
        %v6794 = vor.u32 %v6790, %v6793
        %v6796 = vshrl.u32 %v6769, 16
        %v6798 = vrot.slane %v6796, 2
        %v6799 = vshll.u32 %v6769, 16
        %v6801 = vrot.slane %v6799, 3
        %v6802 = vor.u32 %v6798, %v6801
        %v6803 = vsel %vm5015, %v6794, %v6802
        %v6805 = vshrl.u32 %v6770, 16
        %v6807 = vrot.slane %v6805, 2
        %v6808 = vshll.u32 %v6770, 16
        %v6810 = vrot.slane %v6808, 3
        %v6811 = vor.u32 %v6807, %v6810
        %v6812 = vsel %vm5015, %v6802, %v6811
        %v6814 = vshrl.u32 %v6771, 16
        %v6816 = vrot.slane %v6814, 2
        %v6817 = vshll.u32 %v6771, 16
        %v6819 = vrot.slane %v6817, 3
        %v6820 = vor.u32 %v6816, %v6819
        %v6821 = vsel %vm5015, %v6811, %v6820
        %v6823 = vshrl.u32 %v6772, 16
        %v6825 = vrot.slane %v6823, 2
        %v6826 = vshll.u32 %v6772, 16
        %v6828 = vrot.slane %v6826, 3
        %v6829 = vor.u32 %v6825, %v6828
        %v6830 = vsel %vm5015, %v6820, %v6829
        %v6832 = vshrl.u32 %v6773, 16
        %v6834 = vrot.slane %v6832, 2
        %v6835 = vshll.u32 %v6773, 16
        %v6837 = vrot.slane %v6835, 3
        %v6838 = vor.u32 %v6834, %v6837
        %v6839 = vsel %vm5015, %v6829, %v6838
        %v6841 = vshrl.u32 %v6774, 16
        %v6843 = vrot.slane %v6841, 2
        %v6844 = vshll.u32 %v6774, 16
        %v6846 = vrot.slane %v6844, 3
        %v6847 = vor.u32 %v6843, %v6846
        %v6848 = vsel %vm5015, %v6838, %v6847
        %v6850 = vshrl.u32 %v6775, 16
        %v6852 = vrot.slane %v6850, 2
        %v6853 = vshll.u32 %v6775, 16
        %v6855 = vrot.slane %v6853, 3
        %v6856 = vor.u32 %v6852, %v6855
        %v6857 = vsel %vm5015, %v6847, %v6856
        %v6859 = vshrl.u32 %v6776, 16
        %v6861 = vrot.slane %v6859, 2
        %v6862 = vshll.u32 %v6776, 16
        %v6864 = vrot.slane %v6862, 3
        %v6865 = vor.u32 %v6861, %v6864
        %v6866 = vsel %vm5015, %v6856, %v6865
        %v6868 = vshrl.u32 %v6777, 16
        %v6870 = vrot.slane %v6868, 2
        %v6871 = vshll.u32 %v6777, 16
        %v6873 = vrot.slane %v6871, 3
        %v6874 = vor.u32 %v6870, %v6873
        %v6875 = vsel %vm5015, %v6865, %v6874
        %v6877 = vshrl.u32 %v6778, 16
        %v6879 = vrot.slane %v6877, 2
        %v6880 = vshll.u32 %v6778, 16
        %v6882 = vrot.slane %v6880, 3
        %v6883 = vor.u32 %v6879, %v6882
        %v6884 = vsel %vm5015, %v6874, %v6883
        %v6886 = vshrl.u32 %v6779, 16
        %v6888 = vrot.slane %v6886, 2
        %v6889 = vshll.u32 %v6779, 16
        %v6891 = vrot.slane %v6889, 3
        %v6892 = vor.u32 %v6888, %v6891
        %v6893 = vsel %vm5015, %v6883, %v6892
        %v6895 = vshrl.u32 %v6780, 16
        %v6897 = vrot.slane %v6895, 2
        %v6898 = vshll.u32 %v6780, 16
        %v6900 = vrot.slane %v6898, 3
        %v6901 = vor.u32 %v6897, %v6900
        %v6902 = vsel %vm5015, %v6892, %v6901
        %v6904 = vshrl.u32 %v6781, 16
        %v6906 = vrot.slane %v6904, 2
        %v6907 = vshll.u32 %v6781, 16
        %v6909 = vrot.slane %v6907, 3
        %v6910 = vor.u32 %v6906, %v6909
        %v6911 = vsel %vm5015, %v6901, %v6910
        %v6913 = vshrl.u32 %v6782, 16
        %v6915 = vrot.slane %v6913, 2
        %v6916 = vshll.u32 %v6782, 16
        %v6918 = vrot.slane %v6916, 3
        %v6919 = vor.u32 %v6915, %v6918
        %v6920 = vsel %vm5015, %v6910, %v6919
        %v6922 = vshrl.u32 %v6783, 16
        %v6924 = vrot.slane %v6922, 2
        %v6925 = vshll.u32 %v6783, 16
        %v6927 = vrot.slane %v6925, 3
        %v6928 = vor.u32 %v6924, %v6927
        %v6929 = vsel %vm5015, %v6919, %v6928
        %v6931 = vshrl.u32 %v6784, 16
        %v6933 = vrot.slane %v6931, 2
        %v6934 = vshll.u32 %v6784, 16
        %v6936 = vrot.slane %v6934, 3
        %v6937 = vor.u32 %v6933, %v6936
        %v6938 = vsel %vm5015, %v6928, %v6937
        %v6940 = vshrl.u32 %v6785, 16
        %v6942 = vrot.slane %v6940, 2
        %v6943 = vshll.u32 %v6785, 16
        %v6945 = vrot.slane %v6943, 3
        %v6946 = vor.u32 %v6942, %v6945
        %v6947 = vsel %vm5015, %v6937, %v6946
        %v6949 = vshrl.u32 %v6786, 16
        %v6951 = vrot.slane %v6949, 2
        %v6952 = vshll.u32 %v6786, 16
        %v6954 = vrot.slane %v6952, 3
        %v6955 = vor.u32 %v6951, %v6954
        %v6956 = vsel %vm5015, %v6946, %v6955
        %v6958 = vsel %vm475, %v6803, 0
        %v6961 = vsel %vm475, %v6812, 0
        %v6964 = vsel %vm475, %v6821, 0
        %v6967 = vsel %vm475, %v6830, 0
        %v6970 = vsel %vm475, %v6839, 0
        %v6973 = vsel %vm475, %v6848, 0
        %v6976 = vsel %vm475, %v6857, 0
        %v6979 = vsel %vm475, %v6866, 0
        %v6982 = vsel %vm475, %v6875, 0
        %v6985 = vsel %vm475, %v6884, 0
        %v6988 = vsel %vm475, %v6893, 0
        %v6991 = vsel %vm475, %v6902, 0
        %v6994 = vsel %vm475, %v6911, 0
        %v6997 = vsel %vm475, %v6920, 0
        %v7000 = vsel %vm475, %v6929, 0
        %v7003 = vsel %vm475, %v6938, 0
        %v7006 = vsel %vm475, %v6947, 0
        %v7009 = vsel %vm475, %v6956, 0
        %v7012 = vsel %vm530, %v6693, 0
        %7014 = vmatprep.subr.bf16.mxu0 0
        %7015 = vmatpush1.bf16.msra.mxu0 0
        %7016 = vmatprep.subr.bf16.mxu0 0
        %7017 = vmatpush1.bf16.msra.mxu0 0
        %7018 = vmatprep.subr.bf16.mxu0 0
        %7019 = vmatpush1.bf16.msra.mxu0 0
        %7020 = vmatprep.subr.bf16.mxu0 0
        %7021 = vmatpush1.bf16.msra.mxu0 0
        %7022 = vmatprep.subr.bf16.mxu0 0
        %7023 = vmatpush1.bf16.msra.mxu0 0
        %7024 = vmatprep.subr.bf16.mxu0 0
        %7025 = vmatpush1.bf16.msra.mxu0 0
        %7026 = vmatprep.subr.bf16.mxu0 0
        %7027 = vmatpush1.bf16.msra.mxu0 0
        %7028 = vmatprep.subr.bf16.mxu0 0
        %7029 = vmatpush1.bf16.msra.mxu0 %v7012
        %7030 = vmatprep.subr.bf16.mxu0 0
        %7031 = vmatpush2.bf16.msra.mxu0 0
        %7032 = vmatprep.subr.bf16.mxu0 0
        %7033 = vmatpush2.bf16.msra.mxu0 0
        %7034 = vmatprep.subr.bf16.mxu0 0
        %7035 = vmatpush2.bf16.msra.mxu0 0
        %7036 = vmatprep.subr.bf16.mxu0 0
        %7037 = vmatpush2.bf16.msra.mxu0 0
        %7038 = vmatprep.subr.bf16.mxu0 0
        %7039 = vmatpush2.bf16.msra.mxu0 0
        %7040 = vmatprep.subr.bf16.mxu0 0
        %7041 = vmatpush2.bf16.msra.mxu0 0
        %7042 = vmatprep.subr.bf16.mxu0 0
        %7043 = vmatpush2.bf16.msra.mxu0 0
        %7044 = vmatprep.subr.bf16.mxu0 0
        %7045 = vmatpush2.bf16.msra.mxu0 0
        %7046 = vmatprep.mubr.bf16.mxu0 0
        %7047 = vmatmul.mubr.bf16.gmra.mxu0 %v6958
        %v7048 = vpop.f32.mrf.mxu0
        %v7049 = vadd.f32 0.0, %v7048
        %v7050 = vpop.f32.mrf.mxu0
        %v7051 = vpop.f32.mrf.mxu0
        %v7052 = vadd.f32 0.0, %v7051
        %v7053 = vpop.f32.mrf.mxu0
        %7054 = vmatprep.mubr.bf16.mxu0 0
        %7055 = vmatmul.mubr.bf16.gmra.mxu0 %v6961
        %v7056 = vpop.f32.mrf.mxu0
        %v7057 = vadd.f32 0.0, %v7056
        %v7058 = vpop.f32.mrf.mxu0
        %v7059 = vpop.f32.mrf.mxu0
        %v7060 = vadd.f32 0.0, %v7059
        %v7061 = vpop.f32.mrf.mxu0
        %7062 = vmatprep.mubr.bf16.mxu0 0
        %7063 = vmatmul.mubr.bf16.gmra.mxu0 %v6964
        %v7064 = vpop.f32.mrf.mxu0
        %v7065 = vadd.f32 0.0, %v7064
        %v7066 = vpop.f32.mrf.mxu0
        %v7067 = vpop.f32.mrf.mxu0
        %v7068 = vadd.f32 0.0, %v7067
        %v7069 = vpop.f32.mrf.mxu0
        %7070 = vmatprep.mubr.bf16.mxu0 0
        %7071 = vmatmul.mubr.bf16.gmra.mxu0 %v6967
        %v7072 = vpop.f32.mrf.mxu0
        %v7073 = vadd.f32 0.0, %v7072
        %v7074 = vpop.f32.mrf.mxu0
        %v7075 = vpop.f32.mrf.mxu0
        %v7076 = vadd.f32 0.0, %v7075
        %v7077 = vpop.f32.mrf.mxu0
        %7078 = vmatprep.mubr.bf16.mxu0 0
        %7079 = vmatmul.mubr.bf16.gmra.mxu0 %v6970
        %v7080 = vpop.f32.mrf.mxu0
        %v7081 = vadd.f32 0.0, %v7080
        %v7082 = vpop.f32.mrf.mxu0
        %v7083 = vpop.f32.mrf.mxu0
        %v7084 = vadd.f32 0.0, %v7083
        %v7085 = vpop.f32.mrf.mxu0
        %7086 = vmatprep.mubr.bf16.mxu0 0
        %7087 = vmatmul.mubr.bf16.gmra.mxu0 %v6973
        %v7088 = vpop.f32.mrf.mxu0
        %v7089 = vadd.f32 0.0, %v7088
        %v7090 = vpop.f32.mrf.mxu0
        %v7091 = vpop.f32.mrf.mxu0
        %v7092 = vadd.f32 0.0, %v7091
        %v7093 = vpop.f32.mrf.mxu0
        %7094 = vmatprep.mubr.bf16.mxu0 0
        %7095 = vmatmul.mubr.bf16.gmra.mxu0 %v6976
        %v7096 = vpop.f32.mrf.mxu0
        %v7097 = vadd.f32 0.0, %v7096
        %v7098 = vpop.f32.mrf.mxu0
        %v7099 = vpop.f32.mrf.mxu0
        %v7100 = vadd.f32 0.0, %v7099
        %v7101 = vpop.f32.mrf.mxu0
        %7102 = vmatprep.mubr.bf16.mxu0 0
        %7103 = vmatmul.mubr.bf16.gmra.mxu0 %v6979
        %v7104 = vpop.f32.mrf.mxu0
        %v7105 = vadd.f32 0.0, %v7104
        %v7106 = vpop.f32.mrf.mxu0
        %v7107 = vpop.f32.mrf.mxu0
        %v7108 = vadd.f32 0.0, %v7107
        %v7109 = vpop.f32.mrf.mxu0
        %7110 = vmatprep.mubr.bf16.mxu0 0
        %7111 = vmatmul.mubr.bf16.gmra.mxu0 %v6982
        %v7112 = vpop.f32.mrf.mxu0
        %v7113 = vadd.f32 0.0, %v7112
        %v7114 = vpop.f32.mrf.mxu0
        %v7115 = vpop.f32.mrf.mxu0
        %v7116 = vadd.f32 0.0, %v7115
        %v7117 = vpop.f32.mrf.mxu0
        %7118 = vmatprep.mubr.bf16.mxu0 0
        %7119 = vmatmul.mubr.bf16.gmra.mxu0 %v6985
        %v7120 = vpop.f32.mrf.mxu0
        %v7121 = vadd.f32 0.0, %v7120
        %v7122 = vpop.f32.mrf.mxu0
        %v7123 = vpop.f32.mrf.mxu0
        %v7124 = vadd.f32 0.0, %v7123
        %v7125 = vpop.f32.mrf.mxu0
        %7126 = vmatprep.mubr.bf16.mxu0 0
        %7127 = vmatmul.mubr.bf16.gmra.mxu0 %v6988
        %v7128 = vpop.f32.mrf.mxu0
        %v7129 = vadd.f32 0.0, %v7128
        %v7130 = vpop.f32.mrf.mxu0
        %v7131 = vpop.f32.mrf.mxu0
        %v7132 = vadd.f32 0.0, %v7131
        %v7133 = vpop.f32.mrf.mxu0
        %7134 = vmatprep.mubr.bf16.mxu0 0
        %7135 = vmatmul.mubr.bf16.gmra.mxu0 %v6991
        %v7136 = vpop.f32.mrf.mxu0
        %v7137 = vadd.f32 0.0, %v7136
        %v7138 = vpop.f32.mrf.mxu0
        %v7139 = vpop.f32.mrf.mxu0
        %v7140 = vadd.f32 0.0, %v7139
        %v7141 = vpop.f32.mrf.mxu0
        %7142 = vmatprep.mubr.bf16.mxu0 0
        %7143 = vmatmul.mubr.bf16.gmra.mxu0 %v6994
        %v7144 = vpop.f32.mrf.mxu0
        %v7145 = vadd.f32 0.0, %v7144
        %v7146 = vpop.f32.mrf.mxu0
        %v7147 = vpop.f32.mrf.mxu0
        %v7148 = vadd.f32 0.0, %v7147
        %v7149 = vpop.f32.mrf.mxu0
        %7150 = vmatprep.mubr.bf16.mxu0 0
        %7151 = vmatmul.mubr.bf16.gmra.mxu0 %v6997
        %v7152 = vpop.f32.mrf.mxu0
        %v7153 = vadd.f32 0.0, %v7152
        %v7154 = vpop.f32.mrf.mxu0
        %v7155 = vpop.f32.mrf.mxu0
        %v7156 = vadd.f32 0.0, %v7155
        %v7157 = vpop.f32.mrf.mxu0
        %7158 = vmatprep.mubr.bf16.mxu0 0
        %7159 = vmatmul.mubr.bf16.gmra.mxu0 %v7000
        %v7160 = vpop.f32.mrf.mxu0
        %v7161 = vadd.f32 0.0, %v7160
        %v7162 = vpop.f32.mrf.mxu0
        %v7163 = vpop.f32.mrf.mxu0
        %v7164 = vadd.f32 0.0, %v7163
        %v7165 = vpop.f32.mrf.mxu0
        %7166 = vmatprep.mubr.bf16.mxu0 0
        %7167 = vmatmul.mubr.bf16.gmra.mxu0 %v7003
        %v7168 = vpop.f32.mrf.mxu0
        %v7169 = vadd.f32 0.0, %v7168
        %v7170 = vpop.f32.mrf.mxu0
        %v7171 = vpop.f32.mrf.mxu0
        %v7172 = vadd.f32 0.0, %v7171
        %v7173 = vpop.f32.mrf.mxu0
        %7174 = vmatprep.mubr.bf16.mxu0 0
        %7175 = vmatmul.mubr.bf16.gmra.mxu0 %v7006
        %v7176 = vpop.f32.mrf.mxu0
        %v7177 = vadd.f32 0.0, %v7176
        %v7178 = vpop.f32.mrf.mxu0
        %v7179 = vpop.f32.mrf.mxu0
        %v7180 = vadd.f32 0.0, %v7179
        %v7181 = vpop.f32.mrf.mxu0
        %7182 = vmatprep.mubr.bf16.mxu0 0
        %7183 = vmatmul.mubr.bf16.gmra.mxu0 %v7009
        %v7184 = vpop.f32.mrf.mxu0
        %v7185 = vadd.f32 0.0, %v7184
        %v7186 = vpop.f32.mrf.mxu0
        %v7187 = vpop.f32.mrf.mxu0
        %v7188 = vadd.f32 0.0, %v7187
        %v7189 = vpop.f32.mrf.mxu0
        %7190 = vdwg.mxu0
        %v7191 = vadd.f32 %v6513, %v7049
        %v7192 = vadd.f32 %v6516, %v7052
        %v7193 = vadd.f32 %v6521, %v7057
        %v7194 = vadd.f32 %v6524, %v7060
        %v7195 = vadd.f32 %v6529, %v7065
        %v7196 = vadd.f32 %v6532, %v7068
        %v7197 = vadd.f32 %v6537, %v7073
        %v7198 = vadd.f32 %v6540, %v7076
        %v7199 = vadd.f32 %v6545, %v7081
        %v7200 = vadd.f32 %v6548, %v7084
        %v7201 = vadd.f32 %v6553, %v7089
        %v7202 = vadd.f32 %v6556, %v7092
        %v7203 = vadd.f32 %v6561, %v7097
        %v7204 = vadd.f32 %v6564, %v7100
        %v7205 = vadd.f32 %v6569, %v7105
        %v7206 = vadd.f32 %v6572, %v7108
        %v7207 = vadd.f32 %v6577, %v7113
        %v7208 = vadd.f32 %v6580, %v7116
        %v7209 = vadd.f32 %v6585, %v7121
        %v7210 = vadd.f32 %v6588, %v7124
        %v7211 = vadd.f32 %v6593, %v7129
        %v7212 = vadd.f32 %v6596, %v7132
        %v7213 = vadd.f32 %v6601, %v7137
        %v7214 = vadd.f32 %v6604, %v7140
        %v7215 = vadd.f32 %v6609, %v7145
        %v7216 = vadd.f32 %v6612, %v7148
        %v7217 = vadd.f32 %v6617, %v7153
        %v7218 = vadd.f32 %v6620, %v7156
        %v7219 = vadd.f32 %v6625, %v7161
        %v7220 = vadd.f32 %v6628, %v7164
        %v7221 = vadd.f32 %v6633, %v7169
        %v7222 = vadd.f32 %v6636, %v7172
        %v7223 = vadd.f32 %v6641, %v7177
        %v7224 = vadd.f32 %v6644, %v7180
        %v7225 = vadd.f32 %v6649, %v7185
        %v7226 = vadd.f32 %v6652, %v7188
        %v7227 = vld [vmem:[%s259 + $0x10] sm:$0x8]
        %v7228 = vld [vmem:[#allocation2] sm:$0x3]
        %v7230 = vunpack.c.l.b16 %v7227
        %v7231 = vpack.c.b16 %v6732, %v7230
        %vm7232 = vcmask 1044480
        %v7233 = vrot.slane %v7231, 3
        %v7234 = vrot.slane %v6769, 3
        %v7235 = vsel %vm7232, %v7233, %v7234
        %v7236 = vrot.slane %v6770, 3
        %v7237 = vsel %vm7232, %v7234, %v7236
        %v7238 = vrot.slane %v6771, 3
        %v7239 = vsel %vm7232, %v7236, %v7238
        %v7240 = vrot.slane %v6772, 3
        %v7241 = vsel %vm7232, %v7238, %v7240
        %v7242 = vrot.slane %v6773, 3
        %v7243 = vsel %vm7232, %v7240, %v7242
        %v7244 = vrot.slane %v6774, 3
        %v7245 = vsel %vm7232, %v7242, %v7244
        %v7246 = vrot.slane %v6775, 3
        %v7247 = vsel %vm7232, %v7244, %v7246
        %v7248 = vrot.slane %v6776, 3
        %v7249 = vsel %vm7232, %v7246, %v7248
        %v7250 = vrot.slane %v6777, 3
        %v7251 = vsel %vm7232, %v7248, %v7250
        %v7252 = vrot.slane %v6778, 3
        %v7253 = vsel %vm7232, %v7250, %v7252
        %v7254 = vrot.slane %v6779, 3
        %v7255 = vsel %vm7232, %v7252, %v7254
        %v7256 = vrot.slane %v6780, 3
        %v7257 = vsel %vm7232, %v7254, %v7256
        %v7258 = vrot.slane %v6781, 3
        %v7259 = vsel %vm7232, %v7256, %v7258
        %v7260 = vrot.slane %v6782, 3
        %v7261 = vsel %vm7232, %v7258, %v7260
        %v7262 = vrot.slane %v6783, 3
        %v7263 = vsel %vm7232, %v7260, %v7262
        %v7264 = vrot.slane %v6784, 3
        %v7265 = vsel %vm7232, %v7262, %v7264
        %v7266 = vrot.slane %v6785, 3
        %v7267 = vsel %vm7232, %v7264, %v7266
        %v7268 = vrot.slane %v6786, 3
        %v7269 = vsel %vm7232, %v7266, %v7268
        %v7271 = vsel %vm475, %v7235, 0
        %v7274 = vsel %vm475, %v7237, 0
        %v7277 = vsel %vm475, %v7239, 0
        %v7280 = vsel %vm475, %v7241, 0
        %v7283 = vsel %vm475, %v7243, 0
        %v7286 = vsel %vm475, %v7245, 0
        %v7289 = vsel %vm475, %v7247, 0
        %v7292 = vsel %vm475, %v7249, 0
        %v7295 = vsel %vm475, %v7251, 0
        %v7298 = vsel %vm475, %v7253, 0
        %v7301 = vsel %vm475, %v7255, 0
        %v7304 = vsel %vm475, %v7257, 0
        %v7307 = vsel %vm475, %v7259, 0
        %v7310 = vsel %vm475, %v7261, 0
        %v7313 = vsel %vm475, %v7263, 0
        %v7316 = vsel %vm475, %v7265, 0
        %v7319 = vsel %vm475, %v7267, 0
        %v7322 = vsel %vm475, %v7269, 0
        %v7325 = vsel %vm530, %v7228, 0
        %7327 = vmatprep.subr.bf16.mxu0 0
        %7328 = vmatpush1.bf16.msra.mxu0 0
        %7329 = vmatprep.subr.bf16.mxu0 0
        %7330 = vmatpush1.bf16.msra.mxu0 0
        %7331 = vmatprep.subr.bf16.mxu0 0
        %7332 = vmatpush1.bf16.msra.mxu0 0
        %7333 = vmatprep.subr.bf16.mxu0 0
        %7334 = vmatpush1.bf16.msra.mxu0 0
        %7335 = vmatprep.subr.bf16.mxu0 0
        %7336 = vmatpush1.bf16.msra.mxu0 0
        %7337 = vmatprep.subr.bf16.mxu0 0
        %7338 = vmatpush1.bf16.msra.mxu0 0
        %7339 = vmatprep.subr.bf16.mxu0 0
        %7340 = vmatpush1.bf16.msra.mxu0 0
        %7341 = vmatprep.subr.bf16.mxu0 0
        %7342 = vmatpush1.bf16.msra.mxu0 %v7325
        %7343 = vmatprep.subr.bf16.mxu0 0
        %7344 = vmatpush2.bf16.msra.mxu0 0
        %7345 = vmatprep.subr.bf16.mxu0 0
        %7346 = vmatpush2.bf16.msra.mxu0 0
        %7347 = vmatprep.subr.bf16.mxu0 0
        %7348 = vmatpush2.bf16.msra.mxu0 0
        %7349 = vmatprep.subr.bf16.mxu0 0
        %7350 = vmatpush2.bf16.msra.mxu0 0
        %7351 = vmatprep.subr.bf16.mxu0 0
        %7352 = vmatpush2.bf16.msra.mxu0 0
        %7353 = vmatprep.subr.bf16.mxu0 0
        %7354 = vmatpush2.bf16.msra.mxu0 0
        %7355 = vmatprep.subr.bf16.mxu0 0
        %7356 = vmatpush2.bf16.msra.mxu0 0
        %7357 = vmatprep.subr.bf16.mxu0 0
        %7358 = vmatpush2.bf16.msra.mxu0 0
        %7359 = vmatprep.mubr.bf16.mxu0 0
        %7360 = vmatmul.mubr.bf16.gmra.mxu0 %v7271
        %v7361 = vpop.f32.mrf.mxu0
        %v7362 = vadd.f32 0.0, %v7361
        %v7363 = vpop.f32.mrf.mxu0
        %v7364 = vpop.f32.mrf.mxu0
        %v7365 = vadd.f32 0.0, %v7364
        %v7366 = vpop.f32.mrf.mxu0
        %7367 = vmatprep.mubr.bf16.mxu0 0
        %7368 = vmatmul.mubr.bf16.gmra.mxu0 %v7274
        %v7369 = vpop.f32.mrf.mxu0
        %v7370 = vadd.f32 0.0, %v7369
        %v7371 = vpop.f32.mrf.mxu0
        %v7372 = vpop.f32.mrf.mxu0
        %v7373 = vadd.f32 0.0, %v7372
        %v7374 = vpop.f32.mrf.mxu0
        %7375 = vmatprep.mubr.bf16.mxu0 0
        %7376 = vmatmul.mubr.bf16.gmra.mxu0 %v7277
        %v7377 = vpop.f32.mrf.mxu0
        %v7378 = vadd.f32 0.0, %v7377
        %v7379 = vpop.f32.mrf.mxu0
        %v7380 = vpop.f32.mrf.mxu0
        %v7381 = vadd.f32 0.0, %v7380
        %v7382 = vpop.f32.mrf.mxu0
        %7383 = vmatprep.mubr.bf16.mxu0 0
        %7384 = vmatmul.mubr.bf16.gmra.mxu0 %v7280
        %v7385 = vpop.f32.mrf.mxu0
        %v7386 = vadd.f32 0.0, %v7385
        %v7387 = vpop.f32.mrf.mxu0
        %v7388 = vpop.f32.mrf.mxu0
        %v7389 = vadd.f32 0.0, %v7388
        %v7390 = vpop.f32.mrf.mxu0
        %7391 = vmatprep.mubr.bf16.mxu0 0
        %7392 = vmatmul.mubr.bf16.gmra.mxu0 %v7283
        %v7393 = vpop.f32.mrf.mxu0
        %v7394 = vadd.f32 0.0, %v7393
        %v7395 = vpop.f32.mrf.mxu0
        %v7396 = vpop.f32.mrf.mxu0
        %v7397 = vadd.f32 0.0, %v7396
        %v7398 = vpop.f32.mrf.mxu0
        %7399 = vmatprep.mubr.bf16.mxu0 0
        %7400 = vmatmul.mubr.bf16.gmra.mxu0 %v7286
        %v7401 = vpop.f32.mrf.mxu0
        %v7402 = vadd.f32 0.0, %v7401
        %v7403 = vpop.f32.mrf.mxu0
        %v7404 = vpop.f32.mrf.mxu0
        %v7405 = vadd.f32 0.0, %v7404
        %v7406 = vpop.f32.mrf.mxu0
        %7407 = vmatprep.mubr.bf16.mxu0 0
        %7408 = vmatmul.mubr.bf16.gmra.mxu0 %v7289
        %v7409 = vpop.f32.mrf.mxu0
        %v7410 = vadd.f32 0.0, %v7409
        %v7411 = vpop.f32.mrf.mxu0
        %v7412 = vpop.f32.mrf.mxu0
        %v7413 = vadd.f32 0.0, %v7412
        %v7414 = vpop.f32.mrf.mxu0
        %7415 = vmatprep.mubr.bf16.mxu0 0
        %7416 = vmatmul.mubr.bf16.gmra.mxu0 %v7292
        %v7417 = vpop.f32.mrf.mxu0
        %v7418 = vadd.f32 0.0, %v7417
        %v7419 = vpop.f32.mrf.mxu0
        %v7420 = vpop.f32.mrf.mxu0
        %v7421 = vadd.f32 0.0, %v7420
        %v7422 = vpop.f32.mrf.mxu0
        %7423 = vmatprep.mubr.bf16.mxu0 0
        %7424 = vmatmul.mubr.bf16.gmra.mxu0 %v7295
        %v7425 = vpop.f32.mrf.mxu0
        %v7426 = vadd.f32 0.0, %v7425
        %v7427 = vpop.f32.mrf.mxu0
        %v7428 = vpop.f32.mrf.mxu0
        %v7429 = vadd.f32 0.0, %v7428
        %v7430 = vpop.f32.mrf.mxu0
        %7431 = vmatprep.mubr.bf16.mxu0 0
        %7432 = vmatmul.mubr.bf16.gmra.mxu0 %v7298
        %v7433 = vpop.f32.mrf.mxu0
        %v7434 = vadd.f32 0.0, %v7433
        %v7435 = vpop.f32.mrf.mxu0
        %v7436 = vpop.f32.mrf.mxu0
        %v7437 = vadd.f32 0.0, %v7436
        %v7438 = vpop.f32.mrf.mxu0
        %7439 = vmatprep.mubr.bf16.mxu0 0
        %7440 = vmatmul.mubr.bf16.gmra.mxu0 %v7301
        %v7441 = vpop.f32.mrf.mxu0
        %v7442 = vadd.f32 0.0, %v7441
        %v7443 = vpop.f32.mrf.mxu0
        %v7444 = vpop.f32.mrf.mxu0
        %v7445 = vadd.f32 0.0, %v7444
        %v7446 = vpop.f32.mrf.mxu0
        %7447 = vmatprep.mubr.bf16.mxu0 0
        %7448 = vmatmul.mubr.bf16.gmra.mxu0 %v7304
        %v7449 = vpop.f32.mrf.mxu0
        %v7450 = vadd.f32 0.0, %v7449
        %v7451 = vpop.f32.mrf.mxu0
        %v7452 = vpop.f32.mrf.mxu0
        %v7453 = vadd.f32 0.0, %v7452
        %v7454 = vpop.f32.mrf.mxu0
        %7455 = vmatprep.mubr.bf16.mxu0 0
        %7456 = vmatmul.mubr.bf16.gmra.mxu0 %v7307
        %v7457 = vpop.f32.mrf.mxu0
        %v7458 = vadd.f32 0.0, %v7457
        %v7459 = vpop.f32.mrf.mxu0
        %v7460 = vpop.f32.mrf.mxu0
        %v7461 = vadd.f32 0.0, %v7460
        %v7462 = vpop.f32.mrf.mxu0
        %7463 = vmatprep.mubr.bf16.mxu0 0
        %7464 = vmatmul.mubr.bf16.gmra.mxu0 %v7310
        %v7465 = vpop.f32.mrf.mxu0
        %v7466 = vadd.f32 0.0, %v7465
        %v7467 = vpop.f32.mrf.mxu0
        %v7468 = vpop.f32.mrf.mxu0
        %v7469 = vadd.f32 0.0, %v7468
        %v7470 = vpop.f32.mrf.mxu0
        %7471 = vmatprep.mubr.bf16.mxu0 0
        %7472 = vmatmul.mubr.bf16.gmra.mxu0 %v7313
        %v7473 = vpop.f32.mrf.mxu0
        %v7474 = vadd.f32 0.0, %v7473
        %v7475 = vpop.f32.mrf.mxu0
        %v7476 = vpop.f32.mrf.mxu0
        %v7477 = vadd.f32 0.0, %v7476
        %v7478 = vpop.f32.mrf.mxu0
        %7479 = vmatprep.mubr.bf16.mxu0 0
        %7480 = vmatmul.mubr.bf16.gmra.mxu0 %v7316
        %v7481 = vpop.f32.mrf.mxu0
        %v7482 = vadd.f32 0.0, %v7481
        %v7483 = vpop.f32.mrf.mxu0
        %v7484 = vpop.f32.mrf.mxu0
        %v7485 = vadd.f32 0.0, %v7484
        %v7486 = vpop.f32.mrf.mxu0
        %7487 = vmatprep.mubr.bf16.mxu0 0
        %7488 = vmatmul.mubr.bf16.gmra.mxu0 %v7319
        %v7489 = vpop.f32.mrf.mxu0
        %v7490 = vadd.f32 0.0, %v7489
        %v7491 = vpop.f32.mrf.mxu0
        %v7492 = vpop.f32.mrf.mxu0
        %v7493 = vadd.f32 0.0, %v7492
        %v7494 = vpop.f32.mrf.mxu0
        %7495 = vmatprep.mubr.bf16.mxu0 0
        %7496 = vmatmul.mubr.bf16.gmra.mxu0 %v7322
        %v7497 = vpop.f32.mrf.mxu0
        %v7498 = vadd.f32 0.0, %v7497
        %v7499 = vpop.f32.mrf.mxu0
        %v7500 = vpop.f32.mrf.mxu0
        %v7501 = vadd.f32 0.0, %v7500
        %v7502 = vpop.f32.mrf.mxu0
        %7503 = vdwg.mxu0
        %v7504 = vadd.f32 %v7191, %v7362
        %v7505 = vadd.f32 %v7192, %v7365
        %v7506 = vadd.f32 %v7193, %v7370
        %v7507 = vadd.f32 %v7194, %v7373
        %v7508 = vadd.f32 %v7195, %v7378
        %v7509 = vadd.f32 %v7196, %v7381
        %v7510 = vadd.f32 %v7197, %v7386
        %v7511 = vadd.f32 %v7198, %v7389
        %v7512 = vadd.f32 %v7199, %v7394
        %v7513 = vadd.f32 %v7200, %v7397
        %v7514 = vadd.f32 %v7201, %v7402
        %v7515 = vadd.f32 %v7202, %v7405
        %v7516 = vadd.f32 %v7203, %v7410
        %v7517 = vadd.f32 %v7204, %v7413
        %v7518 = vadd.f32 %v7205, %v7418
        %v7519 = vadd.f32 %v7206, %v7421
        %v7520 = vadd.f32 %v7207, %v7426
        %v7521 = vadd.f32 %v7208, %v7429
        %v7522 = vadd.f32 %v7209, %v7434
        %v7523 = vadd.f32 %v7210, %v7437
        %v7524 = vadd.f32 %v7211, %v7442
        %v7525 = vadd.f32 %v7212, %v7445
        %v7526 = vadd.f32 %v7213, %v7450
        %v7527 = vadd.f32 %v7214, %v7453
        %v7528 = vadd.f32 %v7215, %v7458
        %v7529 = vadd.f32 %v7216, %v7461
        %v7530 = vadd.f32 %v7217, %v7466
        %v7531 = vadd.f32 %v7218, %v7469
        %v7532 = vadd.f32 %v7219, %v7474
        %v7533 = vadd.f32 %v7220, %v7477
        %v7534 = vadd.f32 %v7221, %v7482
        %v7535 = vadd.f32 %v7222, %v7485
        %v7536 = vadd.f32 %v7223, %v7490
        %v7537 = vadd.f32 %v7224, %v7493
        %v7538 = vadd.f32 %v7225, %v7498
        %v7539 = vadd.f32 %v7226, %v7501
        %v7540 = vmul.f32 %v7504, %v2071
        %v7541 = vmul.f32 %v7505, %v2076
        %v7542 = vmul.f32 %v7506, %v2081
        %v7543 = vmul.f32 %v7507, %v2086
        %v7544 = vmul.f32 %v7508, %v2091
        %v7545 = vmul.f32 %v7509, %v2096
        %v7546 = vmul.f32 %v7510, %v2101
        %v7547 = vmul.f32 %v7511, %v2106
        %v7548 = vmul.f32 %v7512, %v2111
        %v7549 = vmul.f32 %v7513, %v2116
        %v7550 = vmul.f32 %v7514, %v2121
        %v7551 = vmul.f32 %v7515, %v2126
        %v7552 = vmul.f32 %v7516, %v2131
        %v7553 = vmul.f32 %v7517, %v2136
        %v7554 = vmul.f32 %v7518, %v2141
        %v7555 = vmul.f32 %v7519, %v2146
        %v7556 = vmul.f32 %v7520, %v2151
        %v7557 = vmul.f32 %v7521, %v2156
        %v7558 = vmul.f32 %v7522, %v2161
        %v7559 = vmul.f32 %v7523, %v2166
        %v7560 = vmul.f32 %v7524, %v2171
        %v7561 = vmul.f32 %v7525, %v2176
        %v7562 = vmul.f32 %v7526, %v2181
        %v7563 = vmul.f32 %v7527, %v2186
        %v7564 = vmul.f32 %v7528, %v2191
        %v7565 = vmul.f32 %v7529, %v2196
        %v7566 = vmul.f32 %v7530, %v2201
        %v7567 = vmul.f32 %v7531, %v2206
        %v7568 = vmul.f32 %v7532, %v2211
        %v7569 = vmul.f32 %v7533, %v2216
        %v7570 = vmul.f32 %v7534, %v2221
        %v7571 = vmul.f32 %v7535, %v2226
        %v7572 = vmul.f32 %v7536, %v2231
        %v7573 = vmul.f32 %v7537, %v2236
        %v7574 = vmul.f32 %v7538, %v2241
        %v7575 = vmul.f32 %v7539, %v2246
        %s7576 = scalar_lea.vmem %s264, 864
        %7577 = vst.msk [vmem:[%s7576] sm:$0xff] %vm475, %v7540
        %7578 = vst.msk [vmem:[%s7576 + $0x8] sm:$0xff] %vm475, %v7541
        %7579 = vst.msk [vmem:[%s7576 + $0x10] sm:$0xff] %vm475, %v7542
        %7580 = vst.msk [vmem:[%s7576 + $0x18] sm:$0xff] %vm475, %v7543
        %7581 = vst.msk [vmem:[%s7576 + $0x20] sm:$0xff] %vm475, %v7544
        %7582 = vst.msk [vmem:[%s7576 + $0x28] sm:$0xff] %vm475, %v7545
        %7583 = vst.msk [vmem:[%s7576 + $0x30] sm:$0xff] %vm475, %v7546
        %7584 = vst.msk [vmem:[%s7576 + $0x38] sm:$0xff] %vm475, %v7547
        %7585 = vst.msk [vmem:[%s7576 + $0x40] sm:$0xff] %vm475, %v7548
        %7586 = vst.msk [vmem:[%s7576 + $0x48] sm:$0xff] %vm475, %v7549
        %7587 = vst.msk [vmem:[%s7576 + $0x50] sm:$0xff] %vm475, %v7550
        %7588 = vst.msk [vmem:[%s7576 + $0x58] sm:$0xff] %vm475, %v7551
        %7589 = vst.msk [vmem:[%s7576 + $0x60] sm:$0xff] %vm475, %v7552
        %7590 = vst.msk [vmem:[%s7576 + $0x68] sm:$0xff] %vm475, %v7553
        %7591 = vst.msk [vmem:[%s7576 + $0x70] sm:$0xff] %vm475, %v7554
        %7592 = vst.msk [vmem:[%s7576 + $0x78] sm:$0xff] %vm475, %v7555
        %7593 = vst.msk [vmem:[%s7576 + $0x80] sm:$0xff] %vm475, %v7556
        %7594 = vst.msk [vmem:[%s7576 + $0x88] sm:$0xff] %vm475, %v7557
        %7595 = vst.msk [vmem:[%s7576 + $0x90] sm:$0xff] %vm475, %v7558
        %7596 = vst.msk [vmem:[%s7576 + $0x98] sm:$0xff] %vm475, %v7559
        %7597 = vst.msk [vmem:[%s7576 + $0xa0] sm:$0xff] %vm475, %v7560
        %7598 = vst.msk [vmem:[%s7576 + $0xa8] sm:$0xff] %vm475, %v7561
        %7599 = vst.msk [vmem:[%s7576 + $0xb0] sm:$0xff] %vm475, %v7562
        %7600 = vst.msk [vmem:[%s7576 + $0xb8] sm:$0xff] %vm475, %v7563
        %7601 = vst.msk [vmem:[%s7576 + $0xc0] sm:$0xff] %vm475, %v7564
        %7602 = vst.msk [vmem:[%s7576 + $0xc8] sm:$0xff] %vm475, %v7565
        %7603 = vst.msk [vmem:[%s7576 + $0xd0] sm:$0xff] %vm475, %v7566
        %7604 = vst.msk [vmem:[%s7576 + $0xd8] sm:$0xff] %vm475, %v7567
        %7605 = vst.msk [vmem:[%s7576 + $0xe0] sm:$0xff] %vm475, %v7568
        %7606 = vst.msk [vmem:[%s7576 + $0xe8] sm:$0xff] %vm475, %v7569
        %7607 = vst.msk [vmem:[%s7576 + $0xf0] sm:$0xff] %vm475, %v7570
        %7608 = vst.msk [vmem:[%s7576 + $0xf8] sm:$0xff] %vm475, %v7571
        %7609 = vst.msk [vmem:[%s7576 + $0x100] sm:$0xff] %vm475, %v7572
        %7610 = vst.msk [vmem:[%s7576 + $0x108] sm:$0xff] %vm475, %v7573
        %7611 = vst.msk [vmem:[%s7576 + $0x110] sm:$0xff] %vm475, %v7574
        %7612 = vst.msk [vmem:[%s7576 + $0x118] sm:$0xff] %vm475, %v7575
        %v7613 = vld [vmem:[%s264] sm:$0xff]
        %v7614 = vld [vmem:[%s264 + $0x8] sm:$0xff]
        %v7615 = vld [vmem:[%s264 + $0x10] sm:$0xff]
        %v7616 = vld [vmem:[%s264 + $0x18] sm:$0xff]
        %v7617 = vld [vmem:[%s264 + $0x20] sm:$0xff]
        %v7618 = vld [vmem:[%s264 + $0x28] sm:$0xff]
        %v7619 = vld [vmem:[%s264 + $0x30] sm:$0xff]
        %v7620 = vld [vmem:[%s264 + $0x38] sm:$0xff]
        %v7621 = vld [vmem:[%s264 + $0x40] sm:$0xff]
        %v7622 = vld [vmem:[%s264 + $0x48] sm:$0xff]
        %v7623 = vld [vmem:[%s264 + $0x50] sm:$0xff]
        %v7624 = vld [vmem:[%s264 + $0x58] sm:$0xff]
        %v7625 = vld [vmem:[%s264 + $0x60] sm:$0xff]
        %v7626 = vld [vmem:[%s264 + $0x68] sm:$0xff]
        %v7627 = vld [vmem:[%s264 + $0x70] sm:$0xff]
        %v7628 = vld [vmem:[%s264 + $0x78] sm:$0xff]
        %v7629 = vld [vmem:[%s264 + $0x80] sm:$0xff]
        %v7630 = vld [vmem:[%s264 + $0x88] sm:$0xff]
        %v7631 = vld [vmem:[%s264 + $0x90] sm:$0xff]
        %v7632 = vld [vmem:[%s264 + $0x98] sm:$0xff]
        %v7633 = vld [vmem:[%s264 + $0xa0] sm:$0xff]
        %v7634 = vld [vmem:[%s264 + $0xa8] sm:$0xff]
        %v7635 = vld [vmem:[%s264 + $0xb0] sm:$0xff]
        %v7636 = vld [vmem:[%s264 + $0xb8] sm:$0xff]
        %v7637 = vld [vmem:[%s264 + $0xc0] sm:$0xff]
        %v7638 = vld [vmem:[%s264 + $0xc8] sm:$0xff]
        %v7639 = vld [vmem:[%s264 + $0xd0] sm:$0xff]
        %v7640 = vld [vmem:[%s264 + $0xd8] sm:$0xff]
        %v7641 = vld [vmem:[%s264 + $0xe0] sm:$0xff]
        %v7642 = vld [vmem:[%s264 + $0xe8] sm:$0xff]
        %v7643 = vld [vmem:[%s264 + $0xf0] sm:$0xff]
        %v7644 = vld [vmem:[%s264 + $0xf8] sm:$0xff]
        %v7645 = vld [vmem:[%s264 + $0x100] sm:$0xff]
        %v7646 = vld [vmem:[%s264 + $0x108] sm:$0xff]
        %v7647 = vld [vmem:[%s264 + $0x110] sm:$0xff]
        %v7648 = vld [vmem:[%s264 + $0x118] sm:$0xff]
        %v7649 = vsel %vm475, %v7613, 0.0
        %v7650 = vsel %vm475, %v7614, 0.0
        %v7651 = vadd.f32 %v7649, %v7650
        %v7652 = vsel %vm475, %v7615, 0.0
        %v7653 = vadd.f32 %v7651, %v7652
        %v7654 = vsel %vm475, %v7616, 0.0
        %v7655 = vadd.f32 %v7653, %v7654
        %v7656 = vsel %vm475, %v7617, 0.0
        %v7657 = vadd.f32 %v7655, %v7656
        %v7658 = vsel %vm475, %v7618, 0.0
        %v7659 = vadd.f32 %v7657, %v7658
        %v7660 = vsel %vm475, %v7619, 0.0
        %v7661 = vadd.f32 %v7659, %v7660
        %v7662 = vsel %vm475, %v7620, 0.0
        %v7663 = vadd.f32 %v7661, %v7662
        %v7664 = vsel %vm475, %v7621, 0.0
        %v7665 = vadd.f32 %v7663, %v7664
        %v7666 = vsel %vm475, %v7622, 0.0
        %v7667 = vadd.f32 %v7665, %v7666
        %v7668 = vsel %vm475, %v7623, 0.0
        %v7669 = vadd.f32 %v7667, %v7668
        %v7670 = vsel %vm475, %v7624, 0.0
        %v7671 = vadd.f32 %v7669, %v7670
        %v7672 = vsel %vm475, %v7625, 0.0
        %v7673 = vadd.f32 %v7671, %v7672
        %v7674 = vsel %vm475, %v7626, 0.0
        %v7675 = vadd.f32 %v7673, %v7674
        %v7676 = vsel %vm475, %v7627, 0.0
        %v7677 = vadd.f32 %v7675, %v7676
        %v7678 = vsel %vm475, %v7628, 0.0
        %v7679 = vadd.f32 %v7677, %v7678
        %v7680 = vsel %vm475, %v7629, 0.0
        %v7681 = vadd.f32 %v7679, %v7680
        %v7682 = vsel %vm475, %v7630, 0.0
        %v7683 = vadd.f32 %v7681, %v7682
        %v7684 = vsel %vm475, %v7631, 0.0
        %v7685 = vadd.f32 %v7683, %v7684
        %v7686 = vsel %vm475, %v7632, 0.0
        %v7687 = vadd.f32 %v7685, %v7686
        %v7688 = vsel %vm475, %v7633, 0.0
        %v7689 = vadd.f32 %v7687, %v7688
        %v7690 = vsel %vm475, %v7634, 0.0
        %v7691 = vadd.f32 %v7689, %v7690
        %v7692 = vsel %vm475, %v7635, 0.0
        %v7693 = vadd.f32 %v7691, %v7692
        %v7694 = vsel %vm475, %v7636, 0.0
        %v7695 = vadd.f32 %v7693, %v7694
        %v7696 = vsel %vm475, %v7637, 0.0
        %v7697 = vadd.f32 %v7695, %v7696
        %v7698 = vsel %vm475, %v7638, 0.0
        %v7699 = vadd.f32 %v7697, %v7698
        %v7700 = vsel %vm475, %v7639, 0.0
        %v7701 = vadd.f32 %v7699, %v7700
        %v7702 = vsel %vm475, %v7640, 0.0
        %v7703 = vadd.f32 %v7701, %v7702
        %v7704 = vsel %vm475, %v7641, 0.0
        %v7705 = vadd.f32 %v7703, %v7704
        %v7706 = vsel %vm475, %v7642, 0.0
        %v7707 = vadd.f32 %v7705, %v7706
        %v7708 = vsel %vm475, %v7643, 0.0
        %v7709 = vadd.f32 %v7707, %v7708
        %v7710 = vsel %vm475, %v7644, 0.0
        %v7711 = vadd.f32 %v7709, %v7710
        %v7712 = vsel %vm475, %v7645, 0.0
        %v7713 = vadd.f32 %v7711, %v7712
        %v7714 = vsel %vm475, %v7646, 0.0
        %v7715 = vadd.f32 %v7713, %v7714
        %v7716 = vsel %vm475, %v7647, 0.0
        %v7717 = vadd.f32 %v7715, %v7716
        %v7718 = vsel %vm475, %v7648, 0.0
        %v7719 = vadd.f32 %v7717, %v7718
        %v7720 = vrot.slane %v7719, 4
        %v7721 = vadd.f32 %v7719, %v7720
        %v7722 = vrot.slane %v7721, 2
        %v7723 = vadd.f32 %v7721, %v7722
        %v7724 = vrot.slane %v7723, 1
        %v7725 = vadd.f32 %v7723, %v7724
        %v7726 = vadd.f32 %v7725, 0.0
        %v7727 = vmul.f32 %v7613, %v7613
        %v7728 = vmul.f32 %v7614, %v7614
        %v7729 = vmul.f32 %v7615, %v7615
        %v7730 = vmul.f32 %v7616, %v7616
        %v7731 = vmul.f32 %v7617, %v7617
        %v7732 = vmul.f32 %v7618, %v7618
        %v7733 = vmul.f32 %v7619, %v7619
        %v7734 = vmul.f32 %v7620, %v7620
        %v7735 = vmul.f32 %v7621, %v7621
        %v7736 = vmul.f32 %v7622, %v7622
        %v7737 = vmul.f32 %v7623, %v7623
        %v7738 = vmul.f32 %v7624, %v7624
        %v7739 = vmul.f32 %v7625, %v7625
        %v7740 = vmul.f32 %v7626, %v7626
        %v7741 = vmul.f32 %v7627, %v7627
        %v7742 = vmul.f32 %v7628, %v7628
        %v7743 = vmul.f32 %v7629, %v7629
        %v7744 = vmul.f32 %v7630, %v7630
        %v7745 = vmul.f32 %v7631, %v7631
        %v7746 = vmul.f32 %v7632, %v7632
        %v7747 = vmul.f32 %v7633, %v7633
        %v7748 = vmul.f32 %v7634, %v7634
        %v7749 = vmul.f32 %v7635, %v7635
        %v7750 = vmul.f32 %v7636, %v7636
        %v7751 = vmul.f32 %v7637, %v7637
        %v7752 = vmul.f32 %v7638, %v7638
        %v7753 = vmul.f32 %v7639, %v7639
        %v7754 = vmul.f32 %v7640, %v7640
        %v7755 = vmul.f32 %v7641, %v7641
        %v7756 = vmul.f32 %v7642, %v7642
        %v7757 = vmul.f32 %v7643, %v7643
        %v7758 = vmul.f32 %v7644, %v7644
        %v7759 = vmul.f32 %v7645, %v7645
        %v7760 = vmul.f32 %v7646, %v7646
        %v7761 = vmul.f32 %v7647, %v7647
        %v7762 = vmul.f32 %v7648, %v7648
        %v7763 = vsel %vm475, %v7727, 0.0
        %v7764 = vsel %vm475, %v7728, 0.0
        %v7765 = vadd.f32 %v7763, %v7764
        %v7766 = vsel %vm475, %v7729, 0.0
        %v7767 = vadd.f32 %v7765, %v7766
        %v7768 = vsel %vm475, %v7730, 0.0
        %v7769 = vadd.f32 %v7767, %v7768
        %v7770 = vsel %vm475, %v7731, 0.0
        %v7771 = vadd.f32 %v7769, %v7770
        %v7772 = vsel %vm475, %v7732, 0.0
        %v7773 = vadd.f32 %v7771, %v7772
        %v7774 = vsel %vm475, %v7733, 0.0
        %v7775 = vadd.f32 %v7773, %v7774
        %v7776 = vsel %vm475, %v7734, 0.0
        %v7777 = vadd.f32 %v7775, %v7776
        %v7778 = vsel %vm475, %v7735, 0.0
        %v7779 = vadd.f32 %v7777, %v7778
        %v7780 = vsel %vm475, %v7736, 0.0
        %v7781 = vadd.f32 %v7779, %v7780
        %v7782 = vsel %vm475, %v7737, 0.0
        %v7783 = vadd.f32 %v7781, %v7782
        %v7784 = vsel %vm475, %v7738, 0.0
        %v7785 = vadd.f32 %v7783, %v7784
        %v7786 = vsel %vm475, %v7739, 0.0
        %v7787 = vadd.f32 %v7785, %v7786
        %v7788 = vsel %vm475, %v7740, 0.0
        %v7789 = vadd.f32 %v7787, %v7788
        %v7790 = vsel %vm475, %v7741, 0.0
        %v7791 = vadd.f32 %v7789, %v7790
        %v7792 = vsel %vm475, %v7742, 0.0
        %v7793 = vadd.f32 %v7791, %v7792
        %v7794 = vsel %vm475, %v7743, 0.0
        %v7795 = vadd.f32 %v7793, %v7794
        %v7796 = vsel %vm475, %v7744, 0.0
        %v7797 = vadd.f32 %v7795, %v7796
        %v7798 = vsel %vm475, %v7745, 0.0
        %v7799 = vadd.f32 %v7797, %v7798
        %v7800 = vsel %vm475, %v7746, 0.0
        %v7801 = vadd.f32 %v7799, %v7800
        %v7802 = vsel %vm475, %v7747, 0.0
        %v7803 = vadd.f32 %v7801, %v7802
        %v7804 = vsel %vm475, %v7748, 0.0
        %v7805 = vadd.f32 %v7803, %v7804
        %v7806 = vsel %vm475, %v7749, 0.0
        %v7807 = vadd.f32 %v7805, %v7806
        %v7808 = vsel %vm475, %v7750, 0.0
        %v7809 = vadd.f32 %v7807, %v7808
        %v7810 = vsel %vm475, %v7751, 0.0
        %v7811 = vadd.f32 %v7809, %v7810
        %v7812 = vsel %vm475, %v7752, 0.0
        %v7813 = vadd.f32 %v7811, %v7812
        %v7814 = vsel %vm475, %v7753, 0.0
        %v7815 = vadd.f32 %v7813, %v7814
        %v7816 = vsel %vm475, %v7754, 0.0
        %v7817 = vadd.f32 %v7815, %v7816
        %v7818 = vsel %vm475, %v7755, 0.0
        %v7819 = vadd.f32 %v7817, %v7818
        %v7820 = vsel %vm475, %v7756, 0.0
        %v7821 = vadd.f32 %v7819, %v7820
        %v7822 = vsel %vm475, %v7757, 0.0
        %v7823 = vadd.f32 %v7821, %v7822
        %v7824 = vsel %vm475, %v7758, 0.0
        %v7825 = vadd.f32 %v7823, %v7824
        %v7826 = vsel %vm475, %v7759, 0.0
        %v7827 = vadd.f32 %v7825, %v7826
        %v7828 = vsel %vm475, %v7760, 0.0
        %v7829 = vadd.f32 %v7827, %v7828
        %v7830 = vsel %vm475, %v7761, 0.0
        %v7831 = vadd.f32 %v7829, %v7830
        %v7832 = vsel %vm475, %v7762, 0.0
        %v7833 = vadd.f32 %v7831, %v7832
        %v7834 = vrot.slane %v7833, 4
        %v7835 = vadd.f32 %v7833, %v7834
        %v7836 = vrot.slane %v7835, 2
        %v7837 = vadd.f32 %v7835, %v7836
        %v7838 = vrot.slane %v7837, 1
        %v7839 = vadd.f32 %v7837, %v7838
        %v7840 = vadd.f32 %v7839, 0.0
        %v7841 = vld [vmem:[%s4033] sm:$0xff]
        %v7842 = vld [vmem:[%s4033 + $0x8] sm:$0xff]
        %v7843 = vld [vmem:[%s4033 + $0x10] sm:$0xff]
        %v7844 = vld [vmem:[%s4033 + $0x18] sm:$0xff]
        %v7845 = vld [vmem:[%s4033 + $0x20] sm:$0xff]
        %v7846 = vld [vmem:[%s4033 + $0x28] sm:$0xff]
        %v7847 = vld [vmem:[%s4033 + $0x30] sm:$0xff]
        %v7848 = vld [vmem:[%s4033 + $0x38] sm:$0xff]
        %v7849 = vld [vmem:[%s4033 + $0x40] sm:$0xff]
        %v7850 = vld [vmem:[%s4033 + $0x48] sm:$0xff]
        %v7851 = vld [vmem:[%s4033 + $0x50] sm:$0xff]
        %v7852 = vld [vmem:[%s4033 + $0x58] sm:$0xff]
        %v7853 = vld [vmem:[%s4033 + $0x60] sm:$0xff]
        %v7854 = vld [vmem:[%s4033 + $0x68] sm:$0xff]
        %v7855 = vld [vmem:[%s4033 + $0x70] sm:$0xff]
        %v7856 = vld [vmem:[%s4033 + $0x78] sm:$0xff]
        %v7857 = vld [vmem:[%s4033 + $0x80] sm:$0xff]
        %v7858 = vld [vmem:[%s4033 + $0x88] sm:$0xff]
        %v7859 = vld [vmem:[%s4033 + $0x90] sm:$0xff]
        %v7860 = vld [vmem:[%s4033 + $0x98] sm:$0xff]
        %v7861 = vld [vmem:[%s4033 + $0xa0] sm:$0xff]
        %v7862 = vld [vmem:[%s4033 + $0xa8] sm:$0xff]
        %v7863 = vld [vmem:[%s4033 + $0xb0] sm:$0xff]
        %v7864 = vld [vmem:[%s4033 + $0xb8] sm:$0xff]
        %v7865 = vld [vmem:[%s4033 + $0xc0] sm:$0xff]
        %v7866 = vld [vmem:[%s4033 + $0xc8] sm:$0xff]
        %v7867 = vld [vmem:[%s4033 + $0xd0] sm:$0xff]
        %v7868 = vld [vmem:[%s4033 + $0xd8] sm:$0xff]
        %v7869 = vld [vmem:[%s4033 + $0xe0] sm:$0xff]
        %v7870 = vld [vmem:[%s4033 + $0xe8] sm:$0xff]
        %v7871 = vld [vmem:[%s4033 + $0xf0] sm:$0xff]
        %v7872 = vld [vmem:[%s4033 + $0xf8] sm:$0xff]
        %v7873 = vld [vmem:[%s4033 + $0x100] sm:$0xff]
        %v7874 = vld [vmem:[%s4033 + $0x108] sm:$0xff]
        %v7875 = vld [vmem:[%s4033 + $0x110] sm:$0xff]
        %v7876 = vld [vmem:[%s4033 + $0x118] sm:$0xff]
        %v7877 = vsel %vm475, %v7841, 0.0
        %v7878 = vsel %vm475, %v7842, 0.0
        %v7879 = vadd.f32 %v7877, %v7878
        %v7880 = vsel %vm475, %v7843, 0.0
        %v7881 = vadd.f32 %v7879, %v7880
        %v7882 = vsel %vm475, %v7844, 0.0
        %v7883 = vadd.f32 %v7881, %v7882
        %v7884 = vsel %vm475, %v7845, 0.0
        %v7885 = vadd.f32 %v7883, %v7884
        %v7886 = vsel %vm475, %v7846, 0.0
        %v7887 = vadd.f32 %v7885, %v7886
        %v7888 = vsel %vm475, %v7847, 0.0
        %v7889 = vadd.f32 %v7887, %v7888
        %v7890 = vsel %vm475, %v7848, 0.0
        %v7891 = vadd.f32 %v7889, %v7890
        %v7892 = vsel %vm475, %v7849, 0.0
        %v7893 = vadd.f32 %v7891, %v7892
        %v7894 = vsel %vm475, %v7850, 0.0
        %v7895 = vadd.f32 %v7893, %v7894
        %v7896 = vsel %vm475, %v7851, 0.0
        %v7897 = vadd.f32 %v7895, %v7896
        %v7898 = vsel %vm475, %v7852, 0.0
        %v7899 = vadd.f32 %v7897, %v7898
        %v7900 = vsel %vm475, %v7853, 0.0
        %v7901 = vadd.f32 %v7899, %v7900
        %v7902 = vsel %vm475, %v7854, 0.0
        %v7903 = vadd.f32 %v7901, %v7902
        %v7904 = vsel %vm475, %v7855, 0.0
        %v7905 = vadd.f32 %v7903, %v7904
        %v7906 = vsel %vm475, %v7856, 0.0
        %v7907 = vadd.f32 %v7905, %v7906
        %v7908 = vsel %vm475, %v7857, 0.0
        %v7909 = vadd.f32 %v7907, %v7908
        %v7910 = vsel %vm475, %v7858, 0.0
        %v7911 = vadd.f32 %v7909, %v7910
        %v7912 = vsel %vm475, %v7859, 0.0
        %v7913 = vadd.f32 %v7911, %v7912
        %v7914 = vsel %vm475, %v7860, 0.0
        %v7915 = vadd.f32 %v7913, %v7914
        %v7916 = vsel %vm475, %v7861, 0.0
        %v7917 = vadd.f32 %v7915, %v7916
        %v7918 = vsel %vm475, %v7862, 0.0
        %v7919 = vadd.f32 %v7917, %v7918
        %v7920 = vsel %vm475, %v7863, 0.0
        %v7921 = vadd.f32 %v7919, %v7920
        %v7922 = vsel %vm475, %v7864, 0.0
        %v7923 = vadd.f32 %v7921, %v7922
        %v7924 = vsel %vm475, %v7865, 0.0
        %v7925 = vadd.f32 %v7923, %v7924
        %v7926 = vsel %vm475, %v7866, 0.0
        %v7927 = vadd.f32 %v7925, %v7926
        %v7928 = vsel %vm475, %v7867, 0.0
        %v7929 = vadd.f32 %v7927, %v7928
        %v7930 = vsel %vm475, %v7868, 0.0
        %v7931 = vadd.f32 %v7929, %v7930
        %v7932 = vsel %vm475, %v7869, 0.0
        %v7933 = vadd.f32 %v7931, %v7932
        %v7934 = vsel %vm475, %v7870, 0.0
        %v7935 = vadd.f32 %v7933, %v7934
        %v7936 = vsel %vm475, %v7871, 0.0
        %v7937 = vadd.f32 %v7935, %v7936
        %v7938 = vsel %vm475, %v7872, 0.0
        %v7939 = vadd.f32 %v7937, %v7938
        %v7940 = vsel %vm475, %v7873, 0.0
        %v7941 = vadd.f32 %v7939, %v7940
        %v7942 = vsel %vm475, %v7874, 0.0
        %v7943 = vadd.f32 %v7941, %v7942
        %v7944 = vsel %vm475, %v7875, 0.0
        %v7945 = vadd.f32 %v7943, %v7944
        %v7946 = vsel %vm475, %v7876, 0.0
        %v7947 = vadd.f32 %v7945, %v7946
        %v7948 = vrot.slane %v7947, 4
        %v7949 = vadd.f32 %v7947, %v7948
        %v7950 = vrot.slane %v7949, 2
        %v7951 = vadd.f32 %v7949, %v7950
        %v7952 = vrot.slane %v7951, 1
        %v7953 = vadd.f32 %v7951, %v7952
        %v7954 = vadd.f32 %v7726, %v7953
        %v7955 = vmul.f32 %v7841, %v7841
        %v7956 = vmul.f32 %v7842, %v7842
        %v7957 = vmul.f32 %v7843, %v7843
        %v7958 = vmul.f32 %v7844, %v7844
        %v7959 = vmul.f32 %v7845, %v7845
        %v7960 = vmul.f32 %v7846, %v7846
        %v7961 = vmul.f32 %v7847, %v7847
        %v7962 = vmul.f32 %v7848, %v7848
        %v7963 = vmul.f32 %v7849, %v7849
        %v7964 = vmul.f32 %v7850, %v7850
        %v7965 = vmul.f32 %v7851, %v7851
        %v7966 = vmul.f32 %v7852, %v7852
        %v7967 = vmul.f32 %v7853, %v7853
        %v7968 = vmul.f32 %v7854, %v7854
        %v7969 = vmul.f32 %v7855, %v7855
        %v7970 = vmul.f32 %v7856, %v7856
        %v7971 = vmul.f32 %v7857, %v7857
        %v7972 = vmul.f32 %v7858, %v7858
        %v7973 = vmul.f32 %v7859, %v7859
        %v7974 = vmul.f32 %v7860, %v7860
        %v7975 = vmul.f32 %v7861, %v7861
        %v7976 = vmul.f32 %v7862, %v7862
        %v7977 = vmul.f32 %v7863, %v7863
        %v7978 = vmul.f32 %v7864, %v7864
        %v7979 = vmul.f32 %v7865, %v7865
        %v7980 = vmul.f32 %v7866, %v7866
        %v7981 = vmul.f32 %v7867, %v7867
        %v7982 = vmul.f32 %v7868, %v7868
        %v7983 = vmul.f32 %v7869, %v7869
        %v7984 = vmul.f32 %v7870, %v7870
        %v7985 = vmul.f32 %v7871, %v7871
        %v7986 = vmul.f32 %v7872, %v7872
        %v7987 = vmul.f32 %v7873, %v7873
        %v7988 = vmul.f32 %v7874, %v7874
        %v7989 = vmul.f32 %v7875, %v7875
        %v7990 = vmul.f32 %v7876, %v7876
        %v7991 = vsel %vm475, %v7955, 0.0
        %v7992 = vsel %vm475, %v7956, 0.0
        %v7993 = vadd.f32 %v7991, %v7992
        %v7994 = vsel %vm475, %v7957, 0.0
        %v7995 = vadd.f32 %v7993, %v7994
        %v7996 = vsel %vm475, %v7958, 0.0
        %v7997 = vadd.f32 %v7995, %v7996
        %v7998 = vsel %vm475, %v7959, 0.0
        %v7999 = vadd.f32 %v7997, %v7998
        %v8000 = vsel %vm475, %v7960, 0.0
        %v8001 = vadd.f32 %v7999, %v8000
        %v8002 = vsel %vm475, %v7961, 0.0
        %v8003 = vadd.f32 %v8001, %v8002
        %v8004 = vsel %vm475, %v7962, 0.0
        %v8005 = vadd.f32 %v8003, %v8004
        %v8006 = vsel %vm475, %v7963, 0.0
        %v8007 = vadd.f32 %v8005, %v8006
        %v8008 = vsel %vm475, %v7964, 0.0
        %v8009 = vadd.f32 %v8007, %v8008
        %v8010 = vsel %vm475, %v7965, 0.0
        %v8011 = vadd.f32 %v8009, %v8010
        %v8012 = vsel %vm475, %v7966, 0.0
        %v8013 = vadd.f32 %v8011, %v8012
        %v8014 = vsel %vm475, %v7967, 0.0
        %v8015 = vadd.f32 %v8013, %v8014
        %v8016 = vsel %vm475, %v7968, 0.0
        %v8017 = vadd.f32 %v8015, %v8016
        %v8018 = vsel %vm475, %v7969, 0.0
        %v8019 = vadd.f32 %v8017, %v8018
        %v8020 = vsel %vm475, %v7970, 0.0
        %v8021 = vadd.f32 %v8019, %v8020
        %v8022 = vsel %vm475, %v7971, 0.0
        %v8023 = vadd.f32 %v8021, %v8022
        %v8024 = vsel %vm475, %v7972, 0.0
        %v8025 = vadd.f32 %v8023, %v8024
        %v8026 = vsel %vm475, %v7973, 0.0
        %v8027 = vadd.f32 %v8025, %v8026
        %v8028 = vsel %vm475, %v7974, 0.0
        %v8029 = vadd.f32 %v8027, %v8028
        %v8030 = vsel %vm475, %v7975, 0.0
        %v8031 = vadd.f32 %v8029, %v8030
        %v8032 = vsel %vm475, %v7976, 0.0
        %v8033 = vadd.f32 %v8031, %v8032
        %v8034 = vsel %vm475, %v7977, 0.0
        %v8035 = vadd.f32 %v8033, %v8034
        %v8036 = vsel %vm475, %v7978, 0.0
        %v8037 = vadd.f32 %v8035, %v8036
        %v8038 = vsel %vm475, %v7979, 0.0
        %v8039 = vadd.f32 %v8037, %v8038
        %v8040 = vsel %vm475, %v7980, 0.0
        %v8041 = vadd.f32 %v8039, %v8040
        %v8042 = vsel %vm475, %v7981, 0.0
        %v8043 = vadd.f32 %v8041, %v8042
        %v8044 = vsel %vm475, %v7982, 0.0
        %v8045 = vadd.f32 %v8043, %v8044
        %v8046 = vsel %vm475, %v7983, 0.0
        %v8047 = vadd.f32 %v8045, %v8046
        %v8048 = vsel %vm475, %v7984, 0.0
        %v8049 = vadd.f32 %v8047, %v8048
        %v8050 = vsel %vm475, %v7985, 0.0
        %v8051 = vadd.f32 %v8049, %v8050
        %v8052 = vsel %vm475, %v7986, 0.0
        %v8053 = vadd.f32 %v8051, %v8052
        %v8054 = vsel %vm475, %v7987, 0.0
        %v8055 = vadd.f32 %v8053, %v8054
        %v8056 = vsel %vm475, %v7988, 0.0
        %v8057 = vadd.f32 %v8055, %v8056
        %v8058 = vsel %vm475, %v7989, 0.0
        %v8059 = vadd.f32 %v8057, %v8058
        %v8060 = vsel %vm475, %v7990, 0.0
        %v8061 = vadd.f32 %v8059, %v8060
        %v8062 = vrot.slane %v8061, 4
        %v8063 = vadd.f32 %v8061, %v8062
        %v8064 = vrot.slane %v8063, 2
        %v8065 = vadd.f32 %v8063, %v8064
        %v8066 = vrot.slane %v8065, 1
        %v8067 = vadd.f32 %v8065, %v8066
        %v8068 = vadd.f32 %v7840, %v8067
        %v8069 = vld [vmem:[%s5805] sm:$0xff]
        %v8070 = vld [vmem:[%s5805 + $0x8] sm:$0xff]
        %v8071 = vld [vmem:[%s5805 + $0x10] sm:$0xff]
        %v8072 = vld [vmem:[%s5805 + $0x18] sm:$0xff]
        %v8073 = vld [vmem:[%s5805 + $0x20] sm:$0xff]
        %v8074 = vld [vmem:[%s5805 + $0x28] sm:$0xff]
        %v8075 = vld [vmem:[%s5805 + $0x30] sm:$0xff]
        %v8076 = vld [vmem:[%s5805 + $0x38] sm:$0xff]
        %v8077 = vld [vmem:[%s5805 + $0x40] sm:$0xff]
        %v8078 = vld [vmem:[%s5805 + $0x48] sm:$0xff]
        %v8079 = vld [vmem:[%s5805 + $0x50] sm:$0xff]
        %v8080 = vld [vmem:[%s5805 + $0x58] sm:$0xff]
        %v8081 = vld [vmem:[%s5805 + $0x60] sm:$0xff]
        %v8082 = vld [vmem:[%s5805 + $0x68] sm:$0xff]
        %v8083 = vld [vmem:[%s5805 + $0x70] sm:$0xff]
        %v8084 = vld [vmem:[%s5805 + $0x78] sm:$0xff]
        %v8085 = vld [vmem:[%s5805 + $0x80] sm:$0xff]
        %v8086 = vld [vmem:[%s5805 + $0x88] sm:$0xff]
        %v8087 = vld [vmem:[%s5805 + $0x90] sm:$0xff]
        %v8088 = vld [vmem:[%s5805 + $0x98] sm:$0xff]
        %v8089 = vld [vmem:[%s5805 + $0xa0] sm:$0xff]
        %v8090 = vld [vmem:[%s5805 + $0xa8] sm:$0xff]
        %v8091 = vld [vmem:[%s5805 + $0xb0] sm:$0xff]
        %v8092 = vld [vmem:[%s5805 + $0xb8] sm:$0xff]
        %v8093 = vld [vmem:[%s5805 + $0xc0] sm:$0xff]
        %v8094 = vld [vmem:[%s5805 + $0xc8] sm:$0xff]
        %v8095 = vld [vmem:[%s5805 + $0xd0] sm:$0xff]
        %v8096 = vld [vmem:[%s5805 + $0xd8] sm:$0xff]
        %v8097 = vld [vmem:[%s5805 + $0xe0] sm:$0xff]
        %v8098 = vld [vmem:[%s5805 + $0xe8] sm:$0xff]
        %v8099 = vld [vmem:[%s5805 + $0xf0] sm:$0xff]
        %v8100 = vld [vmem:[%s5805 + $0xf8] sm:$0xff]
        %v8101 = vld [vmem:[%s5805 + $0x100] sm:$0xff]
        %v8102 = vld [vmem:[%s5805 + $0x108] sm:$0xff]
        %v8103 = vld [vmem:[%s5805 + $0x110] sm:$0xff]
        %v8104 = vld [vmem:[%s5805 + $0x118] sm:$0xff]
        %v8105 = vsel %vm475, %v8069, 0.0
        %v8106 = vsel %vm475, %v8070, 0.0
        %v8107 = vadd.f32 %v8105, %v8106
        %v8108 = vsel %vm475, %v8071, 0.0
        %v8109 = vadd.f32 %v8107, %v8108
        %v8110 = vsel %vm475, %v8072, 0.0
        %v8111 = vadd.f32 %v8109, %v8110
        %v8112 = vsel %vm475, %v8073, 0.0
        %v8113 = vadd.f32 %v8111, %v8112
        %v8114 = vsel %vm475, %v8074, 0.0
        %v8115 = vadd.f32 %v8113, %v8114
        %v8116 = vsel %vm475, %v8075, 0.0
        %v8117 = vadd.f32 %v8115, %v8116
        %v8118 = vsel %vm475, %v8076, 0.0
        %v8119 = vadd.f32 %v8117, %v8118
        %v8120 = vsel %vm475, %v8077, 0.0
        %v8121 = vadd.f32 %v8119, %v8120
        %v8122 = vsel %vm475, %v8078, 0.0
        %v8123 = vadd.f32 %v8121, %v8122
        %v8124 = vsel %vm475, %v8079, 0.0
        %v8125 = vadd.f32 %v8123, %v8124
        %v8126 = vsel %vm475, %v8080, 0.0
        %v8127 = vadd.f32 %v8125, %v8126
        %v8128 = vsel %vm475, %v8081, 0.0
        %v8129 = vadd.f32 %v8127, %v8128
        %v8130 = vsel %vm475, %v8082, 0.0
        %v8131 = vadd.f32 %v8129, %v8130
        %v8132 = vsel %vm475, %v8083, 0.0
        %v8133 = vadd.f32 %v8131, %v8132
        %v8134 = vsel %vm475, %v8084, 0.0
        %v8135 = vadd.f32 %v8133, %v8134
        %v8136 = vsel %vm475, %v8085, 0.0
        %v8137 = vadd.f32 %v8135, %v8136
        %v8138 = vsel %vm475, %v8086, 0.0
        %v8139 = vadd.f32 %v8137, %v8138
        %v8140 = vsel %vm475, %v8087, 0.0
        %v8141 = vadd.f32 %v8139, %v8140
        %v8142 = vsel %vm475, %v8088, 0.0
        %v8143 = vadd.f32 %v8141, %v8142
        %v8144 = vsel %vm475, %v8089, 0.0
        %v8145 = vadd.f32 %v8143, %v8144
        %v8146 = vsel %vm475, %v8090, 0.0
        %v8147 = vadd.f32 %v8145, %v8146
        %v8148 = vsel %vm475, %v8091, 0.0
        %v8149 = vadd.f32 %v8147, %v8148
        %v8150 = vsel %vm475, %v8092, 0.0
        %v8151 = vadd.f32 %v8149, %v8150
        %v8152 = vsel %vm475, %v8093, 0.0
        %v8153 = vadd.f32 %v8151, %v8152
        %v8154 = vsel %vm475, %v8094, 0.0
        %v8155 = vadd.f32 %v8153, %v8154
        %v8156 = vsel %vm475, %v8095, 0.0
        %v8157 = vadd.f32 %v8155, %v8156
        %v8158 = vsel %vm475, %v8096, 0.0
        %v8159 = vadd.f32 %v8157, %v8158
        %v8160 = vsel %vm475, %v8097, 0.0
        %v8161 = vadd.f32 %v8159, %v8160
        %v8162 = vsel %vm475, %v8098, 0.0
        %v8163 = vadd.f32 %v8161, %v8162
        %v8164 = vsel %vm475, %v8099, 0.0
        %v8165 = vadd.f32 %v8163, %v8164
        %v8166 = vsel %vm475, %v8100, 0.0
        %v8167 = vadd.f32 %v8165, %v8166
        %v8168 = vsel %vm475, %v8101, 0.0
        %v8169 = vadd.f32 %v8167, %v8168
        %v8170 = vsel %vm475, %v8102, 0.0
        %v8171 = vadd.f32 %v8169, %v8170
        %v8172 = vsel %vm475, %v8103, 0.0
        %v8173 = vadd.f32 %v8171, %v8172
        %v8174 = vsel %vm475, %v8104, 0.0
        %v8175 = vadd.f32 %v8173, %v8174
        %v8176 = vrot.slane %v8175, 4
        %v8177 = vadd.f32 %v8175, %v8176
        %v8178 = vrot.slane %v8177, 2
        %v8179 = vadd.f32 %v8177, %v8178
        %v8180 = vrot.slane %v8179, 1
        %v8181 = vadd.f32 %v8179, %v8180
        %v8182 = vadd.f32 %v7954, %v8181
        %v8183 = vmul.f32 %v8069, %v8069
        %v8184 = vmul.f32 %v8070, %v8070
        %v8185 = vmul.f32 %v8071, %v8071
        %v8186 = vmul.f32 %v8072, %v8072
        %v8187 = vmul.f32 %v8073, %v8073
        %v8188 = vmul.f32 %v8074, %v8074
        %v8189 = vmul.f32 %v8075, %v8075
        %v8190 = vmul.f32 %v8076, %v8076
        %v8191 = vmul.f32 %v8077, %v8077
        %v8192 = vmul.f32 %v8078, %v8078
        %v8193 = vmul.f32 %v8079, %v8079
        %v8194 = vmul.f32 %v8080, %v8080
        %v8195 = vmul.f32 %v8081, %v8081
        %v8196 = vmul.f32 %v8082, %v8082
        %v8197 = vmul.f32 %v8083, %v8083
        %v8198 = vmul.f32 %v8084, %v8084
        %v8199 = vmul.f32 %v8085, %v8085
        %v8200 = vmul.f32 %v8086, %v8086
        %v8201 = vmul.f32 %v8087, %v8087
        %v8202 = vmul.f32 %v8088, %v8088
        %v8203 = vmul.f32 %v8089, %v8089
        %v8204 = vmul.f32 %v8090, %v8090
        %v8205 = vmul.f32 %v8091, %v8091
        %v8206 = vmul.f32 %v8092, %v8092
        %v8207 = vmul.f32 %v8093, %v8093
        %v8208 = vmul.f32 %v8094, %v8094
        %v8209 = vmul.f32 %v8095, %v8095
        %v8210 = vmul.f32 %v8096, %v8096
        %v8211 = vmul.f32 %v8097, %v8097
        %v8212 = vmul.f32 %v8098, %v8098
        %v8213 = vmul.f32 %v8099, %v8099
        %v8214 = vmul.f32 %v8100, %v8100
        %v8215 = vmul.f32 %v8101, %v8101
        %v8216 = vmul.f32 %v8102, %v8102
        %v8217 = vmul.f32 %v8103, %v8103
        %v8218 = vmul.f32 %v8104, %v8104
        %v8219 = vsel %vm475, %v8183, 0.0
        %v8220 = vsel %vm475, %v8184, 0.0
        %v8221 = vadd.f32 %v8219, %v8220
        %v8222 = vsel %vm475, %v8185, 0.0
        %v8223 = vadd.f32 %v8221, %v8222
        %v8224 = vsel %vm475, %v8186, 0.0
        %v8225 = vadd.f32 %v8223, %v8224
        %v8226 = vsel %vm475, %v8187, 0.0
        %v8227 = vadd.f32 %v8225, %v8226
        %v8228 = vsel %vm475, %v8188, 0.0
        %v8229 = vadd.f32 %v8227, %v8228
        %v8230 = vsel %vm475, %v8189, 0.0
        %v8231 = vadd.f32 %v8229, %v8230
        %v8232 = vsel %vm475, %v8190, 0.0
        %v8233 = vadd.f32 %v8231, %v8232
        %v8234 = vsel %vm475, %v8191, 0.0
        %v8235 = vadd.f32 %v8233, %v8234
        %v8236 = vsel %vm475, %v8192, 0.0
        %v8237 = vadd.f32 %v8235, %v8236
        %v8238 = vsel %vm475, %v8193, 0.0
        %v8239 = vadd.f32 %v8237, %v8238
        %v8240 = vsel %vm475, %v8194, 0.0
        %v8241 = vadd.f32 %v8239, %v8240
        %v8242 = vsel %vm475, %v8195, 0.0
        %v8243 = vadd.f32 %v8241, %v8242
        %v8244 = vsel %vm475, %v8196, 0.0
        %v8245 = vadd.f32 %v8243, %v8244
        %v8246 = vsel %vm475, %v8197, 0.0
        %v8247 = vadd.f32 %v8245, %v8246
        %v8248 = vsel %vm475, %v8198, 0.0
        %v8249 = vadd.f32 %v8247, %v8248
        %v8250 = vsel %vm475, %v8199, 0.0
        %v8251 = vadd.f32 %v8249, %v8250
        %v8252 = vsel %vm475, %v8200, 0.0
        %v8253 = vadd.f32 %v8251, %v8252
        %v8254 = vsel %vm475, %v8201, 0.0
        %v8255 = vadd.f32 %v8253, %v8254
        %v8256 = vsel %vm475, %v8202, 0.0
        %v8257 = vadd.f32 %v8255, %v8256
        %v8258 = vsel %vm475, %v8203, 0.0
        %v8259 = vadd.f32 %v8257, %v8258
        %v8260 = vsel %vm475, %v8204, 0.0
        %v8261 = vadd.f32 %v8259, %v8260
        %v8262 = vsel %vm475, %v8205, 0.0
        %v8263 = vadd.f32 %v8261, %v8262
        %v8264 = vsel %vm475, %v8206, 0.0
        %v8265 = vadd.f32 %v8263, %v8264
        %v8266 = vsel %vm475, %v8207, 0.0
        %v8267 = vadd.f32 %v8265, %v8266
        %v8268 = vsel %vm475, %v8208, 0.0
        %v8269 = vadd.f32 %v8267, %v8268
        %v8270 = vsel %vm475, %v8209, 0.0
        %v8271 = vadd.f32 %v8269, %v8270
        %v8272 = vsel %vm475, %v8210, 0.0
        %v8273 = vadd.f32 %v8271, %v8272
        %v8274 = vsel %vm475, %v8211, 0.0
        %v8275 = vadd.f32 %v8273, %v8274
        %v8276 = vsel %vm475, %v8212, 0.0
        %v8277 = vadd.f32 %v8275, %v8276
        %v8278 = vsel %vm475, %v8213, 0.0
        %v8279 = vadd.f32 %v8277, %v8278
        %v8280 = vsel %vm475, %v8214, 0.0
        %v8281 = vadd.f32 %v8279, %v8280
        %v8282 = vsel %vm475, %v8215, 0.0
        %v8283 = vadd.f32 %v8281, %v8282
        %v8284 = vsel %vm475, %v8216, 0.0
        %v8285 = vadd.f32 %v8283, %v8284
        %v8286 = vsel %vm475, %v8217, 0.0
        %v8287 = vadd.f32 %v8285, %v8286
        %v8288 = vsel %vm475, %v8218, 0.0
        %v8289 = vadd.f32 %v8287, %v8288
        %v8290 = vrot.slane %v8289, 4
        %v8291 = vadd.f32 %v8289, %v8290
        %v8292 = vrot.slane %v8291, 2
        %v8293 = vadd.f32 %v8291, %v8292
        %v8294 = vrot.slane %v8293, 1
        %v8295 = vadd.f32 %v8293, %v8294
        %v8296 = vadd.f32 %v8068, %v8295
        %v8297 = vld [vmem:[%s7576] sm:$0xff]
        %v8298 = vld [vmem:[%s7576 + $0x8] sm:$0xff]
        %v8299 = vld [vmem:[%s7576 + $0x10] sm:$0xff]
        %v8300 = vld [vmem:[%s7576 + $0x18] sm:$0xff]
        %v8301 = vld [vmem:[%s7576 + $0x20] sm:$0xff]
        %v8302 = vld [vmem:[%s7576 + $0x28] sm:$0xff]
        %v8303 = vld [vmem:[%s7576 + $0x30] sm:$0xff]
        %v8304 = vld [vmem:[%s7576 + $0x38] sm:$0xff]
        %v8305 = vld [vmem:[%s7576 + $0x40] sm:$0xff]
        %v8306 = vld [vmem:[%s7576 + $0x48] sm:$0xff]
        %v8307 = vld [vmem:[%s7576 + $0x50] sm:$0xff]
        %v8308 = vld [vmem:[%s7576 + $0x58] sm:$0xff]
        %v8309 = vld [vmem:[%s7576 + $0x60] sm:$0xff]
        %v8310 = vld [vmem:[%s7576 + $0x68] sm:$0xff]
        %v8311 = vld [vmem:[%s7576 + $0x70] sm:$0xff]
        %v8312 = vld [vmem:[%s7576 + $0x78] sm:$0xff]
        %v8313 = vld [vmem:[%s7576 + $0x80] sm:$0xff]
        %v8314 = vld [vmem:[%s7576 + $0x88] sm:$0xff]
        %v8315 = vld [vmem:[%s7576 + $0x90] sm:$0xff]
        %v8316 = vld [vmem:[%s7576 + $0x98] sm:$0xff]
        %v8317 = vld [vmem:[%s7576 + $0xa0] sm:$0xff]
        %v8318 = vld [vmem:[%s7576 + $0xa8] sm:$0xff]
        %v8319 = vld [vmem:[%s7576 + $0xb0] sm:$0xff]
        %v8320 = vld [vmem:[%s7576 + $0xb8] sm:$0xff]
        %v8321 = vld [vmem:[%s7576 + $0xc0] sm:$0xff]
        %v8322 = vld [vmem:[%s7576 + $0xc8] sm:$0xff]
        %v8323 = vld [vmem:[%s7576 + $0xd0] sm:$0xff]
        %v8324 = vld [vmem:[%s7576 + $0xd8] sm:$0xff]
        %v8325 = vld [vmem:[%s7576 + $0xe0] sm:$0xff]
        %v8326 = vld [vmem:[%s7576 + $0xe8] sm:$0xff]
        %v8327 = vld [vmem:[%s7576 + $0xf0] sm:$0xff]
        %v8328 = vld [vmem:[%s7576 + $0xf8] sm:$0xff]
        %v8329 = vld [vmem:[%s7576 + $0x100] sm:$0xff]
        %v8330 = vld [vmem:[%s7576 + $0x108] sm:$0xff]
        %v8331 = vld [vmem:[%s7576 + $0x110] sm:$0xff]
        %v8332 = vld [vmem:[%s7576 + $0x118] sm:$0xff]
        %v8333 = vsel %vm475, %v8297, 0.0
        %v8334 = vsel %vm475, %v8298, 0.0
        %v8335 = vadd.f32 %v8333, %v8334
        %v8336 = vsel %vm475, %v8299, 0.0
        %v8337 = vadd.f32 %v8335, %v8336
        %v8338 = vsel %vm475, %v8300, 0.0
        %v8339 = vadd.f32 %v8337, %v8338
        %v8340 = vsel %vm475, %v8301, 0.0
        %v8341 = vadd.f32 %v8339, %v8340
        %v8342 = vsel %vm475, %v8302, 0.0
        %v8343 = vadd.f32 %v8341, %v8342
        %v8344 = vsel %vm475, %v8303, 0.0
        %v8345 = vadd.f32 %v8343, %v8344
        %v8346 = vsel %vm475, %v8304, 0.0
        %v8347 = vadd.f32 %v8345, %v8346
        %v8348 = vsel %vm475, %v8305, 0.0
        %v8349 = vadd.f32 %v8347, %v8348
        %v8350 = vsel %vm475, %v8306, 0.0
        %v8351 = vadd.f32 %v8349, %v8350
        %v8352 = vsel %vm475, %v8307, 0.0
        %v8353 = vadd.f32 %v8351, %v8352
        %v8354 = vsel %vm475, %v8308, 0.0
        %v8355 = vadd.f32 %v8353, %v8354
        %v8356 = vsel %vm475, %v8309, 0.0
        %v8357 = vadd.f32 %v8355, %v8356
        %v8358 = vsel %vm475, %v8310, 0.0
        %v8359 = vadd.f32 %v8357, %v8358
        %v8360 = vsel %vm475, %v8311, 0.0
        %v8361 = vadd.f32 %v8359, %v8360
        %v8362 = vsel %vm475, %v8312, 0.0
        %v8363 = vadd.f32 %v8361, %v8362
        %v8364 = vsel %vm475, %v8313, 0.0
        %v8365 = vadd.f32 %v8363, %v8364
        %v8366 = vsel %vm475, %v8314, 0.0
        %v8367 = vadd.f32 %v8365, %v8366
        %v8368 = vsel %vm475, %v8315, 0.0
        %v8369 = vadd.f32 %v8367, %v8368
        %v8370 = vsel %vm475, %v8316, 0.0
        %v8371 = vadd.f32 %v8369, %v8370
        %v8372 = vsel %vm475, %v8317, 0.0
        %v8373 = vadd.f32 %v8371, %v8372
        %v8374 = vsel %vm475, %v8318, 0.0
        %v8375 = vadd.f32 %v8373, %v8374
        %v8376 = vsel %vm475, %v8319, 0.0
        %v8377 = vadd.f32 %v8375, %v8376
        %v8378 = vsel %vm475, %v8320, 0.0
        %v8379 = vadd.f32 %v8377, %v8378
        %v8380 = vsel %vm475, %v8321, 0.0
        %v8381 = vadd.f32 %v8379, %v8380
        %v8382 = vsel %vm475, %v8322, 0.0
        %v8383 = vadd.f32 %v8381, %v8382
        %v8384 = vsel %vm475, %v8323, 0.0
        %v8385 = vadd.f32 %v8383, %v8384
        %v8386 = vsel %vm475, %v8324, 0.0
        %v8387 = vadd.f32 %v8385, %v8386
        %v8388 = vsel %vm475, %v8325, 0.0
        %v8389 = vadd.f32 %v8387, %v8388
        %v8390 = vsel %vm475, %v8326, 0.0
        %v8391 = vadd.f32 %v8389, %v8390
        %v8392 = vsel %vm475, %v8327, 0.0
        %v8393 = vadd.f32 %v8391, %v8392
        %v8394 = vsel %vm475, %v8328, 0.0
        %v8395 = vadd.f32 %v8393, %v8394
        %v8396 = vsel %vm475, %v8329, 0.0
        %v8397 = vadd.f32 %v8395, %v8396
        %v8398 = vsel %vm475, %v8330, 0.0
        %v8399 = vadd.f32 %v8397, %v8398
        %v8400 = vsel %vm475, %v8331, 0.0
        %v8401 = vadd.f32 %v8399, %v8400
        %v8402 = vsel %vm475, %v8332, 0.0
        %v8403 = vadd.f32 %v8401, %v8402
        %v8404 = vrot.slane %v8403, 4
        %v8405 = vadd.f32 %v8403, %v8404
        %v8406 = vrot.slane %v8405, 2
        %v8407 = vadd.f32 %v8405, %v8406
        %v8408 = vrot.slane %v8407, 1
        %v8409 = vadd.f32 %v8407, %v8408
        %v8410 = vadd.f32 %v8182, %v8409
        %v8411 = vmul.f32 %v8297, %v8297
        %v8412 = vmul.f32 %v8298, %v8298
        %v8413 = vmul.f32 %v8299, %v8299
        %v8414 = vmul.f32 %v8300, %v8300
        %v8415 = vmul.f32 %v8301, %v8301
        %v8416 = vmul.f32 %v8302, %v8302
        %v8417 = vmul.f32 %v8303, %v8303
        %v8418 = vmul.f32 %v8304, %v8304
        %v8419 = vmul.f32 %v8305, %v8305
        %v8420 = vmul.f32 %v8306, %v8306
        %v8421 = vmul.f32 %v8307, %v8307
        %v8422 = vmul.f32 %v8308, %v8308
        %v8423 = vmul.f32 %v8309, %v8309
        %v8424 = vmul.f32 %v8310, %v8310
        %v8425 = vmul.f32 %v8311, %v8311
        %v8426 = vmul.f32 %v8312, %v8312
        %v8427 = vmul.f32 %v8313, %v8313
        %v8428 = vmul.f32 %v8314, %v8314
        %v8429 = vmul.f32 %v8315, %v8315
        %v8430 = vmul.f32 %v8316, %v8316
        %v8431 = vmul.f32 %v8317, %v8317
        %v8432 = vmul.f32 %v8318, %v8318
        %v8433 = vmul.f32 %v8319, %v8319
        %v8434 = vmul.f32 %v8320, %v8320
        %v8435 = vmul.f32 %v8321, %v8321
        %v8436 = vmul.f32 %v8322, %v8322
        %v8437 = vmul.f32 %v8323, %v8323
        %v8438 = vmul.f32 %v8324, %v8324
        %v8439 = vmul.f32 %v8325, %v8325
        %v8440 = vmul.f32 %v8326, %v8326
        %v8441 = vmul.f32 %v8327, %v8327
        %v8442 = vmul.f32 %v8328, %v8328
        %v8443 = vmul.f32 %v8329, %v8329
        %v8444 = vmul.f32 %v8330, %v8330
        %v8445 = vmul.f32 %v8331, %v8331
        %v8446 = vmul.f32 %v8332, %v8332
        %v8447 = vsel %vm475, %v8411, 0.0
        %v8448 = vsel %vm475, %v8412, 0.0
        %v8449 = vadd.f32 %v8447, %v8448
        %v8450 = vsel %vm475, %v8413, 0.0
        %v8451 = vadd.f32 %v8449, %v8450
        %v8452 = vsel %vm475, %v8414, 0.0
        %v8453 = vadd.f32 %v8451, %v8452
        %v8454 = vsel %vm475, %v8415, 0.0
        %v8455 = vadd.f32 %v8453, %v8454
        %v8456 = vsel %vm475, %v8416, 0.0
        %v8457 = vadd.f32 %v8455, %v8456
        %v8458 = vsel %vm475, %v8417, 0.0
        %v8459 = vadd.f32 %v8457, %v8458
        %v8460 = vsel %vm475, %v8418, 0.0
        %v8461 = vadd.f32 %v8459, %v8460
        %v8462 = vsel %vm475, %v8419, 0.0
        %v8463 = vadd.f32 %v8461, %v8462
        %v8464 = vsel %vm475, %v8420, 0.0
        %v8465 = vadd.f32 %v8463, %v8464
        %v8466 = vsel %vm475, %v8421, 0.0
        %v8467 = vadd.f32 %v8465, %v8466
        %v8468 = vsel %vm475, %v8422, 0.0
        %v8469 = vadd.f32 %v8467, %v8468
        %v8470 = vsel %vm475, %v8423, 0.0
        %v8471 = vadd.f32 %v8469, %v8470
        %v8472 = vsel %vm475, %v8424, 0.0
        %v8473 = vadd.f32 %v8471, %v8472
        %v8474 = vsel %vm475, %v8425, 0.0
        %v8475 = vadd.f32 %v8473, %v8474
        %v8476 = vsel %vm475, %v8426, 0.0
        %v8477 = vadd.f32 %v8475, %v8476
        %v8478 = vsel %vm475, %v8427, 0.0
        %v8479 = vadd.f32 %v8477, %v8478
        %v8480 = vsel %vm475, %v8428, 0.0
        %v8481 = vadd.f32 %v8479, %v8480
        %v8482 = vsel %vm475, %v8429, 0.0
        %v8483 = vadd.f32 %v8481, %v8482
        %v8484 = vsel %vm475, %v8430, 0.0
        %v8485 = vadd.f32 %v8483, %v8484
        %v8486 = vsel %vm475, %v8431, 0.0
        %v8487 = vadd.f32 %v8485, %v8486
        %v8488 = vsel %vm475, %v8432, 0.0
        %v8489 = vadd.f32 %v8487, %v8488
        %v8490 = vsel %vm475, %v8433, 0.0
        %v8491 = vadd.f32 %v8489, %v8490
        %v8492 = vsel %vm475, %v8434, 0.0
        %v8493 = vadd.f32 %v8491, %v8492
        %v8494 = vsel %vm475, %v8435, 0.0
        %v8495 = vadd.f32 %v8493, %v8494
        %v8496 = vsel %vm475, %v8436, 0.0
        %v8497 = vadd.f32 %v8495, %v8496
        %v8498 = vsel %vm475, %v8437, 0.0
        %v8499 = vadd.f32 %v8497, %v8498
        %v8500 = vsel %vm475, %v8438, 0.0
        %v8501 = vadd.f32 %v8499, %v8500
        %v8502 = vsel %vm475, %v8439, 0.0
        %v8503 = vadd.f32 %v8501, %v8502
        %v8504 = vsel %vm475, %v8440, 0.0
        %v8505 = vadd.f32 %v8503, %v8504
        %v8506 = vsel %vm475, %v8441, 0.0
        %v8507 = vadd.f32 %v8505, %v8506
        %v8508 = vsel %vm475, %v8442, 0.0
        %v8509 = vadd.f32 %v8507, %v8508
        %v8510 = vsel %vm475, %v8443, 0.0
        %v8511 = vadd.f32 %v8509, %v8510
        %v8512 = vsel %vm475, %v8444, 0.0
        %v8513 = vadd.f32 %v8511, %v8512
        %v8514 = vsel %vm475, %v8445, 0.0
        %v8515 = vadd.f32 %v8513, %v8514
        %v8516 = vsel %vm475, %v8446, 0.0
        %v8517 = vadd.f32 %v8515, %v8516
        %v8518 = vrot.slane %v8517, 4
        %v8519 = vadd.f32 %v8517, %v8518
        %v8520 = vrot.slane %v8519, 2
        %v8521 = vadd.f32 %v8519, %v8520
        %v8522 = vrot.slane %v8521, 1
        %v8523 = vadd.f32 %v8521, %v8522
        %v8524 = vadd.f32 %v8296, %v8523
        %v8525 = vmul.f32 %v8410, 0.0009765625
        %v8526 = vmul.f32 %v8524, 0.0009765625
        %v8527 = vmul.f32 %v8525, %v8525
        %v8528 = vsub.f32 %v8526, %v8527
        %v8529 = vld [vmem:[#allocation4] sm:$0x1]
        %v8530 = vadd.f32 %v8528, 1e-05
        %v8531 = vrsqrt.pop %v8530
        %v8532 = vmul.f32 %v8529, %v8531
        %v8533 = vld [vmem:[#allocation6] sm:$0x1]
        %v8534 = vmul.f32 %v8525, %v8532
        %v8535 = vsub.f32 %v8533, %v8534
        %v8537 = vlaneseq
        %v8538 = vshrl.u32 %v8537, 7
        %v8539 = vsub.s32 0, %v8538
        %v8540 = vrot.slane %v8532, %v8539
        %v8542 = vmul.f32 %v7613, %v8540
        %v8543 = vmul.f32 %v7614, %v8540
        %v8544 = vmul.f32 %v7615, %v8540
        %v8545 = vmul.f32 %v7616, %v8540
        %v8546 = vmul.f32 %v7617, %v8540
        %v8547 = vmul.f32 %v7618, %v8540
        %v8548 = vmul.f32 %v7619, %v8540
        %v8549 = vmul.f32 %v7620, %v8540
        %v8550 = vmul.f32 %v7621, %v8540
        %v8551 = vmul.f32 %v7622, %v8540
        %v8552 = vmul.f32 %v7623, %v8540
        %v8553 = vmul.f32 %v7624, %v8540
        %v8554 = vmul.f32 %v7625, %v8540
        %v8555 = vmul.f32 %v7626, %v8540
        %v8556 = vmul.f32 %v7627, %v8540
        %v8557 = vmul.f32 %v7628, %v8540
        %v8558 = vmul.f32 %v7629, %v8540
        %v8559 = vmul.f32 %v7630, %v8540
        %v8560 = vmul.f32 %v7631, %v8540
        %v8561 = vmul.f32 %v7632, %v8540
        %v8562 = vmul.f32 %v7633, %v8540
        %v8563 = vmul.f32 %v7634, %v8540
        %v8564 = vmul.f32 %v7635, %v8540
        %v8565 = vmul.f32 %v7636, %v8540
        %v8566 = vmul.f32 %v7637, %v8540
        %v8567 = vmul.f32 %v7638, %v8540
        %v8568 = vmul.f32 %v7639, %v8540
        %v8569 = vmul.f32 %v7640, %v8540
        %v8570 = vmul.f32 %v7641, %v8540
        %v8571 = vmul.f32 %v7642, %v8540
        %v8572 = vmul.f32 %v7643, %v8540
        %v8573 = vmul.f32 %v7644, %v8540
        %v8574 = vmul.f32 %v7645, %v8540
        %v8575 = vmul.f32 %v7646, %v8540
        %v8576 = vmul.f32 %v7647, %v8540
        %v8577 = vmul.f32 %v7648, %v8540
        %v8579 = vlaneseq
        %v8580 = vshrl.u32 %v8579, 7
        %v8581 = vsub.s32 0, %v8580
        %v8582 = vrot.slane %v8535, %v8581
        %v8584 = vadd.f32 %v8542, %v8582
        %v8585 = vadd.f32 %v8543, %v8582
        %v8586 = vadd.f32 %v8544, %v8582
        %v8587 = vadd.f32 %v8545, %v8582
        %v8588 = vadd.f32 %v8546, %v8582
        %v8589 = vadd.f32 %v8547, %v8582
        %v8590 = vadd.f32 %v8548, %v8582
        %v8591 = vadd.f32 %v8549, %v8582
        %v8592 = vadd.f32 %v8550, %v8582
        %v8593 = vadd.f32 %v8551, %v8582
        %v8594 = vadd.f32 %v8552, %v8582
        %v8595 = vadd.f32 %v8553, %v8582
        %v8596 = vadd.f32 %v8554, %v8582
        %v8597 = vadd.f32 %v8555, %v8582
        %v8598 = vadd.f32 %v8556, %v8582
        %v8599 = vadd.f32 %v8557, %v8582
        %v8600 = vadd.f32 %v8558, %v8582
        %v8601 = vadd.f32 %v8559, %v8582
        %v8602 = vadd.f32 %v8560, %v8582
        %v8603 = vadd.f32 %v8561, %v8582
        %v8604 = vadd.f32 %v8562, %v8582
        %v8605 = vadd.f32 %v8563, %v8582
        %v8606 = vadd.f32 %v8564, %v8582
        %v8607 = vadd.f32 %v8565, %v8582
        %v8608 = vadd.f32 %v8566, %v8582
        %v8609 = vadd.f32 %v8567, %v8582
        %v8610 = vadd.f32 %v8568, %v8582
        %v8611 = vadd.f32 %v8569, %v8582
        %v8612 = vadd.f32 %v8570, %v8582
        %v8613 = vadd.f32 %v8571, %v8582
        %v8614 = vadd.f32 %v8572, %v8582
        %v8615 = vadd.f32 %v8573, %v8582
        %v8616 = vadd.f32 %v8574, %v8582
        %v8617 = vadd.f32 %v8575, %v8582
        %v8618 = vadd.f32 %v8576, %v8582
        %v8619 = vadd.f32 %v8577, %v8582
        %v8620 = vmax.f32 %v8584, 0.0
        %v8621 = vmax.f32 %v8585, 0.0
        %v8622 = vmax.f32 %v8586, 0.0
        %v8623 = vmax.f32 %v8587, 0.0
        %v8624 = vmax.f32 %v8588, 0.0
        %v8625 = vmax.f32 %v8589, 0.0
        %v8626 = vmax.f32 %v8590, 0.0
        %v8627 = vmax.f32 %v8591, 0.0
        %v8628 = vmax.f32 %v8592, 0.0
        %v8629 = vmax.f32 %v8593, 0.0
        %v8630 = vmax.f32 %v8594, 0.0
        %v8631 = vmax.f32 %v8595, 0.0
        %v8632 = vmax.f32 %v8596, 0.0
        %v8633 = vmax.f32 %v8597, 0.0
        %v8634 = vmax.f32 %v8598, 0.0
        %v8635 = vmax.f32 %v8599, 0.0
        %v8636 = vmax.f32 %v8600, 0.0
        %v8637 = vmax.f32 %v8601, 0.0
        %v8638 = vmax.f32 %v8602, 0.0
        %v8639 = vmax.f32 %v8603, 0.0
        %v8640 = vmax.f32 %v8604, 0.0
        %v8641 = vmax.f32 %v8605, 0.0
        %v8642 = vmax.f32 %v8606, 0.0
        %v8643 = vmax.f32 %v8607, 0.0
        %v8644 = vmax.f32 %v8608, 0.0
        %v8645 = vmax.f32 %v8609, 0.0
        %v8646 = vmax.f32 %v8610, 0.0
        %v8647 = vmax.f32 %v8611, 0.0
        %v8648 = vmax.f32 %v8612, 0.0
        %v8649 = vmax.f32 %v8613, 0.0
        %v8650 = vmax.f32 %v8614, 0.0
        %v8651 = vmax.f32 %v8615, 0.0
        %v8652 = vmax.f32 %v8616, 0.0
        %v8653 = vmax.f32 %v8617, 0.0
        %v8654 = vmax.f32 %v8618, 0.0
        %v8655 = vmax.f32 %v8619, 0.0
        %8656 = vst.msk [vmem:[%s264] sm:$0xff] %vm475, %v8620
        %8657 = vst.msk [vmem:[%s264 + $0x8] sm:$0xff] %vm475, %v8621
        %8658 = vst.msk [vmem:[%s264 + $0x10] sm:$0xff] %vm475, %v8622
        %8659 = vst.msk [vmem:[%s264 + $0x18] sm:$0xff] %vm475, %v8623
        %8660 = vst.msk [vmem:[%s264 + $0x20] sm:$0xff] %vm475, %v8624
        %8661 = vst.msk [vmem:[%s264 + $0x28] sm:$0xff] %vm475, %v8625
        %8662 = vst.msk [vmem:[%s264 + $0x30] sm:$0xff] %vm475, %v8626
        %8663 = vst.msk [vmem:[%s264 + $0x38] sm:$0xff] %vm475, %v8627
        %8664 = vst.msk [vmem:[%s264 + $0x40] sm:$0xff] %vm475, %v8628
        %8665 = vst.msk [vmem:[%s264 + $0x48] sm:$0xff] %vm475, %v8629
        %8666 = vst.msk [vmem:[%s264 + $0x50] sm:$0xff] %vm475, %v8630
        %8667 = vst.msk [vmem:[%s264 + $0x58] sm:$0xff] %vm475, %v8631
        %8668 = vst.msk [vmem:[%s264 + $0x60] sm:$0xff] %vm475, %v8632
        %8669 = vst.msk [vmem:[%s264 + $0x68] sm:$0xff] %vm475, %v8633
        %8670 = vst.msk [vmem:[%s264 + $0x70] sm:$0xff] %vm475, %v8634
        %8671 = vst.msk [vmem:[%s264 + $0x78] sm:$0xff] %vm475, %v8635
        %8672 = vst.msk [vmem:[%s264 + $0x80] sm:$0xff] %vm475, %v8636
        %8673 = vst.msk [vmem:[%s264 + $0x88] sm:$0xff] %vm475, %v8637
        %8674 = vst.msk [vmem:[%s264 + $0x90] sm:$0xff] %vm475, %v8638
        %8675 = vst.msk [vmem:[%s264 + $0x98] sm:$0xff] %vm475, %v8639
        %8676 = vst.msk [vmem:[%s264 + $0xa0] sm:$0xff] %vm475, %v8640
        %8677 = vst.msk [vmem:[%s264 + $0xa8] sm:$0xff] %vm475, %v8641
        %8678 = vst.msk [vmem:[%s264 + $0xb0] sm:$0xff] %vm475, %v8642
        %8679 = vst.msk [vmem:[%s264 + $0xb8] sm:$0xff] %vm475, %v8643
        %8680 = vst.msk [vmem:[%s264 + $0xc0] sm:$0xff] %vm475, %v8644
        %8681 = vst.msk [vmem:[%s264 + $0xc8] sm:$0xff] %vm475, %v8645
        %8682 = vst.msk [vmem:[%s264 + $0xd0] sm:$0xff] %vm475, %v8646
        %8683 = vst.msk [vmem:[%s264 + $0xd8] sm:$0xff] %vm475, %v8647
        %8684 = vst.msk [vmem:[%s264 + $0xe0] sm:$0xff] %vm475, %v8648
        %8685 = vst.msk [vmem:[%s264 + $0xe8] sm:$0xff] %vm475, %v8649
        %8686 = vst.msk [vmem:[%s264 + $0xf0] sm:$0xff] %vm475, %v8650
        %8687 = vst.msk [vmem:[%s264 + $0xf8] sm:$0xff] %vm475, %v8651
        %8688 = vst.msk [vmem:[%s264 + $0x100] sm:$0xff] %vm475, %v8652
        %8689 = vst.msk [vmem:[%s264 + $0x108] sm:$0xff] %vm475, %v8653
        %8690 = vst.msk [vmem:[%s264 + $0x110] sm:$0xff] %vm475, %v8654
        %8691 = vst.msk [vmem:[%s264 + $0x118] sm:$0xff] %vm475, %v8655
        %v8692 = vld [vmem:[%s4033] sm:$0xff]
        %v8693 = vld [vmem:[%s4033 + $0x8] sm:$0xff]
        %v8694 = vld [vmem:[%s4033 + $0x10] sm:$0xff]
        %v8695 = vld [vmem:[%s4033 + $0x18] sm:$0xff]
        %v8696 = vld [vmem:[%s4033 + $0x20] sm:$0xff]
        %v8697 = vld [vmem:[%s4033 + $0x28] sm:$0xff]
        %v8698 = vld [vmem:[%s4033 + $0x30] sm:$0xff]
        %v8699 = vld [vmem:[%s4033 + $0x38] sm:$0xff]
        %v8700 = vld [vmem:[%s4033 + $0x40] sm:$0xff]
        %v8701 = vld [vmem:[%s4033 + $0x48] sm:$0xff]
        %v8702 = vld [vmem:[%s4033 + $0x50] sm:$0xff]
        %v8703 = vld [vmem:[%s4033 + $0x58] sm:$0xff]
        %v8704 = vld [vmem:[%s4033 + $0x60] sm:$0xff]
        %v8705 = vld [vmem:[%s4033 + $0x68] sm:$0xff]
        %v8706 = vld [vmem:[%s4033 + $0x70] sm:$0xff]
        %v8707 = vld [vmem:[%s4033 + $0x78] sm:$0xff]
        %v8708 = vld [vmem:[%s4033 + $0x80] sm:$0xff]
        %v8709 = vld [vmem:[%s4033 + $0x88] sm:$0xff]
        %v8710 = vld [vmem:[%s4033 + $0x90] sm:$0xff]
        %v8711 = vld [vmem:[%s4033 + $0x98] sm:$0xff]
        %v8712 = vld [vmem:[%s4033 + $0xa0] sm:$0xff]
        %v8713 = vld [vmem:[%s4033 + $0xa8] sm:$0xff]
        %v8714 = vld [vmem:[%s4033 + $0xb0] sm:$0xff]
        %v8715 = vld [vmem:[%s4033 + $0xb8] sm:$0xff]
        %v8716 = vld [vmem:[%s4033 + $0xc0] sm:$0xff]
        %v8717 = vld [vmem:[%s4033 + $0xc8] sm:$0xff]
        %v8718 = vld [vmem:[%s4033 + $0xd0] sm:$0xff]
        %v8719 = vld [vmem:[%s4033 + $0xd8] sm:$0xff]
        %v8720 = vld [vmem:[%s4033 + $0xe0] sm:$0xff]
        %v8721 = vld [vmem:[%s4033 + $0xe8] sm:$0xff]
        %v8722 = vld [vmem:[%s4033 + $0xf0] sm:$0xff]
        %v8723 = vld [vmem:[%s4033 + $0xf8] sm:$0xff]
        %v8724 = vld [vmem:[%s4033 + $0x100] sm:$0xff]
        %v8725 = vld [vmem:[%s4033 + $0x108] sm:$0xff]
        %v8726 = vld [vmem:[%s4033 + $0x110] sm:$0xff]
        %v8727 = vld [vmem:[%s4033 + $0x118] sm:$0xff]
        %v8728 = vmul.f32 %v8692, %v8540
        %v8729 = vmul.f32 %v8693, %v8540
        %v8730 = vmul.f32 %v8694, %v8540
        %v8731 = vmul.f32 %v8695, %v8540
        %v8732 = vmul.f32 %v8696, %v8540
        %v8733 = vmul.f32 %v8697, %v8540
        %v8734 = vmul.f32 %v8698, %v8540
        %v8735 = vmul.f32 %v8699, %v8540
        %v8736 = vmul.f32 %v8700, %v8540
        %v8737 = vmul.f32 %v8701, %v8540
        %v8738 = vmul.f32 %v8702, %v8540
        %v8739 = vmul.f32 %v8703, %v8540
        %v8740 = vmul.f32 %v8704, %v8540
        %v8741 = vmul.f32 %v8705, %v8540
        %v8742 = vmul.f32 %v8706, %v8540
        %v8743 = vmul.f32 %v8707, %v8540
        %v8744 = vmul.f32 %v8708, %v8540
        %v8745 = vmul.f32 %v8709, %v8540
        %v8746 = vmul.f32 %v8710, %v8540
        %v8747 = vmul.f32 %v8711, %v8540
        %v8748 = vmul.f32 %v8712, %v8540
        %v8749 = vmul.f32 %v8713, %v8540
        %v8750 = vmul.f32 %v8714, %v8540
        %v8751 = vmul.f32 %v8715, %v8540
        %v8752 = vmul.f32 %v8716, %v8540
        %v8753 = vmul.f32 %v8717, %v8540
        %v8754 = vmul.f32 %v8718, %v8540
        %v8755 = vmul.f32 %v8719, %v8540
        %v8756 = vmul.f32 %v8720, %v8540
        %v8757 = vmul.f32 %v8721, %v8540
        %v8758 = vmul.f32 %v8722, %v8540
        %v8759 = vmul.f32 %v8723, %v8540
        %v8760 = vmul.f32 %v8724, %v8540
        %v8761 = vmul.f32 %v8725, %v8540
        %v8762 = vmul.f32 %v8726, %v8540
        %v8763 = vmul.f32 %v8727, %v8540
        %v8764 = vadd.f32 %v8728, %v8582
        %v8765 = vadd.f32 %v8729, %v8582
        %v8766 = vadd.f32 %v8730, %v8582
        %v8767 = vadd.f32 %v8731, %v8582
        %v8768 = vadd.f32 %v8732, %v8582
        %v8769 = vadd.f32 %v8733, %v8582
        %v8770 = vadd.f32 %v8734, %v8582
        %v8771 = vadd.f32 %v8735, %v8582
        %v8772 = vadd.f32 %v8736, %v8582
        %v8773 = vadd.f32 %v8737, %v8582
        %v8774 = vadd.f32 %v8738, %v8582
        %v8775 = vadd.f32 %v8739, %v8582
        %v8776 = vadd.f32 %v8740, %v8582
        %v8777 = vadd.f32 %v8741, %v8582
        %v8778 = vadd.f32 %v8742, %v8582
        %v8779 = vadd.f32 %v8743, %v8582
        %v8780 = vadd.f32 %v8744, %v8582
        %v8781 = vadd.f32 %v8745, %v8582
        %v8782 = vadd.f32 %v8746, %v8582
        %v8783 = vadd.f32 %v8747, %v8582
        %v8784 = vadd.f32 %v8748, %v8582
        %v8785 = vadd.f32 %v8749, %v8582
        %v8786 = vadd.f32 %v8750, %v8582
        %v8787 = vadd.f32 %v8751, %v8582
        %v8788 = vadd.f32 %v8752, %v8582
        %v8789 = vadd.f32 %v8753, %v8582
        %v8790 = vadd.f32 %v8754, %v8582
        %v8791 = vadd.f32 %v8755, %v8582
        %v8792 = vadd.f32 %v8756, %v8582
        %v8793 = vadd.f32 %v8757, %v8582
        %v8794 = vadd.f32 %v8758, %v8582
        %v8795 = vadd.f32 %v8759, %v8582
        %v8796 = vadd.f32 %v8760, %v8582
        %v8797 = vadd.f32 %v8761, %v8582
        %v8798 = vadd.f32 %v8762, %v8582
        %v8799 = vadd.f32 %v8763, %v8582
        %v8800 = vmax.f32 %v8764, 0.0
        %v8801 = vmax.f32 %v8765, 0.0
        %v8802 = vmax.f32 %v8766, 0.0
        %v8803 = vmax.f32 %v8767, 0.0
        %v8804 = vmax.f32 %v8768, 0.0
        %v8805 = vmax.f32 %v8769, 0.0
        %v8806 = vmax.f32 %v8770, 0.0
        %v8807 = vmax.f32 %v8771, 0.0
        %v8808 = vmax.f32 %v8772, 0.0
        %v8809 = vmax.f32 %v8773, 0.0
        %v8810 = vmax.f32 %v8774, 0.0
        %v8811 = vmax.f32 %v8775, 0.0
        %v8812 = vmax.f32 %v8776, 0.0
        %v8813 = vmax.f32 %v8777, 0.0
        %v8814 = vmax.f32 %v8778, 0.0
        %v8815 = vmax.f32 %v8779, 0.0
        %v8816 = vmax.f32 %v8780, 0.0
        %v8817 = vmax.f32 %v8781, 0.0
        %v8818 = vmax.f32 %v8782, 0.0
        %v8819 = vmax.f32 %v8783, 0.0
        %v8820 = vmax.f32 %v8784, 0.0
        %v8821 = vmax.f32 %v8785, 0.0
        %v8822 = vmax.f32 %v8786, 0.0
        %v8823 = vmax.f32 %v8787, 0.0
        %v8824 = vmax.f32 %v8788, 0.0
        %v8825 = vmax.f32 %v8789, 0.0
        %v8826 = vmax.f32 %v8790, 0.0
        %v8827 = vmax.f32 %v8791, 0.0
        %v8828 = vmax.f32 %v8792, 0.0
        %v8829 = vmax.f32 %v8793, 0.0
        %v8830 = vmax.f32 %v8794, 0.0
        %v8831 = vmax.f32 %v8795, 0.0
        %v8832 = vmax.f32 %v8796, 0.0
        %v8833 = vmax.f32 %v8797, 0.0
        %v8834 = vmax.f32 %v8798, 0.0
        %v8835 = vmax.f32 %v8799, 0.0
        %8836 = vst.msk [vmem:[%s4033] sm:$0xff] %vm475, %v8800
        %8837 = vst.msk [vmem:[%s4033 + $0x8] sm:$0xff] %vm475, %v8801
        %8838 = vst.msk [vmem:[%s4033 + $0x10] sm:$0xff] %vm475, %v8802
        %8839 = vst.msk [vmem:[%s4033 + $0x18] sm:$0xff] %vm475, %v8803
        %8840 = vst.msk [vmem:[%s4033 + $0x20] sm:$0xff] %vm475, %v8804
        %8841 = vst.msk [vmem:[%s4033 + $0x28] sm:$0xff] %vm475, %v8805
        %8842 = vst.msk [vmem:[%s4033 + $0x30] sm:$0xff] %vm475, %v8806
        %8843 = vst.msk [vmem:[%s4033 + $0x38] sm:$0xff] %vm475, %v8807
        %8844 = vst.msk [vmem:[%s4033 + $0x40] sm:$0xff] %vm475, %v8808
        %8845 = vst.msk [vmem:[%s4033 + $0x48] sm:$0xff] %vm475, %v8809
        %8846 = vst.msk [vmem:[%s4033 + $0x50] sm:$0xff] %vm475, %v8810
        %8847 = vst.msk [vmem:[%s4033 + $0x58] sm:$0xff] %vm475, %v8811
        %8848 = vst.msk [vmem:[%s4033 + $0x60] sm:$0xff] %vm475, %v8812
        %8849 = vst.msk [vmem:[%s4033 + $0x68] sm:$0xff] %vm475, %v8813
        %8850 = vst.msk [vmem:[%s4033 + $0x70] sm:$0xff] %vm475, %v8814
        %8851 = vst.msk [vmem:[%s4033 + $0x78] sm:$0xff] %vm475, %v8815
        %8852 = vst.msk [vmem:[%s4033 + $0x80] sm:$0xff] %vm475, %v8816
        %8853 = vst.msk [vmem:[%s4033 + $0x88] sm:$0xff] %vm475, %v8817
        %8854 = vst.msk [vmem:[%s4033 + $0x90] sm:$0xff] %vm475, %v8818
        %8855 = vst.msk [vmem:[%s4033 + $0x98] sm:$0xff] %vm475, %v8819
        %8856 = vst.msk [vmem:[%s4033 + $0xa0] sm:$0xff] %vm475, %v8820
        %8857 = vst.msk [vmem:[%s4033 + $0xa8] sm:$0xff] %vm475, %v8821
        %8858 = vst.msk [vmem:[%s4033 + $0xb0] sm:$0xff] %vm475, %v8822
        %8859 = vst.msk [vmem:[%s4033 + $0xb8] sm:$0xff] %vm475, %v8823
        %8860 = vst.msk [vmem:[%s4033 + $0xc0] sm:$0xff] %vm475, %v8824
        %8861 = vst.msk [vmem:[%s4033 + $0xc8] sm:$0xff] %vm475, %v8825
        %8862 = vst.msk [vmem:[%s4033 + $0xd0] sm:$0xff] %vm475, %v8826
        %8863 = vst.msk [vmem:[%s4033 + $0xd8] sm:$0xff] %vm475, %v8827
        %8864 = vst.msk [vmem:[%s4033 + $0xe0] sm:$0xff] %vm475, %v8828
        %8865 = vst.msk [vmem:[%s4033 + $0xe8] sm:$0xff] %vm475, %v8829
        %8866 = vst.msk [vmem:[%s4033 + $0xf0] sm:$0xff] %vm475, %v8830
        %8867 = vst.msk [vmem:[%s4033 + $0xf8] sm:$0xff] %vm475, %v8831
        %8868 = vst.msk [vmem:[%s4033 + $0x100] sm:$0xff] %vm475, %v8832
        %8869 = vst.msk [vmem:[%s4033 + $0x108] sm:$0xff] %vm475, %v8833
        %8870 = vst.msk [vmem:[%s4033 + $0x110] sm:$0xff] %vm475, %v8834
        %8871 = vst.msk [vmem:[%s4033 + $0x118] sm:$0xff] %vm475, %v8835
        %v8872 = vld [vmem:[%s5805] sm:$0xff]
        %v8873 = vld [vmem:[%s5805 + $0x8] sm:$0xff]
        %v8874 = vld [vmem:[%s5805 + $0x10] sm:$0xff]
        %v8875 = vld [vmem:[%s5805 + $0x18] sm:$0xff]
        %v8876 = vld [vmem:[%s5805 + $0x20] sm:$0xff]
        %v8877 = vld [vmem:[%s5805 + $0x28] sm:$0xff]
        %v8878 = vld [vmem:[%s5805 + $0x30] sm:$0xff]
        %v8879 = vld [vmem:[%s5805 + $0x38] sm:$0xff]
        %v8880 = vld [vmem:[%s5805 + $0x40] sm:$0xff]
        %v8881 = vld [vmem:[%s5805 + $0x48] sm:$0xff]
        %v8882 = vld [vmem:[%s5805 + $0x50] sm:$0xff]
        %v8883 = vld [vmem:[%s5805 + $0x58] sm:$0xff]
        %v8884 = vld [vmem:[%s5805 + $0x60] sm:$0xff]
        %v8885 = vld [vmem:[%s5805 + $0x68] sm:$0xff]
        %v8886 = vld [vmem:[%s5805 + $0x70] sm:$0xff]
        %v8887 = vld [vmem:[%s5805 + $0x78] sm:$0xff]
        %v8888 = vld [vmem:[%s5805 + $0x80] sm:$0xff]
        %v8889 = vld [vmem:[%s5805 + $0x88] sm:$0xff]
        %v8890 = vld [vmem:[%s5805 + $0x90] sm:$0xff]
        %v8891 = vld [vmem:[%s5805 + $0x98] sm:$0xff]
        %v8892 = vld [vmem:[%s5805 + $0xa0] sm:$0xff]
        %v8893 = vld [vmem:[%s5805 + $0xa8] sm:$0xff]
        %v8894 = vld [vmem:[%s5805 + $0xb0] sm:$0xff]
        %v8895 = vld [vmem:[%s5805 + $0xb8] sm:$0xff]
        %v8896 = vld [vmem:[%s5805 + $0xc0] sm:$0xff]
        %v8897 = vld [vmem:[%s5805 + $0xc8] sm:$0xff]
        %v8898 = vld [vmem:[%s5805 + $0xd0] sm:$0xff]
        %v8899 = vld [vmem:[%s5805 + $0xd8] sm:$0xff]
        %v8900 = vld [vmem:[%s5805 + $0xe0] sm:$0xff]
        %v8901 = vld [vmem:[%s5805 + $0xe8] sm:$0xff]
        %v8902 = vld [vmem:[%s5805 + $0xf0] sm:$0xff]
        %v8903 = vld [vmem:[%s5805 + $0xf8] sm:$0xff]
        %v8904 = vld [vmem:[%s5805 + $0x100] sm:$0xff]
        %v8905 = vld [vmem:[%s5805 + $0x108] sm:$0xff]
        %v8906 = vld [vmem:[%s5805 + $0x110] sm:$0xff]
        %v8907 = vld [vmem:[%s5805 + $0x118] sm:$0xff]
        %v8908 = vmul.f32 %v8872, %v8540
        %v8909 = vmul.f32 %v8873, %v8540
        %v8910 = vmul.f32 %v8874, %v8540
        %v8911 = vmul.f32 %v8875, %v8540
        %v8912 = vmul.f32 %v8876, %v8540
        %v8913 = vmul.f32 %v8877, %v8540
        %v8914 = vmul.f32 %v8878, %v8540
        %v8915 = vmul.f32 %v8879, %v8540
        %v8916 = vmul.f32 %v8880, %v8540
        %v8917 = vmul.f32 %v8881, %v8540
        %v8918 = vmul.f32 %v8882, %v8540
        %v8919 = vmul.f32 %v8883, %v8540
        %v8920 = vmul.f32 %v8884, %v8540
        %v8921 = vmul.f32 %v8885, %v8540
        %v8922 = vmul.f32 %v8886, %v8540
        %v8923 = vmul.f32 %v8887, %v8540
        %v8924 = vmul.f32 %v8888, %v8540
        %v8925 = vmul.f32 %v8889, %v8540
        %v8926 = vmul.f32 %v8890, %v8540
        %v8927 = vmul.f32 %v8891, %v8540
        %v8928 = vmul.f32 %v8892, %v8540
        %v8929 = vmul.f32 %v8893, %v8540
        %v8930 = vmul.f32 %v8894, %v8540
        %v8931 = vmul.f32 %v8895, %v8540
        %v8932 = vmul.f32 %v8896, %v8540
        %v8933 = vmul.f32 %v8897, %v8540
        %v8934 = vmul.f32 %v8898, %v8540
        %v8935 = vmul.f32 %v8899, %v8540
        %v8936 = vmul.f32 %v8900, %v8540
        %v8937 = vmul.f32 %v8901, %v8540
        %v8938 = vmul.f32 %v8902, %v8540
        %v8939 = vmul.f32 %v8903, %v8540
        %v8940 = vmul.f32 %v8904, %v8540
        %v8941 = vmul.f32 %v8905, %v8540
        %v8942 = vmul.f32 %v8906, %v8540
        %v8943 = vmul.f32 %v8907, %v8540
        %v8944 = vadd.f32 %v8908, %v8582
        %v8945 = vadd.f32 %v8909, %v8582
        %v8946 = vadd.f32 %v8910, %v8582
        %v8947 = vadd.f32 %v8911, %v8582
        %v8948 = vadd.f32 %v8912, %v8582
        %v8949 = vadd.f32 %v8913, %v8582
        %v8950 = vadd.f32 %v8914, %v8582
        %v8951 = vadd.f32 %v8915, %v8582
        %v8952 = vadd.f32 %v8916, %v8582
        %v8953 = vadd.f32 %v8917, %v8582
        %v8954 = vadd.f32 %v8918, %v8582
        %v8955 = vadd.f32 %v8919, %v8582
        %v8956 = vadd.f32 %v8920, %v8582
        %v8957 = vadd.f32 %v8921, %v8582
        %v8958 = vadd.f32 %v8922, %v8582
        %v8959 = vadd.f32 %v8923, %v8582
        %v8960 = vadd.f32 %v8924, %v8582
        %v8961 = vadd.f32 %v8925, %v8582
        %v8962 = vadd.f32 %v8926, %v8582
        %v8963 = vadd.f32 %v8927, %v8582
        %v8964 = vadd.f32 %v8928, %v8582
        %v8965 = vadd.f32 %v8929, %v8582
        %v8966 = vadd.f32 %v8930, %v8582
        %v8967 = vadd.f32 %v8931, %v8582
        %v8968 = vadd.f32 %v8932, %v8582
        %v8969 = vadd.f32 %v8933, %v8582
        %v8970 = vadd.f32 %v8934, %v8582
        %v8971 = vadd.f32 %v8935, %v8582
        %v8972 = vadd.f32 %v8936, %v8582
        %v8973 = vadd.f32 %v8937, %v8582
        %v8974 = vadd.f32 %v8938, %v8582
        %v8975 = vadd.f32 %v8939, %v8582
        %v8976 = vadd.f32 %v8940, %v8582
        %v8977 = vadd.f32 %v8941, %v8582
        %v8978 = vadd.f32 %v8942, %v8582
        %v8979 = vadd.f32 %v8943, %v8582
        %v8980 = vmax.f32 %v8944, 0.0
        %v8981 = vmax.f32 %v8945, 0.0
        %v8982 = vmax.f32 %v8946, 0.0
        %v8983 = vmax.f32 %v8947, 0.0
        %v8984 = vmax.f32 %v8948, 0.0
        %v8985 = vmax.f32 %v8949, 0.0
        %v8986 = vmax.f32 %v8950, 0.0
        %v8987 = vmax.f32 %v8951, 0.0
        %v8988 = vmax.f32 %v8952, 0.0
        %v8989 = vmax.f32 %v8953, 0.0
        %v8990 = vmax.f32 %v8954, 0.0
        %v8991 = vmax.f32 %v8955, 0.0
        %v8992 = vmax.f32 %v8956, 0.0
        %v8993 = vmax.f32 %v8957, 0.0
        %v8994 = vmax.f32 %v8958, 0.0
        %v8995 = vmax.f32 %v8959, 0.0
        %v8996 = vmax.f32 %v8960, 0.0
        %v8997 = vmax.f32 %v8961, 0.0
        %v8998 = vmax.f32 %v8962, 0.0
        %v8999 = vmax.f32 %v8963, 0.0
        %v9000 = vmax.f32 %v8964, 0.0
        %v9001 = vmax.f32 %v8965, 0.0
        %v9002 = vmax.f32 %v8966, 0.0
        %v9003 = vmax.f32 %v8967, 0.0
        %v9004 = vmax.f32 %v8968, 0.0
        %v9005 = vmax.f32 %v8969, 0.0
        %v9006 = vmax.f32 %v8970, 0.0
        %v9007 = vmax.f32 %v8971, 0.0
        %v9008 = vmax.f32 %v8972, 0.0
        %v9009 = vmax.f32 %v8973, 0.0
        %v9010 = vmax.f32 %v8974, 0.0
        %v9011 = vmax.f32 %v8975, 0.0
        %v9012 = vmax.f32 %v8976, 0.0
        %v9013 = vmax.f32 %v8977, 0.0
        %v9014 = vmax.f32 %v8978, 0.0
        %v9015 = vmax.f32 %v8979, 0.0
        %9016 = vst.msk [vmem:[%s5805] sm:$0xff] %vm475, %v8980
        %9017 = vst.msk [vmem:[%s5805 + $0x8] sm:$0xff] %vm475, %v8981
        %9018 = vst.msk [vmem:[%s5805 + $0x10] sm:$0xff] %vm475, %v8982
        %9019 = vst.msk [vmem:[%s5805 + $0x18] sm:$0xff] %vm475, %v8983
        %9020 = vst.msk [vmem:[%s5805 + $0x20] sm:$0xff] %vm475, %v8984
        %9021 = vst.msk [vmem:[%s5805 + $0x28] sm:$0xff] %vm475, %v8985
        %9022 = vst.msk [vmem:[%s5805 + $0x30] sm:$0xff] %vm475, %v8986
        %9023 = vst.msk [vmem:[%s5805 + $0x38] sm:$0xff] %vm475, %v8987
        %9024 = vst.msk [vmem:[%s5805 + $0x40] sm:$0xff] %vm475, %v8988
        %9025 = vst.msk [vmem:[%s5805 + $0x48] sm:$0xff] %vm475, %v8989
        %9026 = vst.msk [vmem:[%s5805 + $0x50] sm:$0xff] %vm475, %v8990
        %9027 = vst.msk [vmem:[%s5805 + $0x58] sm:$0xff] %vm475, %v8991
        %9028 = vst.msk [vmem:[%s5805 + $0x60] sm:$0xff] %vm475, %v8992
        %9029 = vst.msk [vmem:[%s5805 + $0x68] sm:$0xff] %vm475, %v8993
        %9030 = vst.msk [vmem:[%s5805 + $0x70] sm:$0xff] %vm475, %v8994
        %9031 = vst.msk [vmem:[%s5805 + $0x78] sm:$0xff] %vm475, %v8995
        %9032 = vst.msk [vmem:[%s5805 + $0x80] sm:$0xff] %vm475, %v8996
        %9033 = vst.msk [vmem:[%s5805 + $0x88] sm:$0xff] %vm475, %v8997
        %9034 = vst.msk [vmem:[%s5805 + $0x90] sm:$0xff] %vm475, %v8998
        %9035 = vst.msk [vmem:[%s5805 + $0x98] sm:$0xff] %vm475, %v8999
        %9036 = vst.msk [vmem:[%s5805 + $0xa0] sm:$0xff] %vm475, %v9000
        %9037 = vst.msk [vmem:[%s5805 + $0xa8] sm:$0xff] %vm475, %v9001
        %9038 = vst.msk [vmem:[%s5805 + $0xb0] sm:$0xff] %vm475, %v9002
        %9039 = vst.msk [vmem:[%s5805 + $0xb8] sm:$0xff] %vm475, %v9003
        %9040 = vst.msk [vmem:[%s5805 + $0xc0] sm:$0xff] %vm475, %v9004
        %9041 = vst.msk [vmem:[%s5805 + $0xc8] sm:$0xff] %vm475, %v9005
        %9042 = vst.msk [vmem:[%s5805 + $0xd0] sm:$0xff] %vm475, %v9006
        %9043 = vst.msk [vmem:[%s5805 + $0xd8] sm:$0xff] %vm475, %v9007
        %9044 = vst.msk [vmem:[%s5805 + $0xe0] sm:$0xff] %vm475, %v9008
        %9045 = vst.msk [vmem:[%s5805 + $0xe8] sm:$0xff] %vm475, %v9009
        %9046 = vst.msk [vmem:[%s5805 + $0xf0] sm:$0xff] %vm475, %v9010
        %9047 = vst.msk [vmem:[%s5805 + $0xf8] sm:$0xff] %vm475, %v9011
        %9048 = vst.msk [vmem:[%s5805 + $0x100] sm:$0xff] %vm475, %v9012
        %9049 = vst.msk [vmem:[%s5805 + $0x108] sm:$0xff] %vm475, %v9013
        %9050 = vst.msk [vmem:[%s5805 + $0x110] sm:$0xff] %vm475, %v9014
        %9051 = vst.msk [vmem:[%s5805 + $0x118] sm:$0xff] %vm475, %v9015
        %v9052 = vld [vmem:[%s7576] sm:$0xff]
        %v9053 = vld [vmem:[%s7576 + $0x8] sm:$0xff]
        %v9054 = vld [vmem:[%s7576 + $0x10] sm:$0xff]
        %v9055 = vld [vmem:[%s7576 + $0x18] sm:$0xff]
        %v9056 = vld [vmem:[%s7576 + $0x20] sm:$0xff]
        %v9057 = vld [vmem:[%s7576 + $0x28] sm:$0xff]
        %v9058 = vld [vmem:[%s7576 + $0x30] sm:$0xff]
        %v9059 = vld [vmem:[%s7576 + $0x38] sm:$0xff]
        %v9060 = vld [vmem:[%s7576 + $0x40] sm:$0xff]
        %v9061 = vld [vmem:[%s7576 + $0x48] sm:$0xff]
        %v9062 = vld [vmem:[%s7576 + $0x50] sm:$0xff]
        %v9063 = vld [vmem:[%s7576 + $0x58] sm:$0xff]
        %v9064 = vld [vmem:[%s7576 + $0x60] sm:$0xff]
        %v9065 = vld [vmem:[%s7576 + $0x68] sm:$0xff]
        %v9066 = vld [vmem:[%s7576 + $0x70] sm:$0xff]
        %v9067 = vld [vmem:[%s7576 + $0x78] sm:$0xff]
        %v9068 = vld [vmem:[%s7576 + $0x80] sm:$0xff]
        %v9069 = vld [vmem:[%s7576 + $0x88] sm:$0xff]
        %v9070 = vld [vmem:[%s7576 + $0x90] sm:$0xff]
        %v9071 = vld [vmem:[%s7576 + $0x98] sm:$0xff]
        %v9072 = vld [vmem:[%s7576 + $0xa0] sm:$0xff]
        %v9073 = vld [vmem:[%s7576 + $0xa8] sm:$0xff]
        %v9074 = vld [vmem:[%s7576 + $0xb0] sm:$0xff]
        %v9075 = vld [vmem:[%s7576 + $0xb8] sm:$0xff]
        %v9076 = vld [vmem:[%s7576 + $0xc0] sm:$0xff]
        %v9077 = vld [vmem:[%s7576 + $0xc8] sm:$0xff]
        %v9078 = vld [vmem:[%s7576 + $0xd0] sm:$0xff]
        %v9079 = vld [vmem:[%s7576 + $0xd8] sm:$0xff]
        %v9080 = vld [vmem:[%s7576 + $0xe0] sm:$0xff]
        %v9081 = vld [vmem:[%s7576 + $0xe8] sm:$0xff]
        %v9082 = vld [vmem:[%s7576 + $0xf0] sm:$0xff]
        %v9083 = vld [vmem:[%s7576 + $0xf8] sm:$0xff]
        %v9084 = vld [vmem:[%s7576 + $0x100] sm:$0xff]
        %v9085 = vld [vmem:[%s7576 + $0x108] sm:$0xff]
        %v9086 = vld [vmem:[%s7576 + $0x110] sm:$0xff]
        %v9087 = vld [vmem:[%s7576 + $0x118] sm:$0xff]
        %v9088 = vmul.f32 %v9052, %v8540
        %v9089 = vmul.f32 %v9053, %v8540
        %v9090 = vmul.f32 %v9054, %v8540
        %v9091 = vmul.f32 %v9055, %v8540
        %v9092 = vmul.f32 %v9056, %v8540
        %v9093 = vmul.f32 %v9057, %v8540
        %v9094 = vmul.f32 %v9058, %v8540
        %v9095 = vmul.f32 %v9059, %v8540
        %v9096 = vmul.f32 %v9060, %v8540
        %v9097 = vmul.f32 %v9061, %v8540
        %v9098 = vmul.f32 %v9062, %v8540
        %v9099 = vmul.f32 %v9063, %v8540
        %v9100 = vmul.f32 %v9064, %v8540
        %v9101 = vmul.f32 %v9065, %v8540
        %v9102 = vmul.f32 %v9066, %v8540
        %v9103 = vmul.f32 %v9067, %v8540
        %v9104 = vmul.f32 %v9068, %v8540
        %v9105 = vmul.f32 %v9069, %v8540
        %v9106 = vmul.f32 %v9070, %v8540
        %v9107 = vmul.f32 %v9071, %v8540
        %v9108 = vmul.f32 %v9072, %v8540
        %v9109 = vmul.f32 %v9073, %v8540
        %v9110 = vmul.f32 %v9074, %v8540
        %v9111 = vmul.f32 %v9075, %v8540
        %v9112 = vmul.f32 %v9076, %v8540
        %v9113 = vmul.f32 %v9077, %v8540
        %v9114 = vmul.f32 %v9078, %v8540
        %v9115 = vmul.f32 %v9079, %v8540
        %v9116 = vmul.f32 %v9080, %v8540
        %v9117 = vmul.f32 %v9081, %v8540
        %v9118 = vmul.f32 %v9082, %v8540
        %v9119 = vmul.f32 %v9083, %v8540
        %v9120 = vmul.f32 %v9084, %v8540
        %v9121 = vmul.f32 %v9085, %v8540
        %v9122 = vmul.f32 %v9086, %v8540
        %v9123 = vmul.f32 %v9087, %v8540
        %v9124 = vadd.f32 %v9088, %v8582
        %v9125 = vadd.f32 %v9089, %v8582
        %v9126 = vadd.f32 %v9090, %v8582
        %v9127 = vadd.f32 %v9091, %v8582
        %v9128 = vadd.f32 %v9092, %v8582
        %v9129 = vadd.f32 %v9093, %v8582
        %v9130 = vadd.f32 %v9094, %v8582
        %v9131 = vadd.f32 %v9095, %v8582
        %v9132 = vadd.f32 %v9096, %v8582
        %v9133 = vadd.f32 %v9097, %v8582
        %v9134 = vadd.f32 %v9098, %v8582
        %v9135 = vadd.f32 %v9099, %v8582
        %v9136 = vadd.f32 %v9100, %v8582
        %v9137 = vadd.f32 %v9101, %v8582
        %v9138 = vadd.f32 %v9102, %v8582
        %v9139 = vadd.f32 %v9103, %v8582
        %v9140 = vadd.f32 %v9104, %v8582
        %v9141 = vadd.f32 %v9105, %v8582
        %v9142 = vadd.f32 %v9106, %v8582
        %v9143 = vadd.f32 %v9107, %v8582
        %v9144 = vadd.f32 %v9108, %v8582
        %v9145 = vadd.f32 %v9109, %v8582
        %v9146 = vadd.f32 %v9110, %v8582
        %v9147 = vadd.f32 %v9111, %v8582
        %v9148 = vadd.f32 %v9112, %v8582
        %v9149 = vadd.f32 %v9113, %v8582
        %v9150 = vadd.f32 %v9114, %v8582
        %v9151 = vadd.f32 %v9115, %v8582
        %v9152 = vadd.f32 %v9116, %v8582
        %v9153 = vadd.f32 %v9117, %v8582
        %v9154 = vadd.f32 %v9118, %v8582
        %v9155 = vadd.f32 %v9119, %v8582
        %v9156 = vadd.f32 %v9120, %v8582
        %v9157 = vadd.f32 %v9121, %v8582
        %v9158 = vadd.f32 %v9122, %v8582
        %v9159 = vadd.f32 %v9123, %v8582
        %v9160 = vmax.f32 %v9124, 0.0
        %v9161 = vmax.f32 %v9125, 0.0
        %v9162 = vmax.f32 %v9126, 0.0
        %v9163 = vmax.f32 %v9127, 0.0
        %v9164 = vmax.f32 %v9128, 0.0
        %v9165 = vmax.f32 %v9129, 0.0
        %v9166 = vmax.f32 %v9130, 0.0
        %v9167 = vmax.f32 %v9131, 0.0
        %v9168 = vmax.f32 %v9132, 0.0
        %v9169 = vmax.f32 %v9133, 0.0
        %v9170 = vmax.f32 %v9134, 0.0
        %v9171 = vmax.f32 %v9135, 0.0
        %v9172 = vmax.f32 %v9136, 0.0
        %v9173 = vmax.f32 %v9137, 0.0
        %v9174 = vmax.f32 %v9138, 0.0
        %v9175 = vmax.f32 %v9139, 0.0
        %v9176 = vmax.f32 %v9140, 0.0
        %v9177 = vmax.f32 %v9141, 0.0
        %v9178 = vmax.f32 %v9142, 0.0
        %v9179 = vmax.f32 %v9143, 0.0
        %v9180 = vmax.f32 %v9144, 0.0
        %v9181 = vmax.f32 %v9145, 0.0
        %v9182 = vmax.f32 %v9146, 0.0
        %v9183 = vmax.f32 %v9147, 0.0
        %v9184 = vmax.f32 %v9148, 0.0
        %v9185 = vmax.f32 %v9149, 0.0
        %v9186 = vmax.f32 %v9150, 0.0
        %v9187 = vmax.f32 %v9151, 0.0
        %v9188 = vmax.f32 %v9152, 0.0
        %v9189 = vmax.f32 %v9153, 0.0
        %v9190 = vmax.f32 %v9154, 0.0
        %v9191 = vmax.f32 %v9155, 0.0
        %v9192 = vmax.f32 %v9156, 0.0
        %v9193 = vmax.f32 %v9157, 0.0
        %v9194 = vmax.f32 %v9158, 0.0
        %v9195 = vmax.f32 %v9159, 0.0
        %9196 = vst.msk [vmem:[%s7576] sm:$0xff] %vm475, %v9160
        %9197 = vst.msk [vmem:[%s7576 + $0x8] sm:$0xff] %vm475, %v9161
        %9198 = vst.msk [vmem:[%s7576 + $0x10] sm:$0xff] %vm475, %v9162
        %9199 = vst.msk [vmem:[%s7576 + $0x18] sm:$0xff] %vm475, %v9163
        %9200 = vst.msk [vmem:[%s7576 + $0x20] sm:$0xff] %vm475, %v9164
        %9201 = vst.msk [vmem:[%s7576 + $0x28] sm:$0xff] %vm475, %v9165
        %9202 = vst.msk [vmem:[%s7576 + $0x30] sm:$0xff] %vm475, %v9166
        %9203 = vst.msk [vmem:[%s7576 + $0x38] sm:$0xff] %vm475, %v9167
        %9204 = vst.msk [vmem:[%s7576 + $0x40] sm:$0xff] %vm475, %v9168
        %9205 = vst.msk [vmem:[%s7576 + $0x48] sm:$0xff] %vm475, %v9169
        %9206 = vst.msk [vmem:[%s7576 + $0x50] sm:$0xff] %vm475, %v9170
        %9207 = vst.msk [vmem:[%s7576 + $0x58] sm:$0xff] %vm475, %v9171
        %9208 = vst.msk [vmem:[%s7576 + $0x60] sm:$0xff] %vm475, %v9172
        %9209 = vst.msk [vmem:[%s7576 + $0x68] sm:$0xff] %vm475, %v9173
        %9210 = vst.msk [vmem:[%s7576 + $0x70] sm:$0xff] %vm475, %v9174
        %9211 = vst.msk [vmem:[%s7576 + $0x78] sm:$0xff] %vm475, %v9175
        %9212 = vst.msk [vmem:[%s7576 + $0x80] sm:$0xff] %vm475, %v9176
        %9213 = vst.msk [vmem:[%s7576 + $0x88] sm:$0xff] %vm475, %v9177
        %9214 = vst.msk [vmem:[%s7576 + $0x90] sm:$0xff] %vm475, %v9178
        %9215 = vst.msk [vmem:[%s7576 + $0x98] sm:$0xff] %vm475, %v9179
        %9216 = vst.msk [vmem:[%s7576 + $0xa0] sm:$0xff] %vm475, %v9180
        %9217 = vst.msk [vmem:[%s7576 + $0xa8] sm:$0xff] %vm475, %v9181
        %9218 = vst.msk [vmem:[%s7576 + $0xb0] sm:$0xff] %vm475, %v9182
        %9219 = vst.msk [vmem:[%s7576 + $0xb8] sm:$0xff] %vm475, %v9183
        %9220 = vst.msk [vmem:[%s7576 + $0xc0] sm:$0xff] %vm475, %v9184
        %9221 = vst.msk [vmem:[%s7576 + $0xc8] sm:$0xff] %vm475, %v9185
        %9222 = vst.msk [vmem:[%s7576 + $0xd0] sm:$0xff] %vm475, %v9186
        %9223 = vst.msk [vmem:[%s7576 + $0xd8] sm:$0xff] %vm475, %v9187
        %9224 = vst.msk [vmem:[%s7576 + $0xe0] sm:$0xff] %vm475, %v9188
        %9225 = vst.msk [vmem:[%s7576 + $0xe8] sm:$0xff] %vm475, %v9189
        %9226 = vst.msk [vmem:[%s7576 + $0xf0] sm:$0xff] %vm475, %v9190
        %9227 = vst.msk [vmem:[%s7576 + $0xf8] sm:$0xff] %vm475, %v9191
        %9228 = vst.msk [vmem:[%s7576 + $0x100] sm:$0xff] %vm475, %v9192
        %9229 = vst.msk [vmem:[%s7576 + $0x108] sm:$0xff] %vm475, %v9193
        %9230 = vst.msk [vmem:[%s7576 + $0x110] sm:$0xff] %vm475, %v9194
        %9231 = vst.msk [vmem:[%s7576 + $0x118] sm:$0xff] %vm475, %v9195
        %p9232 = scmp.lt.s32.totalorder %s18, 1
        %s9233 = scalar_select %p9232, %s18, 1
        %s9234 = smul.addr %s9233, 144
        %s9235 = smul.addr %s9234, 8
        %s9236 = scalar_lea.vmem %s5, %s9235
        // Predicated region
        $region53: #{tpu_custom_call.1} parent=39 // pred_check
          %p9237 = pneg %p146
        $region54: #{tpu_custom_call.1} parent=39 // pred_check_branch
          %9239 = sbr.rel (%p9237) target = $region56
        $region55: #{tpu_custom_call.1} parent=39 // pred_region
          _
        $region56: #{tpu_custom_call.1} parent=39 // pred_fallthru
          _
      $region40: #{tpu_custom_call.1} parent=5 // pred_fallthru
        _
      %p9240 = scmp.le.s32.totalorder 2, %s13
      // Predicated region
      $region57: #{tpu_custom_call.1} parent=5 // pred_check
        %p9241 = pneg %p9240
      $region58: #{tpu_custom_call.1} parent=5 // pred_check_branch
        %9243 = sbr.rel (%p9241) target = $region60
      $region59: #{tpu_custom_call.1} parent=5 // pred_region
        %s9244 = ssub.s32 %s13, 2
        // Predicated region
        $region61: #{tpu_custom_call.1} parent=59 // pred_check
          %p9245 = pneg %p152
        $region62: #{tpu_custom_call.1} parent=59 // pred_check_branch
          %9247 = sbr.rel (%p9245) target = $region64
        $region63: #{tpu_custom_call.1} parent=59 // pred_region
          %p9248 = scmp.lt.s32.totalorder %s19, 1
          %s9249 = scalar_select %p9248, %s19, 1
          %s9250 = smul.addr %s9249, 144
          %s9251 = smul.addr %s9250, 8
          %s9252 = scalar_lea.vmem %s5, %s9251
        $region64: #{tpu_custom_call.1} parent=59 // pred_fallthru
          _
      $region60: #{tpu_custom_call.1} parent=5 // pred_fallthru
        _
    $region6: #{tpu_custom_call.1} parent=1 // loop_footer
      %s17 = sadd.s32 1, %s13
    $region7: #{tpu_custom_call.1} parent=1 // loop_footer_branch
      %12 = sbr.rel target = $region3
    $region8: #{tpu_custom_call.1} parent=1 // loop_exit
      _
    %9253 = vsyncpa [#allocation3], 1
    %s9254 = scalar_lea.sflag [#allocation3], 1
    %9255 = vsyncpa %s9254, 1
    %9256 = vsyncpa [#allocation5], 1

</llo_original>
